<compile_context>
chip_gen: v7x
topology: tpu7x:2x2x1
jax: 0.10.0
libtpu: 0.0.40
codegen_flags: <defaults>
</compile_context>

<pallas_src>
import jax
import jax.numpy as jnp
import numpy as np
from jax.experimental import pallas as pl
from jax.experimental.pallas import tpu as pltpu

CHANS = [3, 16, 32, 64, 128]      # conv1..conv4 in/out channels
STRIDES = [1, 2, 2, 2]
MXU_DTYPE = jnp.bfloat16          # MXU operand dtype (f32 accumulate); jnp.float32 also works


def _block_cfg(H, W):
    """Static per-block geometry (PyTorch Conv2d k=3, pad=1 output sizes)."""
    cfg, h, w = [], H, W
    for cin, cout, s in zip(CHANS[:-1], CHANS[1:], STRIDES):
        if s == 2:
            assert h % 2 == 0 and w % 2 == 0, "stride-2 blocks need even spatial dims"
        ho = (h + 2 - 3) // s + 1
        wo = (w + 2 - 3) // s + 1
        cfg.append(dict(cin=cin, cout=cout, s=s, h=h, w=w, ho=ho, wo=wo))
        h, w = ho, wo
    return cfg


def _dws_block(x, scratch, wf_ref, ssa_ref, blk, mxu_dtype):
    """One DepthWiseSeparableConv block on a single image.

    x        : (h, w, cin) f32 activation value
    scratch  : (pad, pmat) for stride 1, (pad, pad_even, pad_odd, pmat) for stride 2
    wf_ref   : (9*cin, cout) fused depthwise*pointwise weights (mxu_dtype)
    ssa_ref  : (3, cout) f32 -- rows: BN scale, BN shift, PReLU alpha
    returns  : (ho, wo, cout) f32
    """
    h, w, cin = blk["h"], blk["w"], blk["cin"]
    ho, wo, cout, s = blk["ho"], blk["wo"], blk["cout"], blk["s"]
    hp, wp = h + 2, w + 2

    if s == 1:
        pad_ref, pmat_ref = scratch
    else:
        pad_ref, pade_ref, pado_ref, pmat_ref = scratch

    # Zero-padded activation (padding=1) lives entirely in VMEM.
    pad_ref[...] = jnp.zeros((hp, wp, cin), jnp.float32)
    pad_ref[1:h + 1, 1:w + 1, :] = x

    if s == 2:
        # De-interleave padded columns once (even / odd) so that every stride-2
        # tap below becomes a contiguous static slice.
        for j in range(wp // 2):
            pade_ref[:, j:j + 1, :] = pad_ref[:, 2 * j:2 * j + 1, :]
            pado_ref[:, j:j + 1, :] = pad_ref[:, 2 * j + 1:2 * j + 2, :]

    # im2col straight into VMEM scratch: pmat[:, k*cin:(k+1)*cin] = tap_k.
    for k in range(9):
        kh, kw = divmod(k, 3)
        if s == 1:
            tap = pad_ref[kh:kh + ho, kw:kw + wo, :]                # (ho, wo, cin)
        else:
            src = pade_ref if kw % 2 == 0 else pado_ref
            c0 = kw // 2
            v = src[kh:kh + 2 * ho, c0:c0 + wo, :]                  # (2*ho, wo, cin)
            tap = v.reshape(ho, 2, wo, cin)[:, 0]                   # rows kh + 2*i
        pmat_ref[:, k * cin:(k + 1) * cin] = tap.reshape(ho * wo, cin)

    # Depthwise(3x3) (x) pointwise(1x1) fused into ONE MXU matmul, K = 9*cin.
    y = jnp.dot(pmat_ref[...].astype(mxu_dtype), wf_ref[...],
                preferred_element_type=jnp.float32)                  # (ho*wo, cout)

    # Folded BatchNorm (eval) + PReLU, f32 on the VPU.
    y = y * ssa_ref[0:1, :] + ssa_ref[1:2, :]
    y = jnp.where(y > 0.0, y, y * ssa_ref[2:3, :])
    return y.reshape(ho, wo, cout)


def _make_kernel(cfg, mxu_dtype):
    nb = len(cfg)

    def kernel(*refs):
        x_ref = refs[0]
        blk_w = refs[1:1 + 2 * nb]                  # (wf, ssa) per block
        wfc_ref = refs[1 + 2 * nb]
        bfc_ref = refs[2 + 2 * nb]
        o_ref = refs[3 + 2 * nb]
        scratch = refs[4 + 2 * nb:]

        act = x_ref[0]                              # (H, W, 3) f32, one image
        si = 0
        for i, blk in enumerate(cfg):
            ns = 2 if blk["s"] == 1 else 4
            act = _dws_block(act, scratch[si:si + ns],
                             blk_w[2 * i], blk_w[2 * i + 1], blk, mxu_dtype)
            si += ns

        # Head: AdaptiveAvgPool2d((1,1)) + Flatten + Linear as an epilogue.
        ho, wo, c = act.shape
        pooled = jnp.mean(act.reshape(ho * wo, c), axis=0, keepdims=True)   # (1, C)
        logits = jnp.dot(pooled, wfc_ref[...],
                         preferred_element_type=jnp.float32) + bfc_ref[...]
        o_ref[...] = logits.reshape(1, 1, -1).astype(o_ref.dtype)

    return kernel


def minifasnet_forward(x_nchw, blocks, w_fc, b_fc, mxu_dtype=MXU_DTYPE):
    """x_nchw: (N, 3, H, W) -> (N, num_classes) logits."""
    N, C0, H, W = x_nchw.shape
    assert C0 == CHANS[0]
    cfg = _block_cfg(H, W)
    ncls = w_fc.shape[1]

    x = jnp.transpose(x_nchw, (0, 2, 3, 1)).astype(jnp.float32)     # NCHW -> NHWC

    args = [x]
    in_specs = [pl.BlockSpec((1, H, W, C0), lambda n: (n, 0, 0, 0))]
    for p in blocks:
        cin, cout = p["pw"].shape
        # Fold depthwise into pointwise: W_fused[(k,c), d] = dw[k,c] * pw[c,d].
        wf = (p["dw"][:, :, None] * p["pw"][None, :, :]).reshape(9 * cin, cout)
        ssa = jnp.concatenate([p["scale"], p["shift"], p["alpha"]], axis=0)  # (3, cout)
        args += [wf.astype(mxu_dtype), ssa.astype(jnp.float32)]
        in_specs += [pl.BlockSpec((9 * cin, cout), lambda n: (0, 0)),
                     pl.BlockSpec((3, cout), lambda n: (0, 0))]
    args += [w_fc.astype(jnp.float32), b_fc.astype(jnp.float32)]
    in_specs += [pl.BlockSpec(w_fc.shape, lambda n: (0, 0)),
                 pl.BlockSpec(b_fc.shape, lambda n: (0, 0))]

    # VMEM scratch per block: padded activation buffer, (stride 2 only) even/odd
    # de-interleaved padded columns, and the im2col patch matrix.
    scratch_shapes = []
    for c in cfg:
        hp, wp = c["h"] + 2, c["w"] + 2
        scratch_shapes.append(pltpu.VMEM((hp, wp, c["cin"]), jnp.float32))
        if c["s"] == 2:
            scratch_shapes.append(pltpu.VMEM((hp, wp // 2, c["cin"]), jnp.float32))
            scratch_shapes.append(pltpu.VMEM((hp, wp // 2, c["cin"]), jnp.float32))
        scratch_shapes.append(pltpu.VMEM((c["ho"] * c["wo"], 9 * c["cin"]), jnp.float32))

    out = pl.pallas_call(
        _make_kernel(cfg, mxu_dtype),
        out_shape=jax.ShapeDtypeStruct((N, 1, ncls), jnp.float32),
        grid=(N,),
        in_specs=in_specs,
        out_specs=pl.BlockSpec((1, 1, ncls), lambda n: (n, 0, 0)),
        scratch_shapes=scratch_shapes,
        compiler_params=pltpu.CompilerParams(
            dimension_semantics=("parallel",)),   # batch across TensorCores (v7x)
    )(*args)
    return out.reshape(N, ncls)


# ----------------------------------------------------------------------------
# Parameter init (deterministic, synthetic) and pure-JAX reference
# ----------------------------------------------------------------------------
def init_params(key, num_classes=2):
    blocks = []
    for i in range(4):
        cin, cout = CHANS[i], CHANS[i + 1]
        key, k1, k2, k3, k4, k5, k6, k7 = jax.random.split(key, 8)
        dw = jax.random.normal(k1, (9, cin), jnp.float32) / 3.0          # 3x3 depthwise
        pw = jax.random.normal(k2, (cin, cout), jnp.float32) / np.sqrt(cin)
        gamma = 1.0 + 0.1 * jax.random.normal(k3, (1, cout), jnp.float32)
        beta = 0.1 * jax.random.normal(k4, (1, cout), jnp.float32)
        rmean = 0.1 * jax.random.normal(k5, (1, cout), jnp.float32)
        rvar = 1.0 + 0.1 * jax.random.uniform(k6, (1, cout), jnp.float32)
        scale = gamma / jnp.sqrt(rvar + 1e-5)
        shift = beta - rmean * scale
        alpha = 0.25 + 0.05 * jax.random.normal(k7, (1, cout), jnp.float32)
        blocks.append(dict(dw=dw, pw=pw, scale=scale, shift=shift, alpha=alpha))
    key, kw, kb = jax.random.split(key, 3)
    w_fc = jax.random.normal(kw, (CHANS[-1], num_classes), jnp.float32) / np.sqrt(CHANS[-1])
    b_fc = 0.1 * jax.random.normal(kb, (1, num_classes), jnp.float32)
    return blocks, w_fc, b_fc


def ref_forward(x_nchw, blocks, w_fc, b_fc):
    """Pure-JAX f32 reference matching the PyTorch forward semantics."""
    hi = jax.lax.Precision.HIGHEST
    x = jnp.transpose(x_nchw, (0, 2, 3, 1))
    for p, s in zip(blocks, STRIDES):
        cin = x.shape[-1]
        dw_k = p["dw"].reshape(3, 3, 1, cin)                      # HWIO, groups = cin
        y = jax.lax.conv_general_dilated(
            x, dw_k, (s, s), ((1, 1), (1, 1)),
            dimension_numbers=("NHWC", "HWIO", "NHWC"),
            feature_group_count=cin, precision=hi)
        y = jnp.einsum("nhwc,cd->nhwd", y, p["pw"], precision=hi)
        y = y * p["scale"][0] + p["shift"][0]
        x = jnp.where(y > 0, y, y * p["alpha"][0])
    pooled = jnp.mean(x, axis=(1, 2))
    return jnp.dot(pooled, w_fc, precision=hi) + b_fc


if __name__ == "__main__":
    key = jax.random.PRNGKey(0)
    kx, kp = jax.random.split(key)

    N, C, H, W = 2, 3, 16, 16                                     # small NCHW input
    x = jax.random.normal(kx, (N, C, H, W), jnp.float32)
    blocks, w_fc, b_fc = init_params(kp, num_classes=2)

    fwd = jax.jit(minifasnet_forward)
    out = jax.block_until_ready(fwd(x, blocks, w_fc, b_fc))

    ref = np.asarray(ref_forward(x, blocks, w_fc, b_fc))
    got = np.asarray(out)
    assert got.shape == (N, 2), got.shape
    err = float(np.max(np.abs(got - ref)))
    tol = 3e-2 * (1.0 + float(np.max(np.abs(ref))))               # bf16 MXU tolerance
    assert err < tol, f"mismatch: max abs err={err}, tol={tol}"

    print("KERNEL_OK")
</pallas_src>

<mosaic_0001>
module attributes {stable_mosaic.version = 11 : i64} {
  func.func @kernel(%arg0: i32, %arg1: memref<1x16x16x3xf32, #tpu.memory_space<vmem>>, %arg2: memref<27x16xbf16, #tpu.memory_space<vmem>>, %arg3: memref<3x16xf32, #tpu.memory_space<vmem>>, %arg4: memref<144x32xbf16, #tpu.memory_space<vmem>>, %arg5: memref<3x32xf32, #tpu.memory_space<vmem>>, %arg6: memref<288x64xbf16, #tpu.memory_space<vmem>>, %arg7: memref<3x64xf32, #tpu.memory_space<vmem>>, %arg8: memref<576x128xbf16, #tpu.memory_space<vmem>>, %arg9: memref<3x128xf32, #tpu.memory_space<vmem>>, %arg10: memref<128x2xf32, #tpu.memory_space<vmem>>, %arg11: memref<1x2xf32, #tpu.memory_space<vmem>>, %arg12: memref<1x1x2xf32, #tpu.memory_space<vmem>>, %arg13: memref<18x18x3xf32, #tpu.memory_space<vmem>>, %arg14: memref<256x27xf32, #tpu.memory_space<vmem>>, %arg15: memref<18x18x16xf32, #tpu.memory_space<vmem>>, %arg16: memref<18x9x16xf32, #tpu.memory_space<vmem>>, %arg17: memref<18x9x16xf32, #tpu.memory_space<vmem>>, %arg18: memref<64x144xf32, #tpu.memory_space<vmem>>, %arg19: memref<10x10x32xf32, #tpu.memory_space<vmem>>, %arg20: memref<10x5x32xf32, #tpu.memory_space<vmem>>, %arg21: memref<10x5x32xf32, #tpu.memory_space<vmem>>, %arg22: memref<16x288xf32, #tpu.memory_space<vmem>>, %arg23: memref<6x6x64xf32, #tpu.memory_space<vmem>>, %arg24: memref<6x3x64xf32, #tpu.memory_space<vmem>>, %arg25: memref<6x3x64xf32, #tpu.memory_space<vmem>>, %arg26: memref<4x576xf32, #tpu.memory_space<vmem>>) attributes {dimension_semantics = [#tpu.dimension_semantics<parallel>], iteration_bounds = array<i64: 2>, scalar_prefetch = 0 : i64, scratch_operands = 14 : i64, tpu.core_type = #tpu.core_type<tc>, window_params = [{transform_indices = @transform_0, window_bounds = array<i64: 1, 16, 16, 3>}, {pipeline_mode = #tpu.pipeline_mode<synchronous>, transform_indices = @transform_1, window_bounds = array<i64: 27, 16>}, {pipeline_mode = #tpu.pipeline_mode<synchronous>, transform_indices = @transform_2, window_bounds = array<i64: 3, 16>}, {pipeline_mode = #tpu.pipeline_mode<synchronous>, transform_indices = @transform_3, window_bounds = array<i64: 144, 32>}, {pipeline_mode = #tpu.pipeline_mode<synchronous>, transform_indices = @transform_4, window_bounds = array<i64: 3, 32>}, {pipeline_mode = #tpu.pipeline_mode<synchronous>, transform_indices = @transform_5, window_bounds = array<i64: 288, 64>}, {pipeline_mode = #tpu.pipeline_mode<synchronous>, transform_indices = @transform_6, window_bounds = array<i64: 3, 64>}, {pipeline_mode = #tpu.pipeline_mode<synchronous>, transform_indices = @transform_7, window_bounds = array<i64: 576, 128>}, {pipeline_mode = #tpu.pipeline_mode<synchronous>, transform_indices = @transform_8, window_bounds = array<i64: 3, 128>}, {pipeline_mode = #tpu.pipeline_mode<synchronous>, transform_indices = @transform_9, window_bounds = array<i64: 128, 2>}, {pipeline_mode = #tpu.pipeline_mode<synchronous>, transform_indices = @transform_10, window_bounds = array<i64: 1, 2>}, {transform_indices = @transform_11, window_bounds = array<i64: 1, 1, 2>}]} {
    %c0 = arith.constant 0 : index
    %c0_0 = arith.constant 0 : index
    %c0_1 = arith.constant 0 : index
    %c0_2 = arith.constant 0 : index
    %0 = vector.load %arg1[%c0, %c0_0, %c0_1, %c0_2] : memref<1x16x16x3xf32, #tpu.memory_space<vmem>>, vector<1x16x16x3xf32>
    %1 = vector.shape_cast %0 : vector<1x16x16x3xf32> to vector<16x16x3xf32>
    %cst = arith.constant 0.000000e+00 : f32
    %2 = vector.broadcast %cst : f32 to vector<18x18x3xf32>
    %c0_3 = arith.constant 0 : index
    %c0_4 = arith.constant 0 : index
    %c0_5 = arith.constant 0 : index
    %3 = vector.load %arg13[%c0_3, %c0_4, %c0_5] : memref<18x18x3xf32, #tpu.memory_space<vmem>>, vector<18x18x3xf32>
    tpu.vector_store %arg13[%c0_3, %c0_4, %c0_5], %2 {strides = array<i32>} : memref<18x18x3xf32, #tpu.memory_space<vmem>>, vector<18x18x3xf32>,
    %c1 = arith.constant 1 : index
    %c1_6 = arith.constant 1 : index
    %c0_7 = arith.constant 0 : index
    %4 = vector.load %arg13[%c1, %c1_6, %c0_7] : memref<18x18x3xf32, #tpu.memory_space<vmem>>, vector<16x16x3xf32>
    tpu.vector_store %arg13[%c1, %c1_6, %c0_7], %1 {strides = array<i32>} : memref<18x18x3xf32, #tpu.memory_space<vmem>>, vector<16x16x3xf32>,
    %c0_8 = arith.constant 0 : index
    %c0_9 = arith.constant 0 : index
    %c0_10 = arith.constant 0 : index
    %5 = vector.load %arg13[%c0_8, %c0_9, %c0_10] : memref<18x18x3xf32, #tpu.memory_space<vmem>>, vector<16x16x3xf32>
    %6 = vector.shape_cast %5 : vector<16x16x3xf32> to vector<256x3xf32>
    %c0_11 = arith.constant 0 : index
    %c0_12 = arith.constant 0 : index
    %7 = vector.load %arg14[%c0_11, %c0_12] : memref<256x27xf32, #tpu.memory_space<vmem>>, vector<256x3xf32>
    tpu.vector_store %arg14[%c0_11, %c0_12], %6 {strides = array<i32>} : memref<256x27xf32, #tpu.memory_space<vmem>>, vector<256x3xf32>,
    %c0_13 = arith.constant 0 : index
    %c1_14 = arith.constant 1 : index
    %c0_15 = arith.constant 0 : index
    %8 = vector.load %arg13[%c0_13, %c1_14, %c0_15] : memref<18x18x3xf32, #tpu.memory_space<vmem>>, vector<16x16x3xf32>
    %9 = vector.shape_cast %8 : vector<16x16x3xf32> to vector<256x3xf32>
    %c0_16 = arith.constant 0 : index
    %c3 = arith.constant 3 : index
    %10 = vector.load %arg14[%c0_16, %c3] : memref<256x27xf32, #tpu.memory_space<vmem>>, vector<256x3xf32>
    tpu.vector_store %arg14[%c0_16, %c3], %9 {strides = array<i32>} : memref<256x27xf32, #tpu.memory_space<vmem>>, vector<256x3xf32>,
    %c0_17 = arith.constant 0 : index
    %c2 = arith.constant 2 : index
    %c0_18 = arith.constant 0 : index
    %11 = vector.load %arg13[%c0_17, %c2, %c0_18] : memref<18x18x3xf32, #tpu.memory_space<vmem>>, vector<16x16x3xf32>
    %12 = vector.shape_cast %11 : vector<16x16x3xf32> to vector<256x3xf32>
    %c0_19 = arith.constant 0 : index
    %c6 = arith.constant 6 : index
    %13 = vector.load %arg14[%c0_19, %c6] : memref<256x27xf32, #tpu.memory_space<vmem>>, vector<256x3xf32>
    tpu.vector_store %arg14[%c0_19, %c6], %12 {strides = array<i32>} : memref<256x27xf32, #tpu.memory_space<vmem>>, vector<256x3xf32>,
    %c1_20 = arith.constant 1 : index
    %c0_21 = arith.constant 0 : index
    %c0_22 = arith.constant 0 : index
    %14 = vector.load %arg13[%c1_20, %c0_21, %c0_22] : memref<18x18x3xf32, #tpu.memory_space<vmem>>, vector<16x16x3xf32>
    %15 = vector.shape_cast %14 : vector<16x16x3xf32> to vector<256x3xf32>
    %c0_23 = arith.constant 0 : index
    %c9 = arith.constant 9 : index
    %16 = vector.load %arg14[%c0_23, %c9] : memref<256x27xf32, #tpu.memory_space<vmem>>, vector<256x3xf32>
    tpu.vector_store %arg14[%c0_23, %c9], %15 {strides = array<i32>} : memref<256x27xf32, #tpu.memory_space<vmem>>, vector<256x3xf32>,
    %c1_24 = arith.constant 1 : index
    %c1_25 = arith.constant 1 : index
    %c0_26 = arith.constant 0 : index
    %17 = vector.load %arg13[%c1_24, %c1_25, %c0_26] : memref<18x18x3xf32, #tpu.memory_space<vmem>>, vector<16x16x3xf32>
    %18 = vector.shape_cast %17 : vector<16x16x3xf32> to vector<256x3xf32>
    %c0_27 = arith.constant 0 : index
    %c12 = arith.constant 12 : index
    %19 = vector.load %arg14[%c0_27, %c12] : memref<256x27xf32, #tpu.memory_space<vmem>>, vector<256x3xf32>
    tpu.vector_store %arg14[%c0_27, %c12], %18 {strides = array<i32>} : memref<256x27xf32, #tpu.memory_space<vmem>>, vector<256x3xf32>,
    %c1_28 = arith.constant 1 : index
    %c2_29 = arith.constant 2 : index
    %c0_30 = arith.constant 0 : index
    %20 = vector.load %arg13[%c1_28, %c2_29, %c0_30] : memref<18x18x3xf32, #tpu.memory_space<vmem>>, vector<16x16x3xf32>
    %21 = vector.shape_cast %20 : vector<16x16x3xf32> to vector<256x3xf32>
    %c0_31 = arith.constant 0 : index
    %c15 = arith.constant 15 : index
    %22 = vector.load %arg14[%c0_31, %c15] : memref<256x27xf32, #tpu.memory_space<vmem>>, vector<256x3xf32>
    tpu.vector_store %arg14[%c0_31, %c15], %21 {strides = array<i32>} : memref<256x27xf32, #tpu.memory_space<vmem>>, vector<256x3xf32>,
    %c2_32 = arith.constant 2 : index
    %c0_33 = arith.constant 0 : index
    %c0_34 = arith.constant 0 : index
    %23 = vector.load %arg13[%c2_32, %c0_33, %c0_34] : memref<18x18x3xf32, #tpu.memory_space<vmem>>, vector<16x16x3xf32>
    %24 = vector.shape_cast %23 : vector<16x16x3xf32> to vector<256x3xf32>
    %c0_35 = arith.constant 0 : index
    %c18 = arith.constant 18 : index
    %25 = vector.load %arg14[%c0_35, %c18] : memref<256x27xf32, #tpu.memory_space<vmem>>, vector<256x3xf32>
    tpu.vector_store %arg14[%c0_35, %c18], %24 {strides = array<i32>} : memref<256x27xf32, #tpu.memory_space<vmem>>, vector<256x3xf32>,
    %c2_36 = arith.constant 2 : index
    %c1_37 = arith.constant 1 : index
    %c0_38 = arith.constant 0 : index
    %26 = vector.load %arg13[%c2_36, %c1_37, %c0_38] : memref<18x18x3xf32, #tpu.memory_space<vmem>>, vector<16x16x3xf32>
    %27 = vector.shape_cast %26 : vector<16x16x3xf32> to vector<256x3xf32>
    %c0_39 = arith.constant 0 : index
    %c21 = arith.constant 21 : index
    %28 = vector.load %arg14[%c0_39, %c21] : memref<256x27xf32, #tpu.memory_space<vmem>>, vector<256x3xf32>
    tpu.vector_store %arg14[%c0_39, %c21], %27 {strides = array<i32>} : memref<256x27xf32, #tpu.memory_space<vmem>>, vector<256x3xf32>,
    %c2_40 = arith.constant 2 : index
    %c2_41 = arith.constant 2 : index
    %c0_42 = arith.constant 0 : index
    %29 = vector.load %arg13[%c2_40, %c2_41, %c0_42] : memref<18x18x3xf32, #tpu.memory_space<vmem>>, vector<16x16x3xf32>
    %30 = vector.shape_cast %29 : vector<16x16x3xf32> to vector<256x3xf32>
    %c0_43 = arith.constant 0 : index
    %c24 = arith.constant 24 : index
    %31 = vector.load %arg14[%c0_43, %c24] : memref<256x27xf32, #tpu.memory_space<vmem>>, vector<256x3xf32>
    tpu.vector_store %arg14[%c0_43, %c24], %30 {strides = array<i32>} : memref<256x27xf32, #tpu.memory_space<vmem>>, vector<256x3xf32>,
    %c0_44 = arith.constant 0 : index
    %c0_45 = arith.constant 0 : index
    %32 = vector.load %arg14[%c0_44, %c0_45] : memref<256x27xf32, #tpu.memory_space<vmem>>, vector<256x27xf32>
    %33 = arith.truncf %32 : vector<256x27xf32> to vector<256x27xbf16>
    %c0_46 = arith.constant 0 : index
    %c0_47 = arith.constant 0 : index
    %34 = vector.load %arg2[%c0_46, %c0_47] : memref<27x16xbf16, #tpu.memory_space<vmem>>, vector<27x16xbf16>
    %cst_48 = arith.constant dense<0.000000e+00> : vector<256x16xf32>
    %35 = tpu.matmul %33, %34, %cst_48 {dimension_numbers = #tpu.dot_dimension_numbers<[1], [0], [0], [1], [0, 0, 1, 1], [], []>} : vector<256x27xbf16>, vector<27x16xbf16>, vector<256x16xf32> -> vector<256x16xf32>
    %c0_49 = arith.constant 0 : index
    %c0_50 = arith.constant 0 : index
    %36 = vector.load %arg3[%c0_49, %c0_50] : memref<3x16xf32, #tpu.memory_space<vmem>>, vector<1x16xf32>
    %37 = vector.broadcast %36 : vector<1x16xf32> to vector<256x16xf32>
    %38 = arith.mulf %35, %37 : vector<256x16xf32>
    %c1_51 = arith.constant 1 : index
    %c0_52 = arith.constant 0 : index
    %39 = vector.load %arg3[%c1_51, %c0_52] : memref<3x16xf32, #tpu.memory_space<vmem>>, vector<1x16xf32>
    %40 = vector.broadcast %39 : vector<1x16xf32> to vector<256x16xf32>
    %41 = arith.addf %38, %40 : vector<256x16xf32>
    %cst_53 = arith.constant 0.000000e+00 : f32
    %42 = vector.broadcast %cst_53 : f32 to vector<256x16xf32>
    %43 = arith.cmpf ogt, %41, %42 : vector<256x16xf32>
    %c2_54 = arith.constant 2 : index
    %c0_55 = arith.constant 0 : index
    %44 = vector.load %arg3[%c2_54, %c0_55] : memref<3x16xf32, #tpu.memory_space<vmem>>, vector<1x16xf32>
    %45 = vector.broadcast %44 : vector<1x16xf32> to vector<256x16xf32>
    %46 = arith.mulf %41, %45 : vector<256x16xf32>
    %47 = arith.select %43, %41, %46 : vector<256x16xi1>, vector<256x16xf32>
    %48 = vector.shape_cast %47 : vector<256x16xf32> to vector<16x16x16xf32>
    %cst_56 = arith.constant 0.000000e+00 : f32
    %49 = vector.broadcast %cst_56 : f32 to vector<18x18x16xf32>
    %c0_57 = arith.constant 0 : index
    %c0_58 = arith.constant 0 : index
    %c0_59 = arith.constant 0 : index
    %50 = vector.load %arg15[%c0_57, %c0_58, %c0_59] : memref<18x18x16xf32, #tpu.memory_space<vmem>>, vector<18x18x16xf32>
    tpu.vector_store %arg15[%c0_57, %c0_58, %c0_59], %49 {strides = array<i32>} : memref<18x18x16xf32, #tpu.memory_space<vmem>>, vector<18x18x16xf32>,
    %c1_60 = arith.constant 1 : index
    %c1_61 = arith.constant 1 : index
    %c0_62 = arith.constant 0 : index
    %51 = vector.load %arg15[%c1_60, %c1_61, %c0_62] : memref<18x18x16xf32, #tpu.memory_space<vmem>>, vector<16x16x16xf32>
    tpu.vector_store %arg15[%c1_60, %c1_61, %c0_62], %48 {strides = array<i32>} : memref<18x18x16xf32, #tpu.memory_space<vmem>>, vector<16x16x16xf32>,
    %c0_63 = arith.constant 0 : index
    %c0_64 = arith.constant 0 : index
    %c0_65 = arith.constant 0 : index
    %52 = vector.load %arg15[%c0_63, %c0_64, %c0_65] : memref<18x18x16xf32, #tpu.memory_space<vmem>>, vector<18x1x16xf32>
    %c0_66 = arith.constant 0 : index
    %c0_67 = arith.constant 0 : index
    %c0_68 = arith.constant 0 : index
    %53 = vector.load %arg16[%c0_66, %c0_67, %c0_68] : memref<18x9x16xf32, #tpu.memory_space<vmem>>, vector<18x1x16xf32>
    tpu.vector_store %arg16[%c0_66, %c0_67, %c0_68], %52 {strides = array<i32>} : memref<18x9x16xf32, #tpu.memory_space<vmem>>, vector<18x1x16xf32>,
    %c0_69 = arith.constant 0 : index
    %c1_70 = arith.constant 1 : index
    %c0_71 = arith.constant 0 : index
    %54 = vector.load %arg15[%c0_69, %c1_70, %c0_71] : memref<18x18x16xf32, #tpu.memory_space<vmem>>, vector<18x1x16xf32>
    %c0_72 = arith.constant 0 : index
    %c0_73 = arith.constant 0 : index
    %c0_74 = arith.constant 0 : index
    %55 = vector.load %arg17[%c0_72, %c0_73, %c0_74] : memref<18x9x16xf32, #tpu.memory_space<vmem>>, vector<18x1x16xf32>
    tpu.vector_store %arg17[%c0_72, %c0_73, %c0_74], %54 {strides = array<i32>} : memref<18x9x16xf32, #tpu.memory_space<vmem>>, vector<18x1x16xf32>,
    %c0_75 = arith.constant 0 : index
    %c2_76 = arith.constant 2 : index
    %c0_77 = arith.constant 0 : index
    %56 = vector.load %arg15[%c0_75, %c2_76, %c0_77] : memref<18x18x16xf32, #tpu.memory_space<vmem>>, vector<18x1x16xf32>
    %c0_78 = arith.constant 0 : index
    %c1_79 = arith.constant 1 : index
    %c0_80 = arith.constant 0 : index
    %57 = vector.load %arg16[%c0_78, %c1_79, %c0_80] : memref<18x9x16xf32, #tpu.memory_space<vmem>>, vector<18x1x16xf32>
    tpu.vector_store %arg16[%c0_78, %c1_79, %c0_80], %56 {strides = array<i32>} : memref<18x9x16xf32, #tpu.memory_space<vmem>>, vector<18x1x16xf32>,
    %c0_81 = arith.constant 0 : index
    %c3_82 = arith.constant 3 : index
    %c0_83 = arith.constant 0 : index
    %58 = vector.load %arg15[%c0_81, %c3_82, %c0_83] : memref<18x18x16xf32, #tpu.memory_space<vmem>>, vector<18x1x16xf32>
    %c0_84 = arith.constant 0 : index
    %c1_85 = arith.constant 1 : index
    %c0_86 = arith.constant 0 : index
    %59 = vector.load %arg17[%c0_84, %c1_85, %c0_86] : memref<18x9x16xf32, #tpu.memory_space<vmem>>, vector<18x1x16xf32>
    tpu.vector_store %arg17[%c0_84, %c1_85, %c0_86], %58 {strides = array<i32>} : memref<18x9x16xf32, #tpu.memory_space<vmem>>, vector<18x1x16xf32>,
    %c0_87 = arith.constant 0 : index
    %c4 = arith.constant 4 : index
    %c0_88 = arith.constant 0 : index
    %60 = vector.load %arg15[%c0_87, %c4, %c0_88] : memref<18x18x16xf32, #tpu.memory_space<vmem>>, vector<18x1x16xf32>
    %c0_89 = arith.constant 0 : index
    %c2_90 = arith.constant 2 : index
    %c0_91 = arith.constant 0 : index
    %61 = vector.load %arg16[%c0_89, %c2_90, %c0_91] : memref<18x9x16xf32, #tpu.memory_space<vmem>>, vector<18x1x16xf32>
    tpu.vector_store %arg16[%c0_89, %c2_90, %c0_91], %60 {strides = array<i32>} : memref<18x9x16xf32, #tpu.memory_space<vmem>>, vector<18x1x16xf32>,
    %c0_92 = arith.constant 0 : index
    %c5 = arith.constant 5 : index
    %c0_93 = arith.constant 0 : index
    %62 = vector.load %arg15[%c0_92, %c5, %c0_93] : memref<18x18x16xf32, #tpu.memory_space<vmem>>, vector<18x1x16xf32>
    %c0_94 = arith.constant 0 : index
    %c2_95 = arith.constant 2 : index
    %c0_96 = arith.constant 0 : index
    %63 = vector.load %arg17[%c0_94, %c2_95, %c0_96] : memref<18x9x16xf32, #tpu.memory_space<vmem>>, vector<18x1x16xf32>
    tpu.vector_store %arg17[%c0_94, %c2_95, %c0_96], %62 {strides = array<i32>} : memref<18x9x16xf32, #tpu.memory_space<vmem>>, vector<18x1x16xf32>,
    %c0_97 = arith.constant 0 : index
    %c6_98 = arith.constant 6 : index
    %c0_99 = arith.constant 0 : index
    %64 = vector.load %arg15[%c0_97, %c6_98, %c0_99] : memref<18x18x16xf32, #tpu.memory_space<vmem>>, vector<18x1x16xf32>
    %c0_100 = arith.constant 0 : index
    %c3_101 = arith.constant 3 : index
    %c0_102 = arith.constant 0 : index
    %65 = vector.load %arg16[%c0_100, %c3_101, %c0_102] : memref<18x9x16xf32, #tpu.memory_space<vmem>>, vector<18x1x16xf32>
    tpu.vector_store %arg16[%c0_100, %c3_101, %c0_102], %64 {strides = array<i32>} : memref<18x9x16xf32, #tpu.memory_space<vmem>>, vector<18x1x16xf32>,
    %c0_103 = arith.constant 0 : index
    %c7 = arith.constant 7 : index
    %c0_104 = arith.constant 0 : index
    %66 = vector.load %arg15[%c0_103, %c7, %c0_104] : memref<18x18x16xf32, #tpu.memory_space<vmem>>, vector<18x1x16xf32>
    %c0_105 = arith.constant 0 : index
    %c3_106 = arith.constant 3 : index
    %c0_107 = arith.constant 0 : index
    %67 = vector.load %arg17[%c0_105, %c3_106, %c0_107] : memref<18x9x16xf32, #tpu.memory_space<vmem>>, vector<18x1x16xf32>
    tpu.vector_store %arg17[%c0_105, %c3_106, %c0_107], %66 {strides = array<i32>} : memref<18x9x16xf32, #tpu.memory_space<vmem>>, vector<18x1x16xf32>,
    %c0_108 = arith.constant 0 : index
    %c8 = arith.constant 8 : index
    %c0_109 = arith.constant 0 : index
    %68 = vector.load %arg15[%c0_108, %c8, %c0_109] : memref<18x18x16xf32, #tpu.memory_space<vmem>>, vector<18x1x16xf32>
    %c0_110 = arith.constant 0 : index
    %c4_111 = arith.constant 4 : index
    %c0_112 = arith.constant 0 : index
    %69 = vector.load %arg16[%c0_110, %c4_111, %c0_112] : memref<18x9x16xf32, #tpu.memory_space<vmem>>, vector<18x1x16xf32>
    tpu.vector_store %arg16[%c0_110, %c4_111, %c0_112], %68 {strides = array<i32>} : memref<18x9x16xf32, #tpu.memory_space<vmem>>, vector<18x1x16xf32>,
    %c0_113 = arith.constant 0 : index
    %c9_114 = arith.constant 9 : index
    %c0_115 = arith.constant 0 : index
    %70 = vector.load %arg15[%c0_113, %c9_114, %c0_115] : memref<18x18x16xf32, #tpu.memory_space<vmem>>, vector<18x1x16xf32>
    %c0_116 = arith.constant 0 : index
    %c4_117 = arith.constant 4 : index
    %c0_118 = arith.constant 0 : index
    %71 = vector.load %arg17[%c0_116, %c4_117, %c0_118] : memref<18x9x16xf32, #tpu.memory_space<vmem>>, vector<18x1x16xf32>
    tpu.vector_store %arg17[%c0_116, %c4_117, %c0_118], %70 {strides = array<i32>} : memref<18x9x16xf32, #tpu.memory_space<vmem>>, vector<18x1x16xf32>,
    %c0_119 = arith.constant 0 : index
    %c10 = arith.constant 10 : index
    %c0_120 = arith.constant 0 : index
    %72 = vector.load %arg15[%c0_119, %c10, %c0_120] : memref<18x18x16xf32, #tpu.memory_space<vmem>>, vector<18x1x16xf32>
    %c0_121 = arith.constant 0 : index
    %c5_122 = arith.constant 5 : index
    %c0_123 = arith.constant 0 : index
    %73 = vector.load %arg16[%c0_121, %c5_122, %c0_123] : memref<18x9x16xf32, #tpu.memory_space<vmem>>, vector<18x1x16xf32>
    tpu.vector_store %arg16[%c0_121, %c5_122, %c0_123], %72 {strides = array<i32>} : memref<18x9x16xf32, #tpu.memory_space<vmem>>, vector<18x1x16xf32>,
    %c0_124 = arith.constant 0 : index
    %c11 = arith.constant 11 : index
    %c0_125 = arith.constant 0 : index
    %74 = vector.load %arg15[%c0_124, %c11, %c0_125] : memref<18x18x16xf32, #tpu.memory_space<vmem>>, vector<18x1x16xf32>
    %c0_126 = arith.constant 0 : index
    %c5_127 = arith.constant 5 : index
    %c0_128 = arith.constant 0 : index
    %75 = vector.load %arg17[%c0_126, %c5_127, %c0_128] : memref<18x9x16xf32, #tpu.memory_space<vmem>>, vector<18x1x16xf32>
    tpu.vector_store %arg17[%c0_126, %c5_127, %c0_128], %74 {strides = array<i32>} : memref<18x9x16xf32, #tpu.memory_space<vmem>>, vector<18x1x16xf32>,
    %c0_129 = arith.constant 0 : index
    %c12_130 = arith.constant 12 : index
    %c0_131 = arith.constant 0 : index
    %76 = vector.load %arg15[%c0_129, %c12_130, %c0_131] : memref<18x18x16xf32, #tpu.memory_space<vmem>>, vector<18x1x16xf32>
    %c0_132 = arith.constant 0 : index
    %c6_133 = arith.constant 6 : index
    %c0_134 = arith.constant 0 : index
    %77 = vector.load %arg16[%c0_132, %c6_133, %c0_134] : memref<18x9x16xf32, #tpu.memory_space<vmem>>, vector<18x1x16xf32>
    tpu.vector_store %arg16[%c0_132, %c6_133, %c0_134], %76 {strides = array<i32>} : memref<18x9x16xf32, #tpu.memory_space<vmem>>, vector<18x1x16xf32>,
    %c0_135 = arith.constant 0 : index
    %c13 = arith.constant 13 : index
    %c0_136 = arith.constant 0 : index
    %78 = vector.load %arg15[%c0_135, %c13, %c0_136] : memref<18x18x16xf32, #tpu.memory_space<vmem>>, vector<18x1x16xf32>
    %c0_137 = arith.constant 0 : index
    %c6_138 = arith.constant 6 : index
    %c0_139 = arith.constant 0 : index
    %79 = vector.load %arg17[%c0_137, %c6_138, %c0_139] : memref<18x9x16xf32, #tpu.memory_space<vmem>>, vector<18x1x16xf32>
    tpu.vector_store %arg17[%c0_137, %c6_138, %c0_139], %78 {strides = array<i32>} : memref<18x9x16xf32, #tpu.memory_space<vmem>>, vector<18x1x16xf32>,
    %c0_140 = arith.constant 0 : index
    %c14 = arith.constant 14 : index
    %c0_141 = arith.constant 0 : index
    %80 = vector.load %arg15[%c0_140, %c14, %c0_141] : memref<18x18x16xf32, #tpu.memory_space<vmem>>, vector<18x1x16xf32>
    %c0_142 = arith.constant 0 : index
    %c7_143 = arith.constant 7 : index
    %c0_144 = arith.constant 0 : index
    %81 = vector.load %arg16[%c0_142, %c7_143, %c0_144] : memref<18x9x16xf32, #tpu.memory_space<vmem>>, vector<18x1x16xf32>
    tpu.vector_store %arg16[%c0_142, %c7_143, %c0_144], %80 {strides = array<i32>} : memref<18x9x16xf32, #tpu.memory_space<vmem>>, vector<18x1x16xf32>,
    %c0_145 = arith.constant 0 : index
    %c15_146 = arith.constant 15 : index
    %c0_147 = arith.constant 0 : index
    %82 = vector.load %arg15[%c0_145, %c15_146, %c0_147] : memref<18x18x16xf32, #tpu.memory_space<vmem>>, vector<18x1x16xf32>
    %c0_148 = arith.constant 0 : index
    %c7_149 = arith.constant 7 : index
    %c0_150 = arith.constant 0 : index
    %83 = vector.load %arg17[%c0_148, %c7_149, %c0_150] : memref<18x9x16xf32, #tpu.memory_space<vmem>>, vector<18x1x16xf32>
    tpu.vector_store %arg17[%c0_148, %c7_149, %c0_150], %82 {strides = array<i32>} : memref<18x9x16xf32, #tpu.memory_space<vmem>>, vector<18x1x16xf32>,
    %c0_151 = arith.constant 0 : index
    %c16 = arith.constant 16 : index
    %c0_152 = arith.constant 0 : index
    %84 = vector.load %arg15[%c0_151, %c16, %c0_152] : memref<18x18x16xf32, #tpu.memory_space<vmem>>, vector<18x1x16xf32>
    %c0_153 = arith.constant 0 : index
    %c8_154 = arith.constant 8 : index
    %c0_155 = arith.constant 0 : index
    %85 = vector.load %arg16[%c0_153, %c8_154, %c0_155] : memref<18x9x16xf32, #tpu.memory_space<vmem>>, vector<18x1x16xf32>
    tpu.vector_store %arg16[%c0_153, %c8_154, %c0_155], %84 {strides = array<i32>} : memref<18x9x16xf32, #tpu.memory_space<vmem>>, vector<18x1x16xf32>,
    %c0_156 = arith.constant 0 : index
    %c17 = arith.constant 17 : index
    %c0_157 = arith.constant 0 : index
    %86 = vector.load %arg15[%c0_156, %c17, %c0_157] : memref<18x18x16xf32, #tpu.memory_space<vmem>>, vector<18x1x16xf32>
    %c0_158 = arith.constant 0 : index
    %c8_159 = arith.constant 8 : index
    %c0_160 = arith.constant 0 : index
    %87 = vector.load %arg17[%c0_158, %c8_159, %c0_160] : memref<18x9x16xf32, #tpu.memory_space<vmem>>, vector<18x1x16xf32>
    tpu.vector_store %arg17[%c0_158, %c8_159, %c0_160], %86 {strides = array<i32>} : memref<18x9x16xf32, #tpu.memory_space<vmem>>, vector<18x1x16xf32>,
    %c0_161 = arith.constant 0 : index
    %c0_162 = arith.constant 0 : index
    %c0_163 = arith.constant 0 : index
    %88 = vector.load %arg16[%c0_161, %c0_162, %c0_163] : memref<18x9x16xf32, #tpu.memory_space<vmem>>, vector<16x8x16xf32>
    %89 = vector.shape_cast %88 : vector<16x8x16xf32> to vector<8x2x8x16xf32>
    %90 = vector.extract_strided_slice %89 {offsets = [0, 0, 0, 0], sizes = [8, 1, 8, 16], strides = [1, 1, 1, 1]} : vector<8x2x8x16xf32> to vector<8x1x8x16xf32>
    %91 = vector.shape_cast %90 : vector<8x1x8x16xf32> to vector<8x8x16xf32>
    %92 = vector.shape_cast %91 : vector<8x8x16xf32> to vector<64x16xf32>
    %c0_164 = arith.constant 0 : index
    %c0_165 = arith.constant 0 : index
    %93 = vector.load %arg18[%c0_164, %c0_165] : memref<64x144xf32, #tpu.memory_space<vmem>>, vector<64x16xf32>
    tpu.vector_store %arg18[%c0_164, %c0_165], %92 {strides = array<i32>} : memref<64x144xf32, #tpu.memory_space<vmem>>, vector<64x16xf32>,
    %c0_166 = arith.constant 0 : index
    %c0_167 = arith.constant 0 : index
    %c0_168 = arith.constant 0 : index
    %94 = vector.load %arg17[%c0_166, %c0_167, %c0_168] : memref<18x9x16xf32, #tpu.memory_space<vmem>>, vector<16x8x16xf32>
    %95 = vector.shape_cast %94 : vector<16x8x16xf32> to vector<8x2x8x16xf32>
    %96 = vector.extract_strided_slice %95 {offsets = [0, 0, 0, 0], sizes = [8, 1, 8, 16], strides = [1, 1, 1, 1]} : vector<8x2x8x16xf32> to vector<8x1x8x16xf32>
    %97 = vector.shape_cast %96 : vector<8x1x8x16xf32> to vector<8x8x16xf32>
    %98 = vector.shape_cast %97 : vector<8x8x16xf32> to vector<64x16xf32>
    %c0_169 = arith.constant 0 : index
    %c16_170 = arith.constant 16 : index
    %99 = vector.load %arg18[%c0_169, %c16_170] : memref<64x144xf32, #tpu.memory_space<vmem>>, vector<64x16xf32>
    tpu.vector_store %arg18[%c0_169, %c16_170], %98 {strides = array<i32>} : memref<64x144xf32, #tpu.memory_space<vmem>>, vector<64x16xf32>,
    %c0_171 = arith.constant 0 : index
    %c1_172 = arith.constant 1 : index
    %c0_173 = arith.constant 0 : index
    %100 = vector.load %arg16[%c0_171, %c1_172, %c0_173] : memref<18x9x16xf32, #tpu.memory_space<vmem>>, vector<16x8x16xf32>
    %101 = vector.shape_cast %100 : vector<16x8x16xf32> to vector<8x2x8x16xf32>
    %102 = vector.extract_strided_slice %101 {offsets = [0, 0, 0, 0], sizes = [8, 1, 8, 16], strides = [1, 1, 1, 1]} : vector<8x2x8x16xf32> to vector<8x1x8x16xf32>
    %103 = vector.shape_cast %102 : vector<8x1x8x16xf32> to vector<8x8x16xf32>
    %104 = vector.shape_cast %103 : vector<8x8x16xf32> to vector<64x16xf32>
    %c0_174 = arith.constant 0 : index
    %c32 = arith.constant 32 : index
    %105 = vector.load %arg18[%c0_174, %c32] : memref<64x144xf32, #tpu.memory_space<vmem>>, vector<64x16xf32>
    tpu.vector_store %arg18[%c0_174, %c32], %104 {strides = array<i32>} : memref<64x144xf32, #tpu.memory_space<vmem>>, vector<64x16xf32>,
    %c1_175 = arith.constant 1 : index
    %c0_176 = arith.constant 0 : index
    %c0_177 = arith.constant 0 : index
    %106 = vector.load %arg16[%c1_175, %c0_176, %c0_177] : memref<18x9x16xf32, #tpu.memory_space<vmem>>, vector<16x8x16xf32>
    %107 = vector.shape_cast %106 : vector<16x8x16xf32> to vector<8x2x8x16xf32>
    %108 = vector.extract_strided_slice %107 {offsets = [0, 0, 0, 0], sizes = [8, 1, 8, 16], strides = [1, 1, 1, 1]} : vector<8x2x8x16xf32> to vector<8x1x8x16xf32>
    %109 = vector.shape_cast %108 : vector<8x1x8x16xf32> to vector<8x8x16xf32>
    %110 = vector.shape_cast %109 : vector<8x8x16xf32> to vector<64x16xf32>
    %c0_178 = arith.constant 0 : index
    %c48 = arith.constant 48 : index
    %111 = vector.load %arg18[%c0_178, %c48] : memref<64x144xf32, #tpu.memory_space<vmem>>, vector<64x16xf32>
    tpu.vector_store %arg18[%c0_178, %c48], %110 {strides = array<i32>} : memref<64x144xf32, #tpu.memory_space<vmem>>, vector<64x16xf32>,
    %c1_179 = arith.constant 1 : index
    %c0_180 = arith.constant 0 : index
    %c0_181 = arith.constant 0 : index
    %112 = vector.load %arg17[%c1_179, %c0_180, %c0_181] : memref<18x9x16xf32, #tpu.memory_space<vmem>>, vector<16x8x16xf32>
    %113 = vector.shape_cast %112 : vector<16x8x16xf32> to vector<8x2x8x16xf32>
    %114 = vector.extract_strided_slice %113 {offsets = [0, 0, 0, 0], sizes = [8, 1, 8, 16], strides = [1, 1, 1, 1]} : vector<8x2x8x16xf32> to vector<8x1x8x16xf32>
    %115 = vector.shape_cast %114 : vector<8x1x8x16xf32> to vector<8x8x16xf32>
    %116 = vector.shape_cast %115 : vector<8x8x16xf32> to vector<64x16xf32>
    %c0_182 = arith.constant 0 : index
    %c64 = arith.constant 64 : index
    %117 = vector.load %arg18[%c0_182, %c64] : memref<64x144xf32, #tpu.memory_space<vmem>>, vector<64x16xf32>
    tpu.vector_store %arg18[%c0_182, %c64], %116 {strides = array<i32>} : memref<64x144xf32, #tpu.memory_space<vmem>>, vector<64x16xf32>,
    %c1_183 = arith.constant 1 : index
    %c1_184 = arith.constant 1 : index
    %c0_185 = arith.constant 0 : index
    %118 = vector.load %arg16[%c1_183, %c1_184, %c0_185] : memref<18x9x16xf32, #tpu.memory_space<vmem>>, vector<16x8x16xf32>
    %119 = vector.shape_cast %118 : vector<16x8x16xf32> to vector<8x2x8x16xf32>
    %120 = vector.extract_strided_slice %119 {offsets = [0, 0, 0, 0], sizes = [8, 1, 8, 16], strides = [1, 1, 1, 1]} : vector<8x2x8x16xf32> to vector<8x1x8x16xf32>
    %121 = vector.shape_cast %120 : vector<8x1x8x16xf32> to vector<8x8x16xf32>
    %122 = vector.shape_cast %121 : vector<8x8x16xf32> to vector<64x16xf32>
    %c0_186 = arith.constant 0 : index
    %c80 = arith.constant 80 : index
    %123 = vector.load %arg18[%c0_186, %c80] : memref<64x144xf32, #tpu.memory_space<vmem>>, vector<64x16xf32>
    tpu.vector_store %arg18[%c0_186, %c80], %122 {strides = array<i32>} : memref<64x144xf32, #tpu.memory_space<vmem>>, vector<64x16xf32>,
    %c2_187 = arith.constant 2 : index
    %c0_188 = arith.constant 0 : index
    %c0_189 = arith.constant 0 : index
    %124 = vector.load %arg16[%c2_187, %c0_188, %c0_189] : memref<18x9x16xf32, #tpu.memory_space<vmem>>, vector<16x8x16xf32>
    %125 = vector.shape_cast %124 : vector<16x8x16xf32> to vector<8x2x8x16xf32>
    %126 = vector.extract_strided_slice %125 {offsets = [0, 0, 0, 0], sizes = [8, 1, 8, 16], strides = [1, 1, 1, 1]} : vector<8x2x8x16xf32> to vector<8x1x8x16xf32>
    %127 = vector.shape_cast %126 : vector<8x1x8x16xf32> to vector<8x8x16xf32>
    %128 = vector.shape_cast %127 : vector<8x8x16xf32> to vector<64x16xf32>
    %c0_190 = arith.constant 0 : index
    %c96 = arith.constant 96 : index
    %129 = vector.load %arg18[%c0_190, %c96] : memref<64x144xf32, #tpu.memory_space<vmem>>, vector<64x16xf32>
    tpu.vector_store %arg18[%c0_190, %c96], %128 {strides = array<i32>} : memref<64x144xf32, #tpu.memory_space<vmem>>, vector<64x16xf32>,
    %c2_191 = arith.constant 2 : index
    %c0_192 = arith.constant 0 : index
    %c0_193 = arith.constant 0 : index
    %130 = vector.load %arg17[%c2_191, %c0_192, %c0_193] : memref<18x9x16xf32, #tpu.memory_space<vmem>>, vector<16x8x16xf32>
    %131 = vector.shape_cast %130 : vector<16x8x16xf32> to vector<8x2x8x16xf32>
    %132 = vector.extract_strided_slice %131 {offsets = [0, 0, 0, 0], sizes = [8, 1, 8, 16], strides = [1, 1, 1, 1]} : vector<8x2x8x16xf32> to vector<8x1x8x16xf32>
    %133 = vector.shape_cast %132 : vector<8x1x8x16xf32> to vector<8x8x16xf32>
    %134 = vector.shape_cast %133 : vector<8x8x16xf32> to vector<64x16xf32>
    %c0_194 = arith.constant 0 : index
    %c112 = arith.constant 112 : index
    %135 = vector.load %arg18[%c0_194, %c112] : memref<64x144xf32, #tpu.memory_space<vmem>>, vector<64x16xf32>
    tpu.vector_store %arg18[%c0_194, %c112], %134 {strides = array<i32>} : memref<64x144xf32, #tpu.memory_space<vmem>>, vector<64x16xf32>,
    %c2_195 = arith.constant 2 : index
    %c1_196 = arith.constant 1 : index
    %c0_197 = arith.constant 0 : index
    %136 = vector.load %arg16[%c2_195, %c1_196, %c0_197] : memref<18x9x16xf32, #tpu.memory_space<vmem>>, vector<16x8x16xf32>
    %137 = vector.shape_cast %136 : vector<16x8x16xf32> to vector<8x2x8x16xf32>
    %138 = vector.extract_strided_slice %137 {offsets = [0, 0, 0, 0], sizes = [8, 1, 8, 16], strides = [1, 1, 1, 1]} : vector<8x2x8x16xf32> to vector<8x1x8x16xf32>
    %139 = vector.shape_cast %138 : vector<8x1x8x16xf32> to vector<8x8x16xf32>
    %140 = vector.shape_cast %139 : vector<8x8x16xf32> to vector<64x16xf32>
    %c0_198 = arith.constant 0 : index
    %c128 = arith.constant 128 : index
    %141 = vector.load %arg18[%c0_198, %c128] : memref<64x144xf32, #tpu.memory_space<vmem>>, vector<64x16xf32>
    tpu.vector_store %arg18[%c0_198, %c128], %140 {strides = array<i32>} : memref<64x144xf32, #tpu.memory_space<vmem>>, vector<64x16xf32>,
    %c0_199 = arith.constant 0 : index
    %c0_200 = arith.constant 0 : index
    %142 = vector.load %arg18[%c0_199, %c0_200] : memref<64x144xf32, #tpu.memory_space<vmem>>, vector<64x144xf32>
    %143 = arith.truncf %142 : vector<64x144xf32> to vector<64x144xbf16>
    %c0_201 = arith.constant 0 : index
    %c0_202 = arith.constant 0 : index
    %144 = vector.load %arg4[%c0_201, %c0_202] : memref<144x32xbf16, #tpu.memory_space<vmem>>, vector<144x32xbf16>
    %cst_203 = arith.constant dense<0.000000e+00> : vector<64x32xf32>
    %145 = tpu.matmul %143, %144, %cst_203 {dimension_numbers = #tpu.dot_dimension_numbers<[1], [0], [0], [1], [0, 0, 1, 1], [], []>} : vector<64x144xbf16>, vector<144x32xbf16>, vector<64x32xf32> -> vector<64x32xf32>
    %c0_204 = arith.constant 0 : index
    %c0_205 = arith.constant 0 : index
    %146 = vector.load %arg5[%c0_204, %c0_205] : memref<3x32xf32, #tpu.memory_space<vmem>>, vector<1x32xf32>
    %147 = vector.broadcast %146 : vector<1x32xf32> to vector<64x32xf32>
    %148 = arith.mulf %145, %147 : vector<64x32xf32>
    %c1_206 = arith.constant 1 : index
    %c0_207 = arith.constant 0 : index
    %149 = vector.load %arg5[%c1_206, %c0_207] : memref<3x32xf32, #tpu.memory_space<vmem>>, vector<1x32xf32>
    %150 = vector.broadcast %149 : vector<1x32xf32> to vector<64x32xf32>
    %151 = arith.addf %148, %150 : vector<64x32xf32>
    %cst_208 = arith.constant 0.000000e+00 : f32
    %152 = vector.broadcast %cst_208 : f32 to vector<64x32xf32>
    %153 = arith.cmpf ogt, %151, %152 : vector<64x32xf32>
    %c2_209 = arith.constant 2 : index
    %c0_210 = arith.constant 0 : index
    %154 = vector.load %arg5[%c2_209, %c0_210] : memref<3x32xf32, #tpu.memory_space<vmem>>, vector<1x32xf32>
    %155 = vector.broadcast %154 : vector<1x32xf32> to vector<64x32xf32>
    %156 = arith.mulf %151, %155 : vector<64x32xf32>
    %157 = arith.select %153, %151, %156 : vector<64x32xi1>, vector<64x32xf32>
    %158 = vector.shape_cast %157 : vector<64x32xf32> to vector<8x8x32xf32>
    %cst_211 = arith.constant 0.000000e+00 : f32
    %159 = vector.broadcast %cst_211 : f32 to vector<10x10x32xf32>
    %c0_212 = arith.constant 0 : index
    %c0_213 = arith.constant 0 : index
    %c0_214 = arith.constant 0 : index
    %160 = vector.load %arg19[%c0_212, %c0_213, %c0_214] : memref<10x10x32xf32, #tpu.memory_space<vmem>>, vector<10x10x32xf32>
    tpu.vector_store %arg19[%c0_212, %c0_213, %c0_214], %159 {strides = array<i32>} : memref<10x10x32xf32, #tpu.memory_space<vmem>>, vector<10x10x32xf32>,
    %c1_215 = arith.constant 1 : index
    %c1_216 = arith.constant 1 : index
    %c0_217 = arith.constant 0 : index
    %161 = vector.load %arg19[%c1_215, %c1_216, %c0_217] : memref<10x10x32xf32, #tpu.memory_space<vmem>>, vector<8x8x32xf32>
    tpu.vector_store %arg19[%c1_215, %c1_216, %c0_217], %158 {strides = array<i32>} : memref<10x10x32xf32, #tpu.memory_space<vmem>>, vector<8x8x32xf32>,
    %c0_218 = arith.constant 0 : index
    %c0_219 = arith.constant 0 : index
    %c0_220 = arith.constant 0 : index
    %162 = vector.load %arg19[%c0_218, %c0_219, %c0_220] : memref<10x10x32xf32, #tpu.memory_space<vmem>>, vector<10x1x32xf32>
    %c0_221 = arith.constant 0 : index
    %c0_222 = arith.constant 0 : index
    %c0_223 = arith.constant 0 : index
    %163 = vector.load %arg20[%c0_221, %c0_222, %c0_223] : memref<10x5x32xf32, #tpu.memory_space<vmem>>, vector<10x1x32xf32>
    tpu.vector_store %arg20[%c0_221, %c0_222, %c0_223], %162 {strides = array<i32>} : memref<10x5x32xf32, #tpu.memory_space<vmem>>, vector<10x1x32xf32>,
    %c0_224 = arith.constant 0 : index
    %c1_225 = arith.constant 1 : index
    %c0_226 = arith.constant 0 : index
    %164 = vector.load %arg19[%c0_224, %c1_225, %c0_226] : memref<10x10x32xf32, #tpu.memory_space<vmem>>, vector<10x1x32xf32>
    %c0_227 = arith.constant 0 : index
    %c0_228 = arith.constant 0 : index
    %c0_229 = arith.constant 0 : index
    %165 = vector.load %arg21[%c0_227, %c0_228, %c0_229] : memref<10x5x32xf32, #tpu.memory_space<vmem>>, vector<10x1x32xf32>
    tpu.vector_store %arg21[%c0_227, %c0_228, %c0_229], %164 {strides = array<i32>} : memref<10x5x32xf32, #tpu.memory_space<vmem>>, vector<10x1x32xf32>,
    %c0_230 = arith.constant 0 : index
    %c2_231 = arith.constant 2 : index
    %c0_232 = arith.constant 0 : index
    %166 = vector.load %arg19[%c0_230, %c2_231, %c0_232] : memref<10x10x32xf32, #tpu.memory_space<vmem>>, vector<10x1x32xf32>
    %c0_233 = arith.constant 0 : index
    %c1_234 = arith.constant 1 : index
    %c0_235 = arith.constant 0 : index
    %167 = vector.load %arg20[%c0_233, %c1_234, %c0_235] : memref<10x5x32xf32, #tpu.memory_space<vmem>>, vector<10x1x32xf32>
    tpu.vector_store %arg20[%c0_233, %c1_234, %c0_235], %166 {strides = array<i32>} : memref<10x5x32xf32, #tpu.memory_space<vmem>>, vector<10x1x32xf32>,
    %c0_236 = arith.constant 0 : index
    %c3_237 = arith.constant 3 : index
    %c0_238 = arith.constant 0 : index
    %168 = vector.load %arg19[%c0_236, %c3_237, %c0_238] : memref<10x10x32xf32, #tpu.memory_space<vmem>>, vector<10x1x32xf32>
    %c0_239 = arith.constant 0 : index
    %c1_240 = arith.constant 1 : index
    %c0_241 = arith.constant 0 : index
    %169 = vector.load %arg21[%c0_239, %c1_240, %c0_241] : memref<10x5x32xf32, #tpu.memory_space<vmem>>, vector<10x1x32xf32>
    tpu.vector_store %arg21[%c0_239, %c1_240, %c0_241], %168 {strides = array<i32>} : memref<10x5x32xf32, #tpu.memory_space<vmem>>, vector<10x1x32xf32>,
    %c0_242 = arith.constant 0 : index
    %c4_243 = arith.constant 4 : index
    %c0_244 = arith.constant 0 : index
    %170 = vector.load %arg19[%c0_242, %c4_243, %c0_244] : memref<10x10x32xf32, #tpu.memory_space<vmem>>, vector<10x1x32xf32>
    %c0_245 = arith.constant 0 : index
    %c2_246 = arith.constant 2 : index
    %c0_247 = arith.constant 0 : index
    %171 = vector.load %arg20[%c0_245, %c2_246, %c0_247] : memref<10x5x32xf32, #tpu.memory_space<vmem>>, vector<10x1x32xf32>
    tpu.vector_store %arg20[%c0_245, %c2_246, %c0_247], %170 {strides = array<i32>} : memref<10x5x32xf32, #tpu.memory_space<vmem>>, vector<10x1x32xf32>,
    %c0_248 = arith.constant 0 : index
    %c5_249 = arith.constant 5 : index
    %c0_250 = arith.constant 0 : index
    %172 = vector.load %arg19[%c0_248, %c5_249, %c0_250] : memref<10x10x32xf32, #tpu.memory_space<vmem>>, vector<10x1x32xf32>
    %c0_251 = arith.constant 0 : index
    %c2_252 = arith.constant 2 : index
    %c0_253 = arith.constant 0 : index
    %173 = vector.load %arg21[%c0_251, %c2_252, %c0_253] : memref<10x5x32xf32, #tpu.memory_space<vmem>>, vector<10x1x32xf32>
    tpu.vector_store %arg21[%c0_251, %c2_252, %c0_253], %172 {strides = array<i32>} : memref<10x5x32xf32, #tpu.memory_space<vmem>>, vector<10x1x32xf32>,
    %c0_254 = arith.constant 0 : index
    %c6_255 = arith.constant 6 : index
    %c0_256 = arith.constant 0 : index
    %174 = vector.load %arg19[%c0_254, %c6_255, %c0_256] : memref<10x10x32xf32, #tpu.memory_space<vmem>>, vector<10x1x32xf32>
    %c0_257 = arith.constant 0 : index
    %c3_258 = arith.constant 3 : index
    %c0_259 = arith.constant 0 : index
    %175 = vector.load %arg20[%c0_257, %c3_258, %c0_259] : memref<10x5x32xf32, #tpu.memory_space<vmem>>, vector<10x1x32xf32>
    tpu.vector_store %arg20[%c0_257, %c3_258, %c0_259], %174 {strides = array<i32>} : memref<10x5x32xf32, #tpu.memory_space<vmem>>, vector<10x1x32xf32>,
    %c0_260 = arith.constant 0 : index
    %c7_261 = arith.constant 7 : index
    %c0_262 = arith.constant 0 : index
    %176 = vector.load %arg19[%c0_260, %c7_261, %c0_262] : memref<10x10x32xf32, #tpu.memory_space<vmem>>, vector<10x1x32xf32>
    %c0_263 = arith.constant 0 : index
    %c3_264 = arith.constant 3 : index
    %c0_265 = arith.constant 0 : index
    %177 = vector.load %arg21[%c0_263, %c3_264, %c0_265] : memref<10x5x32xf32, #tpu.memory_space<vmem>>, vector<10x1x32xf32>
    tpu.vector_store %arg21[%c0_263, %c3_264, %c0_265], %176 {strides = array<i32>} : memref<10x5x32xf32, #tpu.memory_space<vmem>>, vector<10x1x32xf32>,
    %c0_266 = arith.constant 0 : index
    %c8_267 = arith.constant 8 : index
    %c0_268 = arith.constant 0 : index
    %178 = vector.load %arg19[%c0_266, %c8_267, %c0_268] : memref<10x10x32xf32, #tpu.memory_space<vmem>>, vector<10x1x32xf32>
    %c0_269 = arith.constant 0 : index
    %c4_270 = arith.constant 4 : index
    %c0_271 = arith.constant 0 : index
    %179 = vector.load %arg20[%c0_269, %c4_270, %c0_271] : memref<10x5x32xf32, #tpu.memory_space<vmem>>, vector<10x1x32xf32>
    tpu.vector_store %arg20[%c0_269, %c4_270, %c0_271], %178 {strides = array<i32>} : memref<10x5x32xf32, #tpu.memory_space<vmem>>, vector<10x1x32xf32>,
    %c0_272 = arith.constant 0 : index
    %c9_273 = arith.constant 9 : index
    %c0_274 = arith.constant 0 : index
    %180 = vector.load %arg19[%c0_272, %c9_273, %c0_274] : memref<10x10x32xf32, #tpu.memory_space<vmem>>, vector<10x1x32xf32>
    %c0_275 = arith.constant 0 : index
    %c4_276 = arith.constant 4 : index
    %c0_277 = arith.constant 0 : index
    %181 = vector.load %arg21[%c0_275, %c4_276, %c0_277] : memref<10x5x32xf32, #tpu.memory_space<vmem>>, vector<10x1x32xf32>
    tpu.vector_store %arg21[%c0_275, %c4_276, %c0_277], %180 {strides = array<i32>} : memref<10x5x32xf32, #tpu.memory_space<vmem>>, vector<10x1x32xf32>,
    %c0_278 = arith.constant 0 : index
    %c0_279 = arith.constant 0 : index
    %c0_280 = arith.constant 0 : index
    %182 = vector.load %arg20[%c0_278, %c0_279, %c0_280] : memref<10x5x32xf32, #tpu.memory_space<vmem>>, vector<8x4x32xf32>
    %183 = vector.shape_cast %182 : vector<8x4x32xf32> to vector<4x2x4x32xf32>
    %184 = vector.extract_strided_slice %183 {offsets = [0, 0, 0, 0], sizes = [4, 1, 4, 32], strides = [1, 1, 1, 1]} : vector<4x2x4x32xf32> to vector<4x1x4x32xf32>
    %185 = vector.shape_cast %184 : vector<4x1x4x32xf32> to vector<4x4x32xf32>
    %186 = vector.shape_cast %185 : vector<4x4x32xf32> to vector<16x32xf32>
    %c0_281 = arith.constant 0 : index
    %c0_282 = arith.constant 0 : index
    %187 = vector.load %arg22[%c0_281, %c0_282] : memref<16x288xf32, #tpu.memory_space<vmem>>, vector<16x32xf32>
    tpu.vector_store %arg22[%c0_281, %c0_282], %186 {strides = array<i32>} : memref<16x288xf32, #tpu.memory_space<vmem>>, vector<16x32xf32>,
    %c0_283 = arith.constant 0 : index
    %c0_284 = arith.constant 0 : index
    %c0_285 = arith.constant 0 : index
    %188 = vector.load %arg21[%c0_283, %c0_284, %c0_285] : memref<10x5x32xf32, #tpu.memory_space<vmem>>, vector<8x4x32xf32>
    %189 = vector.shape_cast %188 : vector<8x4x32xf32> to vector<4x2x4x32xf32>
    %190 = vector.extract_strided_slice %189 {offsets = [0, 0, 0, 0], sizes = [4, 1, 4, 32], strides = [1, 1, 1, 1]} : vector<4x2x4x32xf32> to vector<4x1x4x32xf32>
    %191 = vector.shape_cast %190 : vector<4x1x4x32xf32> to vector<4x4x32xf32>
    %192 = vector.shape_cast %191 : vector<4x4x32xf32> to vector<16x32xf32>
    %c0_286 = arith.constant 0 : index
    %c32_287 = arith.constant 32 : index
    %193 = vector.load %arg22[%c0_286, %c32_287] : memref<16x288xf32, #tpu.memory_space<vmem>>, vector<16x32xf32>
    tpu.vector_store %arg22[%c0_286, %c32_287], %192 {strides = array<i32>} : memref<16x288xf32, #tpu.memory_space<vmem>>, vector<16x32xf32>,
    %c0_288 = arith.constant 0 : index
    %c1_289 = arith.constant 1 : index
    %c0_290 = arith.constant 0 : index
    %194 = vector.load %arg20[%c0_288, %c1_289, %c0_290] : memref<10x5x32xf32, #tpu.memory_space<vmem>>, vector<8x4x32xf32>
    %195 = vector.shape_cast %194 : vector<8x4x32xf32> to vector<4x2x4x32xf32>
    %196 = vector.extract_strided_slice %195 {offsets = [0, 0, 0, 0], sizes = [4, 1, 4, 32], strides = [1, 1, 1, 1]} : vector<4x2x4x32xf32> to vector<4x1x4x32xf32>
    %197 = vector.shape_cast %196 : vector<4x1x4x32xf32> to vector<4x4x32xf32>
    %198 = vector.shape_cast %197 : vector<4x4x32xf32> to vector<16x32xf32>
    %c0_291 = arith.constant 0 : index
    %c64_292 = arith.constant 64 : index
    %199 = vector.load %arg22[%c0_291, %c64_292] : memref<16x288xf32, #tpu.memory_space<vmem>>, vector<16x32xf32>
    tpu.vector_store %arg22[%c0_291, %c64_292], %198 {strides = array<i32>} : memref<16x288xf32, #tpu.memory_space<vmem>>, vector<16x32xf32>,
    %c1_293 = arith.constant 1 : index
    %c0_294 = arith.constant 0 : index
    %c0_295 = arith.constant 0 : index
    %200 = vector.load %arg20[%c1_293, %c0_294, %c0_295] : memref<10x5x32xf32, #tpu.memory_space<vmem>>, vector<8x4x32xf32>
    %201 = vector.shape_cast %200 : vector<8x4x32xf32> to vector<4x2x4x32xf32>
    %202 = vector.extract_strided_slice %201 {offsets = [0, 0, 0, 0], sizes = [4, 1, 4, 32], strides = [1, 1, 1, 1]} : vector<4x2x4x32xf32> to vector<4x1x4x32xf32>
    %203 = vector.shape_cast %202 : vector<4x1x4x32xf32> to vector<4x4x32xf32>
    %204 = vector.shape_cast %203 : vector<4x4x32xf32> to vector<16x32xf32>
    %c0_296 = arith.constant 0 : index
    %c96_297 = arith.constant 96 : index
    %205 = vector.load %arg22[%c0_296, %c96_297] : memref<16x288xf32, #tpu.memory_space<vmem>>, vector<16x32xf32>
    tpu.vector_store %arg22[%c0_296, %c96_297], %204 {strides = array<i32>} : memref<16x288xf32, #tpu.memory_space<vmem>>, vector<16x32xf32>,
    %c1_298 = arith.constant 1 : index
    %c0_299 = arith.constant 0 : index
    %c0_300 = arith.constant 0 : index
    %206 = vector.load %arg21[%c1_298, %c0_299, %c0_300] : memref<10x5x32xf32, #tpu.memory_space<vmem>>, vector<8x4x32xf32>
    %207 = vector.shape_cast %206 : vector<8x4x32xf32> to vector<4x2x4x32xf32>
    %208 = vector.extract_strided_slice %207 {offsets = [0, 0, 0, 0], sizes = [4, 1, 4, 32], strides = [1, 1, 1, 1]} : vector<4x2x4x32xf32> to vector<4x1x4x32xf32>
    %209 = vector.shape_cast %208 : vector<4x1x4x32xf32> to vector<4x4x32xf32>
    %210 = vector.shape_cast %209 : vector<4x4x32xf32> to vector<16x32xf32>
    %c0_301 = arith.constant 0 : index
    %c128_302 = arith.constant 128 : index
    %211 = vector.load %arg22[%c0_301, %c128_302] : memref<16x288xf32, #tpu.memory_space<vmem>>, vector<16x32xf32>
    tpu.vector_store %arg22[%c0_301, %c128_302], %210 {strides = array<i32>} : memref<16x288xf32, #tpu.memory_space<vmem>>, vector<16x32xf32>,
    %c1_303 = arith.constant 1 : index
    %c1_304 = arith.constant 1 : index
    %c0_305 = arith.constant 0 : index
    %212 = vector.load %arg20[%c1_303, %c1_304, %c0_305] : memref<10x5x32xf32, #tpu.memory_space<vmem>>, vector<8x4x32xf32>
    %213 = vector.shape_cast %212 : vector<8x4x32xf32> to vector<4x2x4x32xf32>
    %214 = vector.extract_strided_slice %213 {offsets = [0, 0, 0, 0], sizes = [4, 1, 4, 32], strides = [1, 1, 1, 1]} : vector<4x2x4x32xf32> to vector<4x1x4x32xf32>
    %215 = vector.shape_cast %214 : vector<4x1x4x32xf32> to vector<4x4x32xf32>
    %216 = vector.shape_cast %215 : vector<4x4x32xf32> to vector<16x32xf32>
    %c0_306 = arith.constant 0 : index
    %c160 = arith.constant 160 : index
    %217 = vector.load %arg22[%c0_306, %c160] : memref<16x288xf32, #tpu.memory_space<vmem>>, vector<16x32xf32>
    tpu.vector_store %arg22[%c0_306, %c160], %216 {strides = array<i32>} : memref<16x288xf32, #tpu.memory_space<vmem>>, vector<16x32xf32>,
    %c2_307 = arith.constant 2 : index
    %c0_308 = arith.constant 0 : index
    %c0_309 = arith.constant 0 : index
    %218 = vector.load %arg20[%c2_307, %c0_308, %c0_309] : memref<10x5x32xf32, #tpu.memory_space<vmem>>, vector<8x4x32xf32>
    %219 = vector.shape_cast %218 : vector<8x4x32xf32> to vector<4x2x4x32xf32>
    %220 = vector.extract_strided_slice %219 {offsets = [0, 0, 0, 0], sizes = [4, 1, 4, 32], strides = [1, 1, 1, 1]} : vector<4x2x4x32xf32> to vector<4x1x4x32xf32>
    %221 = vector.shape_cast %220 : vector<4x1x4x32xf32> to vector<4x4x32xf32>
    %222 = vector.shape_cast %221 : vector<4x4x32xf32> to vector<16x32xf32>
    %c0_310 = arith.constant 0 : index
    %c192 = arith.constant 192 : index
    %223 = vector.load %arg22[%c0_310, %c192] : memref<16x288xf32, #tpu.memory_space<vmem>>, vector<16x32xf32>
    tpu.vector_store %arg22[%c0_310, %c192], %222 {strides = array<i32>} : memref<16x288xf32, #tpu.memory_space<vmem>>, vector<16x32xf32>,
    %c2_311 = arith.constant 2 : index
    %c0_312 = arith.constant 0 : index
    %c0_313 = arith.constant 0 : index
    %224 = vector.load %arg21[%c2_311, %c0_312, %c0_313] : memref<10x5x32xf32, #tpu.memory_space<vmem>>, vector<8x4x32xf32>
    %225 = vector.shape_cast %224 : vector<8x4x32xf32> to vector<4x2x4x32xf32>
    %226 = vector.extract_strided_slice %225 {offsets = [0, 0, 0, 0], sizes = [4, 1, 4, 32], strides = [1, 1, 1, 1]} : vector<4x2x4x32xf32> to vector<4x1x4x32xf32>
    %227 = vector.shape_cast %226 : vector<4x1x4x32xf32> to vector<4x4x32xf32>
    %228 = vector.shape_cast %227 : vector<4x4x32xf32> to vector<16x32xf32>
    %c0_314 = arith.constant 0 : index
    %c224 = arith.constant 224 : index
    %229 = vector.load %arg22[%c0_314, %c224] : memref<16x288xf32, #tpu.memory_space<vmem>>, vector<16x32xf32>
    tpu.vector_store %arg22[%c0_314, %c224], %228 {strides = array<i32>} : memref<16x288xf32, #tpu.memory_space<vmem>>, vector<16x32xf32>,
    %c2_315 = arith.constant 2 : index
    %c1_316 = arith.constant 1 : index
    %c0_317 = arith.constant 0 : index
    %230 = vector.load %arg20[%c2_315, %c1_316, %c0_317] : memref<10x5x32xf32, #tpu.memory_space<vmem>>, vector<8x4x32xf32>
    %231 = vector.shape_cast %230 : vector<8x4x32xf32> to vector<4x2x4x32xf32>
    %232 = vector.extract_strided_slice %231 {offsets = [0, 0, 0, 0], sizes = [4, 1, 4, 32], strides = [1, 1, 1, 1]} : vector<4x2x4x32xf32> to vector<4x1x4x32xf32>
    %233 = vector.shape_cast %232 : vector<4x1x4x32xf32> to vector<4x4x32xf32>
    %234 = vector.shape_cast %233 : vector<4x4x32xf32> to vector<16x32xf32>
    %c0_318 = arith.constant 0 : index
    %c256 = arith.constant 256 : index
    %235 = vector.load %arg22[%c0_318, %c256] : memref<16x288xf32, #tpu.memory_space<vmem>>, vector<16x32xf32>
    tpu.vector_store %arg22[%c0_318, %c256], %234 {strides = array<i32>} : memref<16x288xf32, #tpu.memory_space<vmem>>, vector<16x32xf32>,
    %c0_319 = arith.constant 0 : index
    %c0_320 = arith.constant 0 : index
    %236 = vector.load %arg22[%c0_319, %c0_320] : memref<16x288xf32, #tpu.memory_space<vmem>>, vector<16x288xf32>
    %237 = arith.truncf %236 : vector<16x288xf32> to vector<16x288xbf16>
    %c0_321 = arith.constant 0 : index
    %c0_322 = arith.constant 0 : index
    %238 = vector.load %arg6[%c0_321, %c0_322] : memref<288x64xbf16, #tpu.memory_space<vmem>>, vector<288x64xbf16>
    %cst_323 = arith.constant dense<0.000000e+00> : vector<16x64xf32>
    %239 = tpu.matmul %237, %238, %cst_323 {dimension_numbers = #tpu.dot_dimension_numbers<[1], [0], [0], [1], [0, 0, 1, 1], [], []>} : vector<16x288xbf16>, vector<288x64xbf16>, vector<16x64xf32> -> vector<16x64xf32>
    %c0_324 = arith.constant 0 : index
    %c0_325 = arith.constant 0 : index
    %240 = vector.load %arg7[%c0_324, %c0_325] : memref<3x64xf32, #tpu.memory_space<vmem>>, vector<1x64xf32>
    %241 = vector.broadcast %240 : vector<1x64xf32> to vector<16x64xf32>
    %242 = arith.mulf %239, %241 : vector<16x64xf32>
    %c1_326 = arith.constant 1 : index
    %c0_327 = arith.constant 0 : index
    %243 = vector.load %arg7[%c1_326, %c0_327] : memref<3x64xf32, #tpu.memory_space<vmem>>, vector<1x64xf32>
    %244 = vector.broadcast %243 : vector<1x64xf32> to vector<16x64xf32>
    %245 = arith.addf %242, %244 : vector<16x64xf32>
    %cst_328 = arith.constant 0.000000e+00 : f32
    %246 = vector.broadcast %cst_328 : f32 to vector<16x64xf32>
    %247 = arith.cmpf ogt, %245, %246 : vector<16x64xf32>
    %c2_329 = arith.constant 2 : index
    %c0_330 = arith.constant 0 : index
    %248 = vector.load %arg7[%c2_329, %c0_330] : memref<3x64xf32, #tpu.memory_space<vmem>>, vector<1x64xf32>
    %249 = vector.broadcast %248 : vector<1x64xf32> to vector<16x64xf32>
    %250 = arith.mulf %245, %249 : vector<16x64xf32>
    %251 = arith.select %247, %245, %250 : vector<16x64xi1>, vector<16x64xf32>
    %252 = vector.shape_cast %251 : vector<16x64xf32> to vector<4x4x64xf32>
    %cst_331 = arith.constant 0.000000e+00 : f32
    %253 = vector.broadcast %cst_331 : f32 to vector<6x6x64xf32>
    %c0_332 = arith.constant 0 : index
    %c0_333 = arith.constant 0 : index
    %c0_334 = arith.constant 0 : index
    %254 = vector.load %arg23[%c0_332, %c0_333, %c0_334] : memref<6x6x64xf32, #tpu.memory_space<vmem>>, vector<6x6x64xf32>
    tpu.vector_store %arg23[%c0_332, %c0_333, %c0_334], %253 {strides = array<i32>} : memref<6x6x64xf32, #tpu.memory_space<vmem>>, vector<6x6x64xf32>,
    %c1_335 = arith.constant 1 : index
    %c1_336 = arith.constant 1 : index
    %c0_337 = arith.constant 0 : index
    %255 = vector.load %arg23[%c1_335, %c1_336, %c0_337] : memref<6x6x64xf32, #tpu.memory_space<vmem>>, vector<4x4x64xf32>
    tpu.vector_store %arg23[%c1_335, %c1_336, %c0_337], %252 {strides = array<i32>} : memref<6x6x64xf32, #tpu.memory_space<vmem>>, vector<4x4x64xf32>,
    %c0_338 = arith.constant 0 : index
    %c0_339 = arith.constant 0 : index
    %c0_340 = arith.constant 0 : index
    %256 = vector.load %arg23[%c0_338, %c0_339, %c0_340] : memref<6x6x64xf32, #tpu.memory_space<vmem>>, vector<6x1x64xf32>
    %c0_341 = arith.constant 0 : index
    %c0_342 = arith.constant 0 : index
    %c0_343 = arith.constant 0 : index
    %257 = vector.load %arg24[%c0_341, %c0_342, %c0_343] : memref<6x3x64xf32, #tpu.memory_space<vmem>>, vector<6x1x64xf32>
    tpu.vector_store %arg24[%c0_341, %c0_342, %c0_343], %256 {strides = array<i32>} : memref<6x3x64xf32, #tpu.memory_space<vmem>>, vector<6x1x64xf32>,
    %c0_344 = arith.constant 0 : index
    %c1_345 = arith.constant 1 : index
    %c0_346 = arith.constant 0 : index
    %258 = vector.load %arg23[%c0_344, %c1_345, %c0_346] : memref<6x6x64xf32, #tpu.memory_space<vmem>>, vector<6x1x64xf32>
    %c0_347 = arith.constant 0 : index
    %c0_348 = arith.constant 0 : index
    %c0_349 = arith.constant 0 : index
    %259 = vector.load %arg25[%c0_347, %c0_348, %c0_349] : memref<6x3x64xf32, #tpu.memory_space<vmem>>, vector<6x1x64xf32>
    tpu.vector_store %arg25[%c0_347, %c0_348, %c0_349], %258 {strides = array<i32>} : memref<6x3x64xf32, #tpu.memory_space<vmem>>, vector<6x1x64xf32>,
    %c0_350 = arith.constant 0 : index
    %c2_351 = arith.constant 2 : index
    %c0_352 = arith.constant 0 : index
    %260 = vector.load %arg23[%c0_350, %c2_351, %c0_352] : memref<6x6x64xf32, #tpu.memory_space<vmem>>, vector<6x1x64xf32>
    %c0_353 = arith.constant 0 : index
    %c1_354 = arith.constant 1 : index
    %c0_355 = arith.constant 0 : index
    %261 = vector.load %arg24[%c0_353, %c1_354, %c0_355] : memref<6x3x64xf32, #tpu.memory_space<vmem>>, vector<6x1x64xf32>
    tpu.vector_store %arg24[%c0_353, %c1_354, %c0_355], %260 {strides = array<i32>} : memref<6x3x64xf32, #tpu.memory_space<vmem>>, vector<6x1x64xf32>,
    %c0_356 = arith.constant 0 : index
    %c3_357 = arith.constant 3 : index
    %c0_358 = arith.constant 0 : index
    %262 = vector.load %arg23[%c0_356, %c3_357, %c0_358] : memref<6x6x64xf32, #tpu.memory_space<vmem>>, vector<6x1x64xf32>
    %c0_359 = arith.constant 0 : index
    %c1_360 = arith.constant 1 : index
    %c0_361 = arith.constant 0 : index
    %263 = vector.load %arg25[%c0_359, %c1_360, %c0_361] : memref<6x3x64xf32, #tpu.memory_space<vmem>>, vector<6x1x64xf32>
    tpu.vector_store %arg25[%c0_359, %c1_360, %c0_361], %262 {strides = array<i32>} : memref<6x3x64xf32, #tpu.memory_space<vmem>>, vector<6x1x64xf32>,
    %c0_362 = arith.constant 0 : index
    %c4_363 = arith.constant 4 : index
    %c0_364 = arith.constant 0 : index
    %264 = vector.load %arg23[%c0_362, %c4_363, %c0_364] : memref<6x6x64xf32, #tpu.memory_space<vmem>>, vector<6x1x64xf32>
    %c0_365 = arith.constant 0 : index
    %c2_366 = arith.constant 2 : index
    %c0_367 = arith.constant 0 : index
    %265 = vector.load %arg24[%c0_365, %c2_366, %c0_367] : memref<6x3x64xf32, #tpu.memory_space<vmem>>, vector<6x1x64xf32>
    tpu.vector_store %arg24[%c0_365, %c2_366, %c0_367], %264 {strides = array<i32>} : memref<6x3x64xf32, #tpu.memory_space<vmem>>, vector<6x1x64xf32>,
    %c0_368 = arith.constant 0 : index
    %c5_369 = arith.constant 5 : index
    %c0_370 = arith.constant 0 : index
    %266 = vector.load %arg23[%c0_368, %c5_369, %c0_370] : memref<6x6x64xf32, #tpu.memory_space<vmem>>, vector<6x1x64xf32>
    %c0_371 = arith.constant 0 : index
    %c2_372 = arith.constant 2 : index
    %c0_373 = arith.constant 0 : index
    %267 = vector.load %arg25[%c0_371, %c2_372, %c0_373] : memref<6x3x64xf32, #tpu.memory_space<vmem>>, vector<6x1x64xf32>
    tpu.vector_store %arg25[%c0_371, %c2_372, %c0_373], %266 {strides = array<i32>} : memref<6x3x64xf32, #tpu.memory_space<vmem>>, vector<6x1x64xf32>,
    %c0_374 = arith.constant 0 : index
    %c0_375 = arith.constant 0 : index
    %c0_376 = arith.constant 0 : index
    %268 = vector.load %arg24[%c0_374, %c0_375, %c0_376] : memref<6x3x64xf32, #tpu.memory_space<vmem>>, vector<4x2x64xf32>
    %269 = vector.shape_cast %268 : vector<4x2x64xf32> to vector<2x2x2x64xf32>
    %270 = vector.extract_strided_slice %269 {offsets = [0, 0, 0, 0], sizes = [2, 1, 2, 64], strides = [1, 1, 1, 1]} : vector<2x2x2x64xf32> to vector<2x1x2x64xf32>
    %271 = vector.shape_cast %270 : vector<2x1x2x64xf32> to vector<2x2x64xf32>
    %272 = vector.shape_cast %271 : vector<2x2x64xf32> to vector<4x64xf32>
    %c0_377 = arith.constant 0 : index
    %c0_378 = arith.constant 0 : index
    %273 = vector.load %arg26[%c0_377, %c0_378] : memref<4x576xf32, #tpu.memory_space<vmem>>, vector<4x64xf32>
    tpu.vector_store %arg26[%c0_377, %c0_378], %272 {strides = array<i32>} : memref<4x576xf32, #tpu.memory_space<vmem>>, vector<4x64xf32>,
    %c0_379 = arith.constant 0 : index
    %c0_380 = arith.constant 0 : index
    %c0_381 = arith.constant 0 : index
    %274 = vector.load %arg25[%c0_379, %c0_380, %c0_381] : memref<6x3x64xf32, #tpu.memory_space<vmem>>, vector<4x2x64xf32>
    %275 = vector.shape_cast %274 : vector<4x2x64xf32> to vector<2x2x2x64xf32>
    %276 = vector.extract_strided_slice %275 {offsets = [0, 0, 0, 0], sizes = [2, 1, 2, 64], strides = [1, 1, 1, 1]} : vector<2x2x2x64xf32> to vector<2x1x2x64xf32>
    %277 = vector.shape_cast %276 : vector<2x1x2x64xf32> to vector<2x2x64xf32>
    %278 = vector.shape_cast %277 : vector<2x2x64xf32> to vector<4x64xf32>
    %c0_382 = arith.constant 0 : index
    %c64_383 = arith.constant 64 : index
    %279 = vector.load %arg26[%c0_382, %c64_383] : memref<4x576xf32, #tpu.memory_space<vmem>>, vector<4x64xf32>
    tpu.vector_store %arg26[%c0_382, %c64_383], %278 {strides = array<i32>} : memref<4x576xf32, #tpu.memory_space<vmem>>, vector<4x64xf32>,
    %c0_384 = arith.constant 0 : index
    %c1_385 = arith.constant 1 : index
    %c0_386 = arith.constant 0 : index
    %280 = vector.load %arg24[%c0_384, %c1_385, %c0_386] : memref<6x3x64xf32, #tpu.memory_space<vmem>>, vector<4x2x64xf32>
    %281 = vector.shape_cast %280 : vector<4x2x64xf32> to vector<2x2x2x64xf32>
    %282 = vector.extract_strided_slice %281 {offsets = [0, 0, 0, 0], sizes = [2, 1, 2, 64], strides = [1, 1, 1, 1]} : vector<2x2x2x64xf32> to vector<2x1x2x64xf32>
    %283 = vector.shape_cast %282 : vector<2x1x2x64xf32> to vector<2x2x64xf32>
    %284 = vector.shape_cast %283 : vector<2x2x64xf32> to vector<4x64xf32>
    %c0_387 = arith.constant 0 : index
    %c128_388 = arith.constant 128 : index
    %285 = vector.load %arg26[%c0_387, %c128_388] : memref<4x576xf32, #tpu.memory_space<vmem>>, vector<4x64xf32>
    tpu.vector_store %arg26[%c0_387, %c128_388], %284 {strides = array<i32>} : memref<4x576xf32, #tpu.memory_space<vmem>>, vector<4x64xf32>,
    %c1_389 = arith.constant 1 : index
    %c0_390 = arith.constant 0 : index
    %c0_391 = arith.constant 0 : index
    %286 = vector.load %arg24[%c1_389, %c0_390, %c0_391] : memref<6x3x64xf32, #tpu.memory_space<vmem>>, vector<4x2x64xf32>
    %287 = vector.shape_cast %286 : vector<4x2x64xf32> to vector<2x2x2x64xf32>
    %288 = vector.extract_strided_slice %287 {offsets = [0, 0, 0, 0], sizes = [2, 1, 2, 64], strides = [1, 1, 1, 1]} : vector<2x2x2x64xf32> to vector<2x1x2x64xf32>
    %289 = vector.shape_cast %288 : vector<2x1x2x64xf32> to vector<2x2x64xf32>
    %290 = vector.shape_cast %289 : vector<2x2x64xf32> to vector<4x64xf32>
    %c0_392 = arith.constant 0 : index
    %c192_393 = arith.constant 192 : index
    %291 = vector.load %arg26[%c0_392, %c192_393] : memref<4x576xf32, #tpu.memory_space<vmem>>, vector<4x64xf32>
    tpu.vector_store %arg26[%c0_392, %c192_393], %290 {strides = array<i32>} : memref<4x576xf32, #tpu.memory_space<vmem>>, vector<4x64xf32>,
    %c1_394 = arith.constant 1 : index
    %c0_395 = arith.constant 0 : index
    %c0_396 = arith.constant 0 : index
    %292 = vector.load %arg25[%c1_394, %c0_395, %c0_396] : memref<6x3x64xf32, #tpu.memory_space<vmem>>, vector<4x2x64xf32>
    %293 = vector.shape_cast %292 : vector<4x2x64xf32> to vector<2x2x2x64xf32>
    %294 = vector.extract_strided_slice %293 {offsets = [0, 0, 0, 0], sizes = [2, 1, 2, 64], strides = [1, 1, 1, 1]} : vector<2x2x2x64xf32> to vector<2x1x2x64xf32>
    %295 = vector.shape_cast %294 : vector<2x1x2x64xf32> to vector<2x2x64xf32>
    %296 = vector.shape_cast %295 : vector<2x2x64xf32> to vector<4x64xf32>
    %c0_397 = arith.constant 0 : index
    %c256_398 = arith.constant 256 : index
    %297 = vector.load %arg26[%c0_397, %c256_398] : memref<4x576xf32, #tpu.memory_space<vmem>>, vector<4x64xf32>
    tpu.vector_store %arg26[%c0_397, %c256_398], %296 {strides = array<i32>} : memref<4x576xf32, #tpu.memory_space<vmem>>, vector<4x64xf32>,
    %c1_399 = arith.constant 1 : index
    %c1_400 = arith.constant 1 : index
    %c0_401 = arith.constant 0 : index
    %298 = vector.load %arg24[%c1_399, %c1_400, %c0_401] : memref<6x3x64xf32, #tpu.memory_space<vmem>>, vector<4x2x64xf32>
    %299 = vector.shape_cast %298 : vector<4x2x64xf32> to vector<2x2x2x64xf32>
    %300 = vector.extract_strided_slice %299 {offsets = [0, 0, 0, 0], sizes = [2, 1, 2, 64], strides = [1, 1, 1, 1]} : vector<2x2x2x64xf32> to vector<2x1x2x64xf32>
    %301 = vector.shape_cast %300 : vector<2x1x2x64xf32> to vector<2x2x64xf32>
    %302 = vector.shape_cast %301 : vector<2x2x64xf32> to vector<4x64xf32>
    %c0_402 = arith.constant 0 : index
    %c320 = arith.constant 320 : index
    %303 = vector.load %arg26[%c0_402, %c320] : memref<4x576xf32, #tpu.memory_space<vmem>>, vector<4x64xf32>
    tpu.vector_store %arg26[%c0_402, %c320], %302 {strides = array<i32>} : memref<4x576xf32, #tpu.memory_space<vmem>>, vector<4x64xf32>,
    %c2_403 = arith.constant 2 : index
    %c0_404 = arith.constant 0 : index
    %c0_405 = arith.constant 0 : index
    %304 = vector.load %arg24[%c2_403, %c0_404, %c0_405] : memref<6x3x64xf32, #tpu.memory_space<vmem>>, vector<4x2x64xf32>
    %305 = vector.shape_cast %304 : vector<4x2x64xf32> to vector<2x2x2x64xf32>
    %306 = vector.extract_strided_slice %305 {offsets = [0, 0, 0, 0], sizes = [2, 1, 2, 64], strides = [1, 1, 1, 1]} : vector<2x2x2x64xf32> to vector<2x1x2x64xf32>
    %307 = vector.shape_cast %306 : vector<2x1x2x64xf32> to vector<2x2x64xf32>
    %308 = vector.shape_cast %307 : vector<2x2x64xf32> to vector<4x64xf32>
    %c0_406 = arith.constant 0 : index
    %c384 = arith.constant 384 : index
    %309 = vector.load %arg26[%c0_406, %c384] : memref<4x576xf32, #tpu.memory_space<vmem>>, vector<4x64xf32>
    tpu.vector_store %arg26[%c0_406, %c384], %308 {strides = array<i32>} : memref<4x576xf32, #tpu.memory_space<vmem>>, vector<4x64xf32>,
    %c2_407 = arith.constant 2 : index
    %c0_408 = arith.constant 0 : index
    %c0_409 = arith.constant 0 : index
    %310 = vector.load %arg25[%c2_407, %c0_408, %c0_409] : memref<6x3x64xf32, #tpu.memory_space<vmem>>, vector<4x2x64xf32>
    %311 = vector.shape_cast %310 : vector<4x2x64xf32> to vector<2x2x2x64xf32>
    %312 = vector.extract_strided_slice %311 {offsets = [0, 0, 0, 0], sizes = [2, 1, 2, 64], strides = [1, 1, 1, 1]} : vector<2x2x2x64xf32> to vector<2x1x2x64xf32>
    %313 = vector.shape_cast %312 : vector<2x1x2x64xf32> to vector<2x2x64xf32>
    %314 = vector.shape_cast %313 : vector<2x2x64xf32> to vector<4x64xf32>
    %c0_410 = arith.constant 0 : index
    %c448 = arith.constant 448 : index
    %315 = vector.load %arg26[%c0_410, %c448] : memref<4x576xf32, #tpu.memory_space<vmem>>, vector<4x64xf32>
    tpu.vector_store %arg26[%c0_410, %c448], %314 {strides = array<i32>} : memref<4x576xf32, #tpu.memory_space<vmem>>, vector<4x64xf32>,
    %c2_411 = arith.constant 2 : index
    %c1_412 = arith.constant 1 : index
    %c0_413 = arith.constant 0 : index
    %316 = vector.load %arg24[%c2_411, %c1_412, %c0_413] : memref<6x3x64xf32, #tpu.memory_space<vmem>>, vector<4x2x64xf32>
    %317 = vector.shape_cast %316 : vector<4x2x64xf32> to vector<2x2x2x64xf32>
    %318 = vector.extract_strided_slice %317 {offsets = [0, 0, 0, 0], sizes = [2, 1, 2, 64], strides = [1, 1, 1, 1]} : vector<2x2x2x64xf32> to vector<2x1x2x64xf32>
    %319 = vector.shape_cast %318 : vector<2x1x2x64xf32> to vector<2x2x64xf32>
    %320 = vector.shape_cast %319 : vector<2x2x64xf32> to vector<4x64xf32>
    %c0_414 = arith.constant 0 : index
    %c512 = arith.constant 512 : index
    %321 = vector.load %arg26[%c0_414, %c512] : memref<4x576xf32, #tpu.memory_space<vmem>>, vector<4x64xf32>
    tpu.vector_store %arg26[%c0_414, %c512], %320 {strides = array<i32>} : memref<4x576xf32, #tpu.memory_space<vmem>>, vector<4x64xf32>,
    %c0_415 = arith.constant 0 : index
    %c0_416 = arith.constant 0 : index
    %322 = vector.load %arg26[%c0_415, %c0_416] : memref<4x576xf32, #tpu.memory_space<vmem>>, vector<4x576xf32>
    %323 = arith.truncf %322 : vector<4x576xf32> to vector<4x576xbf16>
    %c0_417 = arith.constant 0 : index
    %c0_418 = arith.constant 0 : index
    %324 = vector.load %arg8[%c0_417, %c0_418] : memref<576x128xbf16, #tpu.memory_space<vmem>>, vector<576x128xbf16>
    %cst_419 = arith.constant dense<0.000000e+00> : vector<4x128xf32>
    %325 = tpu.matmul %323, %324, %cst_419 {dimension_numbers = #tpu.dot_dimension_numbers<[1], [0], [0], [1], [0, 0, 1, 1], [], []>} : vector<4x576xbf16>, vector<576x128xbf16>, vector<4x128xf32> -> vector<4x128xf32>
    %c0_420 = arith.constant 0 : index
    %c0_421 = arith.constant 0 : index
    %326 = vector.load %arg9[%c0_420, %c0_421] : memref<3x128xf32, #tpu.memory_space<vmem>>, vector<1x128xf32>
    %327 = vector.broadcast %326 : vector<1x128xf32> to vector<4x128xf32>
    %328 = arith.mulf %325, %327 : vector<4x128xf32>
    %c1_422 = arith.constant 1 : index
    %c0_423 = arith.constant 0 : index
    %329 = vector.load %arg9[%c1_422, %c0_423] : memref<3x128xf32, #tpu.memory_space<vmem>>, vector<1x128xf32>
    %330 = vector.broadcast %329 : vector<1x128xf32> to vector<4x128xf32>
    %331 = arith.addf %328, %330 : vector<4x128xf32>
    %cst_424 = arith.constant 0.000000e+00 : f32
    %332 = vector.broadcast %cst_424 : f32 to vector<4x128xf32>
    %333 = arith.cmpf ogt, %331, %332 : vector<4x128xf32>
    %c2_425 = arith.constant 2 : index
    %c0_426 = arith.constant 0 : index
    %334 = vector.load %arg9[%c2_425, %c0_426] : memref<3x128xf32, #tpu.memory_space<vmem>>, vector<1x128xf32>
    %335 = vector.broadcast %334 : vector<1x128xf32> to vector<4x128xf32>
    %336 = arith.mulf %331, %335 : vector<4x128xf32>
    %337 = arith.select %333, %331, %336 : vector<4x128xi1>, vector<4x128xf32>
    %338 = vector.shape_cast %337 : vector<4x128xf32> to vector<2x2x128xf32>
    %339 = vector.shape_cast %338 : vector<2x2x128xf32> to vector<4x128xf32>
    %cst_427 = arith.constant dense<0.000000e+00> : vector<128xf32>
    %340 = vector.multi_reduction <add>, %339, %cst_427 [0] : vector<4x128xf32> to vector<128xf32>
    %341 = vector.shape_cast %340 : vector<128xf32> to vector<1x128xf32>
    %cst_428 = arith.constant 4.000000e+00 : f32
    %342 = vector.broadcast %cst_428 : f32 to vector<1x128xf32>
    %343 = arith.divf %341, %342 : vector<1x128xf32>
    %c0_429 = arith.constant 0 : index
    %c0_430 = arith.constant 0 : index
    %344 = vector.load %arg10[%c0_429, %c0_430] : memref<128x2xf32, #tpu.memory_space<vmem>>, vector<128x2xf32>
    %cst_431 = arith.constant dense<0.000000e+00> : vector<1x2xf32>
    %345 = tpu.matmul %343, %344, %cst_431 {dimension_numbers = #tpu.dot_dimension_numbers<[1], [0], [0], [1], [0, 0, 1, 1], [], []>} : vector<1x128xf32>, vector<128x2xf32>, vector<1x2xf32> -> vector<1x2xf32>
    %c0_432 = arith.constant 0 : index
    %c0_433 = arith.constant 0 : index
    %346 = vector.load %arg11[%c0_432, %c0_433] : memref<1x2xf32, #tpu.memory_space<vmem>>, vector<1x2xf32>
    %347 = arith.addf %345, %346 : vector<1x2xf32>
    %348 = vector.shape_cast %347 : vector<1x2xf32> to vector<1x1x2xf32>
    %c0_434 = arith.constant 0 : index
    %c0_435 = arith.constant 0 : index
    %c0_436 = arith.constant 0 : index
    %349 = vector.load %arg12[%c0_434, %c0_435, %c0_436] : memref<1x1x2xf32, #tpu.memory_space<vmem>>, vector<1x1x2xf32>
    tpu.vector_store %arg12[%c0_434, %c0_435, %c0_436], %348 {strides = array<i32>} : memref<1x1x2xf32, #tpu.memory_space<vmem>>, vector<1x1x2xf32>,
    return
  }
  func.func @transform_0(%arg0: i32) -> (i32, i32, i32, i32) {
    %c0_i32 = arith.constant 0 : i32
    %c0_i32_0 = arith.constant 0 : i32
    %c0_i32_1 = arith.constant 0 : i32
    %c0_i32_2 = arith.constant 0 : i32
    return %arg0, %c0_i32, %c0_i32_0, %c0_i32_1 : i32, i32, i32, i32
  }
  func.func @transform_1(%arg0: i32) -> (i32, i32) {
    %c0_i32 = arith.constant 0 : i32
    %c0_i32_0 = arith.constant 0 : i32
    %c0_i32_1 = arith.constant 0 : i32
    return %c0_i32, %c0_i32_0 : i32, i32
  }
  func.func @transform_2(%arg0: i32) -> (i32, i32) {
    %c0_i32 = arith.constant 0 : i32
    %c0_i32_0 = arith.constant 0 : i32
    %c0_i32_1 = arith.constant 0 : i32
    return %c0_i32, %c0_i32_0 : i32, i32
  }
  func.func @transform_3(%arg0: i32) -> (i32, i32) {
    %c0_i32 = arith.constant 0 : i32
    %c0_i32_0 = arith.constant 0 : i32
    %c0_i32_1 = arith.constant 0 : i32
    return %c0_i32, %c0_i32_0 : i32, i32
  }
  func.func @transform_4(%arg0: i32) -> (i32, i32) {
    %c0_i32 = arith.constant 0 : i32
    %c0_i32_0 = arith.constant 0 : i32
    %c0_i32_1 = arith.constant 0 : i32
    return %c0_i32, %c0_i32_0 : i32, i32
  }
  func.func @transform_5(%arg0: i32) -> (i32, i32) {
    %c0_i32 = arith.constant 0 : i32
    %c0_i32_0 = arith.constant 0 : i32
    %c0_i32_1 = arith.constant 0 : i32
    return %c0_i32, %c0_i32_0 : i32, i32
  }
  func.func @transform_6(%arg0: i32) -> (i32, i32) {
    %c0_i32 = arith.constant 0 : i32
    %c0_i32_0 = arith.constant 0 : i32
    %c0_i32_1 = arith.constant 0 : i32
    return %c0_i32, %c0_i32_0 : i32, i32
  }
  func.func @transform_7(%arg0: i32) -> (i32, i32) {
    %c0_i32 = arith.constant 0 : i32
    %c0_i32_0 = arith.constant 0 : i32
    %c0_i32_1 = arith.constant 0 : i32
    return %c0_i32, %c0_i32_0 : i32, i32
  }
  func.func @transform_8(%arg0: i32) -> (i32, i32) {
    %c0_i32 = arith.constant 0 : i32
    %c0_i32_0 = arith.constant 0 : i32
    %c0_i32_1 = arith.constant 0 : i32
    return %c0_i32, %c0_i32_0 : i32, i32
  }
  func.func @transform_9(%arg0: i32) -> (i32, i32) {
    %c0_i32 = arith.constant 0 : i32
    %c0_i32_0 = arith.constant 0 : i32
    %c0_i32_1 = arith.constant 0 : i32
    return %c0_i32, %c0_i32_0 : i32, i32
  }
  func.func @transform_10(%arg0: i32) -> (i32, i32) {
    %c0_i32 = arith.constant 0 : i32
    %c0_i32_0 = arith.constant 0 : i32
    %c0_i32_1 = arith.constant 0 : i32
    return %c0_i32, %c0_i32_0 : i32, i32
  }
  func.func @transform_11(%arg0: i32) -> (i32, i32, i32) {
    %c0_i32 = arith.constant 0 : i32
    %c0_i32_0 = arith.constant 0 : i32
    %c0_i32_1 = arith.constant 0 : i32
    return %arg0, %c0_i32, %c0_i32_0 : i32, i32, i32
  }
}

</mosaic_0001>

<llo_original>
// kernel: minifasnet_forward.1
$region0: #{minifasnet_forward.1}
  #allocation0 [shape = 'u32[]', space=smem, size = 0x4, offset = 0x4, fixed_abs, tag = 'smem constant byte address 0x4 - core index']
  #allocation1 [shape = 'u32[144,128]{1,0:T(1,128)}', space=vmem, size = 0x12000, scoped, tag = 'internal scratch']
  #allocation2 [shape = 'f32[18,18,3]{2,1,0:T(8,128)}', space=vmem, size = 0x36000, scoped, tag = 'scratch operand']
  #allocation3 [shape = 'f32[256,27]{1,0:T(8,128)}', space=vmem, size = 0x20000, scoped, tag = 'scratch operand']
  #allocation4 [shape = 'f32[18,18,16]{2,1,0:T(8,128)}', space=vmem, size = 0x36000, scoped, tag = 'scratch operand']
  #allocation5 [shape = 'f32[18,9,16]{2,1,0:T(8,128)}', space=vmem, size = 0x24000, scoped, tag = 'scratch operand']
  #allocation6 [shape = 'f32[18,9,16]{2,1,0:T(8,128)}', space=vmem, size = 0x24000, scoped, tag = 'scratch operand']
  #allocation7 [shape = 'f32[64,144]{1,0:T(8,128)}', space=vmem, size = 0x10000, scoped, tag = 'scratch operand']
  #allocation8 [shape = 'f32[10,10,32]{2,1,0:T(8,128)}', space=vmem, size = 0x14000, scoped, tag = 'scratch operand']
  #allocation9 [shape = 'f32[10,5,32]{2,1,0:T(8,128)}', space=vmem, size = 0xa000, scoped, tag = 'scratch operand']
  #allocation10 [shape = 'f32[10,5,32]{2,1,0:T(8,128)}', space=vmem, size = 0xa000, scoped, tag = 'scratch operand']
  #allocation11 [shape = 'f32[16,288]{1,0:T(8,128)}', space=vmem, size = 0x6000, scoped, tag = 'scratch operand']
  #allocation12 [shape = 'f32[6,6,64]{2,1,0:T(8,128)}', space=vmem, size = 0x6000, scoped, tag = 'scratch operand']
  #allocation13 [shape = 'f32[6,3,64]{2,1,0:T(4,128)}', space=vmem, size = 0x3000, scoped, tag = 'scratch operand']
  #allocation14 [shape = 'f32[6,3,64]{2,1,0:T(4,128)}', space=vmem, size = 0x3000, scoped, tag = 'scratch operand']
  #allocation15 [shape = 'f32[4,576]{1,0:T(4,128)}', space=vmem, size = 0x2800, scoped, tag = 'scratch operand']
  %s0 = inlined_call_operand.vmem [shape: f32[2,16,16,3], index: 0, kind: input, shape index: {}]
  %s1 = inlined_call_operand.vmem [shape: bf16[27,16], index: 1, kind: input, shape index: {}]
  %s2 = inlined_call_operand.vmem [shape: f32[3,16], index: 2, kind: input, shape index: {}]
  %s3 = inlined_call_operand.vmem [shape: bf16[144,32], index: 3, kind: input, shape index: {}]
  %s4 = inlined_call_operand.vmem [shape: f32[3,32], index: 4, kind: input, shape index: {}]
  %s5 = inlined_call_operand.vmem [shape: bf16[288,64], index: 5, kind: input, shape index: {}]
  %s6 = inlined_call_operand.vmem [shape: f32[3,64], index: 6, kind: input, shape index: {}]
  %s7 = inlined_call_operand.vmem [shape: bf16[576,128], index: 7, kind: input, shape index: {}]
  %s8 = inlined_call_operand.vmem [shape: f32[3,128], index: 8, kind: input, shape index: {}]
  %s9 = inlined_call_operand.vmem [shape: f32[128,2], index: 9, kind: input, shape index: {}]
  %s10 = inlined_call_operand.vmem [shape: f32[1,2], index: 10, kind: input, shape index: {}]
  %s11 = inlined_call_operand.hbm [shape: f32[2,1,2], index: 11, kind: output, shape index: {}]
  %s12 = sld [smem:[#allocation0]]
  $region77: #{minifasnet_forward.1} parent=0
    _
  %s14 = ssub.s32 1, %s12
  %s15 = scalar_select 0, %s14, %s12
  $region1: #{minifasnet_forward.1} parent=0
    #allocation16 [shape = 'u8[1024]{0}', space=vmem, size = 0x400, scoped, tag = 'output window, operand 0']
    #allocation17 [shape = 's32[2]{0}', space=sflag, size = 0x8, scoped, tag = 'scoped memory for minifasnet_forward.1']
    %16 = vsyncpa [#allocation17], 0
    %s17 = scalar_lea.sflag [#allocation17], 1
    %18 = vsyncpa %s17, 0
    loop: start=0, step=1, limit=4
    $region2: #{minifasnet_forward.1} parent=1 // loop_pre_header
      _
    $region3: #{minifasnet_forward.1} parent=1 // loop_header
      %s20 = sphi 0, %s24
      %p21 = scmp.ge.s32.totalorder %s20, 4
      %s30 = sphi 0, %s32
      %s33 = sphi 0, %s30
      %s34 = sphi 0, %s33
      %s50 = sphi 0, %s34
      %s54 = sphi 0, %s54
      %s56 = sphi 0, %s54
      %s57 = sphi 0, %s56
      %s71 = sphi 0, %s57
      %s75 = sphi 0, %s75
      %s77 = sphi 0, %s75
      %s78 = sphi 0, %s77
      %s92 = sphi 0, %s78
      %s96 = sphi 0, %s96
      %s98 = sphi 0, %s96
      %s99 = sphi 0, %s98
      %s113 = sphi 0, %s99
      %s117 = sphi 0, %s117
      %s119 = sphi 0, %s117
      %s120 = sphi 0, %s119
      %s134 = sphi 0, %s120
      %s138 = sphi 0, %s138
      %s140 = sphi 0, %s138
      %s141 = sphi 0, %s140
      %s155 = sphi 0, %s141
      %s159 = sphi 0, %s159
      %s161 = sphi 0, %s159
      %s162 = sphi 0, %s161
      %s176 = sphi 0, %s162
      %s180 = sphi 0, %s180
      %s182 = sphi 0, %s180
      %s183 = sphi 0, %s182
      %s197 = sphi 0, %s183
      %s201 = sphi 0, %s201
      %s203 = sphi 0, %s201
      %s204 = sphi 0, %s203
      %s218 = sphi 0, %s204
      %s222 = sphi 0, %s222
      %s224 = sphi 0, %s222
      %s225 = sphi 0, %s224
      %s239 = sphi 0, %s225
      %s243 = sphi 0, %s243
      %s245 = sphi 0, %s243
      %s246 = sphi 0, %s245
      %s260 = sphi 0, %s246
      %s266 = sphi 0, %s268
      %s269 = sphi 0, %s266
      %s270 = sphi 0, %s269
      %s286 = sphi 0, %s270
    $region4: #{minifasnet_forward.1} parent=1 // loop_header_branch
      %23 = sbr.rel (%p21) target = $region8
    $region5: #{minifasnet_forward.1} parent=1 // loop_body
      %s25 = ssub.s32 %s20, 1
      %s26 = ssub.s32 %s20, 2
      %s27 = sadd.s32 %s20, 1
      %s28 = ssub.s32 %s20, %s27
      %p29 = scmp.eq.s32.totalorder %s28, 0
      %s31 = sadd.s32 %s30, 1
      %s32 = scalar_select %p29, %s30, %s31
      %p35 = pneg %p29
      %p36 = scmp.eq.s32.totalorder %s20, 1
      %p37 = por %p35, %p36
      %p38 = scmp.ne.s32.totalorder %s30, %s33
      %p39 = scmp.eq.s32.totalorder %s20, 0
      %p40 = por %p38, %p39
      %p41 = scmp.ne.s32.totalorder %s30, %s33
      %p42 = scmp.eq.s32.totalorder %s25, 1
      %p43 = por %p41, %p42
      %p44 = scmp.ne.s32.totalorder %s33, %s34
      %p45 = scmp.eq.s32.totalorder %s25, 0
      %p46 = por %p44, %p45
      %p47 = scmp.ne.s32.totalorder %s33, %s34
      %p48 = scmp.eq.s32.totalorder %s26, 1
      %p49 = por %p47, %p48
      %p51 = scmp.ne.s32.totalorder %s34, %s50
      %p52 = scmp.eq.s32.totalorder %s26, 0
      %p53 = por %p51, %p52
      %s55 = sadd.s32 %s54, 1
      %p58 = scmp.eq.s32.totalorder %s20, 1
      %p59 = scmp.ne.s32.totalorder %s54, %s56
      %p60 = scmp.eq.s32.totalorder %s20, 0
      %p61 = por %p59, %p60
      %p62 = scmp.ne.s32.totalorder %s54, %s56
      %p63 = scmp.eq.s32.totalorder %s25, 1
      %p64 = por %p62, %p63
      %p65 = scmp.ne.s32.totalorder %s56, %s57
      %p66 = scmp.eq.s32.totalorder %s25, 0
      %p67 = por %p65, %p66
      %p68 = scmp.ne.s32.totalorder %s56, %s57
      %p69 = scmp.eq.s32.totalorder %s26, 1
      %p70 = por %p68, %p69
      %p72 = scmp.ne.s32.totalorder %s57, %s71
      %p73 = scmp.eq.s32.totalorder %s26, 0
      %p74 = por %p72, %p73
      %s76 = sadd.s32 %s75, 1
      %p79 = scmp.eq.s32.totalorder %s20, 1
      %p80 = scmp.ne.s32.totalorder %s75, %s77
      %p81 = scmp.eq.s32.totalorder %s20, 0
      %p82 = por %p80, %p81
      %p83 = scmp.ne.s32.totalorder %s75, %s77
      %p84 = scmp.eq.s32.totalorder %s25, 1
      %p85 = por %p83, %p84
      %p86 = scmp.ne.s32.totalorder %s77, %s78
      %p87 = scmp.eq.s32.totalorder %s25, 0
      %p88 = por %p86, %p87
      %p89 = scmp.ne.s32.totalorder %s77, %s78
      %p90 = scmp.eq.s32.totalorder %s26, 1
      %p91 = por %p89, %p90
      %p93 = scmp.ne.s32.totalorder %s78, %s92
      %p94 = scmp.eq.s32.totalorder %s26, 0
      %p95 = por %p93, %p94
      %s97 = sadd.s32 %s96, 1
      %p100 = scmp.eq.s32.totalorder %s20, 1
      %p101 = scmp.ne.s32.totalorder %s96, %s98
      %p102 = scmp.eq.s32.totalorder %s20, 0
      %p103 = por %p101, %p102
      %p104 = scmp.ne.s32.totalorder %s96, %s98
      %p105 = scmp.eq.s32.totalorder %s25, 1
      %p106 = por %p104, %p105
      %p107 = scmp.ne.s32.totalorder %s98, %s99
      %p108 = scmp.eq.s32.totalorder %s25, 0
      %p109 = por %p107, %p108
      %p110 = scmp.ne.s32.totalorder %s98, %s99
      %p111 = scmp.eq.s32.totalorder %s26, 1
      %p112 = por %p110, %p111
      %p114 = scmp.ne.s32.totalorder %s99, %s113
      %p115 = scmp.eq.s32.totalorder %s26, 0
      %p116 = por %p114, %p115
      %s118 = sadd.s32 %s117, 1
      %p121 = scmp.eq.s32.totalorder %s20, 1
      %p122 = scmp.ne.s32.totalorder %s117, %s119
      %p123 = scmp.eq.s32.totalorder %s20, 0
      %p124 = por %p122, %p123
      %p125 = scmp.ne.s32.totalorder %s117, %s119
      %p126 = scmp.eq.s32.totalorder %s25, 1
      %p127 = por %p125, %p126
      %p128 = scmp.ne.s32.totalorder %s119, %s120
      %p129 = scmp.eq.s32.totalorder %s25, 0
      %p130 = por %p128, %p129
      %p131 = scmp.ne.s32.totalorder %s119, %s120
      %p132 = scmp.eq.s32.totalorder %s26, 1
      %p133 = por %p131, %p132
      %p135 = scmp.ne.s32.totalorder %s120, %s134
      %p136 = scmp.eq.s32.totalorder %s26, 0
      %p137 = por %p135, %p136
      %s139 = sadd.s32 %s138, 1
      %p142 = scmp.eq.s32.totalorder %s20, 1
      %p143 = scmp.ne.s32.totalorder %s138, %s140
      %p144 = scmp.eq.s32.totalorder %s20, 0
      %p145 = por %p143, %p144
      %p146 = scmp.ne.s32.totalorder %s138, %s140
      %p147 = scmp.eq.s32.totalorder %s25, 1
      %p148 = por %p146, %p147
      %p149 = scmp.ne.s32.totalorder %s140, %s141
      %p150 = scmp.eq.s32.totalorder %s25, 0
      %p151 = por %p149, %p150
      %p152 = scmp.ne.s32.totalorder %s140, %s141
      %p153 = scmp.eq.s32.totalorder %s26, 1
      %p154 = por %p152, %p153
      %p156 = scmp.ne.s32.totalorder %s141, %s155
      %p157 = scmp.eq.s32.totalorder %s26, 0
      %p158 = por %p156, %p157
      %s160 = sadd.s32 %s159, 1
      %p163 = scmp.eq.s32.totalorder %s20, 1
      %p164 = scmp.ne.s32.totalorder %s159, %s161
      %p165 = scmp.eq.s32.totalorder %s20, 0
      %p166 = por %p164, %p165
      %p167 = scmp.ne.s32.totalorder %s159, %s161
      %p168 = scmp.eq.s32.totalorder %s25, 1
      %p169 = por %p167, %p168
      %p170 = scmp.ne.s32.totalorder %s161, %s162
      %p171 = scmp.eq.s32.totalorder %s25, 0
      %p172 = por %p170, %p171
      %p173 = scmp.ne.s32.totalorder %s161, %s162
      %p174 = scmp.eq.s32.totalorder %s26, 1
      %p175 = por %p173, %p174
      %p177 = scmp.ne.s32.totalorder %s162, %s176
      %p178 = scmp.eq.s32.totalorder %s26, 0
      %p179 = por %p177, %p178
      %s181 = sadd.s32 %s180, 1
      %p184 = scmp.eq.s32.totalorder %s20, 1
      %p185 = scmp.ne.s32.totalorder %s180, %s182
      %p186 = scmp.eq.s32.totalorder %s20, 0
      %p187 = por %p185, %p186
      %p188 = scmp.ne.s32.totalorder %s180, %s182
      %p189 = scmp.eq.s32.totalorder %s25, 1
      %p190 = por %p188, %p189
      %p191 = scmp.ne.s32.totalorder %s182, %s183
      %p192 = scmp.eq.s32.totalorder %s25, 0
      %p193 = por %p191, %p192
      %p194 = scmp.ne.s32.totalorder %s182, %s183
      %p195 = scmp.eq.s32.totalorder %s26, 1
      %p196 = por %p194, %p195
      %p198 = scmp.ne.s32.totalorder %s183, %s197
      %p199 = scmp.eq.s32.totalorder %s26, 0
      %p200 = por %p198, %p199
      %s202 = sadd.s32 %s201, 1
      %p205 = scmp.eq.s32.totalorder %s20, 1
      %p206 = scmp.ne.s32.totalorder %s201, %s203
      %p207 = scmp.eq.s32.totalorder %s20, 0
      %p208 = por %p206, %p207
      %p209 = scmp.ne.s32.totalorder %s201, %s203
      %p210 = scmp.eq.s32.totalorder %s25, 1
      %p211 = por %p209, %p210
      %p212 = scmp.ne.s32.totalorder %s203, %s204
      %p213 = scmp.eq.s32.totalorder %s25, 0
      %p214 = por %p212, %p213
      %p215 = scmp.ne.s32.totalorder %s203, %s204
      %p216 = scmp.eq.s32.totalorder %s26, 1
      %p217 = por %p215, %p216
      %p219 = scmp.ne.s32.totalorder %s204, %s218
      %p220 = scmp.eq.s32.totalorder %s26, 0
      %p221 = por %p219, %p220
      %s223 = sadd.s32 %s222, 1
      %p226 = scmp.eq.s32.totalorder %s20, 1
      %p227 = scmp.ne.s32.totalorder %s222, %s224
      %p228 = scmp.eq.s32.totalorder %s20, 0
      %p229 = por %p227, %p228
      %p230 = scmp.ne.s32.totalorder %s222, %s224
      %p231 = scmp.eq.s32.totalorder %s25, 1
      %p232 = por %p230, %p231
      %p233 = scmp.ne.s32.totalorder %s224, %s225
      %p234 = scmp.eq.s32.totalorder %s25, 0
      %p235 = por %p233, %p234
      %p236 = scmp.ne.s32.totalorder %s224, %s225
      %p237 = scmp.eq.s32.totalorder %s26, 1
      %p238 = por %p236, %p237
      %p240 = scmp.ne.s32.totalorder %s225, %s239
      %p241 = scmp.eq.s32.totalorder %s26, 0
      %p242 = por %p240, %p241
      %s244 = sadd.s32 %s243, 1
      %p247 = scmp.eq.s32.totalorder %s20, 1
      %p248 = scmp.ne.s32.totalorder %s243, %s245
      %p249 = scmp.eq.s32.totalorder %s20, 0
      %p250 = por %p248, %p249
      %p251 = scmp.ne.s32.totalorder %s243, %s245
      %p252 = scmp.eq.s32.totalorder %s25, 1
      %p253 = por %p251, %p252
      %p254 = scmp.ne.s32.totalorder %s245, %s246
      %p255 = scmp.eq.s32.totalorder %s25, 0
      %p256 = por %p254, %p255
      %p257 = scmp.ne.s32.totalorder %s245, %s246
      %p258 = scmp.eq.s32.totalorder %s26, 1
      %p259 = por %p257, %p258
      %p261 = scmp.ne.s32.totalorder %s246, %s260
      %p262 = scmp.eq.s32.totalorder %s26, 0
      %p263 = por %p261, %p262
      %s264 = ssub.s32 %s20, %s27
      %p265 = scmp.eq.s32.totalorder %s264, 0
      %s267 = sadd.s32 %s266, 1
      %s268 = scalar_select %p265, %s266, %s267
      %p271 = pneg %p265
      %p272 = scmp.eq.s32.totalorder %s20, 1
      %p273 = por %p271, %p272
      %p274 = scmp.ne.s32.totalorder %s266, %s269
      %p275 = scmp.eq.s32.totalorder %s20, 0
      %p276 = por %p274, %p275
      %p277 = scmp.ne.s32.totalorder %s266, %s269
      %p278 = scmp.eq.s32.totalorder %s25, 1
      %p279 = por %p277, %p278
      %p280 = scmp.ne.s32.totalorder %s269, %s270
      %p281 = scmp.eq.s32.totalorder %s25, 0
      %p282 = por %p280, %p281
      %p283 = scmp.ne.s32.totalorder %s269, %s270
      %p284 = scmp.eq.s32.totalorder %s26, 1
      %p285 = por %p283, %p284
      %p287 = scmp.ne.s32.totalorder %s270, %s286
      %p288 = scmp.eq.s32.totalorder %s26, 0
      %p289 = por %p287, %p288
      %p290 = scmp.le.s32.totalorder 1, %s20
      %p291 = scmp.lt.s32.totalorder %s20, 3
      %p292 = pnand %p290, %p291
      %p293 = pneg %p292
      // Predicated region
      $region9: #{minifasnet_forward.1} parent=5 // pred_check
        _
      $region10: #{minifasnet_forward.1} parent=5 // pred_check_branch
        %295 = sbr.rel (%p292) target = $region12
      $region11: #{minifasnet_forward.1} parent=5 // pred_region
        %s296 = ssub.s32 %s20, 1
        // Predicated region
        $region13: #{minifasnet_forward.1} parent=11 // pred_check
          %p297 = pneg %p67
        $region14: #{minifasnet_forward.1} parent=11 // pred_check_branch
          %299 = sbr.rel (%p297) target = $region16
        $region15: #{minifasnet_forward.1} parent=11 // pred_region
          _
        $region16: #{minifasnet_forward.1} parent=11 // pred_fallthru
          _
        // Predicated region
        $region17: #{minifasnet_forward.1} parent=11 // pred_check
          %p300 = pneg %p88
        $region18: #{minifasnet_forward.1} parent=11 // pred_check_branch
          %302 = sbr.rel (%p300) target = $region20
        $region19: #{minifasnet_forward.1} parent=11 // pred_region
          _
        $region20: #{minifasnet_forward.1} parent=11 // pred_fallthru
          _
        // Predicated region
        $region21: #{minifasnet_forward.1} parent=11 // pred_check
          %p303 = pneg %p109
        $region22: #{minifasnet_forward.1} parent=11 // pred_check_branch
          %305 = sbr.rel (%p303) target = $region24
        $region23: #{minifasnet_forward.1} parent=11 // pred_region
          _
        $region24: #{minifasnet_forward.1} parent=11 // pred_fallthru
          _
        // Predicated region
        $region25: #{minifasnet_forward.1} parent=11 // pred_check
          %p306 = pneg %p130
        $region26: #{minifasnet_forward.1} parent=11 // pred_check_branch
          %308 = sbr.rel (%p306) target = $region28
        $region27: #{minifasnet_forward.1} parent=11 // pred_region
          _
        $region28: #{minifasnet_forward.1} parent=11 // pred_fallthru
          _
        // Predicated region
        $region29: #{minifasnet_forward.1} parent=11 // pred_check
          %p309 = pneg %p151
        $region30: #{minifasnet_forward.1} parent=11 // pred_check_branch
          %311 = sbr.rel (%p309) target = $region32
        $region31: #{minifasnet_forward.1} parent=11 // pred_region
          _
        $region32: #{minifasnet_forward.1} parent=11 // pred_fallthru
          _
        // Predicated region
        $region33: #{minifasnet_forward.1} parent=11 // pred_check
          %p312 = pneg %p172
        $region34: #{minifasnet_forward.1} parent=11 // pred_check_branch
          %314 = sbr.rel (%p312) target = $region36
        $region35: #{minifasnet_forward.1} parent=11 // pred_region
          _
        $region36: #{minifasnet_forward.1} parent=11 // pred_fallthru
          _
        // Predicated region
        $region37: #{minifasnet_forward.1} parent=11 // pred_check
          %p315 = pneg %p193
        $region38: #{minifasnet_forward.1} parent=11 // pred_check_branch
          %317 = sbr.rel (%p315) target = $region40
        $region39: #{minifasnet_forward.1} parent=11 // pred_region
          _
        $region40: #{minifasnet_forward.1} parent=11 // pred_fallthru
          _
        // Predicated region
        $region41: #{minifasnet_forward.1} parent=11 // pred_check
          %p318 = pneg %p214
        $region42: #{minifasnet_forward.1} parent=11 // pred_check_branch
          %320 = sbr.rel (%p318) target = $region44
        $region43: #{minifasnet_forward.1} parent=11 // pred_region
          _
        $region44: #{minifasnet_forward.1} parent=11 // pred_fallthru
          _
        // Predicated region
        $region45: #{minifasnet_forward.1} parent=11 // pred_check
          %p321 = pneg %p235
        $region46: #{minifasnet_forward.1} parent=11 // pred_check_branch
          %323 = sbr.rel (%p321) target = $region48
        $region47: #{minifasnet_forward.1} parent=11 // pred_region
          _
        $region48: #{minifasnet_forward.1} parent=11 // pred_fallthru
          _
        // Predicated region
        $region49: #{minifasnet_forward.1} parent=11 // pred_check
          %p324 = pneg %p256
        $region50: #{minifasnet_forward.1} parent=11 // pred_check_branch
          %326 = sbr.rel (%p324) target = $region52
        $region51: #{minifasnet_forward.1} parent=11 // pred_region
          _
        $region52: #{minifasnet_forward.1} parent=11 // pred_fallthru
          _
      $region12: #{minifasnet_forward.1} parent=5 // pred_fallthru
        _
      %p327 = scmp.lt.s32.totalorder %s20, 2
      // Predicated region
      $region53: #{minifasnet_forward.1} parent=5 // pred_check
        %p328 = pneg %p327
      $region54: #{minifasnet_forward.1} parent=5 // pred_check_branch
        %330 = sbr.rel (%p328) target = $region56
      $region55: #{minifasnet_forward.1} parent=5 // pred_region
        // Predicated region
        $region57: #{minifasnet_forward.1} parent=55 // pred_check
          %p331 = pneg %p40
        $region58: #{minifasnet_forward.1} parent=55 // pred_check_branch
          %333 = sbr.rel (%p331) target = $region60
        $region59: #{minifasnet_forward.1} parent=55 // pred_region
          %p334 = scmp.lt.s32.totalorder %s20, 1
          %s335 = scalar_select %p334, %s20, 1
          %s336 = smul.addr %s335, 32
          %s337 = smul.addr %s336, 8
          %s338 = scalar_lea.vmem %s0, %s337
        $region60: #{minifasnet_forward.1} parent=55 // pred_fallthru
          _
      $region56: #{minifasnet_forward.1} parent=5 // pred_fallthru
        _
      %p339 = scmp.le.s32.totalorder 1, %s20
      %p340 = scmp.lt.s32.totalorder %s20, 3
      %p341 = pnand %p339, %p340
      %p342 = pneg %p341
      // Predicated region
      $region61: #{minifasnet_forward.1} parent=5 // pred_check
        _
      $region62: #{minifasnet_forward.1} parent=5 // pred_check_branch
        %344 = sbr.rel (%p341) target = $region64
      $region63: #{minifasnet_forward.1} parent=5 // pred_region
        %s345 = ssub.s32 %s20, 1
        %p346 = scmp.lt.s32.totalorder %s25, 1
        %s347 = scalar_select %p346, %s25, 1
        %s348 = smul.addr %s347, 32
        %s349 = smul.addr %s348, 8
        %s350 = scalar_lea.vmem %s0, %s349
        %p351 = pneg %p46
        %p352 = pneg %p43
        %p353 = pneg %p67
        %p354 = pneg %p64
        %p355 = pneg %p88
        %p356 = pneg %p85
        %p357 = pneg %p109
        %p358 = pneg %p106
        %p359 = pneg %p130
        %p360 = pneg %p127
        %p361 = pneg %p151
        %p362 = pneg %p148
        %p363 = pneg %p172
        %p364 = pneg %p169
        %p365 = pneg %p193
        %p366 = pneg %p190
        %p367 = pneg %p214
        %p368 = pneg %p211
        %p369 = pneg %p235
        %p370 = pneg %p232
        %p371 = pneg %p256
        %p372 = pneg %p253
        %p373 = pneg %p282
        %p374 = pneg %p279
        %s375 = sand.u32 %s269, 1
        %s376 = scalar_lea.sflag [#allocation17], %s375
        %s377 = sand.u32 %s269, 1
        %s378 = scalar_lea.vmem [#allocation16], %s377
        %p379 = scmp.lt.s32.totalorder %s25, 1
        %s380 = scalar_select %p379, %s25, 1
        %s381 = smul.addr %s380, 32
        %s382 = smul.addr %s381, 8
        %s383 = scalar_lea.vmem %s0, %s382
        %v385 = vld [vmem:[%s383] sm:$0xff]
        %v386 = vld [vmem:[%s383 + $0x8] sm:$0xff]
        %v387 = vld [vmem:[%s383 + $0x10] sm:$0xff]
        %v388 = vld [vmem:[%s383 + $0x18] sm:$0xff]
        %v389 = vld [vmem:[%s383 + $0x20] sm:$0xff]
        %v390 = vld [vmem:[%s383 + $0x28] sm:$0xff]
        %v391 = vld [vmem:[%s383 + $0x30] sm:$0xff]
        %v392 = vld [vmem:[%s383 + $0x38] sm:$0xff]
        %v393 = vld [vmem:[%s383 + $0x40] sm:$0xff]
        %v394 = vld [vmem:[%s383 + $0x48] sm:$0xff]
        %v395 = vld [vmem:[%s383 + $0x50] sm:$0xff]
        %v396 = vld [vmem:[%s383 + $0x58] sm:$0xff]
        %v397 = vld [vmem:[%s383 + $0x60] sm:$0xff]
        %v398 = vld [vmem:[%s383 + $0x68] sm:$0xff]
        %v399 = vld [vmem:[%s383 + $0x70] sm:$0xff]
        %v400 = vld [vmem:[%s383 + $0x78] sm:$0xff]
        %v401 = vld [vmem:[%s383 + $0x80] sm:$0xff]
        %v402 = vld [vmem:[%s383 + $0x88] sm:$0xff]
        %v403 = vld [vmem:[%s383 + $0x90] sm:$0xff]
        %v404 = vld [vmem:[%s383 + $0x98] sm:$0xff]
        %v405 = vld [vmem:[%s383 + $0xa0] sm:$0xff]
        %v406 = vld [vmem:[%s383 + $0xa8] sm:$0xff]
        %v407 = vld [vmem:[%s383 + $0xb0] sm:$0xff]
        %v408 = vld [vmem:[%s383 + $0xb8] sm:$0xff]
        %v409 = vld [vmem:[%s383 + $0xc0] sm:$0xff]
        %v410 = vld [vmem:[%s383 + $0xc8] sm:$0xff]
        %v411 = vld [vmem:[%s383 + $0xd0] sm:$0xff]
        %v412 = vld [vmem:[%s383 + $0xd8] sm:$0xff]
        %v413 = vld [vmem:[%s383 + $0xe0] sm:$0xff]
        %v414 = vld [vmem:[%s383 + $0xe8] sm:$0xff]
        %v415 = vld [vmem:[%s383 + $0xf0] sm:$0xff]
        %v416 = vld [vmem:[%s383 + $0xf8] sm:$0xff]
        %vm417 = vcmask 23552
        %418 = vst.msk [vmem:[#allocation2] sm:$0xff] %vm417, 0.0
        %419 = vst.msk [vmem:[#allocation2 + $0x8] sm:$0xff] %vm417, 0.0
        %vm420 = vcmask 17408
        %421 = vst.msk [vmem:[#allocation2 + $0x10] sm:$0x3] %vm420, 0.0
        %422 = vst.msk [vmem:[#allocation2 + $0x18] sm:$0xff] %vm417, 0.0
        %423 = vst.msk [vmem:[#allocation2 + $0x20] sm:$0xff] %vm417, 0.0
        %424 = vst.msk [vmem:[#allocation2 + $0x28] sm:$0x3] %vm420, 0.0
        %425 = vst.msk [vmem:[#allocation2 + $0x30] sm:$0xff] %vm417, 0.0
        %426 = vst.msk [vmem:[#allocation2 + $0x38] sm:$0xff] %vm417, 0.0
        %427 = vst.msk [vmem:[#allocation2 + $0x40] sm:$0x3] %vm420, 0.0
        %428 = vst.msk [vmem:[#allocation2 + $0x48] sm:$0xff] %vm417, 0.0
        %429 = vst.msk [vmem:[#allocation2 + $0x50] sm:$0xff] %vm417, 0.0
        %430 = vst.msk [vmem:[#allocation2 + $0x58] sm:$0x3] %vm420, 0.0
        %431 = vst.msk [vmem:[#allocation2 + $0x60] sm:$0xff] %vm417, 0.0
        %432 = vst.msk [vmem:[#allocation2 + $0x68] sm:$0xff] %vm417, 0.0
        %433 = vst.msk [vmem:[#allocation2 + $0x70] sm:$0x3] %vm420, 0.0
        %434 = vst.msk [vmem:[#allocation2 + $0x78] sm:$0xff] %vm417, 0.0
        %435 = vst.msk [vmem:[#allocation2 + $0x80] sm:$0xff] %vm417, 0.0
        %436 = vst.msk [vmem:[#allocation2 + $0x88] sm:$0x3] %vm420, 0.0
        %437 = vst.msk [vmem:[#allocation2 + $0x90] sm:$0xff] %vm417, 0.0
        %438 = vst.msk [vmem:[#allocation2 + $0x98] sm:$0xff] %vm417, 0.0
        %439 = vst.msk [vmem:[#allocation2 + $0xa0] sm:$0x3] %vm420, 0.0
        %440 = vst.msk [vmem:[#allocation2 + $0xa8] sm:$0xff] %vm417, 0.0
        %441 = vst.msk [vmem:[#allocation2 + $0xb0] sm:$0xff] %vm417, 0.0
        %442 = vst.msk [vmem:[#allocation2 + $0xb8] sm:$0x3] %vm420, 0.0
        %443 = vst.msk [vmem:[#allocation2 + $0xc0] sm:$0xff] %vm417, 0.0
        %444 = vst.msk [vmem:[#allocation2 + $0xc8] sm:$0xff] %vm417, 0.0
        %445 = vst.msk [vmem:[#allocation2 + $0xd0] sm:$0x3] %vm420, 0.0
        %446 = vst.msk [vmem:[#allocation2 + $0xd8] sm:$0xff] %vm417, 0.0
        %447 = vst.msk [vmem:[#allocation2 + $0xe0] sm:$0xff] %vm417, 0.0
        %448 = vst.msk [vmem:[#allocation2 + $0xe8] sm:$0x3] %vm420, 0.0
        %449 = vst.msk [vmem:[#allocation2 + $0xf0] sm:$0xff] %vm417, 0.0
        %450 = vst.msk [vmem:[#allocation2 + $0xf8] sm:$0xff] %vm417, 0.0
        %451 = vst.msk [vmem:[#allocation2 + $0x100] sm:$0x3] %vm420, 0.0
        %452 = vst.msk [vmem:[#allocation2 + $0x108] sm:$0xff] %vm417, 0.0
        %453 = vst.msk [vmem:[#allocation2 + $0x110] sm:$0xff] %vm417, 0.0
        %454 = vst.msk [vmem:[#allocation2 + $0x118] sm:$0x3] %vm420, 0.0
        %455 = vst.msk [vmem:[#allocation2 + $0x120] sm:$0xff] %vm417, 0.0
        %456 = vst.msk [vmem:[#allocation2 + $0x128] sm:$0xff] %vm417, 0.0
        %457 = vst.msk [vmem:[#allocation2 + $0x130] sm:$0x3] %vm420, 0.0
        %458 = vst.msk [vmem:[#allocation2 + $0x138] sm:$0xff] %vm417, 0.0
        %459 = vst.msk [vmem:[#allocation2 + $0x140] sm:$0xff] %vm417, 0.0
        %460 = vst.msk [vmem:[#allocation2 + $0x148] sm:$0x3] %vm420, 0.0
        %461 = vst.msk [vmem:[#allocation2 + $0x150] sm:$0xff] %vm417, 0.0
        %462 = vst.msk [vmem:[#allocation2 + $0x158] sm:$0xff] %vm417, 0.0
        %463 = vst.msk [vmem:[#allocation2 + $0x160] sm:$0x3] %vm420, 0.0
        %464 = vst.msk [vmem:[#allocation2 + $0x168] sm:$0xff] %vm417, 0.0
        %465 = vst.msk [vmem:[#allocation2 + $0x170] sm:$0xff] %vm417, 0.0
        %466 = vst.msk [vmem:[#allocation2 + $0x178] sm:$0x3] %vm420, 0.0
        %467 = vst.msk [vmem:[#allocation2 + $0x180] sm:$0xff] %vm417, 0.0
        %468 = vst.msk [vmem:[#allocation2 + $0x188] sm:$0xff] %vm417, 0.0
        %469 = vst.msk [vmem:[#allocation2 + $0x190] sm:$0x3] %vm420, 0.0
        %470 = vst.msk [vmem:[#allocation2 + $0x198] sm:$0xff] %vm417, 0.0
        %471 = vst.msk [vmem:[#allocation2 + $0x1a0] sm:$0xff] %vm417, 0.0
        %472 = vst.msk [vmem:[#allocation2 + $0x1a8] sm:$0x3] %vm420, 0.0
        %s473 = scalar_lea.vmem [#allocation2], 24
        %474 = vst.msk [vmem:[%s473 + $0x1] sm:$0xff] %vm417, %v385
        %475 = vst.msk [vmem:[%s473 + $0x9] sm:$0xff] %vm417, %v386
        %476 = vst.msk [vmem:[%s473 + $0x19] sm:$0xff] %vm417, %v387
        %477 = vst.msk [vmem:[%s473 + $0x21] sm:$0xff] %vm417, %v388
        %478 = vst.msk [vmem:[%s473 + $0x31] sm:$0xff] %vm417, %v389
        %479 = vst.msk [vmem:[%s473 + $0x39] sm:$0xff] %vm417, %v390
        %480 = vst.msk [vmem:[%s473 + $0x49] sm:$0xff] %vm417, %v391
        %481 = vst.msk [vmem:[%s473 + $0x51] sm:$0xff] %vm417, %v392
        %482 = vst.msk [vmem:[%s473 + $0x61] sm:$0xff] %vm417, %v393
        %483 = vst.msk [vmem:[%s473 + $0x69] sm:$0xff] %vm417, %v394
        %484 = vst.msk [vmem:[%s473 + $0x79] sm:$0xff] %vm417, %v395
        %485 = vst.msk [vmem:[%s473 + $0x81] sm:$0xff] %vm417, %v396
        %486 = vst.msk [vmem:[%s473 + $0x91] sm:$0xff] %vm417, %v397
        %487 = vst.msk [vmem:[%s473 + $0x99] sm:$0xff] %vm417, %v398
        %488 = vst.msk [vmem:[%s473 + $0xa9] sm:$0xff] %vm417, %v399
        %489 = vst.msk [vmem:[%s473 + $0xb1] sm:$0xff] %vm417, %v400
        %490 = vst.msk [vmem:[%s473 + $0xc1] sm:$0xff] %vm417, %v401
        %491 = vst.msk [vmem:[%s473 + $0xc9] sm:$0xff] %vm417, %v402
        %492 = vst.msk [vmem:[%s473 + $0xd9] sm:$0xff] %vm417, %v403
        %493 = vst.msk [vmem:[%s473 + $0xe1] sm:$0xff] %vm417, %v404
        %494 = vst.msk [vmem:[%s473 + $0xf1] sm:$0xff] %vm417, %v405
        %495 = vst.msk [vmem:[%s473 + $0xf9] sm:$0xff] %vm417, %v406
        %496 = vst.msk [vmem:[%s473 + $0x109] sm:$0xff] %vm417, %v407
        %497 = vst.msk [vmem:[%s473 + $0x111] sm:$0xff] %vm417, %v408
        %498 = vst.msk [vmem:[%s473 + $0x121] sm:$0xff] %vm417, %v409
        %499 = vst.msk [vmem:[%s473 + $0x129] sm:$0xff] %vm417, %v410
        %500 = vst.msk [vmem:[%s473 + $0x139] sm:$0xff] %vm417, %v411
        %501 = vst.msk [vmem:[%s473 + $0x141] sm:$0xff] %vm417, %v412
        %502 = vst.msk [vmem:[%s473 + $0x151] sm:$0xff] %vm417, %v413
        %503 = vst.msk [vmem:[%s473 + $0x159] sm:$0xff] %vm417, %v414
        %504 = vst.msk [vmem:[%s473 + $0x169] sm:$0xff] %vm417, %v415
        %505 = vst.msk [vmem:[%s473 + $0x171] sm:$0xff] %vm417, %v416
        %v506 = vld [vmem:[#allocation2] sm:$0xff]
        %v507 = vld [vmem:[#allocation2 + $0x8] sm:$0xff]
        %v508 = vld [vmem:[#allocation2 + $0x18] sm:$0xff]
        %v509 = vld [vmem:[#allocation2 + $0x20] sm:$0xff]
        %v510 = vld [vmem:[#allocation2 + $0x30] sm:$0xff]
        %v511 = vld [vmem:[#allocation2 + $0x38] sm:$0xff]
        %v512 = vld [vmem:[#allocation2 + $0x48] sm:$0xff]
        %v513 = vld [vmem:[#allocation2 + $0x50] sm:$0xff]
        %v514 = vld [vmem:[#allocation2 + $0x60] sm:$0xff]
        %v515 = vld [vmem:[#allocation2 + $0x68] sm:$0xff]
        %v516 = vld [vmem:[#allocation2 + $0x78] sm:$0xff]
        %v517 = vld [vmem:[#allocation2 + $0x80] sm:$0xff]
        %v518 = vld [vmem:[#allocation2 + $0x90] sm:$0xff]
        %v519 = vld [vmem:[#allocation2 + $0x98] sm:$0xff]
        %v520 = vld [vmem:[#allocation2 + $0xa8] sm:$0xff]
        %v521 = vld [vmem:[#allocation2 + $0xb0] sm:$0xff]
        %v522 = vld [vmem:[#allocation2 + $0xc0] sm:$0xff]
        %v523 = vld [vmem:[#allocation2 + $0xc8] sm:$0xff]
        %v524 = vld [vmem:[#allocation2 + $0xd8] sm:$0xff]
        %v525 = vld [vmem:[#allocation2 + $0xe0] sm:$0xff]
        %v526 = vld [vmem:[#allocation2 + $0xf0] sm:$0xff]
        %v527 = vld [vmem:[#allocation2 + $0xf8] sm:$0xff]
        %v528 = vld [vmem:[#allocation2 + $0x108] sm:$0xff]
        %v529 = vld [vmem:[#allocation2 + $0x110] sm:$0xff]
        %v530 = vld [vmem:[#allocation2 + $0x120] sm:$0xff]
        %v531 = vld [vmem:[#allocation2 + $0x128] sm:$0xff]
        %v532 = vld [vmem:[#allocation2 + $0x138] sm:$0xff]
        %v533 = vld [vmem:[#allocation2 + $0x140] sm:$0xff]
        %v534 = vld [vmem:[#allocation2 + $0x150] sm:$0xff]
        %v535 = vld [vmem:[#allocation2 + $0x158] sm:$0xff]
        %v536 = vld [vmem:[#allocation2 + $0x168] sm:$0xff]
        %v537 = vld [vmem:[#allocation2 + $0x170] sm:$0xff]
        %538 = vst.msk [vmem:[#allocation3] sm:$0xff] %vm417, %v506
        %539 = vst.msk [vmem:[#allocation3 + $0x8] sm:$0xff] %vm417, %v507
        %540 = vst.msk [vmem:[#allocation3 + $0x10] sm:$0xff] %vm417, %v508
        %541 = vst.msk [vmem:[#allocation3 + $0x18] sm:$0xff] %vm417, %v509
        %542 = vst.msk [vmem:[#allocation3 + $0x20] sm:$0xff] %vm417, %v510
        %543 = vst.msk [vmem:[#allocation3 + $0x28] sm:$0xff] %vm417, %v511
        %544 = vst.msk [vmem:[#allocation3 + $0x30] sm:$0xff] %vm417, %v512
        %545 = vst.msk [vmem:[#allocation3 + $0x38] sm:$0xff] %vm417, %v513
        %546 = vst.msk [vmem:[#allocation3 + $0x40] sm:$0xff] %vm417, %v514
        %547 = vst.msk [vmem:[#allocation3 + $0x48] sm:$0xff] %vm417, %v515
        %548 = vst.msk [vmem:[#allocation3 + $0x50] sm:$0xff] %vm417, %v516
        %549 = vst.msk [vmem:[#allocation3 + $0x58] sm:$0xff] %vm417, %v517
        %550 = vst.msk [vmem:[#allocation3 + $0x60] sm:$0xff] %vm417, %v518
        %551 = vst.msk [vmem:[#allocation3 + $0x68] sm:$0xff] %vm417, %v519
        %552 = vst.msk [vmem:[#allocation3 + $0x70] sm:$0xff] %vm417, %v520
        %553 = vst.msk [vmem:[#allocation3 + $0x78] sm:$0xff] %vm417, %v521
        %554 = vst.msk [vmem:[#allocation3 + $0x80] sm:$0xff] %vm417, %v522
        %555 = vst.msk [vmem:[#allocation3 + $0x88] sm:$0xff] %vm417, %v523
        %556 = vst.msk [vmem:[#allocation3 + $0x90] sm:$0xff] %vm417, %v524
        %557 = vst.msk [vmem:[#allocation3 + $0x98] sm:$0xff] %vm417, %v525
        %558 = vst.msk [vmem:[#allocation3 + $0xa0] sm:$0xff] %vm417, %v526
        %559 = vst.msk [vmem:[#allocation3 + $0xa8] sm:$0xff] %vm417, %v527
        %560 = vst.msk [vmem:[#allocation3 + $0xb0] sm:$0xff] %vm417, %v528
        %561 = vst.msk [vmem:[#allocation3 + $0xb8] sm:$0xff] %vm417, %v529
        %562 = vst.msk [vmem:[#allocation3 + $0xc0] sm:$0xff] %vm417, %v530
        %563 = vst.msk [vmem:[#allocation3 + $0xc8] sm:$0xff] %vm417, %v531
        %564 = vst.msk [vmem:[#allocation3 + $0xd0] sm:$0xff] %vm417, %v532
        %565 = vst.msk [vmem:[#allocation3 + $0xd8] sm:$0xff] %vm417, %v533
        %566 = vst.msk [vmem:[#allocation3 + $0xe0] sm:$0xff] %vm417, %v534
        %567 = vst.msk [vmem:[#allocation3 + $0xe8] sm:$0xff] %vm417, %v535
        %568 = vst.msk [vmem:[#allocation3 + $0xf0] sm:$0xff] %vm417, %v536
        %569 = vst.msk [vmem:[#allocation3 + $0xf8] sm:$0xff] %vm417, %v537
        %v570 = vld [vmem:[#allocation2 + $0x1] sm:$0xff]
        %v571 = vld [vmem:[#allocation2 + $0x9] sm:$0xff]
        %v572 = vld [vmem:[#allocation2 + $0x19] sm:$0xff]
        %v573 = vld [vmem:[#allocation2 + $0x21] sm:$0xff]
        %v574 = vld [vmem:[#allocation2 + $0x31] sm:$0xff]
        %v575 = vld [vmem:[#allocation2 + $0x39] sm:$0xff]
        %v576 = vld [vmem:[#allocation2 + $0x49] sm:$0xff]
        %v577 = vld [vmem:[#allocation2 + $0x51] sm:$0xff]
        %v578 = vld [vmem:[#allocation2 + $0x61] sm:$0xff]
        %v579 = vld [vmem:[#allocation2 + $0x69] sm:$0xff]
        %v580 = vld [vmem:[#allocation2 + $0x79] sm:$0xff]
        %v581 = vld [vmem:[#allocation2 + $0x81] sm:$0xff]
        %v582 = vld [vmem:[#allocation2 + $0x91] sm:$0xff]
        %v583 = vld [vmem:[#allocation2 + $0x99] sm:$0xff]
        %v584 = vld [vmem:[#allocation2 + $0xa9] sm:$0xff]
        %v585 = vld [vmem:[#allocation2 + $0xb1] sm:$0xff]
        %v586 = vld [vmem:[#allocation2 + $0xc1] sm:$0xff]
        %v587 = vld [vmem:[#allocation2 + $0xc9] sm:$0xff]
        %v588 = vld [vmem:[#allocation2 + $0xd9] sm:$0xff]
        %v589 = vld [vmem:[#allocation2 + $0xe1] sm:$0xff]
        %v590 = vld [vmem:[#allocation2 + $0xf1] sm:$0xff]
        %v591 = vld [vmem:[#allocation2 + $0xf9] sm:$0xff]
        %v592 = vld [vmem:[#allocation2 + $0x109] sm:$0xff]
        %v593 = vld [vmem:[#allocation2 + $0x111] sm:$0xff]
        %v594 = vld [vmem:[#allocation2 + $0x121] sm:$0xff]
        %v595 = vld [vmem:[#allocation2 + $0x129] sm:$0xff]
        %v596 = vld [vmem:[#allocation2 + $0x139] sm:$0xff]
        %v597 = vld [vmem:[#allocation2 + $0x141] sm:$0xff]
        %v598 = vld [vmem:[#allocation2 + $0x151] sm:$0xff]
        %v599 = vld [vmem:[#allocation2 + $0x159] sm:$0xff]
        %v600 = vld [vmem:[#allocation2 + $0x169] sm:$0xff]
        %v601 = vld [vmem:[#allocation2 + $0x171] sm:$0xff]
        %634 = vrot.lane.b32.xlu0 %v570, 3
        %v635 = vpop.permute.xlu0 %634
        %636 = vrot.lane.b32.xlu0 %v571, 3
        %v637 = vpop.permute.xlu0 %636
        %638 = vrot.lane.b32.xlu0 %v572, 3
        %v639 = vpop.permute.xlu0 %638
        %640 = vrot.lane.b32.xlu0 %v573, 3
        %v641 = vpop.permute.xlu0 %640
        %642 = vrot.lane.b32.xlu0 %v574, 3
        %v643 = vpop.permute.xlu0 %642
        %644 = vrot.lane.b32.xlu0 %v575, 3
        %v645 = vpop.permute.xlu0 %644
        %646 = vrot.lane.b32.xlu0 %v576, 3
        %v647 = vpop.permute.xlu0 %646
        %648 = vrot.lane.b32.xlu0 %v577, 3
        %v649 = vpop.permute.xlu0 %648
        %650 = vrot.lane.b32.xlu0 %v578, 3
        %v651 = vpop.permute.xlu0 %650
        %652 = vrot.lane.b32.xlu0 %v579, 3
        %v653 = vpop.permute.xlu0 %652
        %654 = vrot.lane.b32.xlu0 %v580, 3
        %v655 = vpop.permute.xlu0 %654
        %656 = vrot.lane.b32.xlu0 %v581, 3
        %v657 = vpop.permute.xlu0 %656
        %658 = vrot.lane.b32.xlu0 %v582, 3
        %v659 = vpop.permute.xlu0 %658
        %660 = vrot.lane.b32.xlu0 %v583, 3
        %v661 = vpop.permute.xlu0 %660
        %662 = vrot.lane.b32.xlu0 %v584, 3
        %v663 = vpop.permute.xlu0 %662
        %664 = vrot.lane.b32.xlu0 %v585, 3
        %v665 = vpop.permute.xlu0 %664
        %666 = vrot.lane.b32.xlu0 %v586, 3
        %v667 = vpop.permute.xlu0 %666
        %668 = vrot.lane.b32.xlu0 %v587, 3
        %v669 = vpop.permute.xlu0 %668
        %670 = vrot.lane.b32.xlu0 %v588, 3
        %v671 = vpop.permute.xlu0 %670
        %672 = vrot.lane.b32.xlu0 %v589, 3
        %v673 = vpop.permute.xlu0 %672
        %674 = vrot.lane.b32.xlu0 %v590, 3
        %v675 = vpop.permute.xlu0 %674
        %676 = vrot.lane.b32.xlu0 %v591, 3
        %v677 = vpop.permute.xlu0 %676
        %678 = vrot.lane.b32.xlu0 %v592, 3
        %v679 = vpop.permute.xlu0 %678
        %680 = vrot.lane.b32.xlu0 %v593, 3
        %v681 = vpop.permute.xlu0 %680
        %682 = vrot.lane.b32.xlu0 %v594, 3
        %v683 = vpop.permute.xlu0 %682
        %684 = vrot.lane.b32.xlu0 %v595, 3
        %v685 = vpop.permute.xlu0 %684
        %686 = vrot.lane.b32.xlu0 %v596, 3
        %v687 = vpop.permute.xlu0 %686
        %688 = vrot.lane.b32.xlu0 %v597, 3
        %v689 = vpop.permute.xlu0 %688
        %690 = vrot.lane.b32.xlu0 %v598, 3
        %v691 = vpop.permute.xlu0 %690
        %692 = vrot.lane.b32.xlu0 %v599, 3
        %v693 = vpop.permute.xlu0 %692
        %694 = vrot.lane.b32.xlu0 %v600, 3
        %v695 = vpop.permute.xlu0 %694
        %696 = vrot.lane.b32.xlu0 %v601, 3
        %v697 = vpop.permute.xlu0 %696
        %vm730 = vcmask 48152
        %731 = vst.msk [vmem:[#allocation3] sm:$0xff] %vm730, %v635
        %732 = vst.msk [vmem:[#allocation3 + $0x8] sm:$0xff] %vm730, %v637
        %733 = vst.msk [vmem:[#allocation3 + $0x10] sm:$0xff] %vm730, %v639
        %734 = vst.msk [vmem:[#allocation3 + $0x18] sm:$0xff] %vm730, %v641
        %735 = vst.msk [vmem:[#allocation3 + $0x20] sm:$0xff] %vm730, %v643
        %736 = vst.msk [vmem:[#allocation3 + $0x28] sm:$0xff] %vm730, %v645
        %737 = vst.msk [vmem:[#allocation3 + $0x30] sm:$0xff] %vm730, %v647
        %738 = vst.msk [vmem:[#allocation3 + $0x38] sm:$0xff] %vm730, %v649
        %739 = vst.msk [vmem:[#allocation3 + $0x40] sm:$0xff] %vm730, %v651
        %740 = vst.msk [vmem:[#allocation3 + $0x48] sm:$0xff] %vm730, %v653
        %741 = vst.msk [vmem:[#allocation3 + $0x50] sm:$0xff] %vm730, %v655
        %742 = vst.msk [vmem:[#allocation3 + $0x58] sm:$0xff] %vm730, %v657
        %743 = vst.msk [vmem:[#allocation3 + $0x60] sm:$0xff] %vm730, %v659
        %744 = vst.msk [vmem:[#allocation3 + $0x68] sm:$0xff] %vm730, %v661
        %745 = vst.msk [vmem:[#allocation3 + $0x70] sm:$0xff] %vm730, %v663
        %746 = vst.msk [vmem:[#allocation3 + $0x78] sm:$0xff] %vm730, %v665
        %747 = vst.msk [vmem:[#allocation3 + $0x80] sm:$0xff] %vm730, %v667
        %748 = vst.msk [vmem:[#allocation3 + $0x88] sm:$0xff] %vm730, %v669
        %749 = vst.msk [vmem:[#allocation3 + $0x90] sm:$0xff] %vm730, %v671
        %750 = vst.msk [vmem:[#allocation3 + $0x98] sm:$0xff] %vm730, %v673
        %751 = vst.msk [vmem:[#allocation3 + $0xa0] sm:$0xff] %vm730, %v675
        %752 = vst.msk [vmem:[#allocation3 + $0xa8] sm:$0xff] %vm730, %v677
        %753 = vst.msk [vmem:[#allocation3 + $0xb0] sm:$0xff] %vm730, %v679
        %754 = vst.msk [vmem:[#allocation3 + $0xb8] sm:$0xff] %vm730, %v681
        %755 = vst.msk [vmem:[#allocation3 + $0xc0] sm:$0xff] %vm730, %v683
        %756 = vst.msk [vmem:[#allocation3 + $0xc8] sm:$0xff] %vm730, %v685
        %757 = vst.msk [vmem:[#allocation3 + $0xd0] sm:$0xff] %vm730, %v687
        %758 = vst.msk [vmem:[#allocation3 + $0xd8] sm:$0xff] %vm730, %v689
        %759 = vst.msk [vmem:[#allocation3 + $0xe0] sm:$0xff] %vm730, %v691
        %760 = vst.msk [vmem:[#allocation3 + $0xe8] sm:$0xff] %vm730, %v693
        %761 = vst.msk [vmem:[#allocation3 + $0xf0] sm:$0xff] %vm730, %v695
        %762 = vst.msk [vmem:[#allocation3 + $0xf8] sm:$0xff] %vm730, %v697
        %v763 = vld [vmem:[#allocation2 + $0x2] sm:$0xff]
        %v764 = vld [vmem:[#allocation2 + $0xa] sm:$0xff]
        %v765 = vld [vmem:[#allocation2 + $0x1a] sm:$0xff]
        %v766 = vld [vmem:[#allocation2 + $0x22] sm:$0xff]
        %v767 = vld [vmem:[#allocation2 + $0x32] sm:$0xff]
        %v768 = vld [vmem:[#allocation2 + $0x3a] sm:$0xff]
        %v769 = vld [vmem:[#allocation2 + $0x4a] sm:$0xff]
        %v770 = vld [vmem:[#allocation2 + $0x52] sm:$0xff]
        %v771 = vld [vmem:[#allocation2 + $0x62] sm:$0xff]
        %v772 = vld [vmem:[#allocation2 + $0x6a] sm:$0xff]
        %v773 = vld [vmem:[#allocation2 + $0x7a] sm:$0xff]
        %v774 = vld [vmem:[#allocation2 + $0x82] sm:$0xff]
        %v775 = vld [vmem:[#allocation2 + $0x92] sm:$0xff]
        %v776 = vld [vmem:[#allocation2 + $0x9a] sm:$0xff]
        %v777 = vld [vmem:[#allocation2 + $0xaa] sm:$0xff]
        %v778 = vld [vmem:[#allocation2 + $0xb2] sm:$0xff]
        %v779 = vld [vmem:[#allocation2 + $0xc2] sm:$0xff]
        %v780 = vld [vmem:[#allocation2 + $0xca] sm:$0xff]
        %v781 = vld [vmem:[#allocation2 + $0xda] sm:$0xff]
        %v782 = vld [vmem:[#allocation2 + $0xe2] sm:$0xff]
        %v783 = vld [vmem:[#allocation2 + $0xf2] sm:$0xff]
        %v784 = vld [vmem:[#allocation2 + $0xfa] sm:$0xff]
        %v785 = vld [vmem:[#allocation2 + $0x10a] sm:$0xff]
        %v786 = vld [vmem:[#allocation2 + $0x112] sm:$0xff]
        %v787 = vld [vmem:[#allocation2 + $0x122] sm:$0xff]
        %v788 = vld [vmem:[#allocation2 + $0x12a] sm:$0xff]
        %v789 = vld [vmem:[#allocation2 + $0x13a] sm:$0xff]
        %v790 = vld [vmem:[#allocation2 + $0x142] sm:$0xff]
        %v791 = vld [vmem:[#allocation2 + $0x152] sm:$0xff]
        %v792 = vld [vmem:[#allocation2 + $0x15a] sm:$0xff]
        %v793 = vld [vmem:[#allocation2 + $0x16a] sm:$0xff]
        %v794 = vld [vmem:[#allocation2 + $0x172] sm:$0xff]
        %827 = vrot.lane.b32.xlu0 %v763, 6
        %v828 = vpop.permute.xlu0 %827
        %829 = vrot.lane.b32.xlu0 %v764, 6
        %v830 = vpop.permute.xlu0 %829
        %831 = vrot.lane.b32.xlu0 %v765, 6
        %v832 = vpop.permute.xlu0 %831
        %833 = vrot.lane.b32.xlu0 %v766, 6
        %v834 = vpop.permute.xlu0 %833
        %835 = vrot.lane.b32.xlu0 %v767, 6
        %v836 = vpop.permute.xlu0 %835
        %837 = vrot.lane.b32.xlu0 %v768, 6
        %v838 = vpop.permute.xlu0 %837
        %839 = vrot.lane.b32.xlu0 %v769, 6
        %v840 = vpop.permute.xlu0 %839
        %841 = vrot.lane.b32.xlu0 %v770, 6
        %v842 = vpop.permute.xlu0 %841
        %843 = vrot.lane.b32.xlu0 %v771, 6
        %v844 = vpop.permute.xlu0 %843
        %845 = vrot.lane.b32.xlu0 %v772, 6
        %v846 = vpop.permute.xlu0 %845
        %847 = vrot.lane.b32.xlu0 %v773, 6
        %v848 = vpop.permute.xlu0 %847
        %849 = vrot.lane.b32.xlu0 %v774, 6
        %v850 = vpop.permute.xlu0 %849
        %851 = vrot.lane.b32.xlu0 %v775, 6
        %v852 = vpop.permute.xlu0 %851
        %853 = vrot.lane.b32.xlu0 %v776, 6
        %v854 = vpop.permute.xlu0 %853
        %855 = vrot.lane.b32.xlu0 %v777, 6
        %v856 = vpop.permute.xlu0 %855
        %857 = vrot.lane.b32.xlu0 %v778, 6
        %v858 = vpop.permute.xlu0 %857
        %859 = vrot.lane.b32.xlu0 %v779, 6
        %v860 = vpop.permute.xlu0 %859
        %861 = vrot.lane.b32.xlu0 %v780, 6
        %v862 = vpop.permute.xlu0 %861
        %863 = vrot.lane.b32.xlu0 %v781, 6
        %v864 = vpop.permute.xlu0 %863
        %865 = vrot.lane.b32.xlu0 %v782, 6
        %v866 = vpop.permute.xlu0 %865
        %867 = vrot.lane.b32.xlu0 %v783, 6
        %v868 = vpop.permute.xlu0 %867
        %869 = vrot.lane.b32.xlu0 %v784, 6
        %v870 = vpop.permute.xlu0 %869
        %871 = vrot.lane.b32.xlu0 %v785, 6
        %v872 = vpop.permute.xlu0 %871
        %873 = vrot.lane.b32.xlu0 %v786, 6
        %v874 = vpop.permute.xlu0 %873
        %875 = vrot.lane.b32.xlu0 %v787, 6
        %v876 = vpop.permute.xlu0 %875
        %877 = vrot.lane.b32.xlu0 %v788, 6
        %v878 = vpop.permute.xlu0 %877
        %879 = vrot.lane.b32.xlu0 %v789, 6
        %v880 = vpop.permute.xlu0 %879
        %881 = vrot.lane.b32.xlu0 %v790, 6
        %v882 = vpop.permute.xlu0 %881
        %883 = vrot.lane.b32.xlu0 %v791, 6
        %v884 = vpop.permute.xlu0 %883
        %885 = vrot.lane.b32.xlu0 %v792, 6
        %v886 = vpop.permute.xlu0 %885
        %887 = vrot.lane.b32.xlu0 %v793, 6
        %v888 = vpop.permute.xlu0 %887
        %889 = vrot.lane.b32.xlu0 %v794, 6
        %v890 = vpop.permute.xlu0 %889
        %vm923 = vcmask 72752
        %924 = vst.msk [vmem:[#allocation3] sm:$0xff] %vm923, %v828
        %925 = vst.msk [vmem:[#allocation3 + $0x8] sm:$0xff] %vm923, %v830
        %926 = vst.msk [vmem:[#allocation3 + $0x10] sm:$0xff] %vm923, %v832
        %927 = vst.msk [vmem:[#allocation3 + $0x18] sm:$0xff] %vm923, %v834
        %928 = vst.msk [vmem:[#allocation3 + $0x20] sm:$0xff] %vm923, %v836
        %929 = vst.msk [vmem:[#allocation3 + $0x28] sm:$0xff] %vm923, %v838
        %930 = vst.msk [vmem:[#allocation3 + $0x30] sm:$0xff] %vm923, %v840
        %931 = vst.msk [vmem:[#allocation3 + $0x38] sm:$0xff] %vm923, %v842
        %932 = vst.msk [vmem:[#allocation3 + $0x40] sm:$0xff] %vm923, %v844
        %933 = vst.msk [vmem:[#allocation3 + $0x48] sm:$0xff] %vm923, %v846
        %934 = vst.msk [vmem:[#allocation3 + $0x50] sm:$0xff] %vm923, %v848
        %935 = vst.msk [vmem:[#allocation3 + $0x58] sm:$0xff] %vm923, %v850
        %936 = vst.msk [vmem:[#allocation3 + $0x60] sm:$0xff] %vm923, %v852
        %937 = vst.msk [vmem:[#allocation3 + $0x68] sm:$0xff] %vm923, %v854
        %938 = vst.msk [vmem:[#allocation3 + $0x70] sm:$0xff] %vm923, %v856
        %939 = vst.msk [vmem:[#allocation3 + $0x78] sm:$0xff] %vm923, %v858
        %940 = vst.msk [vmem:[#allocation3 + $0x80] sm:$0xff] %vm923, %v860
        %941 = vst.msk [vmem:[#allocation3 + $0x88] sm:$0xff] %vm923, %v862
        %942 = vst.msk [vmem:[#allocation3 + $0x90] sm:$0xff] %vm923, %v864
        %943 = vst.msk [vmem:[#allocation3 + $0x98] sm:$0xff] %vm923, %v866
        %944 = vst.msk [vmem:[#allocation3 + $0xa0] sm:$0xff] %vm923, %v868
        %945 = vst.msk [vmem:[#allocation3 + $0xa8] sm:$0xff] %vm923, %v870
        %946 = vst.msk [vmem:[#allocation3 + $0xb0] sm:$0xff] %vm923, %v872
        %947 = vst.msk [vmem:[#allocation3 + $0xb8] sm:$0xff] %vm923, %v874
        %948 = vst.msk [vmem:[#allocation3 + $0xc0] sm:$0xff] %vm923, %v876
        %949 = vst.msk [vmem:[#allocation3 + $0xc8] sm:$0xff] %vm923, %v878
        %950 = vst.msk [vmem:[#allocation3 + $0xd0] sm:$0xff] %vm923, %v880
        %951 = vst.msk [vmem:[#allocation3 + $0xd8] sm:$0xff] %vm923, %v882
        %952 = vst.msk [vmem:[#allocation3 + $0xe0] sm:$0xff] %vm923, %v884
        %953 = vst.msk [vmem:[#allocation3 + $0xe8] sm:$0xff] %vm923, %v886
        %954 = vst.msk [vmem:[#allocation3 + $0xf0] sm:$0xff] %vm923, %v888
        %955 = vst.msk [vmem:[#allocation3 + $0xf8] sm:$0xff] %vm923, %v890
        %v956 = vld [vmem:[%s473] sm:$0xff]
        %v957 = vld [vmem:[%s473 + $0x8] sm:$0xff]
        %v958 = vld [vmem:[%s473 + $0x18] sm:$0xff]
        %v959 = vld [vmem:[%s473 + $0x20] sm:$0xff]
        %v960 = vld [vmem:[%s473 + $0x30] sm:$0xff]
        %v961 = vld [vmem:[%s473 + $0x38] sm:$0xff]
        %v962 = vld [vmem:[%s473 + $0x48] sm:$0xff]
        %v963 = vld [vmem:[%s473 + $0x50] sm:$0xff]
        %v964 = vld [vmem:[%s473 + $0x60] sm:$0xff]
        %v965 = vld [vmem:[%s473 + $0x68] sm:$0xff]
        %v966 = vld [vmem:[%s473 + $0x78] sm:$0xff]
        %v967 = vld [vmem:[%s473 + $0x80] sm:$0xff]
        %v968 = vld [vmem:[%s473 + $0x90] sm:$0xff]
        %v969 = vld [vmem:[%s473 + $0x98] sm:$0xff]
        %v970 = vld [vmem:[%s473 + $0xa8] sm:$0xff]
        %v971 = vld [vmem:[%s473 + $0xb0] sm:$0xff]
        %v972 = vld [vmem:[%s473 + $0xc0] sm:$0xff]
        %v973 = vld [vmem:[%s473 + $0xc8] sm:$0xff]
        %v974 = vld [vmem:[%s473 + $0xd8] sm:$0xff]
        %v975 = vld [vmem:[%s473 + $0xe0] sm:$0xff]
        %v976 = vld [vmem:[%s473 + $0xf0] sm:$0xff]
        %v977 = vld [vmem:[%s473 + $0xf8] sm:$0xff]
        %v978 = vld [vmem:[%s473 + $0x108] sm:$0xff]
        %v979 = vld [vmem:[%s473 + $0x110] sm:$0xff]
        %v980 = vld [vmem:[%s473 + $0x120] sm:$0xff]
        %v981 = vld [vmem:[%s473 + $0x128] sm:$0xff]
        %v982 = vld [vmem:[%s473 + $0x138] sm:$0xff]
        %v983 = vld [vmem:[%s473 + $0x140] sm:$0xff]
        %v984 = vld [vmem:[%s473 + $0x150] sm:$0xff]
        %v985 = vld [vmem:[%s473 + $0x158] sm:$0xff]
        %v986 = vld [vmem:[%s473 + $0x168] sm:$0xff]
        %v987 = vld [vmem:[%s473 + $0x170] sm:$0xff]
        %1020 = vrot.lane.b32.xlu0 %v956, 9
        %v1021 = vpop.permute.xlu0 %1020
        %1022 = vrot.lane.b32.xlu0 %v957, 9
        %v1023 = vpop.permute.xlu0 %1022
        %1024 = vrot.lane.b32.xlu0 %v958, 9
        %v1025 = vpop.permute.xlu0 %1024
        %1026 = vrot.lane.b32.xlu0 %v959, 9
        %v1027 = vpop.permute.xlu0 %1026
        %1028 = vrot.lane.b32.xlu0 %v960, 9
        %v1029 = vpop.permute.xlu0 %1028
        %1030 = vrot.lane.b32.xlu0 %v961, 9
        %v1031 = vpop.permute.xlu0 %1030
        %1032 = vrot.lane.b32.xlu0 %v962, 9
        %v1033 = vpop.permute.xlu0 %1032
        %1034 = vrot.lane.b32.xlu0 %v963, 9
        %v1035 = vpop.permute.xlu0 %1034
        %1036 = vrot.lane.b32.xlu0 %v964, 9
        %v1037 = vpop.permute.xlu0 %1036
        %1038 = vrot.lane.b32.xlu0 %v965, 9
        %v1039 = vpop.permute.xlu0 %1038
        %1040 = vrot.lane.b32.xlu0 %v966, 9
        %v1041 = vpop.permute.xlu0 %1040
        %1042 = vrot.lane.b32.xlu0 %v967, 9
        %v1043 = vpop.permute.xlu0 %1042
        %1044 = vrot.lane.b32.xlu0 %v968, 9
        %v1045 = vpop.permute.xlu0 %1044
        %1046 = vrot.lane.b32.xlu0 %v969, 9
        %v1047 = vpop.permute.xlu0 %1046
        %1048 = vrot.lane.b32.xlu0 %v970, 9
        %v1049 = vpop.permute.xlu0 %1048
        %1050 = vrot.lane.b32.xlu0 %v971, 9
        %v1051 = vpop.permute.xlu0 %1050
        %1052 = vrot.lane.b32.xlu0 %v972, 9
        %v1053 = vpop.permute.xlu0 %1052
        %1054 = vrot.lane.b32.xlu0 %v973, 9
        %v1055 = vpop.permute.xlu0 %1054
        %1056 = vrot.lane.b32.xlu0 %v974, 9
        %v1057 = vpop.permute.xlu0 %1056
        %1058 = vrot.lane.b32.xlu0 %v975, 9
        %v1059 = vpop.permute.xlu0 %1058
        %1060 = vrot.lane.b32.xlu0 %v976, 9
        %v1061 = vpop.permute.xlu0 %1060
        %1062 = vrot.lane.b32.xlu0 %v977, 9
        %v1063 = vpop.permute.xlu0 %1062
        %1064 = vrot.lane.b32.xlu0 %v978, 9
        %v1065 = vpop.permute.xlu0 %1064
        %1066 = vrot.lane.b32.xlu0 %v979, 9
        %v1067 = vpop.permute.xlu0 %1066
        %1068 = vrot.lane.b32.xlu0 %v980, 9
        %v1069 = vpop.permute.xlu0 %1068
        %1070 = vrot.lane.b32.xlu0 %v981, 9
        %v1071 = vpop.permute.xlu0 %1070
        %1072 = vrot.lane.b32.xlu0 %v982, 9
        %v1073 = vpop.permute.xlu0 %1072
        %1074 = vrot.lane.b32.xlu0 %v983, 9
        %v1075 = vpop.permute.xlu0 %1074
        %1076 = vrot.lane.b32.xlu0 %v984, 9
        %v1077 = vpop.permute.xlu0 %1076
        %1078 = vrot.lane.b32.xlu0 %v985, 9
        %v1079 = vpop.permute.xlu0 %1078
        %1080 = vrot.lane.b32.xlu0 %v986, 9
        %v1081 = vpop.permute.xlu0 %1080
        %1082 = vrot.lane.b32.xlu0 %v987, 9
        %v1083 = vpop.permute.xlu0 %1082
        %vm1116 = vcmask 97352
        %1117 = vst.msk [vmem:[#allocation3] sm:$0xff] %vm1116, %v1021
        %1118 = vst.msk [vmem:[#allocation3 + $0x8] sm:$0xff] %vm1116, %v1023
        %1119 = vst.msk [vmem:[#allocation3 + $0x10] sm:$0xff] %vm1116, %v1025
        %1120 = vst.msk [vmem:[#allocation3 + $0x18] sm:$0xff] %vm1116, %v1027
        %1121 = vst.msk [vmem:[#allocation3 + $0x20] sm:$0xff] %vm1116, %v1029
        %1122 = vst.msk [vmem:[#allocation3 + $0x28] sm:$0xff] %vm1116, %v1031
        %1123 = vst.msk [vmem:[#allocation3 + $0x30] sm:$0xff] %vm1116, %v1033
        %1124 = vst.msk [vmem:[#allocation3 + $0x38] sm:$0xff] %vm1116, %v1035
        %1125 = vst.msk [vmem:[#allocation3 + $0x40] sm:$0xff] %vm1116, %v1037
        %1126 = vst.msk [vmem:[#allocation3 + $0x48] sm:$0xff] %vm1116, %v1039
        %1127 = vst.msk [vmem:[#allocation3 + $0x50] sm:$0xff] %vm1116, %v1041
        %1128 = vst.msk [vmem:[#allocation3 + $0x58] sm:$0xff] %vm1116, %v1043
        %1129 = vst.msk [vmem:[#allocation3 + $0x60] sm:$0xff] %vm1116, %v1045
        %1130 = vst.msk [vmem:[#allocation3 + $0x68] sm:$0xff] %vm1116, %v1047
        %1131 = vst.msk [vmem:[#allocation3 + $0x70] sm:$0xff] %vm1116, %v1049
        %1132 = vst.msk [vmem:[#allocation3 + $0x78] sm:$0xff] %vm1116, %v1051
        %1133 = vst.msk [vmem:[#allocation3 + $0x80] sm:$0xff] %vm1116, %v1053
        %1134 = vst.msk [vmem:[#allocation3 + $0x88] sm:$0xff] %vm1116, %v1055
        %1135 = vst.msk [vmem:[#allocation3 + $0x90] sm:$0xff] %vm1116, %v1057
        %1136 = vst.msk [vmem:[#allocation3 + $0x98] sm:$0xff] %vm1116, %v1059
        %1137 = vst.msk [vmem:[#allocation3 + $0xa0] sm:$0xff] %vm1116, %v1061
        %1138 = vst.msk [vmem:[#allocation3 + $0xa8] sm:$0xff] %vm1116, %v1063
        %1139 = vst.msk [vmem:[#allocation3 + $0xb0] sm:$0xff] %vm1116, %v1065
        %1140 = vst.msk [vmem:[#allocation3 + $0xb8] sm:$0xff] %vm1116, %v1067
        %1141 = vst.msk [vmem:[#allocation3 + $0xc0] sm:$0xff] %vm1116, %v1069
        %1142 = vst.msk [vmem:[#allocation3 + $0xc8] sm:$0xff] %vm1116, %v1071
        %1143 = vst.msk [vmem:[#allocation3 + $0xd0] sm:$0xff] %vm1116, %v1073
        %1144 = vst.msk [vmem:[#allocation3 + $0xd8] sm:$0xff] %vm1116, %v1075
        %1145 = vst.msk [vmem:[#allocation3 + $0xe0] sm:$0xff] %vm1116, %v1077
        %1146 = vst.msk [vmem:[#allocation3 + $0xe8] sm:$0xff] %vm1116, %v1079
        %1147 = vst.msk [vmem:[#allocation3 + $0xf0] sm:$0xff] %vm1116, %v1081
        %1148 = vst.msk [vmem:[#allocation3 + $0xf8] sm:$0xff] %vm1116, %v1083
        %v1149 = vld [vmem:[%s473 + $0x1] sm:$0xff]
        %v1150 = vld [vmem:[%s473 + $0x9] sm:$0xff]
        %v1151 = vld [vmem:[%s473 + $0x19] sm:$0xff]
        %v1152 = vld [vmem:[%s473 + $0x21] sm:$0xff]
        %v1153 = vld [vmem:[%s473 + $0x31] sm:$0xff]
        %v1154 = vld [vmem:[%s473 + $0x39] sm:$0xff]
        %v1155 = vld [vmem:[%s473 + $0x49] sm:$0xff]
        %v1156 = vld [vmem:[%s473 + $0x51] sm:$0xff]
        %v1157 = vld [vmem:[%s473 + $0x61] sm:$0xff]
        %v1158 = vld [vmem:[%s473 + $0x69] sm:$0xff]
        %v1159 = vld [vmem:[%s473 + $0x79] sm:$0xff]
        %v1160 = vld [vmem:[%s473 + $0x81] sm:$0xff]
        %v1161 = vld [vmem:[%s473 + $0x91] sm:$0xff]
        %v1162 = vld [vmem:[%s473 + $0x99] sm:$0xff]
        %v1163 = vld [vmem:[%s473 + $0xa9] sm:$0xff]
        %v1164 = vld [vmem:[%s473 + $0xb1] sm:$0xff]
        %v1165 = vld [vmem:[%s473 + $0xc1] sm:$0xff]
        %v1166 = vld [vmem:[%s473 + $0xc9] sm:$0xff]
        %v1167 = vld [vmem:[%s473 + $0xd9] sm:$0xff]
        %v1168 = vld [vmem:[%s473 + $0xe1] sm:$0xff]
        %v1169 = vld [vmem:[%s473 + $0xf1] sm:$0xff]
        %v1170 = vld [vmem:[%s473 + $0xf9] sm:$0xff]
        %v1171 = vld [vmem:[%s473 + $0x109] sm:$0xff]
        %v1172 = vld [vmem:[%s473 + $0x111] sm:$0xff]
        %v1173 = vld [vmem:[%s473 + $0x121] sm:$0xff]
        %v1174 = vld [vmem:[%s473 + $0x129] sm:$0xff]
        %v1175 = vld [vmem:[%s473 + $0x139] sm:$0xff]
        %v1176 = vld [vmem:[%s473 + $0x141] sm:$0xff]
        %v1177 = vld [vmem:[%s473 + $0x151] sm:$0xff]
        %v1178 = vld [vmem:[%s473 + $0x159] sm:$0xff]
        %v1179 = vld [vmem:[%s473 + $0x169] sm:$0xff]
        %v1180 = vld [vmem:[%s473 + $0x171] sm:$0xff]
        %1213 = vrot.lane.b32.xlu0 %v1149, 12
        %v1214 = vpop.permute.xlu0 %1213
        %1215 = vrot.lane.b32.xlu0 %v1150, 12
        %v1216 = vpop.permute.xlu0 %1215
        %1217 = vrot.lane.b32.xlu0 %v1151, 12
        %v1218 = vpop.permute.xlu0 %1217
        %1219 = vrot.lane.b32.xlu0 %v1152, 12
        %v1220 = vpop.permute.xlu0 %1219
        %1221 = vrot.lane.b32.xlu0 %v1153, 12
        %v1222 = vpop.permute.xlu0 %1221
        %1223 = vrot.lane.b32.xlu0 %v1154, 12
        %v1224 = vpop.permute.xlu0 %1223
        %1225 = vrot.lane.b32.xlu0 %v1155, 12
        %v1226 = vpop.permute.xlu0 %1225
        %1227 = vrot.lane.b32.xlu0 %v1156, 12
        %v1228 = vpop.permute.xlu0 %1227
        %1229 = vrot.lane.b32.xlu0 %v1157, 12
        %v1230 = vpop.permute.xlu0 %1229
        %1231 = vrot.lane.b32.xlu0 %v1158, 12
        %v1232 = vpop.permute.xlu0 %1231
        %1233 = vrot.lane.b32.xlu0 %v1159, 12
        %v1234 = vpop.permute.xlu0 %1233
        %1235 = vrot.lane.b32.xlu0 %v1160, 12
        %v1236 = vpop.permute.xlu0 %1235
        %1237 = vrot.lane.b32.xlu0 %v1161, 12
        %v1238 = vpop.permute.xlu0 %1237
        %1239 = vrot.lane.b32.xlu0 %v1162, 12
        %v1240 = vpop.permute.xlu0 %1239
        %1241 = vrot.lane.b32.xlu0 %v1163, 12
        %v1242 = vpop.permute.xlu0 %1241
        %1243 = vrot.lane.b32.xlu0 %v1164, 12
        %v1244 = vpop.permute.xlu0 %1243
        %1245 = vrot.lane.b32.xlu0 %v1165, 12
        %v1246 = vpop.permute.xlu0 %1245
        %1247 = vrot.lane.b32.xlu0 %v1166, 12
        %v1248 = vpop.permute.xlu0 %1247
        %1249 = vrot.lane.b32.xlu0 %v1167, 12
        %v1250 = vpop.permute.xlu0 %1249
        %1251 = vrot.lane.b32.xlu0 %v1168, 12
        %v1252 = vpop.permute.xlu0 %1251
        %1253 = vrot.lane.b32.xlu0 %v1169, 12
        %v1254 = vpop.permute.xlu0 %1253
        %1255 = vrot.lane.b32.xlu0 %v1170, 12
        %v1256 = vpop.permute.xlu0 %1255
        %1257 = vrot.lane.b32.xlu0 %v1171, 12
        %v1258 = vpop.permute.xlu0 %1257
        %1259 = vrot.lane.b32.xlu0 %v1172, 12
        %v1260 = vpop.permute.xlu0 %1259
        %1261 = vrot.lane.b32.xlu0 %v1173, 12
        %v1262 = vpop.permute.xlu0 %1261
        %1263 = vrot.lane.b32.xlu0 %v1174, 12
        %v1264 = vpop.permute.xlu0 %1263
        %1265 = vrot.lane.b32.xlu0 %v1175, 12
        %v1266 = vpop.permute.xlu0 %1265
        %1267 = vrot.lane.b32.xlu0 %v1176, 12
        %v1268 = vpop.permute.xlu0 %1267
        %1269 = vrot.lane.b32.xlu0 %v1177, 12
        %v1270 = vpop.permute.xlu0 %1269
        %1271 = vrot.lane.b32.xlu0 %v1178, 12
        %v1272 = vpop.permute.xlu0 %1271
        %1273 = vrot.lane.b32.xlu0 %v1179, 12
        %v1274 = vpop.permute.xlu0 %1273
        %1275 = vrot.lane.b32.xlu0 %v1180, 12
        %v1276 = vpop.permute.xlu0 %1275
        %vm1309 = vcmask 121952
        %1310 = vst.msk [vmem:[#allocation3] sm:$0xff] %vm1309, %v1214
        %1311 = vst.msk [vmem:[#allocation3 + $0x8] sm:$0xff] %vm1309, %v1216
        %1312 = vst.msk [vmem:[#allocation3 + $0x10] sm:$0xff] %vm1309, %v1218
        %1313 = vst.msk [vmem:[#allocation3 + $0x18] sm:$0xff] %vm1309, %v1220
        %1314 = vst.msk [vmem:[#allocation3 + $0x20] sm:$0xff] %vm1309, %v1222
        %1315 = vst.msk [vmem:[#allocation3 + $0x28] sm:$0xff] %vm1309, %v1224
        %1316 = vst.msk [vmem:[#allocation3 + $0x30] sm:$0xff] %vm1309, %v1226
        %1317 = vst.msk [vmem:[#allocation3 + $0x38] sm:$0xff] %vm1309, %v1228
        %1318 = vst.msk [vmem:[#allocation3 + $0x40] sm:$0xff] %vm1309, %v1230
        %1319 = vst.msk [vmem:[#allocation3 + $0x48] sm:$0xff] %vm1309, %v1232
        %1320 = vst.msk [vmem:[#allocation3 + $0x50] sm:$0xff] %vm1309, %v1234
        %1321 = vst.msk [vmem:[#allocation3 + $0x58] sm:$0xff] %vm1309, %v1236
        %1322 = vst.msk [vmem:[#allocation3 + $0x60] sm:$0xff] %vm1309, %v1238
        %1323 = vst.msk [vmem:[#allocation3 + $0x68] sm:$0xff] %vm1309, %v1240
        %1324 = vst.msk [vmem:[#allocation3 + $0x70] sm:$0xff] %vm1309, %v1242
        %1325 = vst.msk [vmem:[#allocation3 + $0x78] sm:$0xff] %vm1309, %v1244
        %1326 = vst.msk [vmem:[#allocation3 + $0x80] sm:$0xff] %vm1309, %v1246
        %1327 = vst.msk [vmem:[#allocation3 + $0x88] sm:$0xff] %vm1309, %v1248
        %1328 = vst.msk [vmem:[#allocation3 + $0x90] sm:$0xff] %vm1309, %v1250
        %1329 = vst.msk [vmem:[#allocation3 + $0x98] sm:$0xff] %vm1309, %v1252
        %1330 = vst.msk [vmem:[#allocation3 + $0xa0] sm:$0xff] %vm1309, %v1254
        %1331 = vst.msk [vmem:[#allocation3 + $0xa8] sm:$0xff] %vm1309, %v1256
        %1332 = vst.msk [vmem:[#allocation3 + $0xb0] sm:$0xff] %vm1309, %v1258
        %1333 = vst.msk [vmem:[#allocation3 + $0xb8] sm:$0xff] %vm1309, %v1260
        %1334 = vst.msk [vmem:[#allocation3 + $0xc0] sm:$0xff] %vm1309, %v1262
        %1335 = vst.msk [vmem:[#allocation3 + $0xc8] sm:$0xff] %vm1309, %v1264
        %1336 = vst.msk [vmem:[#allocation3 + $0xd0] sm:$0xff] %vm1309, %v1266
        %1337 = vst.msk [vmem:[#allocation3 + $0xd8] sm:$0xff] %vm1309, %v1268
        %1338 = vst.msk [vmem:[#allocation3 + $0xe0] sm:$0xff] %vm1309, %v1270
        %1339 = vst.msk [vmem:[#allocation3 + $0xe8] sm:$0xff] %vm1309, %v1272
        %1340 = vst.msk [vmem:[#allocation3 + $0xf0] sm:$0xff] %vm1309, %v1274
        %1341 = vst.msk [vmem:[#allocation3 + $0xf8] sm:$0xff] %vm1309, %v1276
        %v1342 = vld [vmem:[%s473 + $0x2] sm:$0xff]
        %v1343 = vld [vmem:[%s473 + $0xa] sm:$0xff]
        %v1344 = vld [vmem:[%s473 + $0x1a] sm:$0xff]
        %v1345 = vld [vmem:[%s473 + $0x22] sm:$0xff]
        %v1346 = vld [vmem:[%s473 + $0x32] sm:$0xff]
        %v1347 = vld [vmem:[%s473 + $0x3a] sm:$0xff]
        %v1348 = vld [vmem:[%s473 + $0x4a] sm:$0xff]
        %v1349 = vld [vmem:[%s473 + $0x52] sm:$0xff]
        %v1350 = vld [vmem:[%s473 + $0x62] sm:$0xff]
        %v1351 = vld [vmem:[%s473 + $0x6a] sm:$0xff]
        %v1352 = vld [vmem:[%s473 + $0x7a] sm:$0xff]
        %v1353 = vld [vmem:[%s473 + $0x82] sm:$0xff]
        %v1354 = vld [vmem:[%s473 + $0x92] sm:$0xff]
        %v1355 = vld [vmem:[%s473 + $0x9a] sm:$0xff]
        %v1356 = vld [vmem:[%s473 + $0xaa] sm:$0xff]
        %v1357 = vld [vmem:[%s473 + $0xb2] sm:$0xff]
        %v1358 = vld [vmem:[%s473 + $0xc2] sm:$0xff]
        %v1359 = vld [vmem:[%s473 + $0xca] sm:$0xff]
        %v1360 = vld [vmem:[%s473 + $0xda] sm:$0xff]
        %v1361 = vld [vmem:[%s473 + $0xe2] sm:$0xff]
        %v1362 = vld [vmem:[%s473 + $0xf2] sm:$0xff]
        %v1363 = vld [vmem:[%s473 + $0xfa] sm:$0xff]
        %v1364 = vld [vmem:[%s473 + $0x10a] sm:$0xff]
        %v1365 = vld [vmem:[%s473 + $0x112] sm:$0xff]
        %v1366 = vld [vmem:[%s473 + $0x122] sm:$0xff]
        %v1367 = vld [vmem:[%s473 + $0x12a] sm:$0xff]
        %v1368 = vld [vmem:[%s473 + $0x13a] sm:$0xff]
        %v1369 = vld [vmem:[%s473 + $0x142] sm:$0xff]
        %v1370 = vld [vmem:[%s473 + $0x152] sm:$0xff]
        %v1371 = vld [vmem:[%s473 + $0x15a] sm:$0xff]
        %v1372 = vld [vmem:[%s473 + $0x16a] sm:$0xff]
        %v1373 = vld [vmem:[%s473 + $0x172] sm:$0xff]
        %1406 = vrot.lane.b32.xlu0 %v1342, 15
        %v1407 = vpop.permute.xlu0 %1406
        %1408 = vrot.lane.b32.xlu0 %v1343, 15
        %v1409 = vpop.permute.xlu0 %1408
        %1410 = vrot.lane.b32.xlu0 %v1344, 15
        %v1411 = vpop.permute.xlu0 %1410
        %1412 = vrot.lane.b32.xlu0 %v1345, 15
        %v1413 = vpop.permute.xlu0 %1412
        %1414 = vrot.lane.b32.xlu0 %v1346, 15
        %v1415 = vpop.permute.xlu0 %1414
        %1416 = vrot.lane.b32.xlu0 %v1347, 15
        %v1417 = vpop.permute.xlu0 %1416
        %1418 = vrot.lane.b32.xlu0 %v1348, 15
        %v1419 = vpop.permute.xlu0 %1418
        %1420 = vrot.lane.b32.xlu0 %v1349, 15
        %v1421 = vpop.permute.xlu0 %1420
        %1422 = vrot.lane.b32.xlu0 %v1350, 15
        %v1423 = vpop.permute.xlu0 %1422
        %1424 = vrot.lane.b32.xlu0 %v1351, 15
        %v1425 = vpop.permute.xlu0 %1424
        %1426 = vrot.lane.b32.xlu0 %v1352, 15
        %v1427 = vpop.permute.xlu0 %1426
        %1428 = vrot.lane.b32.xlu0 %v1353, 15
        %v1429 = vpop.permute.xlu0 %1428
        %1430 = vrot.lane.b32.xlu0 %v1354, 15
        %v1431 = vpop.permute.xlu0 %1430
        %1432 = vrot.lane.b32.xlu0 %v1355, 15
        %v1433 = vpop.permute.xlu0 %1432
        %1434 = vrot.lane.b32.xlu0 %v1356, 15
        %v1435 = vpop.permute.xlu0 %1434
        %1436 = vrot.lane.b32.xlu0 %v1357, 15
        %v1437 = vpop.permute.xlu0 %1436
        %1438 = vrot.lane.b32.xlu0 %v1358, 15
        %v1439 = vpop.permute.xlu0 %1438
        %1440 = vrot.lane.b32.xlu0 %v1359, 15
        %v1441 = vpop.permute.xlu0 %1440
        %1442 = vrot.lane.b32.xlu0 %v1360, 15
        %v1443 = vpop.permute.xlu0 %1442
        %1444 = vrot.lane.b32.xlu0 %v1361, 15
        %v1445 = vpop.permute.xlu0 %1444
        %1446 = vrot.lane.b32.xlu0 %v1362, 15
        %v1447 = vpop.permute.xlu0 %1446
        %1448 = vrot.lane.b32.xlu0 %v1363, 15
        %v1449 = vpop.permute.xlu0 %1448
        %1450 = vrot.lane.b32.xlu0 %v1364, 15
        %v1451 = vpop.permute.xlu0 %1450
        %1452 = vrot.lane.b32.xlu0 %v1365, 15
        %v1453 = vpop.permute.xlu0 %1452
        %1454 = vrot.lane.b32.xlu0 %v1366, 15
        %v1455 = vpop.permute.xlu0 %1454
        %1456 = vrot.lane.b32.xlu0 %v1367, 15
        %v1457 = vpop.permute.xlu0 %1456
        %1458 = vrot.lane.b32.xlu0 %v1368, 15
        %v1459 = vpop.permute.xlu0 %1458
        %1460 = vrot.lane.b32.xlu0 %v1369, 15
        %v1461 = vpop.permute.xlu0 %1460
        %1462 = vrot.lane.b32.xlu0 %v1370, 15
        %v1463 = vpop.permute.xlu0 %1462
        %1464 = vrot.lane.b32.xlu0 %v1371, 15
        %v1465 = vpop.permute.xlu0 %1464
        %1466 = vrot.lane.b32.xlu0 %v1372, 15
        %v1467 = vpop.permute.xlu0 %1466
        %1468 = vrot.lane.b32.xlu0 %v1373, 15
        %v1469 = vpop.permute.xlu0 %1468
        %vm1502 = vcmask 146552
        %1503 = vst.msk [vmem:[#allocation3] sm:$0xff] %vm1502, %v1407
        %1504 = vst.msk [vmem:[#allocation3 + $0x8] sm:$0xff] %vm1502, %v1409
        %1505 = vst.msk [vmem:[#allocation3 + $0x10] sm:$0xff] %vm1502, %v1411
        %1506 = vst.msk [vmem:[#allocation3 + $0x18] sm:$0xff] %vm1502, %v1413
        %1507 = vst.msk [vmem:[#allocation3 + $0x20] sm:$0xff] %vm1502, %v1415
        %1508 = vst.msk [vmem:[#allocation3 + $0x28] sm:$0xff] %vm1502, %v1417
        %1509 = vst.msk [vmem:[#allocation3 + $0x30] sm:$0xff] %vm1502, %v1419
        %1510 = vst.msk [vmem:[#allocation3 + $0x38] sm:$0xff] %vm1502, %v1421
        %1511 = vst.msk [vmem:[#allocation3 + $0x40] sm:$0xff] %vm1502, %v1423
        %1512 = vst.msk [vmem:[#allocation3 + $0x48] sm:$0xff] %vm1502, %v1425
        %1513 = vst.msk [vmem:[#allocation3 + $0x50] sm:$0xff] %vm1502, %v1427
        %1514 = vst.msk [vmem:[#allocation3 + $0x58] sm:$0xff] %vm1502, %v1429
        %1515 = vst.msk [vmem:[#allocation3 + $0x60] sm:$0xff] %vm1502, %v1431
        %1516 = vst.msk [vmem:[#allocation3 + $0x68] sm:$0xff] %vm1502, %v1433
        %1517 = vst.msk [vmem:[#allocation3 + $0x70] sm:$0xff] %vm1502, %v1435
        %1518 = vst.msk [vmem:[#allocation3 + $0x78] sm:$0xff] %vm1502, %v1437
        %1519 = vst.msk [vmem:[#allocation3 + $0x80] sm:$0xff] %vm1502, %v1439
        %1520 = vst.msk [vmem:[#allocation3 + $0x88] sm:$0xff] %vm1502, %v1441
        %1521 = vst.msk [vmem:[#allocation3 + $0x90] sm:$0xff] %vm1502, %v1443
        %1522 = vst.msk [vmem:[#allocation3 + $0x98] sm:$0xff] %vm1502, %v1445
        %1523 = vst.msk [vmem:[#allocation3 + $0xa0] sm:$0xff] %vm1502, %v1447
        %1524 = vst.msk [vmem:[#allocation3 + $0xa8] sm:$0xff] %vm1502, %v1449
        %1525 = vst.msk [vmem:[#allocation3 + $0xb0] sm:$0xff] %vm1502, %v1451
        %1526 = vst.msk [vmem:[#allocation3 + $0xb8] sm:$0xff] %vm1502, %v1453
        %1527 = vst.msk [vmem:[#allocation3 + $0xc0] sm:$0xff] %vm1502, %v1455
        %1528 = vst.msk [vmem:[#allocation3 + $0xc8] sm:$0xff] %vm1502, %v1457
        %1529 = vst.msk [vmem:[#allocation3 + $0xd0] sm:$0xff] %vm1502, %v1459
        %1530 = vst.msk [vmem:[#allocation3 + $0xd8] sm:$0xff] %vm1502, %v1461
        %1531 = vst.msk [vmem:[#allocation3 + $0xe0] sm:$0xff] %vm1502, %v1463
        %1532 = vst.msk [vmem:[#allocation3 + $0xe8] sm:$0xff] %vm1502, %v1465
        %1533 = vst.msk [vmem:[#allocation3 + $0xf0] sm:$0xff] %vm1502, %v1467
        %1534 = vst.msk [vmem:[#allocation3 + $0xf8] sm:$0xff] %vm1502, %v1469
        %s1535 = scalar_lea.vmem [#allocation2], 48
        %v1536 = vld [vmem:[%s1535] sm:$0xff]
        %v1537 = vld [vmem:[%s1535 + $0x8] sm:$0xff]
        %v1538 = vld [vmem:[%s1535 + $0x18] sm:$0xff]
        %v1539 = vld [vmem:[%s1535 + $0x20] sm:$0xff]
        %v1540 = vld [vmem:[%s1535 + $0x30] sm:$0xff]
        %v1541 = vld [vmem:[%s1535 + $0x38] sm:$0xff]
        %v1542 = vld [vmem:[%s1535 + $0x48] sm:$0xff]
        %v1543 = vld [vmem:[%s1535 + $0x50] sm:$0xff]
        %v1544 = vld [vmem:[%s1535 + $0x60] sm:$0xff]
        %v1545 = vld [vmem:[%s1535 + $0x68] sm:$0xff]
        %v1546 = vld [vmem:[%s1535 + $0x78] sm:$0xff]
        %v1547 = vld [vmem:[%s1535 + $0x80] sm:$0xff]
        %v1548 = vld [vmem:[%s1535 + $0x90] sm:$0xff]
        %v1549 = vld [vmem:[%s1535 + $0x98] sm:$0xff]
        %v1550 = vld [vmem:[%s1535 + $0xa8] sm:$0xff]
        %v1551 = vld [vmem:[%s1535 + $0xb0] sm:$0xff]
        %v1552 = vld [vmem:[%s1535 + $0xc0] sm:$0xff]
        %v1553 = vld [vmem:[%s1535 + $0xc8] sm:$0xff]
        %v1554 = vld [vmem:[%s1535 + $0xd8] sm:$0xff]
        %v1555 = vld [vmem:[%s1535 + $0xe0] sm:$0xff]
        %v1556 = vld [vmem:[%s1535 + $0xf0] sm:$0xff]
        %v1557 = vld [vmem:[%s1535 + $0xf8] sm:$0xff]
        %v1558 = vld [vmem:[%s1535 + $0x108] sm:$0xff]
        %v1559 = vld [vmem:[%s1535 + $0x110] sm:$0xff]
        %v1560 = vld [vmem:[%s1535 + $0x120] sm:$0xff]
        %v1561 = vld [vmem:[%s1535 + $0x128] sm:$0xff]
        %v1562 = vld [vmem:[%s1535 + $0x138] sm:$0xff]
        %v1563 = vld [vmem:[%s1535 + $0x140] sm:$0xff]
        %v1564 = vld [vmem:[%s1535 + $0x150] sm:$0xff]
        %v1565 = vld [vmem:[%s1535 + $0x158] sm:$0xff]
        %v1566 = vld [vmem:[%s1535 + $0x168] sm:$0xff]
        %v1567 = vld [vmem:[%s1535 + $0x170] sm:$0xff]
        %1600 = vrot.lane.b32.xlu0 %v1536, 18
        %v1601 = vpop.permute.xlu0 %1600
        %1602 = vrot.lane.b32.xlu0 %v1537, 18
        %v1603 = vpop.permute.xlu0 %1602
        %1604 = vrot.lane.b32.xlu0 %v1538, 18
        %v1605 = vpop.permute.xlu0 %1604
        %1606 = vrot.lane.b32.xlu0 %v1539, 18
        %v1607 = vpop.permute.xlu0 %1606
        %1608 = vrot.lane.b32.xlu0 %v1540, 18
        %v1609 = vpop.permute.xlu0 %1608
        %1610 = vrot.lane.b32.xlu0 %v1541, 18
        %v1611 = vpop.permute.xlu0 %1610
        %1612 = vrot.lane.b32.xlu0 %v1542, 18
        %v1613 = vpop.permute.xlu0 %1612
        %1614 = vrot.lane.b32.xlu0 %v1543, 18
        %v1615 = vpop.permute.xlu0 %1614
        %1616 = vrot.lane.b32.xlu0 %v1544, 18
        %v1617 = vpop.permute.xlu0 %1616
        %1618 = vrot.lane.b32.xlu0 %v1545, 18
        %v1619 = vpop.permute.xlu0 %1618
        %1620 = vrot.lane.b32.xlu0 %v1546, 18
        %v1621 = vpop.permute.xlu0 %1620
        %1622 = vrot.lane.b32.xlu0 %v1547, 18
        %v1623 = vpop.permute.xlu0 %1622
        %1624 = vrot.lane.b32.xlu0 %v1548, 18
        %v1625 = vpop.permute.xlu0 %1624
        %1626 = vrot.lane.b32.xlu0 %v1549, 18
        %v1627 = vpop.permute.xlu0 %1626
        %1628 = vrot.lane.b32.xlu0 %v1550, 18
        %v1629 = vpop.permute.xlu0 %1628
        %1630 = vrot.lane.b32.xlu0 %v1551, 18
        %v1631 = vpop.permute.xlu0 %1630
        %1632 = vrot.lane.b32.xlu0 %v1552, 18
        %v1633 = vpop.permute.xlu0 %1632
        %1634 = vrot.lane.b32.xlu0 %v1553, 18
        %v1635 = vpop.permute.xlu0 %1634
        %1636 = vrot.lane.b32.xlu0 %v1554, 18
        %v1637 = vpop.permute.xlu0 %1636
        %1638 = vrot.lane.b32.xlu0 %v1555, 18
        %v1639 = vpop.permute.xlu0 %1638
        %1640 = vrot.lane.b32.xlu0 %v1556, 18
        %v1641 = vpop.permute.xlu0 %1640
        %1642 = vrot.lane.b32.xlu0 %v1557, 18
        %v1643 = vpop.permute.xlu0 %1642
        %1644 = vrot.lane.b32.xlu0 %v1558, 18
        %v1645 = vpop.permute.xlu0 %1644
        %1646 = vrot.lane.b32.xlu0 %v1559, 18
        %v1647 = vpop.permute.xlu0 %1646
        %1648 = vrot.lane.b32.xlu0 %v1560, 18
        %v1649 = vpop.permute.xlu0 %1648
        %1650 = vrot.lane.b32.xlu0 %v1561, 18
        %v1651 = vpop.permute.xlu0 %1650
        %1652 = vrot.lane.b32.xlu0 %v1562, 18
        %v1653 = vpop.permute.xlu0 %1652
        %1654 = vrot.lane.b32.xlu0 %v1563, 18
        %v1655 = vpop.permute.xlu0 %1654
        %1656 = vrot.lane.b32.xlu0 %v1564, 18
        %v1657 = vpop.permute.xlu0 %1656
        %1658 = vrot.lane.b32.xlu0 %v1565, 18
        %v1659 = vpop.permute.xlu0 %1658
        %1660 = vrot.lane.b32.xlu0 %v1566, 18
        %v1661 = vpop.permute.xlu0 %1660
        %1662 = vrot.lane.b32.xlu0 %v1567, 18
        %v1663 = vpop.permute.xlu0 %1662
        %vm1696 = vcmask 171152
        %1697 = vst.msk [vmem:[#allocation3] sm:$0xff] %vm1696, %v1601
        %1698 = vst.msk [vmem:[#allocation3 + $0x8] sm:$0xff] %vm1696, %v1603
        %1699 = vst.msk [vmem:[#allocation3 + $0x10] sm:$0xff] %vm1696, %v1605
        %1700 = vst.msk [vmem:[#allocation3 + $0x18] sm:$0xff] %vm1696, %v1607
        %1701 = vst.msk [vmem:[#allocation3 + $0x20] sm:$0xff] %vm1696, %v1609
        %1702 = vst.msk [vmem:[#allocation3 + $0x28] sm:$0xff] %vm1696, %v1611
        %1703 = vst.msk [vmem:[#allocation3 + $0x30] sm:$0xff] %vm1696, %v1613
        %1704 = vst.msk [vmem:[#allocation3 + $0x38] sm:$0xff] %vm1696, %v1615
        %1705 = vst.msk [vmem:[#allocation3 + $0x40] sm:$0xff] %vm1696, %v1617
        %1706 = vst.msk [vmem:[#allocation3 + $0x48] sm:$0xff] %vm1696, %v1619
        %1707 = vst.msk [vmem:[#allocation3 + $0x50] sm:$0xff] %vm1696, %v1621
        %1708 = vst.msk [vmem:[#allocation3 + $0x58] sm:$0xff] %vm1696, %v1623
        %1709 = vst.msk [vmem:[#allocation3 + $0x60] sm:$0xff] %vm1696, %v1625
        %1710 = vst.msk [vmem:[#allocation3 + $0x68] sm:$0xff] %vm1696, %v1627
        %1711 = vst.msk [vmem:[#allocation3 + $0x70] sm:$0xff] %vm1696, %v1629
        %1712 = vst.msk [vmem:[#allocation3 + $0x78] sm:$0xff] %vm1696, %v1631
        %1713 = vst.msk [vmem:[#allocation3 + $0x80] sm:$0xff] %vm1696, %v1633
        %1714 = vst.msk [vmem:[#allocation3 + $0x88] sm:$0xff] %vm1696, %v1635
        %1715 = vst.msk [vmem:[#allocation3 + $0x90] sm:$0xff] %vm1696, %v1637
        %1716 = vst.msk [vmem:[#allocation3 + $0x98] sm:$0xff] %vm1696, %v1639
        %1717 = vst.msk [vmem:[#allocation3 + $0xa0] sm:$0xff] %vm1696, %v1641
        %1718 = vst.msk [vmem:[#allocation3 + $0xa8] sm:$0xff] %vm1696, %v1643
        %1719 = vst.msk [vmem:[#allocation3 + $0xb0] sm:$0xff] %vm1696, %v1645
        %1720 = vst.msk [vmem:[#allocation3 + $0xb8] sm:$0xff] %vm1696, %v1647
        %1721 = vst.msk [vmem:[#allocation3 + $0xc0] sm:$0xff] %vm1696, %v1649
        %1722 = vst.msk [vmem:[#allocation3 + $0xc8] sm:$0xff] %vm1696, %v1651
        %1723 = vst.msk [vmem:[#allocation3 + $0xd0] sm:$0xff] %vm1696, %v1653
        %1724 = vst.msk [vmem:[#allocation3 + $0xd8] sm:$0xff] %vm1696, %v1655
        %1725 = vst.msk [vmem:[#allocation3 + $0xe0] sm:$0xff] %vm1696, %v1657
        %1726 = vst.msk [vmem:[#allocation3 + $0xe8] sm:$0xff] %vm1696, %v1659
        %1727 = vst.msk [vmem:[#allocation3 + $0xf0] sm:$0xff] %vm1696, %v1661
        %1728 = vst.msk [vmem:[#allocation3 + $0xf8] sm:$0xff] %vm1696, %v1663
        %v1729 = vld [vmem:[%s1535 + $0x1] sm:$0xff]
        %v1730 = vld [vmem:[%s1535 + $0x9] sm:$0xff]
        %v1731 = vld [vmem:[%s1535 + $0x19] sm:$0xff]
        %v1732 = vld [vmem:[%s1535 + $0x21] sm:$0xff]
        %v1733 = vld [vmem:[%s1535 + $0x31] sm:$0xff]
        %v1734 = vld [vmem:[%s1535 + $0x39] sm:$0xff]
        %v1735 = vld [vmem:[%s1535 + $0x49] sm:$0xff]
        %v1736 = vld [vmem:[%s1535 + $0x51] sm:$0xff]
        %v1737 = vld [vmem:[%s1535 + $0x61] sm:$0xff]
        %v1738 = vld [vmem:[%s1535 + $0x69] sm:$0xff]
        %v1739 = vld [vmem:[%s1535 + $0x79] sm:$0xff]
        %v1740 = vld [vmem:[%s1535 + $0x81] sm:$0xff]
        %v1741 = vld [vmem:[%s1535 + $0x91] sm:$0xff]
        %v1742 = vld [vmem:[%s1535 + $0x99] sm:$0xff]
        %v1743 = vld [vmem:[%s1535 + $0xa9] sm:$0xff]
        %v1744 = vld [vmem:[%s1535 + $0xb1] sm:$0xff]
        %v1745 = vld [vmem:[%s1535 + $0xc1] sm:$0xff]
        %v1746 = vld [vmem:[%s1535 + $0xc9] sm:$0xff]
        %v1747 = vld [vmem:[%s1535 + $0xd9] sm:$0xff]
        %v1748 = vld [vmem:[%s1535 + $0xe1] sm:$0xff]
        %v1749 = vld [vmem:[%s1535 + $0xf1] sm:$0xff]
        %v1750 = vld [vmem:[%s1535 + $0xf9] sm:$0xff]
        %v1751 = vld [vmem:[%s1535 + $0x109] sm:$0xff]
        %v1752 = vld [vmem:[%s1535 + $0x111] sm:$0xff]
        %v1753 = vld [vmem:[%s1535 + $0x121] sm:$0xff]
        %v1754 = vld [vmem:[%s1535 + $0x129] sm:$0xff]
        %v1755 = vld [vmem:[%s1535 + $0x139] sm:$0xff]
        %v1756 = vld [vmem:[%s1535 + $0x141] sm:$0xff]
        %v1757 = vld [vmem:[%s1535 + $0x151] sm:$0xff]
        %v1758 = vld [vmem:[%s1535 + $0x159] sm:$0xff]
        %v1759 = vld [vmem:[%s1535 + $0x169] sm:$0xff]
        %v1760 = vld [vmem:[%s1535 + $0x171] sm:$0xff]
        %1793 = vrot.lane.b32.xlu0 %v1729, 21
        %v1794 = vpop.permute.xlu0 %1793
        %1795 = vrot.lane.b32.xlu0 %v1730, 21
        %v1796 = vpop.permute.xlu0 %1795
        %1797 = vrot.lane.b32.xlu0 %v1731, 21
        %v1798 = vpop.permute.xlu0 %1797
        %1799 = vrot.lane.b32.xlu0 %v1732, 21
        %v1800 = vpop.permute.xlu0 %1799
        %1801 = vrot.lane.b32.xlu0 %v1733, 21
        %v1802 = vpop.permute.xlu0 %1801
        %1803 = vrot.lane.b32.xlu0 %v1734, 21
        %v1804 = vpop.permute.xlu0 %1803
        %1805 = vrot.lane.b32.xlu0 %v1735, 21
        %v1806 = vpop.permute.xlu0 %1805
        %1807 = vrot.lane.b32.xlu0 %v1736, 21
        %v1808 = vpop.permute.xlu0 %1807
        %1809 = vrot.lane.b32.xlu0 %v1737, 21
        %v1810 = vpop.permute.xlu0 %1809
        %1811 = vrot.lane.b32.xlu0 %v1738, 21
        %v1812 = vpop.permute.xlu0 %1811
        %1813 = vrot.lane.b32.xlu0 %v1739, 21
        %v1814 = vpop.permute.xlu0 %1813
        %1815 = vrot.lane.b32.xlu0 %v1740, 21
        %v1816 = vpop.permute.xlu0 %1815
        %1817 = vrot.lane.b32.xlu0 %v1741, 21
        %v1818 = vpop.permute.xlu0 %1817
        %1819 = vrot.lane.b32.xlu0 %v1742, 21
        %v1820 = vpop.permute.xlu0 %1819
        %1821 = vrot.lane.b32.xlu0 %v1743, 21
        %v1822 = vpop.permute.xlu0 %1821
        %1823 = vrot.lane.b32.xlu0 %v1744, 21
        %v1824 = vpop.permute.xlu0 %1823
        %1825 = vrot.lane.b32.xlu0 %v1745, 21
        %v1826 = vpop.permute.xlu0 %1825
        %1827 = vrot.lane.b32.xlu0 %v1746, 21
        %v1828 = vpop.permute.xlu0 %1827
        %1829 = vrot.lane.b32.xlu0 %v1747, 21
        %v1830 = vpop.permute.xlu0 %1829
        %1831 = vrot.lane.b32.xlu0 %v1748, 21
        %v1832 = vpop.permute.xlu0 %1831
        %1833 = vrot.lane.b32.xlu0 %v1749, 21
        %v1834 = vpop.permute.xlu0 %1833
        %1835 = vrot.lane.b32.xlu0 %v1750, 21
        %v1836 = vpop.permute.xlu0 %1835
        %1837 = vrot.lane.b32.xlu0 %v1751, 21
        %v1838 = vpop.permute.xlu0 %1837
        %1839 = vrot.lane.b32.xlu0 %v1752, 21
        %v1840 = vpop.permute.xlu0 %1839
        %1841 = vrot.lane.b32.xlu0 %v1753, 21
        %v1842 = vpop.permute.xlu0 %1841
        %1843 = vrot.lane.b32.xlu0 %v1754, 21
        %v1844 = vpop.permute.xlu0 %1843
        %1845 = vrot.lane.b32.xlu0 %v1755, 21
        %v1846 = vpop.permute.xlu0 %1845
        %1847 = vrot.lane.b32.xlu0 %v1756, 21
        %v1848 = vpop.permute.xlu0 %1847
        %1849 = vrot.lane.b32.xlu0 %v1757, 21
        %v1850 = vpop.permute.xlu0 %1849
        %1851 = vrot.lane.b32.xlu0 %v1758, 21
        %v1852 = vpop.permute.xlu0 %1851
        %1853 = vrot.lane.b32.xlu0 %v1759, 21
        %v1854 = vpop.permute.xlu0 %1853
        %1855 = vrot.lane.b32.xlu0 %v1760, 21
        %v1856 = vpop.permute.xlu0 %1855
        %vm1889 = vcmask 195752
        %1890 = vst.msk [vmem:[#allocation3] sm:$0xff] %vm1889, %v1794
        %1891 = vst.msk [vmem:[#allocation3 + $0x8] sm:$0xff] %vm1889, %v1796
        %1892 = vst.msk [vmem:[#allocation3 + $0x10] sm:$0xff] %vm1889, %v1798
        %1893 = vst.msk [vmem:[#allocation3 + $0x18] sm:$0xff] %vm1889, %v1800
        %1894 = vst.msk [vmem:[#allocation3 + $0x20] sm:$0xff] %vm1889, %v1802
        %1895 = vst.msk [vmem:[#allocation3 + $0x28] sm:$0xff] %vm1889, %v1804
        %1896 = vst.msk [vmem:[#allocation3 + $0x30] sm:$0xff] %vm1889, %v1806
        %1897 = vst.msk [vmem:[#allocation3 + $0x38] sm:$0xff] %vm1889, %v1808
        %1898 = vst.msk [vmem:[#allocation3 + $0x40] sm:$0xff] %vm1889, %v1810
        %1899 = vst.msk [vmem:[#allocation3 + $0x48] sm:$0xff] %vm1889, %v1812
        %1900 = vst.msk [vmem:[#allocation3 + $0x50] sm:$0xff] %vm1889, %v1814
        %1901 = vst.msk [vmem:[#allocation3 + $0x58] sm:$0xff] %vm1889, %v1816
        %1902 = vst.msk [vmem:[#allocation3 + $0x60] sm:$0xff] %vm1889, %v1818
        %1903 = vst.msk [vmem:[#allocation3 + $0x68] sm:$0xff] %vm1889, %v1820
        %1904 = vst.msk [vmem:[#allocation3 + $0x70] sm:$0xff] %vm1889, %v1822
        %1905 = vst.msk [vmem:[#allocation3 + $0x78] sm:$0xff] %vm1889, %v1824
        %1906 = vst.msk [vmem:[#allocation3 + $0x80] sm:$0xff] %vm1889, %v1826
        %1907 = vst.msk [vmem:[#allocation3 + $0x88] sm:$0xff] %vm1889, %v1828
        %1908 = vst.msk [vmem:[#allocation3 + $0x90] sm:$0xff] %vm1889, %v1830
        %1909 = vst.msk [vmem:[#allocation3 + $0x98] sm:$0xff] %vm1889, %v1832
        %1910 = vst.msk [vmem:[#allocation3 + $0xa0] sm:$0xff] %vm1889, %v1834
        %1911 = vst.msk [vmem:[#allocation3 + $0xa8] sm:$0xff] %vm1889, %v1836
        %1912 = vst.msk [vmem:[#allocation3 + $0xb0] sm:$0xff] %vm1889, %v1838
        %1913 = vst.msk [vmem:[#allocation3 + $0xb8] sm:$0xff] %vm1889, %v1840
        %1914 = vst.msk [vmem:[#allocation3 + $0xc0] sm:$0xff] %vm1889, %v1842
        %1915 = vst.msk [vmem:[#allocation3 + $0xc8] sm:$0xff] %vm1889, %v1844
        %1916 = vst.msk [vmem:[#allocation3 + $0xd0] sm:$0xff] %vm1889, %v1846
        %1917 = vst.msk [vmem:[#allocation3 + $0xd8] sm:$0xff] %vm1889, %v1848
        %1918 = vst.msk [vmem:[#allocation3 + $0xe0] sm:$0xff] %vm1889, %v1850
        %1919 = vst.msk [vmem:[#allocation3 + $0xe8] sm:$0xff] %vm1889, %v1852
        %1920 = vst.msk [vmem:[#allocation3 + $0xf0] sm:$0xff] %vm1889, %v1854
        %1921 = vst.msk [vmem:[#allocation3 + $0xf8] sm:$0xff] %vm1889, %v1856
        %v1922 = vld [vmem:[%s1535 + $0x2] sm:$0xff]
        %v1923 = vld [vmem:[%s1535 + $0xa] sm:$0xff]
        %v1924 = vld [vmem:[%s1535 + $0x1a] sm:$0xff]
        %v1925 = vld [vmem:[%s1535 + $0x22] sm:$0xff]
        %v1926 = vld [vmem:[%s1535 + $0x32] sm:$0xff]
        %v1927 = vld [vmem:[%s1535 + $0x3a] sm:$0xff]
        %v1928 = vld [vmem:[%s1535 + $0x4a] sm:$0xff]
        %v1929 = vld [vmem:[%s1535 + $0x52] sm:$0xff]
        %v1930 = vld [vmem:[%s1535 + $0x62] sm:$0xff]
        %v1931 = vld [vmem:[%s1535 + $0x6a] sm:$0xff]
        %v1932 = vld [vmem:[%s1535 + $0x7a] sm:$0xff]
        %v1933 = vld [vmem:[%s1535 + $0x82] sm:$0xff]
        %v1934 = vld [vmem:[%s1535 + $0x92] sm:$0xff]
        %v1935 = vld [vmem:[%s1535 + $0x9a] sm:$0xff]
        %v1936 = vld [vmem:[%s1535 + $0xaa] sm:$0xff]
        %v1937 = vld [vmem:[%s1535 + $0xb2] sm:$0xff]
        %v1938 = vld [vmem:[%s1535 + $0xc2] sm:$0xff]
        %v1939 = vld [vmem:[%s1535 + $0xca] sm:$0xff]
        %v1940 = vld [vmem:[%s1535 + $0xda] sm:$0xff]
        %v1941 = vld [vmem:[%s1535 + $0xe2] sm:$0xff]
        %v1942 = vld [vmem:[%s1535 + $0xf2] sm:$0xff]
        %v1943 = vld [vmem:[%s1535 + $0xfa] sm:$0xff]
        %v1944 = vld [vmem:[%s1535 + $0x10a] sm:$0xff]
        %v1945 = vld [vmem:[%s1535 + $0x112] sm:$0xff]
        %v1946 = vld [vmem:[%s1535 + $0x122] sm:$0xff]
        %v1947 = vld [vmem:[%s1535 + $0x12a] sm:$0xff]
        %v1948 = vld [vmem:[%s1535 + $0x13a] sm:$0xff]
        %v1949 = vld [vmem:[%s1535 + $0x142] sm:$0xff]
        %v1950 = vld [vmem:[%s1535 + $0x152] sm:$0xff]
        %v1951 = vld [vmem:[%s1535 + $0x15a] sm:$0xff]
        %v1952 = vld [vmem:[%s1535 + $0x16a] sm:$0xff]
        %v1953 = vld [vmem:[%s1535 + $0x172] sm:$0xff]
        %1986 = vrot.lane.b32.xlu0 %v1922, 24
        %v1987 = vpop.permute.xlu0 %1986
        %1988 = vrot.lane.b32.xlu0 %v1923, 24
        %v1989 = vpop.permute.xlu0 %1988
        %1990 = vrot.lane.b32.xlu0 %v1924, 24
        %v1991 = vpop.permute.xlu0 %1990
        %1992 = vrot.lane.b32.xlu0 %v1925, 24
        %v1993 = vpop.permute.xlu0 %1992
        %1994 = vrot.lane.b32.xlu0 %v1926, 24
        %v1995 = vpop.permute.xlu0 %1994
        %1996 = vrot.lane.b32.xlu0 %v1927, 24
        %v1997 = vpop.permute.xlu0 %1996
        %1998 = vrot.lane.b32.xlu0 %v1928, 24
        %v1999 = vpop.permute.xlu0 %1998
        %2000 = vrot.lane.b32.xlu0 %v1929, 24
        %v2001 = vpop.permute.xlu0 %2000
        %2002 = vrot.lane.b32.xlu0 %v1930, 24
        %v2003 = vpop.permute.xlu0 %2002
        %2004 = vrot.lane.b32.xlu0 %v1931, 24
        %v2005 = vpop.permute.xlu0 %2004
        %2006 = vrot.lane.b32.xlu0 %v1932, 24
        %v2007 = vpop.permute.xlu0 %2006
        %2008 = vrot.lane.b32.xlu0 %v1933, 24
        %v2009 = vpop.permute.xlu0 %2008
        %2010 = vrot.lane.b32.xlu0 %v1934, 24
        %v2011 = vpop.permute.xlu0 %2010
        %2012 = vrot.lane.b32.xlu0 %v1935, 24
        %v2013 = vpop.permute.xlu0 %2012
        %2014 = vrot.lane.b32.xlu0 %v1936, 24
        %v2015 = vpop.permute.xlu0 %2014
        %2016 = vrot.lane.b32.xlu0 %v1937, 24
        %v2017 = vpop.permute.xlu0 %2016
        %2018 = vrot.lane.b32.xlu0 %v1938, 24
        %v2019 = vpop.permute.xlu0 %2018
        %2020 = vrot.lane.b32.xlu0 %v1939, 24
        %v2021 = vpop.permute.xlu0 %2020
        %2022 = vrot.lane.b32.xlu0 %v1940, 24
        %v2023 = vpop.permute.xlu0 %2022
        %2024 = vrot.lane.b32.xlu0 %v1941, 24
        %v2025 = vpop.permute.xlu0 %2024
        %2026 = vrot.lane.b32.xlu0 %v1942, 24
        %v2027 = vpop.permute.xlu0 %2026
        %2028 = vrot.lane.b32.xlu0 %v1943, 24
        %v2029 = vpop.permute.xlu0 %2028
        %2030 = vrot.lane.b32.xlu0 %v1944, 24
        %v2031 = vpop.permute.xlu0 %2030
        %2032 = vrot.lane.b32.xlu0 %v1945, 24
        %v2033 = vpop.permute.xlu0 %2032
        %2034 = vrot.lane.b32.xlu0 %v1946, 24
        %v2035 = vpop.permute.xlu0 %2034
        %2036 = vrot.lane.b32.xlu0 %v1947, 24
        %v2037 = vpop.permute.xlu0 %2036
        %2038 = vrot.lane.b32.xlu0 %v1948, 24
        %v2039 = vpop.permute.xlu0 %2038
        %2040 = vrot.lane.b32.xlu0 %v1949, 24
        %v2041 = vpop.permute.xlu0 %2040
        %2042 = vrot.lane.b32.xlu0 %v1950, 24
        %v2043 = vpop.permute.xlu0 %2042
        %2044 = vrot.lane.b32.xlu0 %v1951, 24
        %v2045 = vpop.permute.xlu0 %2044
        %2046 = vrot.lane.b32.xlu0 %v1952, 24
        %v2047 = vpop.permute.xlu0 %2046
        %2048 = vrot.lane.b32.xlu0 %v1953, 24
        %v2049 = vpop.permute.xlu0 %2048
        %vm2082 = vcmask 220352
        %2083 = vst.msk [vmem:[#allocation3] sm:$0xff] %vm2082, %v1987
        %2084 = vst.msk [vmem:[#allocation3 + $0x8] sm:$0xff] %vm2082, %v1989
        %2085 = vst.msk [vmem:[#allocation3 + $0x10] sm:$0xff] %vm2082, %v1991
        %2086 = vst.msk [vmem:[#allocation3 + $0x18] sm:$0xff] %vm2082, %v1993
        %2087 = vst.msk [vmem:[#allocation3 + $0x20] sm:$0xff] %vm2082, %v1995
        %2088 = vst.msk [vmem:[#allocation3 + $0x28] sm:$0xff] %vm2082, %v1997
        %2089 = vst.msk [vmem:[#allocation3 + $0x30] sm:$0xff] %vm2082, %v1999
        %2090 = vst.msk [vmem:[#allocation3 + $0x38] sm:$0xff] %vm2082, %v2001
        %2091 = vst.msk [vmem:[#allocation3 + $0x40] sm:$0xff] %vm2082, %v2003
        %2092 = vst.msk [vmem:[#allocation3 + $0x48] sm:$0xff] %vm2082, %v2005
        %2093 = vst.msk [vmem:[#allocation3 + $0x50] sm:$0xff] %vm2082, %v2007
        %2094 = vst.msk [vmem:[#allocation3 + $0x58] sm:$0xff] %vm2082, %v2009
        %2095 = vst.msk [vmem:[#allocation3 + $0x60] sm:$0xff] %vm2082, %v2011
        %2096 = vst.msk [vmem:[#allocation3 + $0x68] sm:$0xff] %vm2082, %v2013
        %2097 = vst.msk [vmem:[#allocation3 + $0x70] sm:$0xff] %vm2082, %v2015
        %2098 = vst.msk [vmem:[#allocation3 + $0x78] sm:$0xff] %vm2082, %v2017
        %2099 = vst.msk [vmem:[#allocation3 + $0x80] sm:$0xff] %vm2082, %v2019
        %2100 = vst.msk [vmem:[#allocation3 + $0x88] sm:$0xff] %vm2082, %v2021
        %2101 = vst.msk [vmem:[#allocation3 + $0x90] sm:$0xff] %vm2082, %v2023
        %2102 = vst.msk [vmem:[#allocation3 + $0x98] sm:$0xff] %vm2082, %v2025
        %2103 = vst.msk [vmem:[#allocation3 + $0xa0] sm:$0xff] %vm2082, %v2027
        %2104 = vst.msk [vmem:[#allocation3 + $0xa8] sm:$0xff] %vm2082, %v2029
        %2105 = vst.msk [vmem:[#allocation3 + $0xb0] sm:$0xff] %vm2082, %v2031
        %2106 = vst.msk [vmem:[#allocation3 + $0xb8] sm:$0xff] %vm2082, %v2033
        %2107 = vst.msk [vmem:[#allocation3 + $0xc0] sm:$0xff] %vm2082, %v2035
        %2108 = vst.msk [vmem:[#allocation3 + $0xc8] sm:$0xff] %vm2082, %v2037
        %2109 = vst.msk [vmem:[#allocation3 + $0xd0] sm:$0xff] %vm2082, %v2039
        %2110 = vst.msk [vmem:[#allocation3 + $0xd8] sm:$0xff] %vm2082, %v2041
        %2111 = vst.msk [vmem:[#allocation3 + $0xe0] sm:$0xff] %vm2082, %v2043
        %2112 = vst.msk [vmem:[#allocation3 + $0xe8] sm:$0xff] %vm2082, %v2045
        %2113 = vst.msk [vmem:[#allocation3 + $0xf0] sm:$0xff] %vm2082, %v2047
        %2114 = vst.msk [vmem:[#allocation3 + $0xf8] sm:$0xff] %vm2082, %v2049
        %v2115 = vld [vmem:[#allocation3] sm:$0xff]
        %v2116 = vld [vmem:[#allocation3 + $0x8] sm:$0xff]
        %v2117 = vld [vmem:[#allocation3 + $0x10] sm:$0xff]
        %v2118 = vld [vmem:[#allocation3 + $0x18] sm:$0xff]
        %v2119 = vld [vmem:[#allocation3 + $0x20] sm:$0xff]
        %v2120 = vld [vmem:[#allocation3 + $0x28] sm:$0xff]
        %v2121 = vld [vmem:[#allocation3 + $0x30] sm:$0xff]
        %v2122 = vld [vmem:[#allocation3 + $0x38] sm:$0xff]
        %v2123 = vld [vmem:[#allocation3 + $0x40] sm:$0xff]
        %v2124 = vld [vmem:[#allocation3 + $0x48] sm:$0xff]
        %v2125 = vld [vmem:[#allocation3 + $0x50] sm:$0xff]
        %v2126 = vld [vmem:[#allocation3 + $0x58] sm:$0xff]
        %v2127 = vld [vmem:[#allocation3 + $0x60] sm:$0xff]
        %v2128 = vld [vmem:[#allocation3 + $0x68] sm:$0xff]
        %v2129 = vld [vmem:[#allocation3 + $0x70] sm:$0xff]
        %v2130 = vld [vmem:[#allocation3 + $0x78] sm:$0xff]
        %v2131 = vld [vmem:[#allocation3 + $0x80] sm:$0xff]
        %v2132 = vld [vmem:[#allocation3 + $0x88] sm:$0xff]
        %v2133 = vld [vmem:[#allocation3 + $0x90] sm:$0xff]
        %v2134 = vld [vmem:[#allocation3 + $0x98] sm:$0xff]
        %v2135 = vld [vmem:[#allocation3 + $0xa0] sm:$0xff]
        %v2136 = vld [vmem:[#allocation3 + $0xa8] sm:$0xff]
        %v2137 = vld [vmem:[#allocation3 + $0xb0] sm:$0xff]
        %v2138 = vld [vmem:[#allocation3 + $0xb8] sm:$0xff]
        %v2139 = vld [vmem:[#allocation3 + $0xc0] sm:$0xff]
        %v2140 = vld [vmem:[#allocation3 + $0xc8] sm:$0xff]
        %v2141 = vld [vmem:[#allocation3 + $0xd0] sm:$0xff]
        %v2142 = vld [vmem:[#allocation3 + $0xd8] sm:$0xff]
        %v2143 = vld [vmem:[#allocation3 + $0xe0] sm:$0xff]
        %v2144 = vld [vmem:[#allocation3 + $0xe8] sm:$0xff]
        %v2145 = vld [vmem:[#allocation3 + $0xf0] sm:$0xff]
        %v2146 = vld [vmem:[#allocation3 + $0xf8] sm:$0xff]
        %v2147 = vpack.c.bf16 %v2116, %v2115
        %v2148 = vpack.c.bf16 %v2118, %v2117
        %v2149 = vpack.c.bf16 %v2120, %v2119
        %v2150 = vpack.c.bf16 %v2122, %v2121
        %v2151 = vpack.c.bf16 %v2124, %v2123
        %v2152 = vpack.c.bf16 %v2126, %v2125
        %v2153 = vpack.c.bf16 %v2128, %v2127
        %v2154 = vpack.c.bf16 %v2130, %v2129
        %v2155 = vpack.c.bf16 %v2132, %v2131
        %v2156 = vpack.c.bf16 %v2134, %v2133
        %v2157 = vpack.c.bf16 %v2136, %v2135
        %v2158 = vpack.c.bf16 %v2138, %v2137
        %v2159 = vpack.c.bf16 %v2140, %v2139
        %v2160 = vpack.c.bf16 %v2142, %v2141
        %v2161 = vpack.c.bf16 %v2144, %v2143
        %v2162 = vpack.c.bf16 %v2146, %v2145
        %v2163 = vld [vmem:[%s1] sm:$0xf]
        %v2164 = vld [vmem:[%s1 + $0x4] sm:$0xf]
        %v2165 = vld [vmem:[%s1 + $0x8] sm:$0xf]
        %v2166 = vld [vmem:[%s1 + $0xc] sm:$0x3]
        %v2171 = vunpack.c.l.b16 %v2163
        %v2172 = vunpack.c.l.b16 %v2164
        %v2173 = vunpack.c.l.b16 %v2165
        %v2174 = vunpack.c.l.b16 %v2166
        %v2175 = vpack.c.b16 %v2172, %v2171
        %v2176 = vpack.c.b16 %v2174, %v2173
        %vm2178 = vcmask 220160
        %v2180 = vsel %vm2178, %v2147, 0
        %v2183 = vsel %vm2178, %v2148, 0
        %v2186 = vsel %vm2178, %v2149, 0
        %v2189 = vsel %vm2178, %v2150, 0
        %v2192 = vsel %vm2178, %v2151, 0
        %v2195 = vsel %vm2178, %v2152, 0
        %v2198 = vsel %vm2178, %v2153, 0
        %v2201 = vsel %vm2178, %v2154, 0
        %v2204 = vsel %vm2178, %v2155, 0
        %v2207 = vsel %vm2178, %v2156, 0
        %v2210 = vsel %vm2178, %v2157, 0
        %v2213 = vsel %vm2178, %v2158, 0
        %v2216 = vsel %vm2178, %v2159, 0
        %v2219 = vsel %vm2178, %v2160, 0
        %v2222 = vsel %vm2178, %v2161, 0
        %v2225 = vsel %vm2178, %v2162, 0
        %vm2227 = vcmask 1044480
        %vm2228 = vcmask 1045504
        %v2229 = vsel %vm2227, 4294967295, 65535
        %v2230 = vsel %vm2228, %v2229, 0
        %v2232 = vand.u32 %v2176, %v2230
        %2234 = vmatprep.subr.bf16.mxu0 0
        %2235 = vmatpush1.bf16.msra.mxu0 %v2175
        %2236 = vmatprep.subr.bf16.mxu0 0
        %2237 = vmatpush1.bf16.msra.mxu0 %v2232
        %2238 = vmatprep.subr.bf16.mxu0 0
        %2239 = vmatpush1.bf16.msra.mxu0 0
        %2240 = vmatprep.subr.bf16.mxu0 0
        %2241 = vmatpush1.bf16.msra.mxu0 0
        %2242 = vmatprep.subr.bf16.mxu0 0
        %2243 = vmatpush1.bf16.msra.mxu0 0
        %2244 = vmatprep.subr.bf16.mxu0 0
        %2245 = vmatpush1.bf16.msra.mxu0 0
        %2246 = vmatprep.subr.bf16.mxu0 0
        %2247 = vmatpush1.bf16.msra.mxu0 0
        %2248 = vmatprep.subr.bf16.mxu0 0
        %2249 = vmatpush1.bf16.msra.mxu0 0
        %2250 = vmatprep.subr.bf16.mxu0 0
        %2251 = vmatpush1.bf16.msra.mxu0 0
        %2252 = vmatprep.subr.bf16.mxu0 0
        %2253 = vmatpush1.bf16.msra.mxu0 0
        %2254 = vmatprep.subr.bf16.mxu0 0
        %2255 = vmatpush1.bf16.msra.mxu0 0
        %2256 = vmatprep.subr.bf16.mxu0 0
        %2257 = vmatpush1.bf16.msra.mxu0 0
        %2258 = vmatprep.subr.bf16.mxu0 0
        %2259 = vmatpush1.bf16.msra.mxu0 0
        %2260 = vmatprep.subr.bf16.mxu0 0
        %2261 = vmatpush1.bf16.msra.mxu0 0
        %2262 = vmatprep.subr.bf16.mxu0 0
        %2263 = vmatpush1.bf16.msra.mxu0 0
        %2264 = vmatprep.subr.bf16.mxu0 0
        %2265 = vmatpush1.bf16.msra.mxu0 0
        %2266 = vmatprep.mubr.bf16.mxu0 0
        %2267 = vmatmul.mubr.bf16.gmra.mrb[0].mxu0 %v2180
        %v2268 = vpop.f32.mrb[0].mxu0
        %v2269 = vadd.f32 0.0, %v2268
        %v2270 = vpop.f32.mrb[0].mxu0
        %v2271 = vpop.f32.mrb[0].mxu0
        %v2272 = vadd.f32 0.0, %v2271
        %v2273 = vpop.f32.mrb[0].mxu0
        %2274 = vmatprep.mubr.bf16.mxu0 0
        %2275 = vmatmul.mubr.bf16.gmra.mrb[0].mxu0 %v2183
        %v2276 = vpop.f32.mrb[0].mxu0
        %v2277 = vadd.f32 0.0, %v2276
        %v2278 = vpop.f32.mrb[0].mxu0
        %v2279 = vpop.f32.mrb[0].mxu0
        %v2280 = vadd.f32 0.0, %v2279
        %v2281 = vpop.f32.mrb[0].mxu0
        %2282 = vmatprep.mubr.bf16.mxu0 0
        %2283 = vmatmul.mubr.bf16.gmra.mrb[0].mxu0 %v2186
        %v2284 = vpop.f32.mrb[0].mxu0
        %v2285 = vadd.f32 0.0, %v2284
        %v2286 = vpop.f32.mrb[0].mxu0
        %v2287 = vpop.f32.mrb[0].mxu0
        %v2288 = vadd.f32 0.0, %v2287
        %v2289 = vpop.f32.mrb[0].mxu0
        %2290 = vmatprep.mubr.bf16.mxu0 0
        %2291 = vmatmul.mubr.bf16.gmra.mrb[0].mxu0 %v2189
        %v2292 = vpop.f32.mrb[0].mxu0
        %v2293 = vadd.f32 0.0, %v2292
        %v2294 = vpop.f32.mrb[0].mxu0
        %v2295 = vpop.f32.mrb[0].mxu0
        %v2296 = vadd.f32 0.0, %v2295
        %v2297 = vpop.f32.mrb[0].mxu0
        %2298 = vmatprep.mubr.bf16.mxu0 0
        %2299 = vmatmul.mubr.bf16.gmra.mrb[0].mxu0 %v2192
        %v2300 = vpop.f32.mrb[0].mxu0
        %v2301 = vadd.f32 0.0, %v2300
        %v2302 = vpop.f32.mrb[0].mxu0
        %v2303 = vpop.f32.mrb[0].mxu0
        %v2304 = vadd.f32 0.0, %v2303
        %v2305 = vpop.f32.mrb[0].mxu0
        %2306 = vmatprep.mubr.bf16.mxu0 0
        %2307 = vmatmul.mubr.bf16.gmra.mrb[0].mxu0 %v2195
        %v2308 = vpop.f32.mrb[0].mxu0
        %v2309 = vadd.f32 0.0, %v2308
        %v2310 = vpop.f32.mrb[0].mxu0
        %v2311 = vpop.f32.mrb[0].mxu0
        %v2312 = vadd.f32 0.0, %v2311
        %v2313 = vpop.f32.mrb[0].mxu0
        %2314 = vmatprep.mubr.bf16.mxu0 0
        %2315 = vmatmul.mubr.bf16.gmra.mrb[0].mxu0 %v2198
        %v2316 = vpop.f32.mrb[0].mxu0
        %v2317 = vadd.f32 0.0, %v2316
        %v2318 = vpop.f32.mrb[0].mxu0
        %v2319 = vpop.f32.mrb[0].mxu0
        %v2320 = vadd.f32 0.0, %v2319
        %v2321 = vpop.f32.mrb[0].mxu0
        %2322 = vmatprep.mubr.bf16.mxu0 0
        %2323 = vmatmul.mubr.bf16.gmra.mrb[0].mxu0 %v2201
        %v2324 = vpop.f32.mrb[0].mxu0
        %v2325 = vadd.f32 0.0, %v2324
        %v2326 = vpop.f32.mrb[0].mxu0
        %v2327 = vpop.f32.mrb[0].mxu0
        %v2328 = vadd.f32 0.0, %v2327
        %v2329 = vpop.f32.mrb[0].mxu0
        %2330 = vmatprep.mubr.bf16.mxu0 0
        %2331 = vmatmul.mubr.bf16.gmra.mrb[0].mxu0 %v2204
        %v2332 = vpop.f32.mrb[0].mxu0
        %v2333 = vadd.f32 0.0, %v2332
        %v2334 = vpop.f32.mrb[0].mxu0
        %v2335 = vpop.f32.mrb[0].mxu0
        %v2336 = vadd.f32 0.0, %v2335
        %v2337 = vpop.f32.mrb[0].mxu0
        %2338 = vmatprep.mubr.bf16.mxu0 0
        %2339 = vmatmul.mubr.bf16.gmra.mrb[0].mxu0 %v2207
        %v2340 = vpop.f32.mrb[0].mxu0
        %v2341 = vadd.f32 0.0, %v2340
        %v2342 = vpop.f32.mrb[0].mxu0
        %v2343 = vpop.f32.mrb[0].mxu0
        %v2344 = vadd.f32 0.0, %v2343
        %v2345 = vpop.f32.mrb[0].mxu0
        %2346 = vmatprep.mubr.bf16.mxu0 0
        %2347 = vmatmul.mubr.bf16.gmra.mrb[0].mxu0 %v2210
        %v2348 = vpop.f32.mrb[0].mxu0
        %v2349 = vadd.f32 0.0, %v2348
        %v2350 = vpop.f32.mrb[0].mxu0
        %v2351 = vpop.f32.mrb[0].mxu0
        %v2352 = vadd.f32 0.0, %v2351
        %v2353 = vpop.f32.mrb[0].mxu0
        %2354 = vmatprep.mubr.bf16.mxu0 0
        %2355 = vmatmul.mubr.bf16.gmra.mrb[0].mxu0 %v2213
        %v2356 = vpop.f32.mrb[0].mxu0
        %v2357 = vadd.f32 0.0, %v2356
        %v2358 = vpop.f32.mrb[0].mxu0
        %v2359 = vpop.f32.mrb[0].mxu0
        %v2360 = vadd.f32 0.0, %v2359
        %v2361 = vpop.f32.mrb[0].mxu0
        %2362 = vmatprep.mubr.bf16.mxu0 0
        %2363 = vmatmul.mubr.bf16.gmra.mrb[0].mxu0 %v2216
        %v2364 = vpop.f32.mrb[0].mxu0
        %v2365 = vadd.f32 0.0, %v2364
        %v2366 = vpop.f32.mrb[0].mxu0
        %v2367 = vpop.f32.mrb[0].mxu0
        %v2368 = vadd.f32 0.0, %v2367
        %v2369 = vpop.f32.mrb[0].mxu0
        %2370 = vmatprep.mubr.bf16.mxu0 0
        %2371 = vmatmul.mubr.bf16.gmra.mrb[0].mxu0 %v2219
        %v2372 = vpop.f32.mrb[0].mxu0
        %v2373 = vadd.f32 0.0, %v2372
        %v2374 = vpop.f32.mrb[0].mxu0
        %v2375 = vpop.f32.mrb[0].mxu0
        %v2376 = vadd.f32 0.0, %v2375
        %v2377 = vpop.f32.mrb[0].mxu0
        %2378 = vmatprep.mubr.bf16.mxu0 0
        %2379 = vmatmul.mubr.bf16.gmra.mrb[0].mxu0 %v2222
        %v2380 = vpop.f32.mrb[0].mxu0
        %v2381 = vadd.f32 0.0, %v2380
        %v2382 = vpop.f32.mrb[0].mxu0
        %v2383 = vpop.f32.mrb[0].mxu0
        %v2384 = vadd.f32 0.0, %v2383
        %v2385 = vpop.f32.mrb[0].mxu0
        %2386 = vmatprep.mubr.bf16.mxu0 0
        %2387 = vmatmul.mubr.bf16.gmra.mrb[0].mxu0 %v2225
        %v2388 = vpop.f32.mrb[0].mxu0
        %v2389 = vadd.f32 0.0, %v2388
        %v2390 = vpop.f32.mrb[0].mxu0
        %v2391 = vpop.f32.mrb[0].mxu0
        %v2392 = vadd.f32 0.0, %v2391
        %v2393 = vpop.f32.mrb[0].mxu0
        %2394 = vdwg.mxu0
        %v2395 = vld [vmem:[%s2] sm:$0x1]
        %v2396 = vlaneseq
        %v2397 = vshrl.u32 %v2396, 7
        %v2398 = vsub.s32 0, %v2397
        %v2399 = vrot.slane %v2395, %v2398
        %v2400 = vmul.f32 %v2269, %v2399
        %v2401 = vmul.f32 %v2272, %v2399
        %v2402 = vmul.f32 %v2277, %v2399
        %v2403 = vmul.f32 %v2280, %v2399
        %v2404 = vmul.f32 %v2285, %v2399
        %v2405 = vmul.f32 %v2288, %v2399
        %v2406 = vmul.f32 %v2293, %v2399
        %v2407 = vmul.f32 %v2296, %v2399
        %v2408 = vmul.f32 %v2301, %v2399
        %v2409 = vmul.f32 %v2304, %v2399
        %v2410 = vmul.f32 %v2309, %v2399
        %v2411 = vmul.f32 %v2312, %v2399
        %v2412 = vmul.f32 %v2317, %v2399
        %v2413 = vmul.f32 %v2320, %v2399
        %v2414 = vmul.f32 %v2325, %v2399
        %v2415 = vmul.f32 %v2328, %v2399
        %v2416 = vmul.f32 %v2333, %v2399
        %v2417 = vmul.f32 %v2336, %v2399
        %v2418 = vmul.f32 %v2341, %v2399
        %v2419 = vmul.f32 %v2344, %v2399
        %v2420 = vmul.f32 %v2349, %v2399
        %v2421 = vmul.f32 %v2352, %v2399
        %v2422 = vmul.f32 %v2357, %v2399
        %v2423 = vmul.f32 %v2360, %v2399
        %v2424 = vmul.f32 %v2365, %v2399
        %v2425 = vmul.f32 %v2368, %v2399
        %v2426 = vmul.f32 %v2373, %v2399
        %v2427 = vmul.f32 %v2376, %v2399
        %v2428 = vmul.f32 %v2381, %v2399
        %v2429 = vmul.f32 %v2384, %v2399
        %v2430 = vmul.f32 %v2389, %v2399
        %v2431 = vmul.f32 %v2392, %v2399
        %v2432 = vld [vmem:[%s2 + $0x1] sm:$0x1]
        %v2433 = vlaneseq
        %v2434 = vshrl.u32 %v2433, 7
        %v2435 = vsub.s32 0, %v2434
        %v2436 = vrot.slane %v2432, %v2435
        %v2437 = vadd.f32 %v2400, %v2436
        %v2438 = vadd.f32 %v2401, %v2436
        %v2439 = vadd.f32 %v2402, %v2436
        %v2440 = vadd.f32 %v2403, %v2436
        %v2441 = vadd.f32 %v2404, %v2436
        %v2442 = vadd.f32 %v2405, %v2436
        %v2443 = vadd.f32 %v2406, %v2436
        %v2444 = vadd.f32 %v2407, %v2436
        %v2445 = vadd.f32 %v2408, %v2436
        %v2446 = vadd.f32 %v2409, %v2436
        %v2447 = vadd.f32 %v2410, %v2436
        %v2448 = vadd.f32 %v2411, %v2436
        %v2449 = vadd.f32 %v2412, %v2436
        %v2450 = vadd.f32 %v2413, %v2436
        %v2451 = vadd.f32 %v2414, %v2436
        %v2452 = vadd.f32 %v2415, %v2436
        %v2453 = vadd.f32 %v2416, %v2436
        %v2454 = vadd.f32 %v2417, %v2436
        %v2455 = vadd.f32 %v2418, %v2436
        %v2456 = vadd.f32 %v2419, %v2436
        %v2457 = vadd.f32 %v2420, %v2436
        %v2458 = vadd.f32 %v2421, %v2436
        %v2459 = vadd.f32 %v2422, %v2436
        %v2460 = vadd.f32 %v2423, %v2436
        %v2461 = vadd.f32 %v2424, %v2436
        %v2462 = vadd.f32 %v2425, %v2436
        %v2463 = vadd.f32 %v2426, %v2436
        %v2464 = vadd.f32 %v2427, %v2436
        %v2465 = vadd.f32 %v2428, %v2436
        %v2466 = vadd.f32 %v2429, %v2436
        %v2467 = vadd.f32 %v2430, %v2436
        %v2468 = vadd.f32 %v2431, %v2436
        %vm2469 = vcmp.gt.f32.partialorder %v2437, 0.0
        %vm2470 = vcmp.gt.f32.partialorder %v2438, 0.0
        %vm2471 = vcmp.gt.f32.partialorder %v2439, 0.0
        %vm2472 = vcmp.gt.f32.partialorder %v2440, 0.0
        %vm2473 = vcmp.gt.f32.partialorder %v2441, 0.0
        %vm2474 = vcmp.gt.f32.partialorder %v2442, 0.0
        %vm2475 = vcmp.gt.f32.partialorder %v2443, 0.0
        %vm2476 = vcmp.gt.f32.partialorder %v2444, 0.0
        %vm2477 = vcmp.gt.f32.partialorder %v2445, 0.0
        %vm2478 = vcmp.gt.f32.partialorder %v2446, 0.0
        %vm2479 = vcmp.gt.f32.partialorder %v2447, 0.0
        %vm2480 = vcmp.gt.f32.partialorder %v2448, 0.0
        %vm2481 = vcmp.gt.f32.partialorder %v2449, 0.0
        %vm2482 = vcmp.gt.f32.partialorder %v2450, 0.0
        %vm2483 = vcmp.gt.f32.partialorder %v2451, 0.0
        %vm2484 = vcmp.gt.f32.partialorder %v2452, 0.0
        %vm2485 = vcmp.gt.f32.partialorder %v2453, 0.0
        %vm2486 = vcmp.gt.f32.partialorder %v2454, 0.0
        %vm2487 = vcmp.gt.f32.partialorder %v2455, 0.0
        %vm2488 = vcmp.gt.f32.partialorder %v2456, 0.0
        %vm2489 = vcmp.gt.f32.partialorder %v2457, 0.0
        %vm2490 = vcmp.gt.f32.partialorder %v2458, 0.0
        %vm2491 = vcmp.gt.f32.partialorder %v2459, 0.0
        %vm2492 = vcmp.gt.f32.partialorder %v2460, 0.0
        %vm2493 = vcmp.gt.f32.partialorder %v2461, 0.0
        %vm2494 = vcmp.gt.f32.partialorder %v2462, 0.0
        %vm2495 = vcmp.gt.f32.partialorder %v2463, 0.0
        %vm2496 = vcmp.gt.f32.partialorder %v2464, 0.0
        %vm2497 = vcmp.gt.f32.partialorder %v2465, 0.0
        %vm2498 = vcmp.gt.f32.partialorder %v2466, 0.0
        %vm2499 = vcmp.gt.f32.partialorder %v2467, 0.0
        %vm2500 = vcmp.gt.f32.partialorder %v2468, 0.0
        %v2501 = vld [vmem:[%s2 + $0x2] sm:$0x1]
        %v2502 = vlaneseq
        %v2503 = vshrl.u32 %v2502, 7
        %v2504 = vsub.s32 0, %v2503
        %v2505 = vrot.slane %v2501, %v2504
        %v2506 = vmul.f32 %v2437, %v2505
        %v2507 = vmul.f32 %v2438, %v2505
        %v2508 = vmul.f32 %v2439, %v2505
        %v2509 = vmul.f32 %v2440, %v2505
        %v2510 = vmul.f32 %v2441, %v2505
        %v2511 = vmul.f32 %v2442, %v2505
        %v2512 = vmul.f32 %v2443, %v2505
        %v2513 = vmul.f32 %v2444, %v2505
        %v2514 = vmul.f32 %v2445, %v2505
        %v2515 = vmul.f32 %v2446, %v2505
        %v2516 = vmul.f32 %v2447, %v2505
        %v2517 = vmul.f32 %v2448, %v2505
        %v2518 = vmul.f32 %v2449, %v2505
        %v2519 = vmul.f32 %v2450, %v2505
        %v2520 = vmul.f32 %v2451, %v2505
        %v2521 = vmul.f32 %v2452, %v2505
        %v2522 = vmul.f32 %v2453, %v2505
        %v2523 = vmul.f32 %v2454, %v2505
        %v2524 = vmul.f32 %v2455, %v2505
        %v2525 = vmul.f32 %v2456, %v2505
        %v2526 = vmul.f32 %v2457, %v2505
        %v2527 = vmul.f32 %v2458, %v2505
        %v2528 = vmul.f32 %v2459, %v2505
        %v2529 = vmul.f32 %v2460, %v2505
        %v2530 = vmul.f32 %v2461, %v2505
        %v2531 = vmul.f32 %v2462, %v2505
        %v2532 = vmul.f32 %v2463, %v2505
        %v2533 = vmul.f32 %v2464, %v2505
        %v2534 = vmul.f32 %v2465, %v2505
        %v2535 = vmul.f32 %v2466, %v2505
        %v2536 = vmul.f32 %v2467, %v2505
        %v2537 = vmul.f32 %v2468, %v2505
        %v2538 = vsel %vm2469, %v2437, %v2506
        %v2539 = vsel %vm2470, %v2438, %v2507
        %v2540 = vsel %vm2471, %v2439, %v2508
        %v2541 = vsel %vm2472, %v2440, %v2509
        %v2542 = vsel %vm2473, %v2441, %v2510
        %v2543 = vsel %vm2474, %v2442, %v2511
        %v2544 = vsel %vm2475, %v2443, %v2512
        %v2545 = vsel %vm2476, %v2444, %v2513
        %v2546 = vsel %vm2477, %v2445, %v2514
        %v2547 = vsel %vm2478, %v2446, %v2515
        %v2548 = vsel %vm2479, %v2447, %v2516
        %v2549 = vsel %vm2480, %v2448, %v2517
        %v2550 = vsel %vm2481, %v2449, %v2518
        %v2551 = vsel %vm2482, %v2450, %v2519
        %v2552 = vsel %vm2483, %v2451, %v2520
        %v2553 = vsel %vm2484, %v2452, %v2521
        %v2554 = vsel %vm2485, %v2453, %v2522
        %v2555 = vsel %vm2486, %v2454, %v2523
        %v2556 = vsel %vm2487, %v2455, %v2524
        %v2557 = vsel %vm2488, %v2456, %v2525
        %v2558 = vsel %vm2489, %v2457, %v2526
        %v2559 = vsel %vm2490, %v2458, %v2527
        %v2560 = vsel %vm2491, %v2459, %v2528
        %v2561 = vsel %vm2492, %v2460, %v2529
        %v2562 = vsel %vm2493, %v2461, %v2530
        %v2563 = vsel %vm2494, %v2462, %v2531
        %v2564 = vsel %vm2495, %v2463, %v2532
        %v2565 = vsel %vm2496, %v2464, %v2533
        %v2566 = vsel %vm2497, %v2465, %v2534
        %v2567 = vsel %vm2498, %v2466, %v2535
        %v2568 = vsel %vm2499, %v2467, %v2536
        %v2569 = vsel %vm2500, %v2468, %v2537
        %vm2570 = vcmask 130048
        %2571 = vst.msk [vmem:[#allocation4] sm:$0xff] %vm2570, 0.0
        %2572 = vst.msk [vmem:[#allocation4 + $0x8] sm:$0xff] %vm2570, 0.0
        %vm2573 = vcmask 123904
        %2574 = vst.msk [vmem:[#allocation4 + $0x10] sm:$0x3] %vm2573, 0.0
        %2575 = vst.msk [vmem:[#allocation4 + $0x18] sm:$0xff] %vm2570, 0.0
        %2576 = vst.msk [vmem:[#allocation4 + $0x20] sm:$0xff] %vm2570, 0.0
        %2577 = vst.msk [vmem:[#allocation4 + $0x28] sm:$0x3] %vm2573, 0.0
        %2578 = vst.msk [vmem:[#allocation4 + $0x30] sm:$0xff] %vm2570, 0.0
        %2579 = vst.msk [vmem:[#allocation4 + $0x38] sm:$0xff] %vm2570, 0.0
        %2580 = vst.msk [vmem:[#allocation4 + $0x40] sm:$0x3] %vm2573, 0.0
        %2581 = vst.msk [vmem:[#allocation4 + $0x48] sm:$0xff] %vm2570, 0.0
        %2582 = vst.msk [vmem:[#allocation4 + $0x50] sm:$0xff] %vm2570, 0.0
        %2583 = vst.msk [vmem:[#allocation4 + $0x58] sm:$0x3] %vm2573, 0.0
        %2584 = vst.msk [vmem:[#allocation4 + $0x60] sm:$0xff] %vm2570, 0.0
        %2585 = vst.msk [vmem:[#allocation4 + $0x68] sm:$0xff] %vm2570, 0.0
        %2586 = vst.msk [vmem:[#allocation4 + $0x70] sm:$0x3] %vm2573, 0.0
        %2587 = vst.msk [vmem:[#allocation4 + $0x78] sm:$0xff] %vm2570, 0.0
        %2588 = vst.msk [vmem:[#allocation4 + $0x80] sm:$0xff] %vm2570, 0.0
        %2589 = vst.msk [vmem:[#allocation4 + $0x88] sm:$0x3] %vm2573, 0.0
        %2590 = vst.msk [vmem:[#allocation4 + $0x90] sm:$0xff] %vm2570, 0.0
        %2591 = vst.msk [vmem:[#allocation4 + $0x98] sm:$0xff] %vm2570, 0.0
        %2592 = vst.msk [vmem:[#allocation4 + $0xa0] sm:$0x3] %vm2573, 0.0
        %2593 = vst.msk [vmem:[#allocation4 + $0xa8] sm:$0xff] %vm2570, 0.0
        %2594 = vst.msk [vmem:[#allocation4 + $0xb0] sm:$0xff] %vm2570, 0.0
        %2595 = vst.msk [vmem:[#allocation4 + $0xb8] sm:$0x3] %vm2573, 0.0
        %2596 = vst.msk [vmem:[#allocation4 + $0xc0] sm:$0xff] %vm2570, 0.0
        %2597 = vst.msk [vmem:[#allocation4 + $0xc8] sm:$0xff] %vm2570, 0.0
        %2598 = vst.msk [vmem:[#allocation4 + $0xd0] sm:$0x3] %vm2573, 0.0
        %2599 = vst.msk [vmem:[#allocation4 + $0xd8] sm:$0xff] %vm2570, 0.0
        %2600 = vst.msk [vmem:[#allocation4 + $0xe0] sm:$0xff] %vm2570, 0.0
        %2601 = vst.msk [vmem:[#allocation4 + $0xe8] sm:$0x3] %vm2573, 0.0
        %2602 = vst.msk [vmem:[#allocation4 + $0xf0] sm:$0xff] %vm2570, 0.0
        %2603 = vst.msk [vmem:[#allocation4 + $0xf8] sm:$0xff] %vm2570, 0.0
        %2604 = vst.msk [vmem:[#allocation4 + $0x100] sm:$0x3] %vm2573, 0.0
        %2605 = vst.msk [vmem:[#allocation4 + $0x108] sm:$0xff] %vm2570, 0.0
        %2606 = vst.msk [vmem:[#allocation4 + $0x110] sm:$0xff] %vm2570, 0.0
        %2607 = vst.msk [vmem:[#allocation4 + $0x118] sm:$0x3] %vm2573, 0.0
        %2608 = vst.msk [vmem:[#allocation4 + $0x120] sm:$0xff] %vm2570, 0.0
        %2609 = vst.msk [vmem:[#allocation4 + $0x128] sm:$0xff] %vm2570, 0.0
        %2610 = vst.msk [vmem:[#allocation4 + $0x130] sm:$0x3] %vm2573, 0.0
        %2611 = vst.msk [vmem:[#allocation4 + $0x138] sm:$0xff] %vm2570, 0.0
        %2612 = vst.msk [vmem:[#allocation4 + $0x140] sm:$0xff] %vm2570, 0.0
        %2613 = vst.msk [vmem:[#allocation4 + $0x148] sm:$0x3] %vm2573, 0.0
        %2614 = vst.msk [vmem:[#allocation4 + $0x150] sm:$0xff] %vm2570, 0.0
        %2615 = vst.msk [vmem:[#allocation4 + $0x158] sm:$0xff] %vm2570, 0.0
        %2616 = vst.msk [vmem:[#allocation4 + $0x160] sm:$0x3] %vm2573, 0.0
        %2617 = vst.msk [vmem:[#allocation4 + $0x168] sm:$0xff] %vm2570, 0.0
        %2618 = vst.msk [vmem:[#allocation4 + $0x170] sm:$0xff] %vm2570, 0.0
        %2619 = vst.msk [vmem:[#allocation4 + $0x178] sm:$0x3] %vm2573, 0.0
        %2620 = vst.msk [vmem:[#allocation4 + $0x180] sm:$0xff] %vm2570, 0.0
        %2621 = vst.msk [vmem:[#allocation4 + $0x188] sm:$0xff] %vm2570, 0.0
        %2622 = vst.msk [vmem:[#allocation4 + $0x190] sm:$0x3] %vm2573, 0.0
        %2623 = vst.msk [vmem:[#allocation4 + $0x198] sm:$0xff] %vm2570, 0.0
        %2624 = vst.msk [vmem:[#allocation4 + $0x1a0] sm:$0xff] %vm2570, 0.0
        %2625 = vst.msk [vmem:[#allocation4 + $0x1a8] sm:$0x3] %vm2573, 0.0
        %s2626 = scalar_lea.vmem [#allocation4], 24
        %2627 = vst.msk [vmem:[%s2626 + $0x1] sm:$0xff] %vm2570, %v2538
        %2628 = vst.msk [vmem:[%s2626 + $0x9] sm:$0xff] %vm2570, %v2539
        %2629 = vst.msk [vmem:[%s2626 + $0x19] sm:$0xff] %vm2570, %v2540
        %2630 = vst.msk [vmem:[%s2626 + $0x21] sm:$0xff] %vm2570, %v2541
        %2631 = vst.msk [vmem:[%s2626 + $0x31] sm:$0xff] %vm2570, %v2542
        %2632 = vst.msk [vmem:[%s2626 + $0x39] sm:$0xff] %vm2570, %v2543
        %2633 = vst.msk [vmem:[%s2626 + $0x49] sm:$0xff] %vm2570, %v2544
        %2634 = vst.msk [vmem:[%s2626 + $0x51] sm:$0xff] %vm2570, %v2545
        %2635 = vst.msk [vmem:[%s2626 + $0x61] sm:$0xff] %vm2570, %v2546
        %2636 = vst.msk [vmem:[%s2626 + $0x69] sm:$0xff] %vm2570, %v2547
        %2637 = vst.msk [vmem:[%s2626 + $0x79] sm:$0xff] %vm2570, %v2548
        %2638 = vst.msk [vmem:[%s2626 + $0x81] sm:$0xff] %vm2570, %v2549
        %2639 = vst.msk [vmem:[%s2626 + $0x91] sm:$0xff] %vm2570, %v2550
        %2640 = vst.msk [vmem:[%s2626 + $0x99] sm:$0xff] %vm2570, %v2551
        %2641 = vst.msk [vmem:[%s2626 + $0xa9] sm:$0xff] %vm2570, %v2552
        %2642 = vst.msk [vmem:[%s2626 + $0xb1] sm:$0xff] %vm2570, %v2553
        %2643 = vst.msk [vmem:[%s2626 + $0xc1] sm:$0xff] %vm2570, %v2554
        %2644 = vst.msk [vmem:[%s2626 + $0xc9] sm:$0xff] %vm2570, %v2555
        %2645 = vst.msk [vmem:[%s2626 + $0xd9] sm:$0xff] %vm2570, %v2556
        %2646 = vst.msk [vmem:[%s2626 + $0xe1] sm:$0xff] %vm2570, %v2557
        %2647 = vst.msk [vmem:[%s2626 + $0xf1] sm:$0xff] %vm2570, %v2558
        %2648 = vst.msk [vmem:[%s2626 + $0xf9] sm:$0xff] %vm2570, %v2559
        %2649 = vst.msk [vmem:[%s2626 + $0x109] sm:$0xff] %vm2570, %v2560
        %2650 = vst.msk [vmem:[%s2626 + $0x111] sm:$0xff] %vm2570, %v2561
        %2651 = vst.msk [vmem:[%s2626 + $0x121] sm:$0xff] %vm2570, %v2562
        %2652 = vst.msk [vmem:[%s2626 + $0x129] sm:$0xff] %vm2570, %v2563
        %2653 = vst.msk [vmem:[%s2626 + $0x139] sm:$0xff] %vm2570, %v2564
        %2654 = vst.msk [vmem:[%s2626 + $0x141] sm:$0xff] %vm2570, %v2565
        %2655 = vst.msk [vmem:[%s2626 + $0x151] sm:$0xff] %vm2570, %v2566
        %2656 = vst.msk [vmem:[%s2626 + $0x159] sm:$0xff] %vm2570, %v2567
        %2657 = vst.msk [vmem:[%s2626 + $0x169] sm:$0xff] %vm2570, %v2568
        %2658 = vst.msk [vmem:[%s2626 + $0x171] sm:$0xff] %vm2570, %v2569
        %v2659 = vld [vmem:[#allocation4] sm:$0x1]
        %v2660 = vld [vmem:[#allocation4 + $0x18] sm:$0x1]
        %v2661 = vld [vmem:[#allocation4 + $0x30] sm:$0x1]
        %v2662 = vld [vmem:[#allocation4 + $0x48] sm:$0x1]
        %v2663 = vld [vmem:[#allocation4 + $0x60] sm:$0x1]
        %v2664 = vld [vmem:[#allocation4 + $0x78] sm:$0x1]
        %v2665 = vld [vmem:[#allocation4 + $0x90] sm:$0x1]
        %v2666 = vld [vmem:[#allocation4 + $0xa8] sm:$0x1]
        %v2667 = vld [vmem:[#allocation4 + $0xc0] sm:$0x1]
        %v2668 = vld [vmem:[#allocation4 + $0xd8] sm:$0x1]
        %v2669 = vld [vmem:[#allocation4 + $0xf0] sm:$0x1]
        %v2670 = vld [vmem:[#allocation4 + $0x108] sm:$0x1]
        %v2671 = vld [vmem:[#allocation4 + $0x120] sm:$0x1]
        %v2672 = vld [vmem:[#allocation4 + $0x138] sm:$0x1]
        %v2673 = vld [vmem:[#allocation4 + $0x150] sm:$0x1]
        %v2674 = vld [vmem:[#allocation4 + $0x168] sm:$0x1]
        %v2675 = vld [vmem:[#allocation4 + $0x180] sm:$0x1]
        %v2676 = vld [vmem:[#allocation4 + $0x198] sm:$0x1]
        %vm2677 = vcmask 122880
        %2678 = vst.msk [vmem:[#allocation5] sm:$0x1] %vm2677, %v2659
        %2679 = vst.msk [vmem:[#allocation5 + $0x10] sm:$0x1] %vm2677, %v2660
        %2680 = vst.msk [vmem:[#allocation5 + $0x20] sm:$0x1] %vm2677, %v2661
        %2681 = vst.msk [vmem:[#allocation5 + $0x30] sm:$0x1] %vm2677, %v2662
        %2682 = vst.msk [vmem:[#allocation5 + $0x40] sm:$0x1] %vm2677, %v2663
        %2683 = vst.msk [vmem:[#allocation5 + $0x50] sm:$0x1] %vm2677, %v2664
        %2684 = vst.msk [vmem:[#allocation5 + $0x60] sm:$0x1] %vm2677, %v2665
        %2685 = vst.msk [vmem:[#allocation5 + $0x70] sm:$0x1] %vm2677, %v2666
        %2686 = vst.msk [vmem:[#allocation5 + $0x80] sm:$0x1] %vm2677, %v2667
        %2687 = vst.msk [vmem:[#allocation5 + $0x90] sm:$0x1] %vm2677, %v2668
        %2688 = vst.msk [vmem:[#allocation5 + $0xa0] sm:$0x1] %vm2677, %v2669
        %2689 = vst.msk [vmem:[#allocation5 + $0xb0] sm:$0x1] %vm2677, %v2670
        %2690 = vst.msk [vmem:[#allocation5 + $0xc0] sm:$0x1] %vm2677, %v2671
        %2691 = vst.msk [vmem:[#allocation5 + $0xd0] sm:$0x1] %vm2677, %v2672
        %2692 = vst.msk [vmem:[#allocation5 + $0xe0] sm:$0x1] %vm2677, %v2673
        %2693 = vst.msk [vmem:[#allocation5 + $0xf0] sm:$0x1] %vm2677, %v2674
        %2694 = vst.msk [vmem:[#allocation5 + $0x100] sm:$0x1] %vm2677, %v2675
        %2695 = vst.msk [vmem:[#allocation5 + $0x110] sm:$0x1] %vm2677, %v2676
        %v2696 = vld [vmem:[#allocation4 + $0x1] sm:$0x1]
        %v2697 = vld [vmem:[#allocation4 + $0x19] sm:$0x1]
        %v2698 = vld [vmem:[#allocation4 + $0x31] sm:$0x1]
        %v2699 = vld [vmem:[#allocation4 + $0x49] sm:$0x1]
        %v2700 = vld [vmem:[#allocation4 + $0x61] sm:$0x1]
        %v2701 = vld [vmem:[#allocation4 + $0x79] sm:$0x1]
        %v2702 = vld [vmem:[#allocation4 + $0x91] sm:$0x1]
        %v2703 = vld [vmem:[#allocation4 + $0xa9] sm:$0x1]
        %v2704 = vld [vmem:[#allocation4 + $0xc1] sm:$0x1]
        %v2705 = vld [vmem:[#allocation4 + $0xd9] sm:$0x1]
        %v2706 = vld [vmem:[#allocation4 + $0xf1] sm:$0x1]
        %v2707 = vld [vmem:[#allocation4 + $0x109] sm:$0x1]
        %v2708 = vld [vmem:[#allocation4 + $0x121] sm:$0x1]
        %v2709 = vld [vmem:[#allocation4 + $0x139] sm:$0x1]
        %v2710 = vld [vmem:[#allocation4 + $0x151] sm:$0x1]
        %v2711 = vld [vmem:[#allocation4 + $0x169] sm:$0x1]
        %v2712 = vld [vmem:[#allocation4 + $0x181] sm:$0x1]
        %v2713 = vld [vmem:[#allocation4 + $0x199] sm:$0x1]
        %2714 = vst.msk [vmem:[#allocation6] sm:$0x1] %vm2677, %v2696
        %2715 = vst.msk [vmem:[#allocation6 + $0x10] sm:$0x1] %vm2677, %v2697
        %2716 = vst.msk [vmem:[#allocation6 + $0x20] sm:$0x1] %vm2677, %v2698
        %2717 = vst.msk [vmem:[#allocation6 + $0x30] sm:$0x1] %vm2677, %v2699
        %2718 = vst.msk [vmem:[#allocation6 + $0x40] sm:$0x1] %vm2677, %v2700
        %2719 = vst.msk [vmem:[#allocation6 + $0x50] sm:$0x1] %vm2677, %v2701
        %2720 = vst.msk [vmem:[#allocation6 + $0x60] sm:$0x1] %vm2677, %v2702
        %2721 = vst.msk [vmem:[#allocation6 + $0x70] sm:$0x1] %vm2677, %v2703
        %2722 = vst.msk [vmem:[#allocation6 + $0x80] sm:$0x1] %vm2677, %v2704
        %2723 = vst.msk [vmem:[#allocation6 + $0x90] sm:$0x1] %vm2677, %v2705
        %2724 = vst.msk [vmem:[#allocation6 + $0xa0] sm:$0x1] %vm2677, %v2706
        %2725 = vst.msk [vmem:[#allocation6 + $0xb0] sm:$0x1] %vm2677, %v2707
        %2726 = vst.msk [vmem:[#allocation6 + $0xc0] sm:$0x1] %vm2677, %v2708
        %2727 = vst.msk [vmem:[#allocation6 + $0xd0] sm:$0x1] %vm2677, %v2709
        %2728 = vst.msk [vmem:[#allocation6 + $0xe0] sm:$0x1] %vm2677, %v2710
        %2729 = vst.msk [vmem:[#allocation6 + $0xf0] sm:$0x1] %vm2677, %v2711
        %2730 = vst.msk [vmem:[#allocation6 + $0x100] sm:$0x1] %vm2677, %v2712
        %2731 = vst.msk [vmem:[#allocation6 + $0x110] sm:$0x1] %vm2677, %v2713
        %v2732 = vld [vmem:[#allocation4 + $0x2] sm:$0x1]
        %v2733 = vld [vmem:[#allocation4 + $0x1a] sm:$0x1]
        %v2734 = vld [vmem:[#allocation4 + $0x32] sm:$0x1]
        %v2735 = vld [vmem:[#allocation4 + $0x4a] sm:$0x1]
        %v2736 = vld [vmem:[#allocation4 + $0x62] sm:$0x1]
        %v2737 = vld [vmem:[#allocation4 + $0x7a] sm:$0x1]
        %v2738 = vld [vmem:[#allocation4 + $0x92] sm:$0x1]
        %v2739 = vld [vmem:[#allocation4 + $0xaa] sm:$0x1]
        %v2740 = vld [vmem:[#allocation4 + $0xc2] sm:$0x1]
        %v2741 = vld [vmem:[#allocation4 + $0xda] sm:$0x1]
        %v2742 = vld [vmem:[#allocation4 + $0xf2] sm:$0x1]
        %v2743 = vld [vmem:[#allocation4 + $0x10a] sm:$0x1]
        %v2744 = vld [vmem:[#allocation4 + $0x122] sm:$0x1]
        %v2745 = vld [vmem:[#allocation4 + $0x13a] sm:$0x1]
        %v2746 = vld [vmem:[#allocation4 + $0x152] sm:$0x1]
        %v2747 = vld [vmem:[#allocation4 + $0x16a] sm:$0x1]
        %v2748 = vld [vmem:[#allocation4 + $0x182] sm:$0x1]
        %v2749 = vld [vmem:[#allocation4 + $0x19a] sm:$0x1]
        %2750 = vst.msk [vmem:[#allocation5 + $0x1] sm:$0x1] %vm2677, %v2732
        %2751 = vst.msk [vmem:[#allocation5 + $0x11] sm:$0x1] %vm2677, %v2733
        %2752 = vst.msk [vmem:[#allocation5 + $0x21] sm:$0x1] %vm2677, %v2734
        %2753 = vst.msk [vmem:[#allocation5 + $0x31] sm:$0x1] %vm2677, %v2735
        %2754 = vst.msk [vmem:[#allocation5 + $0x41] sm:$0x1] %vm2677, %v2736
        %2755 = vst.msk [vmem:[#allocation5 + $0x51] sm:$0x1] %vm2677, %v2737
        %2756 = vst.msk [vmem:[#allocation5 + $0x61] sm:$0x1] %vm2677, %v2738
        %2757 = vst.msk [vmem:[#allocation5 + $0x71] sm:$0x1] %vm2677, %v2739
        %2758 = vst.msk [vmem:[#allocation5 + $0x81] sm:$0x1] %vm2677, %v2740
        %2759 = vst.msk [vmem:[#allocation5 + $0x91] sm:$0x1] %vm2677, %v2741
        %2760 = vst.msk [vmem:[#allocation5 + $0xa1] sm:$0x1] %vm2677, %v2742
        %2761 = vst.msk [vmem:[#allocation5 + $0xb1] sm:$0x1] %vm2677, %v2743
        %2762 = vst.msk [vmem:[#allocation5 + $0xc1] sm:$0x1] %vm2677, %v2744
        %2763 = vst.msk [vmem:[#allocation5 + $0xd1] sm:$0x1] %vm2677, %v2745
        %2764 = vst.msk [vmem:[#allocation5 + $0xe1] sm:$0x1] %vm2677, %v2746
        %2765 = vst.msk [vmem:[#allocation5 + $0xf1] sm:$0x1] %vm2677, %v2747
        %2766 = vst.msk [vmem:[#allocation5 + $0x101] sm:$0x1] %vm2677, %v2748
        %2767 = vst.msk [vmem:[#allocation5 + $0x111] sm:$0x1] %vm2677, %v2749
        %v2768 = vld [vmem:[#allocation4 + $0x3] sm:$0x1]
        %v2769 = vld [vmem:[#allocation4 + $0x1b] sm:$0x1]
        %v2770 = vld [vmem:[#allocation4 + $0x33] sm:$0x1]
        %v2771 = vld [vmem:[#allocation4 + $0x4b] sm:$0x1]
        %v2772 = vld [vmem:[#allocation4 + $0x63] sm:$0x1]
        %v2773 = vld [vmem:[#allocation4 + $0x7b] sm:$0x1]
        %v2774 = vld [vmem:[#allocation4 + $0x93] sm:$0x1]
        %v2775 = vld [vmem:[#allocation4 + $0xab] sm:$0x1]
        %v2776 = vld [vmem:[#allocation4 + $0xc3] sm:$0x1]
        %v2777 = vld [vmem:[#allocation4 + $0xdb] sm:$0x1]
        %v2778 = vld [vmem:[#allocation4 + $0xf3] sm:$0x1]
        %v2779 = vld [vmem:[#allocation4 + $0x10b] sm:$0x1]
        %v2780 = vld [vmem:[#allocation4 + $0x123] sm:$0x1]
        %v2781 = vld [vmem:[#allocation4 + $0x13b] sm:$0x1]
        %v2782 = vld [vmem:[#allocation4 + $0x153] sm:$0x1]
        %v2783 = vld [vmem:[#allocation4 + $0x16b] sm:$0x1]
        %v2784 = vld [vmem:[#allocation4 + $0x183] sm:$0x1]
        %v2785 = vld [vmem:[#allocation4 + $0x19b] sm:$0x1]
        %2786 = vst.msk [vmem:[#allocation6 + $0x1] sm:$0x1] %vm2677, %v2768
        %2787 = vst.msk [vmem:[#allocation6 + $0x11] sm:$0x1] %vm2677, %v2769
        %2788 = vst.msk [vmem:[#allocation6 + $0x21] sm:$0x1] %vm2677, %v2770
        %2789 = vst.msk [vmem:[#allocation6 + $0x31] sm:$0x1] %vm2677, %v2771
        %2790 = vst.msk [vmem:[#allocation6 + $0x41] sm:$0x1] %vm2677, %v2772
        %2791 = vst.msk [vmem:[#allocation6 + $0x51] sm:$0x1] %vm2677, %v2773
        %2792 = vst.msk [vmem:[#allocation6 + $0x61] sm:$0x1] %vm2677, %v2774
        %2793 = vst.msk [vmem:[#allocation6 + $0x71] sm:$0x1] %vm2677, %v2775
        %2794 = vst.msk [vmem:[#allocation6 + $0x81] sm:$0x1] %vm2677, %v2776
        %2795 = vst.msk [vmem:[#allocation6 + $0x91] sm:$0x1] %vm2677, %v2777
        %2796 = vst.msk [vmem:[#allocation6 + $0xa1] sm:$0x1] %vm2677, %v2778
        %2797 = vst.msk [vmem:[#allocation6 + $0xb1] sm:$0x1] %vm2677, %v2779
        %2798 = vst.msk [vmem:[#allocation6 + $0xc1] sm:$0x1] %vm2677, %v2780
        %2799 = vst.msk [vmem:[#allocation6 + $0xd1] sm:$0x1] %vm2677, %v2781
        %2800 = vst.msk [vmem:[#allocation6 + $0xe1] sm:$0x1] %vm2677, %v2782
        %2801 = vst.msk [vmem:[#allocation6 + $0xf1] sm:$0x1] %vm2677, %v2783
        %2802 = vst.msk [vmem:[#allocation6 + $0x101] sm:$0x1] %vm2677, %v2784
        %2803 = vst.msk [vmem:[#allocation6 + $0x111] sm:$0x1] %vm2677, %v2785
        %v2804 = vld [vmem:[#allocation4 + $0x4] sm:$0x1]
        %v2805 = vld [vmem:[#allocation4 + $0x1c] sm:$0x1]
        %v2806 = vld [vmem:[#allocation4 + $0x34] sm:$0x1]
        %v2807 = vld [vmem:[#allocation4 + $0x4c] sm:$0x1]
        %v2808 = vld [vmem:[#allocation4 + $0x64] sm:$0x1]
        %v2809 = vld [vmem:[#allocation4 + $0x7c] sm:$0x1]
        %v2810 = vld [vmem:[#allocation4 + $0x94] sm:$0x1]
        %v2811 = vld [vmem:[#allocation4 + $0xac] sm:$0x1]
        %v2812 = vld [vmem:[#allocation4 + $0xc4] sm:$0x1]
        %v2813 = vld [vmem:[#allocation4 + $0xdc] sm:$0x1]
        %v2814 = vld [vmem:[#allocation4 + $0xf4] sm:$0x1]
        %v2815 = vld [vmem:[#allocation4 + $0x10c] sm:$0x1]
        %v2816 = vld [vmem:[#allocation4 + $0x124] sm:$0x1]
        %v2817 = vld [vmem:[#allocation4 + $0x13c] sm:$0x1]
        %v2818 = vld [vmem:[#allocation4 + $0x154] sm:$0x1]
        %v2819 = vld [vmem:[#allocation4 + $0x16c] sm:$0x1]
        %v2820 = vld [vmem:[#allocation4 + $0x184] sm:$0x1]
        %v2821 = vld [vmem:[#allocation4 + $0x19c] sm:$0x1]
        %2822 = vst.msk [vmem:[#allocation5 + $0x2] sm:$0x1] %vm2677, %v2804
        %2823 = vst.msk [vmem:[#allocation5 + $0x12] sm:$0x1] %vm2677, %v2805
        %2824 = vst.msk [vmem:[#allocation5 + $0x22] sm:$0x1] %vm2677, %v2806
        %2825 = vst.msk [vmem:[#allocation5 + $0x32] sm:$0x1] %vm2677, %v2807
        %2826 = vst.msk [vmem:[#allocation5 + $0x42] sm:$0x1] %vm2677, %v2808
        %2827 = vst.msk [vmem:[#allocation5 + $0x52] sm:$0x1] %vm2677, %v2809
        %2828 = vst.msk [vmem:[#allocation5 + $0x62] sm:$0x1] %vm2677, %v2810
        %2829 = vst.msk [vmem:[#allocation5 + $0x72] sm:$0x1] %vm2677, %v2811
        %2830 = vst.msk [vmem:[#allocation5 + $0x82] sm:$0x1] %vm2677, %v2812
        %2831 = vst.msk [vmem:[#allocation5 + $0x92] sm:$0x1] %vm2677, %v2813
        %2832 = vst.msk [vmem:[#allocation5 + $0xa2] sm:$0x1] %vm2677, %v2814
        %2833 = vst.msk [vmem:[#allocation5 + $0xb2] sm:$0x1] %vm2677, %v2815
        %2834 = vst.msk [vmem:[#allocation5 + $0xc2] sm:$0x1] %vm2677, %v2816
        %2835 = vst.msk [vmem:[#allocation5 + $0xd2] sm:$0x1] %vm2677, %v2817
        %2836 = vst.msk [vmem:[#allocation5 + $0xe2] sm:$0x1] %vm2677, %v2818
        %2837 = vst.msk [vmem:[#allocation5 + $0xf2] sm:$0x1] %vm2677, %v2819
        %2838 = vst.msk [vmem:[#allocation5 + $0x102] sm:$0x1] %vm2677, %v2820
        %2839 = vst.msk [vmem:[#allocation5 + $0x112] sm:$0x1] %vm2677, %v2821
        %v2840 = vld [vmem:[#allocation4 + $0x5] sm:$0x1]
        %v2841 = vld [vmem:[#allocation4 + $0x1d] sm:$0x1]
        %v2842 = vld [vmem:[#allocation4 + $0x35] sm:$0x1]
        %v2843 = vld [vmem:[#allocation4 + $0x4d] sm:$0x1]
        %v2844 = vld [vmem:[#allocation4 + $0x65] sm:$0x1]
        %v2845 = vld [vmem:[#allocation4 + $0x7d] sm:$0x1]
        %v2846 = vld [vmem:[#allocation4 + $0x95] sm:$0x1]
        %v2847 = vld [vmem:[#allocation4 + $0xad] sm:$0x1]
        %v2848 = vld [vmem:[#allocation4 + $0xc5] sm:$0x1]
        %v2849 = vld [vmem:[#allocation4 + $0xdd] sm:$0x1]
        %v2850 = vld [vmem:[#allocation4 + $0xf5] sm:$0x1]
        %v2851 = vld [vmem:[#allocation4 + $0x10d] sm:$0x1]
        %v2852 = vld [vmem:[#allocation4 + $0x125] sm:$0x1]
        %v2853 = vld [vmem:[#allocation4 + $0x13d] sm:$0x1]
        %v2854 = vld [vmem:[#allocation4 + $0x155] sm:$0x1]
        %v2855 = vld [vmem:[#allocation4 + $0x16d] sm:$0x1]
        %v2856 = vld [vmem:[#allocation4 + $0x185] sm:$0x1]
        %v2857 = vld [vmem:[#allocation4 + $0x19d] sm:$0x1]
        %2858 = vst.msk [vmem:[#allocation6 + $0x2] sm:$0x1] %vm2677, %v2840
        %2859 = vst.msk [vmem:[#allocation6 + $0x12] sm:$0x1] %vm2677, %v2841
        %2860 = vst.msk [vmem:[#allocation6 + $0x22] sm:$0x1] %vm2677, %v2842
        %2861 = vst.msk [vmem:[#allocation6 + $0x32] sm:$0x1] %vm2677, %v2843
        %2862 = vst.msk [vmem:[#allocation6 + $0x42] sm:$0x1] %vm2677, %v2844
        %2863 = vst.msk [vmem:[#allocation6 + $0x52] sm:$0x1] %vm2677, %v2845
        %2864 = vst.msk [vmem:[#allocation6 + $0x62] sm:$0x1] %vm2677, %v2846
        %2865 = vst.msk [vmem:[#allocation6 + $0x72] sm:$0x1] %vm2677, %v2847
        %2866 = vst.msk [vmem:[#allocation6 + $0x82] sm:$0x1] %vm2677, %v2848
        %2867 = vst.msk [vmem:[#allocation6 + $0x92] sm:$0x1] %vm2677, %v2849
        %2868 = vst.msk [vmem:[#allocation6 + $0xa2] sm:$0x1] %vm2677, %v2850
        %2869 = vst.msk [vmem:[#allocation6 + $0xb2] sm:$0x1] %vm2677, %v2851
        %2870 = vst.msk [vmem:[#allocation6 + $0xc2] sm:$0x1] %vm2677, %v2852
        %2871 = vst.msk [vmem:[#allocation6 + $0xd2] sm:$0x1] %vm2677, %v2853
        %2872 = vst.msk [vmem:[#allocation6 + $0xe2] sm:$0x1] %vm2677, %v2854
        %2873 = vst.msk [vmem:[#allocation6 + $0xf2] sm:$0x1] %vm2677, %v2855
        %2874 = vst.msk [vmem:[#allocation6 + $0x102] sm:$0x1] %vm2677, %v2856
        %2875 = vst.msk [vmem:[#allocation6 + $0x112] sm:$0x1] %vm2677, %v2857
        %v2876 = vld [vmem:[#allocation4 + $0x6] sm:$0x1]
        %v2877 = vld [vmem:[#allocation4 + $0x1e] sm:$0x1]
        %v2878 = vld [vmem:[#allocation4 + $0x36] sm:$0x1]
        %v2879 = vld [vmem:[#allocation4 + $0x4e] sm:$0x1]
        %v2880 = vld [vmem:[#allocation4 + $0x66] sm:$0x1]
        %v2881 = vld [vmem:[#allocation4 + $0x7e] sm:$0x1]
        %v2882 = vld [vmem:[#allocation4 + $0x96] sm:$0x1]
        %v2883 = vld [vmem:[#allocation4 + $0xae] sm:$0x1]
        %v2884 = vld [vmem:[#allocation4 + $0xc6] sm:$0x1]
        %v2885 = vld [vmem:[#allocation4 + $0xde] sm:$0x1]
        %v2886 = vld [vmem:[#allocation4 + $0xf6] sm:$0x1]
        %v2887 = vld [vmem:[#allocation4 + $0x10e] sm:$0x1]
        %v2888 = vld [vmem:[#allocation4 + $0x126] sm:$0x1]
        %v2889 = vld [vmem:[#allocation4 + $0x13e] sm:$0x1]
        %v2890 = vld [vmem:[#allocation4 + $0x156] sm:$0x1]
        %v2891 = vld [vmem:[#allocation4 + $0x16e] sm:$0x1]
        %v2892 = vld [vmem:[#allocation4 + $0x186] sm:$0x1]
        %v2893 = vld [vmem:[#allocation4 + $0x19e] sm:$0x1]
        %2894 = vst.msk [vmem:[#allocation5 + $0x3] sm:$0x1] %vm2677, %v2876
        %2895 = vst.msk [vmem:[#allocation5 + $0x13] sm:$0x1] %vm2677, %v2877
        %2896 = vst.msk [vmem:[#allocation5 + $0x23] sm:$0x1] %vm2677, %v2878
        %2897 = vst.msk [vmem:[#allocation5 + $0x33] sm:$0x1] %vm2677, %v2879
        %2898 = vst.msk [vmem:[#allocation5 + $0x43] sm:$0x1] %vm2677, %v2880
        %2899 = vst.msk [vmem:[#allocation5 + $0x53] sm:$0x1] %vm2677, %v2881
        %2900 = vst.msk [vmem:[#allocation5 + $0x63] sm:$0x1] %vm2677, %v2882
        %2901 = vst.msk [vmem:[#allocation5 + $0x73] sm:$0x1] %vm2677, %v2883
        %2902 = vst.msk [vmem:[#allocation5 + $0x83] sm:$0x1] %vm2677, %v2884
        %2903 = vst.msk [vmem:[#allocation5 + $0x93] sm:$0x1] %vm2677, %v2885
        %2904 = vst.msk [vmem:[#allocation5 + $0xa3] sm:$0x1] %vm2677, %v2886
        %2905 = vst.msk [vmem:[#allocation5 + $0xb3] sm:$0x1] %vm2677, %v2887
        %2906 = vst.msk [vmem:[#allocation5 + $0xc3] sm:$0x1] %vm2677, %v2888
        %2907 = vst.msk [vmem:[#allocation5 + $0xd3] sm:$0x1] %vm2677, %v2889
        %2908 = vst.msk [vmem:[#allocation5 + $0xe3] sm:$0x1] %vm2677, %v2890
        %2909 = vst.msk [vmem:[#allocation5 + $0xf3] sm:$0x1] %vm2677, %v2891
        %2910 = vst.msk [vmem:[#allocation5 + $0x103] sm:$0x1] %vm2677, %v2892
        %2911 = vst.msk [vmem:[#allocation5 + $0x113] sm:$0x1] %vm2677, %v2893
        %v2912 = vld [vmem:[#allocation4 + $0x7] sm:$0x1]
        %v2913 = vld [vmem:[#allocation4 + $0x1f] sm:$0x1]
        %v2914 = vld [vmem:[#allocation4 + $0x37] sm:$0x1]
        %v2915 = vld [vmem:[#allocation4 + $0x4f] sm:$0x1]
        %v2916 = vld [vmem:[#allocation4 + $0x67] sm:$0x1]
        %v2917 = vld [vmem:[#allocation4 + $0x7f] sm:$0x1]
        %v2918 = vld [vmem:[#allocation4 + $0x97] sm:$0x1]
        %v2919 = vld [vmem:[#allocation4 + $0xaf] sm:$0x1]
        %v2920 = vld [vmem:[#allocation4 + $0xc7] sm:$0x1]
        %v2921 = vld [vmem:[#allocation4 + $0xdf] sm:$0x1]
        %v2922 = vld [vmem:[#allocation4 + $0xf7] sm:$0x1]
        %v2923 = vld [vmem:[#allocation4 + $0x10f] sm:$0x1]
        %v2924 = vld [vmem:[#allocation4 + $0x127] sm:$0x1]
        %v2925 = vld [vmem:[#allocation4 + $0x13f] sm:$0x1]
        %v2926 = vld [vmem:[#allocation4 + $0x157] sm:$0x1]
        %v2927 = vld [vmem:[#allocation4 + $0x16f] sm:$0x1]
        %v2928 = vld [vmem:[#allocation4 + $0x187] sm:$0x1]
        %v2929 = vld [vmem:[#allocation4 + $0x19f] sm:$0x1]
        %2930 = vst.msk [vmem:[#allocation6 + $0x3] sm:$0x1] %vm2677, %v2912
        %2931 = vst.msk [vmem:[#allocation6 + $0x13] sm:$0x1] %vm2677, %v2913
        %2932 = vst.msk [vmem:[#allocation6 + $0x23] sm:$0x1] %vm2677, %v2914
        %2933 = vst.msk [vmem:[#allocation6 + $0x33] sm:$0x1] %vm2677, %v2915
        %2934 = vst.msk [vmem:[#allocation6 + $0x43] sm:$0x1] %vm2677, %v2916
        %2935 = vst.msk [vmem:[#allocation6 + $0x53] sm:$0x1] %vm2677, %v2917
        %2936 = vst.msk [vmem:[#allocation6 + $0x63] sm:$0x1] %vm2677, %v2918
        %2937 = vst.msk [vmem:[#allocation6 + $0x73] sm:$0x1] %vm2677, %v2919
        %2938 = vst.msk [vmem:[#allocation6 + $0x83] sm:$0x1] %vm2677, %v2920
        %2939 = vst.msk [vmem:[#allocation6 + $0x93] sm:$0x1] %vm2677, %v2921
        %2940 = vst.msk [vmem:[#allocation6 + $0xa3] sm:$0x1] %vm2677, %v2922
        %2941 = vst.msk [vmem:[#allocation6 + $0xb3] sm:$0x1] %vm2677, %v2923
        %2942 = vst.msk [vmem:[#allocation6 + $0xc3] sm:$0x1] %vm2677, %v2924
        %2943 = vst.msk [vmem:[#allocation6 + $0xd3] sm:$0x1] %vm2677, %v2925
        %2944 = vst.msk [vmem:[#allocation6 + $0xe3] sm:$0x1] %vm2677, %v2926
        %2945 = vst.msk [vmem:[#allocation6 + $0xf3] sm:$0x1] %vm2677, %v2927
        %2946 = vst.msk [vmem:[#allocation6 + $0x103] sm:$0x1] %vm2677, %v2928
        %2947 = vst.msk [vmem:[#allocation6 + $0x113] sm:$0x1] %vm2677, %v2929
        %v2948 = vld [vmem:[#allocation4 + $0x8] sm:$0x1]
        %v2949 = vld [vmem:[#allocation4 + $0x20] sm:$0x1]
        %v2950 = vld [vmem:[#allocation4 + $0x38] sm:$0x1]
        %v2951 = vld [vmem:[#allocation4 + $0x50] sm:$0x1]
        %v2952 = vld [vmem:[#allocation4 + $0x68] sm:$0x1]
        %v2953 = vld [vmem:[#allocation4 + $0x80] sm:$0x1]
        %v2954 = vld [vmem:[#allocation4 + $0x98] sm:$0x1]
        %v2955 = vld [vmem:[#allocation4 + $0xb0] sm:$0x1]
        %v2956 = vld [vmem:[#allocation4 + $0xc8] sm:$0x1]
        %v2957 = vld [vmem:[#allocation4 + $0xe0] sm:$0x1]
        %v2958 = vld [vmem:[#allocation4 + $0xf8] sm:$0x1]
        %v2959 = vld [vmem:[#allocation4 + $0x110] sm:$0x1]
        %v2960 = vld [vmem:[#allocation4 + $0x128] sm:$0x1]
        %v2961 = vld [vmem:[#allocation4 + $0x140] sm:$0x1]
        %v2962 = vld [vmem:[#allocation4 + $0x158] sm:$0x1]
        %v2963 = vld [vmem:[#allocation4 + $0x170] sm:$0x1]
        %v2964 = vld [vmem:[#allocation4 + $0x188] sm:$0x1]
        %v2965 = vld [vmem:[#allocation4 + $0x1a0] sm:$0x1]
        %2966 = vst.msk [vmem:[#allocation5 + $0x4] sm:$0x1] %vm2677, %v2948
        %2967 = vst.msk [vmem:[#allocation5 + $0x14] sm:$0x1] %vm2677, %v2949
        %2968 = vst.msk [vmem:[#allocation5 + $0x24] sm:$0x1] %vm2677, %v2950
        %2969 = vst.msk [vmem:[#allocation5 + $0x34] sm:$0x1] %vm2677, %v2951
        %2970 = vst.msk [vmem:[#allocation5 + $0x44] sm:$0x1] %vm2677, %v2952
        %2971 = vst.msk [vmem:[#allocation5 + $0x54] sm:$0x1] %vm2677, %v2953
        %2972 = vst.msk [vmem:[#allocation5 + $0x64] sm:$0x1] %vm2677, %v2954
        %2973 = vst.msk [vmem:[#allocation5 + $0x74] sm:$0x1] %vm2677, %v2955
        %2974 = vst.msk [vmem:[#allocation5 + $0x84] sm:$0x1] %vm2677, %v2956
        %2975 = vst.msk [vmem:[#allocation5 + $0x94] sm:$0x1] %vm2677, %v2957
        %2976 = vst.msk [vmem:[#allocation5 + $0xa4] sm:$0x1] %vm2677, %v2958
        %2977 = vst.msk [vmem:[#allocation5 + $0xb4] sm:$0x1] %vm2677, %v2959
        %2978 = vst.msk [vmem:[#allocation5 + $0xc4] sm:$0x1] %vm2677, %v2960
        %2979 = vst.msk [vmem:[#allocation5 + $0xd4] sm:$0x1] %vm2677, %v2961
        %2980 = vst.msk [vmem:[#allocation5 + $0xe4] sm:$0x1] %vm2677, %v2962
        %2981 = vst.msk [vmem:[#allocation5 + $0xf4] sm:$0x1] %vm2677, %v2963
        %2982 = vst.msk [vmem:[#allocation5 + $0x104] sm:$0x1] %vm2677, %v2964
        %2983 = vst.msk [vmem:[#allocation5 + $0x114] sm:$0x1] %vm2677, %v2965
        %v2984 = vld [vmem:[#allocation4 + $0x9] sm:$0x1]
        %v2985 = vld [vmem:[#allocation4 + $0x21] sm:$0x1]
        %v2986 = vld [vmem:[#allocation4 + $0x39] sm:$0x1]
        %v2987 = vld [vmem:[#allocation4 + $0x51] sm:$0x1]
        %v2988 = vld [vmem:[#allocation4 + $0x69] sm:$0x1]
        %v2989 = vld [vmem:[#allocation4 + $0x81] sm:$0x1]
        %v2990 = vld [vmem:[#allocation4 + $0x99] sm:$0x1]
        %v2991 = vld [vmem:[#allocation4 + $0xb1] sm:$0x1]
        %v2992 = vld [vmem:[#allocation4 + $0xc9] sm:$0x1]
        %v2993 = vld [vmem:[#allocation4 + $0xe1] sm:$0x1]
        %v2994 = vld [vmem:[#allocation4 + $0xf9] sm:$0x1]
        %v2995 = vld [vmem:[#allocation4 + $0x111] sm:$0x1]
        %v2996 = vld [vmem:[#allocation4 + $0x129] sm:$0x1]
        %v2997 = vld [vmem:[#allocation4 + $0x141] sm:$0x1]
        %v2998 = vld [vmem:[#allocation4 + $0x159] sm:$0x1]
        %v2999 = vld [vmem:[#allocation4 + $0x171] sm:$0x1]
        %v3000 = vld [vmem:[#allocation4 + $0x189] sm:$0x1]
        %v3001 = vld [vmem:[#allocation4 + $0x1a1] sm:$0x1]
        %3002 = vst.msk [vmem:[#allocation6 + $0x4] sm:$0x1] %vm2677, %v2984
        %3003 = vst.msk [vmem:[#allocation6 + $0x14] sm:$0x1] %vm2677, %v2985
        %3004 = vst.msk [vmem:[#allocation6 + $0x24] sm:$0x1] %vm2677, %v2986
        %3005 = vst.msk [vmem:[#allocation6 + $0x34] sm:$0x1] %vm2677, %v2987
        %3006 = vst.msk [vmem:[#allocation6 + $0x44] sm:$0x1] %vm2677, %v2988
        %3007 = vst.msk [vmem:[#allocation6 + $0x54] sm:$0x1] %vm2677, %v2989
        %3008 = vst.msk [vmem:[#allocation6 + $0x64] sm:$0x1] %vm2677, %v2990
        %3009 = vst.msk [vmem:[#allocation6 + $0x74] sm:$0x1] %vm2677, %v2991
        %3010 = vst.msk [vmem:[#allocation6 + $0x84] sm:$0x1] %vm2677, %v2992
        %3011 = vst.msk [vmem:[#allocation6 + $0x94] sm:$0x1] %vm2677, %v2993
        %3012 = vst.msk [vmem:[#allocation6 + $0xa4] sm:$0x1] %vm2677, %v2994
        %3013 = vst.msk [vmem:[#allocation6 + $0xb4] sm:$0x1] %vm2677, %v2995
        %3014 = vst.msk [vmem:[#allocation6 + $0xc4] sm:$0x1] %vm2677, %v2996
        %3015 = vst.msk [vmem:[#allocation6 + $0xd4] sm:$0x1] %vm2677, %v2997
        %3016 = vst.msk [vmem:[#allocation6 + $0xe4] sm:$0x1] %vm2677, %v2998
        %3017 = vst.msk [vmem:[#allocation6 + $0xf4] sm:$0x1] %vm2677, %v2999
        %3018 = vst.msk [vmem:[#allocation6 + $0x104] sm:$0x1] %vm2677, %v3000
        %3019 = vst.msk [vmem:[#allocation6 + $0x114] sm:$0x1] %vm2677, %v3001
        %v3020 = vld [vmem:[#allocation4 + $0xa] sm:$0x1]
        %v3021 = vld [vmem:[#allocation4 + $0x22] sm:$0x1]
        %v3022 = vld [vmem:[#allocation4 + $0x3a] sm:$0x1]
        %v3023 = vld [vmem:[#allocation4 + $0x52] sm:$0x1]
        %v3024 = vld [vmem:[#allocation4 + $0x6a] sm:$0x1]
        %v3025 = vld [vmem:[#allocation4 + $0x82] sm:$0x1]
        %v3026 = vld [vmem:[#allocation4 + $0x9a] sm:$0x1]
        %v3027 = vld [vmem:[#allocation4 + $0xb2] sm:$0x1]
        %v3028 = vld [vmem:[#allocation4 + $0xca] sm:$0x1]
        %v3029 = vld [vmem:[#allocation4 + $0xe2] sm:$0x1]
        %v3030 = vld [vmem:[#allocation4 + $0xfa] sm:$0x1]
        %v3031 = vld [vmem:[#allocation4 + $0x112] sm:$0x1]
        %v3032 = vld [vmem:[#allocation4 + $0x12a] sm:$0x1]
        %v3033 = vld [vmem:[#allocation4 + $0x142] sm:$0x1]
        %v3034 = vld [vmem:[#allocation4 + $0x15a] sm:$0x1]
        %v3035 = vld [vmem:[#allocation4 + $0x172] sm:$0x1]
        %v3036 = vld [vmem:[#allocation4 + $0x18a] sm:$0x1]
        %v3037 = vld [vmem:[#allocation4 + $0x1a2] sm:$0x1]
        %3038 = vst.msk [vmem:[#allocation5 + $0x5] sm:$0x1] %vm2677, %v3020
        %3039 = vst.msk [vmem:[#allocation5 + $0x15] sm:$0x1] %vm2677, %v3021
        %3040 = vst.msk [vmem:[#allocation5 + $0x25] sm:$0x1] %vm2677, %v3022
        %3041 = vst.msk [vmem:[#allocation5 + $0x35] sm:$0x1] %vm2677, %v3023
        %3042 = vst.msk [vmem:[#allocation5 + $0x45] sm:$0x1] %vm2677, %v3024
        %3043 = vst.msk [vmem:[#allocation5 + $0x55] sm:$0x1] %vm2677, %v3025
        %3044 = vst.msk [vmem:[#allocation5 + $0x65] sm:$0x1] %vm2677, %v3026
        %3045 = vst.msk [vmem:[#allocation5 + $0x75] sm:$0x1] %vm2677, %v3027
        %3046 = vst.msk [vmem:[#allocation5 + $0x85] sm:$0x1] %vm2677, %v3028
        %3047 = vst.msk [vmem:[#allocation5 + $0x95] sm:$0x1] %vm2677, %v3029
        %3048 = vst.msk [vmem:[#allocation5 + $0xa5] sm:$0x1] %vm2677, %v3030
        %3049 = vst.msk [vmem:[#allocation5 + $0xb5] sm:$0x1] %vm2677, %v3031
        %3050 = vst.msk [vmem:[#allocation5 + $0xc5] sm:$0x1] %vm2677, %v3032
        %3051 = vst.msk [vmem:[#allocation5 + $0xd5] sm:$0x1] %vm2677, %v3033
        %3052 = vst.msk [vmem:[#allocation5 + $0xe5] sm:$0x1] %vm2677, %v3034
        %3053 = vst.msk [vmem:[#allocation5 + $0xf5] sm:$0x1] %vm2677, %v3035
        %3054 = vst.msk [vmem:[#allocation5 + $0x105] sm:$0x1] %vm2677, %v3036
        %3055 = vst.msk [vmem:[#allocation5 + $0x115] sm:$0x1] %vm2677, %v3037
        %v3056 = vld [vmem:[#allocation4 + $0xb] sm:$0x1]
        %v3057 = vld [vmem:[#allocation4 + $0x23] sm:$0x1]
        %v3058 = vld [vmem:[#allocation4 + $0x3b] sm:$0x1]
        %v3059 = vld [vmem:[#allocation4 + $0x53] sm:$0x1]
        %v3060 = vld [vmem:[#allocation4 + $0x6b] sm:$0x1]
        %v3061 = vld [vmem:[#allocation4 + $0x83] sm:$0x1]
        %v3062 = vld [vmem:[#allocation4 + $0x9b] sm:$0x1]
        %v3063 = vld [vmem:[#allocation4 + $0xb3] sm:$0x1]
        %v3064 = vld [vmem:[#allocation4 + $0xcb] sm:$0x1]
        %v3065 = vld [vmem:[#allocation4 + $0xe3] sm:$0x1]
        %v3066 = vld [vmem:[#allocation4 + $0xfb] sm:$0x1]
        %v3067 = vld [vmem:[#allocation4 + $0x113] sm:$0x1]
        %v3068 = vld [vmem:[#allocation4 + $0x12b] sm:$0x1]
        %v3069 = vld [vmem:[#allocation4 + $0x143] sm:$0x1]
        %v3070 = vld [vmem:[#allocation4 + $0x15b] sm:$0x1]
        %v3071 = vld [vmem:[#allocation4 + $0x173] sm:$0x1]
        %v3072 = vld [vmem:[#allocation4 + $0x18b] sm:$0x1]
        %v3073 = vld [vmem:[#allocation4 + $0x1a3] sm:$0x1]
        %3074 = vst.msk [vmem:[#allocation6 + $0x5] sm:$0x1] %vm2677, %v3056
        %3075 = vst.msk [vmem:[#allocation6 + $0x15] sm:$0x1] %vm2677, %v3057
        %3076 = vst.msk [vmem:[#allocation6 + $0x25] sm:$0x1] %vm2677, %v3058
        %3077 = vst.msk [vmem:[#allocation6 + $0x35] sm:$0x1] %vm2677, %v3059
        %3078 = vst.msk [vmem:[#allocation6 + $0x45] sm:$0x1] %vm2677, %v3060
        %3079 = vst.msk [vmem:[#allocation6 + $0x55] sm:$0x1] %vm2677, %v3061
        %3080 = vst.msk [vmem:[#allocation6 + $0x65] sm:$0x1] %vm2677, %v3062
        %3081 = vst.msk [vmem:[#allocation6 + $0x75] sm:$0x1] %vm2677, %v3063
        %3082 = vst.msk [vmem:[#allocation6 + $0x85] sm:$0x1] %vm2677, %v3064
        %3083 = vst.msk [vmem:[#allocation6 + $0x95] sm:$0x1] %vm2677, %v3065
        %3084 = vst.msk [vmem:[#allocation6 + $0xa5] sm:$0x1] %vm2677, %v3066
        %3085 = vst.msk [vmem:[#allocation6 + $0xb5] sm:$0x1] %vm2677, %v3067
        %3086 = vst.msk [vmem:[#allocation6 + $0xc5] sm:$0x1] %vm2677, %v3068
        %3087 = vst.msk [vmem:[#allocation6 + $0xd5] sm:$0x1] %vm2677, %v3069
        %3088 = vst.msk [vmem:[#allocation6 + $0xe5] sm:$0x1] %vm2677, %v3070
        %3089 = vst.msk [vmem:[#allocation6 + $0xf5] sm:$0x1] %vm2677, %v3071
        %3090 = vst.msk [vmem:[#allocation6 + $0x105] sm:$0x1] %vm2677, %v3072
        %3091 = vst.msk [vmem:[#allocation6 + $0x115] sm:$0x1] %vm2677, %v3073
        %v3092 = vld [vmem:[#allocation4 + $0xc] sm:$0x1]
        %v3093 = vld [vmem:[#allocation4 + $0x24] sm:$0x1]
        %v3094 = vld [vmem:[#allocation4 + $0x3c] sm:$0x1]
        %v3095 = vld [vmem:[#allocation4 + $0x54] sm:$0x1]
        %v3096 = vld [vmem:[#allocation4 + $0x6c] sm:$0x1]
        %v3097 = vld [vmem:[#allocation4 + $0x84] sm:$0x1]
        %v3098 = vld [vmem:[#allocation4 + $0x9c] sm:$0x1]
        %v3099 = vld [vmem:[#allocation4 + $0xb4] sm:$0x1]
        %v3100 = vld [vmem:[#allocation4 + $0xcc] sm:$0x1]
        %v3101 = vld [vmem:[#allocation4 + $0xe4] sm:$0x1]
        %v3102 = vld [vmem:[#allocation4 + $0xfc] sm:$0x1]
        %v3103 = vld [vmem:[#allocation4 + $0x114] sm:$0x1]
        %v3104 = vld [vmem:[#allocation4 + $0x12c] sm:$0x1]
        %v3105 = vld [vmem:[#allocation4 + $0x144] sm:$0x1]
        %v3106 = vld [vmem:[#allocation4 + $0x15c] sm:$0x1]
        %v3107 = vld [vmem:[#allocation4 + $0x174] sm:$0x1]
        %v3108 = vld [vmem:[#allocation4 + $0x18c] sm:$0x1]
        %v3109 = vld [vmem:[#allocation4 + $0x1a4] sm:$0x1]
        %3110 = vst.msk [vmem:[#allocation5 + $0x6] sm:$0x1] %vm2677, %v3092
        %3111 = vst.msk [vmem:[#allocation5 + $0x16] sm:$0x1] %vm2677, %v3093
        %3112 = vst.msk [vmem:[#allocation5 + $0x26] sm:$0x1] %vm2677, %v3094
        %3113 = vst.msk [vmem:[#allocation5 + $0x36] sm:$0x1] %vm2677, %v3095
        %3114 = vst.msk [vmem:[#allocation5 + $0x46] sm:$0x1] %vm2677, %v3096
        %3115 = vst.msk [vmem:[#allocation5 + $0x56] sm:$0x1] %vm2677, %v3097
        %3116 = vst.msk [vmem:[#allocation5 + $0x66] sm:$0x1] %vm2677, %v3098
        %3117 = vst.msk [vmem:[#allocation5 + $0x76] sm:$0x1] %vm2677, %v3099
        %3118 = vst.msk [vmem:[#allocation5 + $0x86] sm:$0x1] %vm2677, %v3100
        %3119 = vst.msk [vmem:[#allocation5 + $0x96] sm:$0x1] %vm2677, %v3101
        %3120 = vst.msk [vmem:[#allocation5 + $0xa6] sm:$0x1] %vm2677, %v3102
        %3121 = vst.msk [vmem:[#allocation5 + $0xb6] sm:$0x1] %vm2677, %v3103
        %3122 = vst.msk [vmem:[#allocation5 + $0xc6] sm:$0x1] %vm2677, %v3104
        %3123 = vst.msk [vmem:[#allocation5 + $0xd6] sm:$0x1] %vm2677, %v3105
        %3124 = vst.msk [vmem:[#allocation5 + $0xe6] sm:$0x1] %vm2677, %v3106
        %3125 = vst.msk [vmem:[#allocation5 + $0xf6] sm:$0x1] %vm2677, %v3107
        %3126 = vst.msk [vmem:[#allocation5 + $0x106] sm:$0x1] %vm2677, %v3108
        %3127 = vst.msk [vmem:[#allocation5 + $0x116] sm:$0x1] %vm2677, %v3109
        %v3128 = vld [vmem:[#allocation4 + $0xd] sm:$0x1]
        %v3129 = vld [vmem:[#allocation4 + $0x25] sm:$0x1]
        %v3130 = vld [vmem:[#allocation4 + $0x3d] sm:$0x1]
        %v3131 = vld [vmem:[#allocation4 + $0x55] sm:$0x1]
        %v3132 = vld [vmem:[#allocation4 + $0x6d] sm:$0x1]
        %v3133 = vld [vmem:[#allocation4 + $0x85] sm:$0x1]
        %v3134 = vld [vmem:[#allocation4 + $0x9d] sm:$0x1]
        %v3135 = vld [vmem:[#allocation4 + $0xb5] sm:$0x1]
        %v3136 = vld [vmem:[#allocation4 + $0xcd] sm:$0x1]
        %v3137 = vld [vmem:[#allocation4 + $0xe5] sm:$0x1]
        %v3138 = vld [vmem:[#allocation4 + $0xfd] sm:$0x1]
        %v3139 = vld [vmem:[#allocation4 + $0x115] sm:$0x1]
        %v3140 = vld [vmem:[#allocation4 + $0x12d] sm:$0x1]
        %v3141 = vld [vmem:[#allocation4 + $0x145] sm:$0x1]
        %v3142 = vld [vmem:[#allocation4 + $0x15d] sm:$0x1]
        %v3143 = vld [vmem:[#allocation4 + $0x175] sm:$0x1]
        %v3144 = vld [vmem:[#allocation4 + $0x18d] sm:$0x1]
        %v3145 = vld [vmem:[#allocation4 + $0x1a5] sm:$0x1]
        %3146 = vst.msk [vmem:[#allocation6 + $0x6] sm:$0x1] %vm2677, %v3128
        %3147 = vst.msk [vmem:[#allocation6 + $0x16] sm:$0x1] %vm2677, %v3129
        %3148 = vst.msk [vmem:[#allocation6 + $0x26] sm:$0x1] %vm2677, %v3130
        %3149 = vst.msk [vmem:[#allocation6 + $0x36] sm:$0x1] %vm2677, %v3131
        %3150 = vst.msk [vmem:[#allocation6 + $0x46] sm:$0x1] %vm2677, %v3132
        %3151 = vst.msk [vmem:[#allocation6 + $0x56] sm:$0x1] %vm2677, %v3133
        %3152 = vst.msk [vmem:[#allocation6 + $0x66] sm:$0x1] %vm2677, %v3134
        %3153 = vst.msk [vmem:[#allocation6 + $0x76] sm:$0x1] %vm2677, %v3135
        %3154 = vst.msk [vmem:[#allocation6 + $0x86] sm:$0x1] %vm2677, %v3136
        %3155 = vst.msk [vmem:[#allocation6 + $0x96] sm:$0x1] %vm2677, %v3137
        %3156 = vst.msk [vmem:[#allocation6 + $0xa6] sm:$0x1] %vm2677, %v3138
        %3157 = vst.msk [vmem:[#allocation6 + $0xb6] sm:$0x1] %vm2677, %v3139
        %3158 = vst.msk [vmem:[#allocation6 + $0xc6] sm:$0x1] %vm2677, %v3140
        %3159 = vst.msk [vmem:[#allocation6 + $0xd6] sm:$0x1] %vm2677, %v3141
        %3160 = vst.msk [vmem:[#allocation6 + $0xe6] sm:$0x1] %vm2677, %v3142
        %3161 = vst.msk [vmem:[#allocation6 + $0xf6] sm:$0x1] %vm2677, %v3143
        %3162 = vst.msk [vmem:[#allocation6 + $0x106] sm:$0x1] %vm2677, %v3144
        %3163 = vst.msk [vmem:[#allocation6 + $0x116] sm:$0x1] %vm2677, %v3145
        %v3164 = vld [vmem:[#allocation4 + $0xe] sm:$0x1]
        %v3165 = vld [vmem:[#allocation4 + $0x26] sm:$0x1]
        %v3166 = vld [vmem:[#allocation4 + $0x3e] sm:$0x1]
        %v3167 = vld [vmem:[#allocation4 + $0x56] sm:$0x1]
        %v3168 = vld [vmem:[#allocation4 + $0x6e] sm:$0x1]
        %v3169 = vld [vmem:[#allocation4 + $0x86] sm:$0x1]
        %v3170 = vld [vmem:[#allocation4 + $0x9e] sm:$0x1]
        %v3171 = vld [vmem:[#allocation4 + $0xb6] sm:$0x1]
        %v3172 = vld [vmem:[#allocation4 + $0xce] sm:$0x1]
        %v3173 = vld [vmem:[#allocation4 + $0xe6] sm:$0x1]
        %v3174 = vld [vmem:[#allocation4 + $0xfe] sm:$0x1]
        %v3175 = vld [vmem:[#allocation4 + $0x116] sm:$0x1]
        %v3176 = vld [vmem:[#allocation4 + $0x12e] sm:$0x1]
        %v3177 = vld [vmem:[#allocation4 + $0x146] sm:$0x1]
        %v3178 = vld [vmem:[#allocation4 + $0x15e] sm:$0x1]
        %v3179 = vld [vmem:[#allocation4 + $0x176] sm:$0x1]
        %v3180 = vld [vmem:[#allocation4 + $0x18e] sm:$0x1]
        %v3181 = vld [vmem:[#allocation4 + $0x1a6] sm:$0x1]
        %3182 = vst.msk [vmem:[#allocation5 + $0x7] sm:$0x1] %vm2677, %v3164
        %3183 = vst.msk [vmem:[#allocation5 + $0x17] sm:$0x1] %vm2677, %v3165
        %3184 = vst.msk [vmem:[#allocation5 + $0x27] sm:$0x1] %vm2677, %v3166
        %3185 = vst.msk [vmem:[#allocation5 + $0x37] sm:$0x1] %vm2677, %v3167
        %3186 = vst.msk [vmem:[#allocation5 + $0x47] sm:$0x1] %vm2677, %v3168
        %3187 = vst.msk [vmem:[#allocation5 + $0x57] sm:$0x1] %vm2677, %v3169
        %3188 = vst.msk [vmem:[#allocation5 + $0x67] sm:$0x1] %vm2677, %v3170
        %3189 = vst.msk [vmem:[#allocation5 + $0x77] sm:$0x1] %vm2677, %v3171
        %3190 = vst.msk [vmem:[#allocation5 + $0x87] sm:$0x1] %vm2677, %v3172
        %3191 = vst.msk [vmem:[#allocation5 + $0x97] sm:$0x1] %vm2677, %v3173
        %3192 = vst.msk [vmem:[#allocation5 + $0xa7] sm:$0x1] %vm2677, %v3174
        %3193 = vst.msk [vmem:[#allocation5 + $0xb7] sm:$0x1] %vm2677, %v3175
        %3194 = vst.msk [vmem:[#allocation5 + $0xc7] sm:$0x1] %vm2677, %v3176
        %3195 = vst.msk [vmem:[#allocation5 + $0xd7] sm:$0x1] %vm2677, %v3177
        %3196 = vst.msk [vmem:[#allocation5 + $0xe7] sm:$0x1] %vm2677, %v3178
        %3197 = vst.msk [vmem:[#allocation5 + $0xf7] sm:$0x1] %vm2677, %v3179
        %3198 = vst.msk [vmem:[#allocation5 + $0x107] sm:$0x1] %vm2677, %v3180
        %3199 = vst.msk [vmem:[#allocation5 + $0x117] sm:$0x1] %vm2677, %v3181
        %v3200 = vld [vmem:[#allocation4 + $0xf] sm:$0x1]
        %v3201 = vld [vmem:[#allocation4 + $0x27] sm:$0x1]
        %v3202 = vld [vmem:[#allocation4 + $0x3f] sm:$0x1]
        %v3203 = vld [vmem:[#allocation4 + $0x57] sm:$0x1]
        %v3204 = vld [vmem:[#allocation4 + $0x6f] sm:$0x1]
        %v3205 = vld [vmem:[#allocation4 + $0x87] sm:$0x1]
        %v3206 = vld [vmem:[#allocation4 + $0x9f] sm:$0x1]
        %v3207 = vld [vmem:[#allocation4 + $0xb7] sm:$0x1]
        %v3208 = vld [vmem:[#allocation4 + $0xcf] sm:$0x1]
        %v3209 = vld [vmem:[#allocation4 + $0xe7] sm:$0x1]
        %v3210 = vld [vmem:[#allocation4 + $0xff] sm:$0x1]
        %v3211 = vld [vmem:[#allocation4 + $0x117] sm:$0x1]
        %v3212 = vld [vmem:[#allocation4 + $0x12f] sm:$0x1]
        %v3213 = vld [vmem:[#allocation4 + $0x147] sm:$0x1]
        %v3214 = vld [vmem:[#allocation4 + $0x15f] sm:$0x1]
        %v3215 = vld [vmem:[#allocation4 + $0x177] sm:$0x1]
        %v3216 = vld [vmem:[#allocation4 + $0x18f] sm:$0x1]
        %v3217 = vld [vmem:[#allocation4 + $0x1a7] sm:$0x1]
        %3218 = vst.msk [vmem:[#allocation6 + $0x7] sm:$0x1] %vm2677, %v3200
        %3219 = vst.msk [vmem:[#allocation6 + $0x17] sm:$0x1] %vm2677, %v3201
        %3220 = vst.msk [vmem:[#allocation6 + $0x27] sm:$0x1] %vm2677, %v3202
        %3221 = vst.msk [vmem:[#allocation6 + $0x37] sm:$0x1] %vm2677, %v3203
        %3222 = vst.msk [vmem:[#allocation6 + $0x47] sm:$0x1] %vm2677, %v3204
        %3223 = vst.msk [vmem:[#allocation6 + $0x57] sm:$0x1] %vm2677, %v3205
        %3224 = vst.msk [vmem:[#allocation6 + $0x67] sm:$0x1] %vm2677, %v3206
        %3225 = vst.msk [vmem:[#allocation6 + $0x77] sm:$0x1] %vm2677, %v3207
        %3226 = vst.msk [vmem:[#allocation6 + $0x87] sm:$0x1] %vm2677, %v3208
        %3227 = vst.msk [vmem:[#allocation6 + $0x97] sm:$0x1] %vm2677, %v3209
        %3228 = vst.msk [vmem:[#allocation6 + $0xa7] sm:$0x1] %vm2677, %v3210
        %3229 = vst.msk [vmem:[#allocation6 + $0xb7] sm:$0x1] %vm2677, %v3211
        %3230 = vst.msk [vmem:[#allocation6 + $0xc7] sm:$0x1] %vm2677, %v3212
        %3231 = vst.msk [vmem:[#allocation6 + $0xd7] sm:$0x1] %vm2677, %v3213
        %3232 = vst.msk [vmem:[#allocation6 + $0xe7] sm:$0x1] %vm2677, %v3214
        %3233 = vst.msk [vmem:[#allocation6 + $0xf7] sm:$0x1] %vm2677, %v3215
        %3234 = vst.msk [vmem:[#allocation6 + $0x107] sm:$0x1] %vm2677, %v3216
        %3235 = vst.msk [vmem:[#allocation6 + $0x117] sm:$0x1] %vm2677, %v3217
        %v3236 = vld [vmem:[#allocation4 + $0x10] sm:$0x1]
        %v3237 = vld [vmem:[#allocation4 + $0x28] sm:$0x1]
        %v3238 = vld [vmem:[#allocation4 + $0x40] sm:$0x1]
        %v3239 = vld [vmem:[#allocation4 + $0x58] sm:$0x1]
        %v3240 = vld [vmem:[#allocation4 + $0x70] sm:$0x1]
        %v3241 = vld [vmem:[#allocation4 + $0x88] sm:$0x1]
        %v3242 = vld [vmem:[#allocation4 + $0xa0] sm:$0x1]
        %v3243 = vld [vmem:[#allocation4 + $0xb8] sm:$0x1]
        %v3244 = vld [vmem:[#allocation4 + $0xd0] sm:$0x1]
        %v3245 = vld [vmem:[#allocation4 + $0xe8] sm:$0x1]
        %v3246 = vld [vmem:[#allocation4 + $0x100] sm:$0x1]
        %v3247 = vld [vmem:[#allocation4 + $0x118] sm:$0x1]
        %v3248 = vld [vmem:[#allocation4 + $0x130] sm:$0x1]
        %v3249 = vld [vmem:[#allocation4 + $0x148] sm:$0x1]
        %v3250 = vld [vmem:[#allocation4 + $0x160] sm:$0x1]
        %v3251 = vld [vmem:[#allocation4 + $0x178] sm:$0x1]
        %v3252 = vld [vmem:[#allocation4 + $0x190] sm:$0x1]
        %v3253 = vld [vmem:[#allocation4 + $0x1a8] sm:$0x1]
        %3254 = vst.msk [vmem:[#allocation5 + $0x8] sm:$0x1] %vm2677, %v3236
        %3255 = vst.msk [vmem:[#allocation5 + $0x18] sm:$0x1] %vm2677, %v3237
        %3256 = vst.msk [vmem:[#allocation5 + $0x28] sm:$0x1] %vm2677, %v3238
        %3257 = vst.msk [vmem:[#allocation5 + $0x38] sm:$0x1] %vm2677, %v3239
        %3258 = vst.msk [vmem:[#allocation5 + $0x48] sm:$0x1] %vm2677, %v3240
        %3259 = vst.msk [vmem:[#allocation5 + $0x58] sm:$0x1] %vm2677, %v3241
        %3260 = vst.msk [vmem:[#allocation5 + $0x68] sm:$0x1] %vm2677, %v3242
        %3261 = vst.msk [vmem:[#allocation5 + $0x78] sm:$0x1] %vm2677, %v3243
        %3262 = vst.msk [vmem:[#allocation5 + $0x88] sm:$0x1] %vm2677, %v3244
        %3263 = vst.msk [vmem:[#allocation5 + $0x98] sm:$0x1] %vm2677, %v3245
        %3264 = vst.msk [vmem:[#allocation5 + $0xa8] sm:$0x1] %vm2677, %v3246
        %3265 = vst.msk [vmem:[#allocation5 + $0xb8] sm:$0x1] %vm2677, %v3247
        %3266 = vst.msk [vmem:[#allocation5 + $0xc8] sm:$0x1] %vm2677, %v3248
        %3267 = vst.msk [vmem:[#allocation5 + $0xd8] sm:$0x1] %vm2677, %v3249
        %3268 = vst.msk [vmem:[#allocation5 + $0xe8] sm:$0x1] %vm2677, %v3250
        %3269 = vst.msk [vmem:[#allocation5 + $0xf8] sm:$0x1] %vm2677, %v3251
        %3270 = vst.msk [vmem:[#allocation5 + $0x108] sm:$0x1] %vm2677, %v3252
        %3271 = vst.msk [vmem:[#allocation5 + $0x118] sm:$0x1] %vm2677, %v3253
        %v3272 = vld [vmem:[#allocation4 + $0x11] sm:$0x1]
        %v3273 = vld [vmem:[#allocation4 + $0x29] sm:$0x1]
        %v3274 = vld [vmem:[#allocation4 + $0x41] sm:$0x1]
        %v3275 = vld [vmem:[#allocation4 + $0x59] sm:$0x1]
        %v3276 = vld [vmem:[#allocation4 + $0x71] sm:$0x1]
        %v3277 = vld [vmem:[#allocation4 + $0x89] sm:$0x1]
        %v3278 = vld [vmem:[#allocation4 + $0xa1] sm:$0x1]
        %v3279 = vld [vmem:[#allocation4 + $0xb9] sm:$0x1]
        %v3280 = vld [vmem:[#allocation4 + $0xd1] sm:$0x1]
        %v3281 = vld [vmem:[#allocation4 + $0xe9] sm:$0x1]
        %v3282 = vld [vmem:[#allocation4 + $0x101] sm:$0x1]
        %v3283 = vld [vmem:[#allocation4 + $0x119] sm:$0x1]
        %v3284 = vld [vmem:[#allocation4 + $0x131] sm:$0x1]
        %v3285 = vld [vmem:[#allocation4 + $0x149] sm:$0x1]
        %v3286 = vld [vmem:[#allocation4 + $0x161] sm:$0x1]
        %v3287 = vld [vmem:[#allocation4 + $0x179] sm:$0x1]
        %v3288 = vld [vmem:[#allocation4 + $0x191] sm:$0x1]
        %v3289 = vld [vmem:[#allocation4 + $0x1a9] sm:$0x1]
        %3290 = vst.msk [vmem:[#allocation6 + $0x8] sm:$0x1] %vm2677, %v3272
        %3291 = vst.msk [vmem:[#allocation6 + $0x18] sm:$0x1] %vm2677, %v3273
        %3292 = vst.msk [vmem:[#allocation6 + $0x28] sm:$0x1] %vm2677, %v3274
        %3293 = vst.msk [vmem:[#allocation6 + $0x38] sm:$0x1] %vm2677, %v3275
        %3294 = vst.msk [vmem:[#allocation6 + $0x48] sm:$0x1] %vm2677, %v3276
        %3295 = vst.msk [vmem:[#allocation6 + $0x58] sm:$0x1] %vm2677, %v3277
        %3296 = vst.msk [vmem:[#allocation6 + $0x68] sm:$0x1] %vm2677, %v3278
        %3297 = vst.msk [vmem:[#allocation6 + $0x78] sm:$0x1] %vm2677, %v3279
        %3298 = vst.msk [vmem:[#allocation6 + $0x88] sm:$0x1] %vm2677, %v3280
        %3299 = vst.msk [vmem:[#allocation6 + $0x98] sm:$0x1] %vm2677, %v3281
        %3300 = vst.msk [vmem:[#allocation6 + $0xa8] sm:$0x1] %vm2677, %v3282
        %3301 = vst.msk [vmem:[#allocation6 + $0xb8] sm:$0x1] %vm2677, %v3283
        %3302 = vst.msk [vmem:[#allocation6 + $0xc8] sm:$0x1] %vm2677, %v3284
        %3303 = vst.msk [vmem:[#allocation6 + $0xd8] sm:$0x1] %vm2677, %v3285
        %3304 = vst.msk [vmem:[#allocation6 + $0xe8] sm:$0x1] %vm2677, %v3286
        %3305 = vst.msk [vmem:[#allocation6 + $0xf8] sm:$0x1] %vm2677, %v3287
        %3306 = vst.msk [vmem:[#allocation6 + $0x108] sm:$0x1] %vm2677, %v3288
        %3307 = vst.msk [vmem:[#allocation6 + $0x118] sm:$0x1] %vm2677, %v3289
        %v3308 = vld [vmem:[#allocation5] sm:$0xff]
        %v3309 = vld [vmem:[#allocation5 + $0x20] sm:$0xff]
        %v3310 = vld [vmem:[#allocation5 + $0x40] sm:$0xff]
        %v3311 = vld [vmem:[#allocation5 + $0x60] sm:$0xff]
        %v3312 = vld [vmem:[#allocation5 + $0x80] sm:$0xff]
        %v3313 = vld [vmem:[#allocation5 + $0xa0] sm:$0xff]
        %v3314 = vld [vmem:[#allocation5 + $0xc0] sm:$0xff]
        %v3315 = vld [vmem:[#allocation5 + $0xe0] sm:$0xff]
        %3316 = vst.msk [vmem:[#allocation7] sm:$0xff] %vm2570, %v3308
        %3317 = vst.msk [vmem:[#allocation7 + $0x10] sm:$0xff] %vm2570, %v3309
        %3318 = vst.msk [vmem:[#allocation7 + $0x20] sm:$0xff] %vm2570, %v3310
        %3319 = vst.msk [vmem:[#allocation7 + $0x30] sm:$0xff] %vm2570, %v3311
        %3320 = vst.msk [vmem:[#allocation7 + $0x40] sm:$0xff] %vm2570, %v3312
        %3321 = vst.msk [vmem:[#allocation7 + $0x50] sm:$0xff] %vm2570, %v3313
        %3322 = vst.msk [vmem:[#allocation7 + $0x60] sm:$0xff] %vm2570, %v3314
        %3323 = vst.msk [vmem:[#allocation7 + $0x70] sm:$0xff] %vm2570, %v3315
        %v3324 = vld [vmem:[#allocation6] sm:$0xff]
        %v3325 = vld [vmem:[#allocation6 + $0x20] sm:$0xff]
        %v3326 = vld [vmem:[#allocation6 + $0x40] sm:$0xff]
        %v3327 = vld [vmem:[#allocation6 + $0x60] sm:$0xff]
        %v3328 = vld [vmem:[#allocation6 + $0x80] sm:$0xff]
        %v3329 = vld [vmem:[#allocation6 + $0xa0] sm:$0xff]
        %v3330 = vld [vmem:[#allocation6 + $0xc0] sm:$0xff]
        %v3331 = vld [vmem:[#allocation6 + $0xe0] sm:$0xff]
        %3340 = vrot.lane.b32.xlu0 %v3324, 16
        %v3341 = vpop.permute.xlu0 %3340
        %3342 = vrot.lane.b32.xlu0 %v3325, 16
        %v3343 = vpop.permute.xlu0 %3342
        %3344 = vrot.lane.b32.xlu0 %v3326, 16
        %v3345 = vpop.permute.xlu0 %3344
        %3346 = vrot.lane.b32.xlu0 %v3327, 16
        %v3347 = vpop.permute.xlu0 %3346
        %3348 = vrot.lane.b32.xlu0 %v3328, 16
        %v3349 = vpop.permute.xlu0 %3348
        %3350 = vrot.lane.b32.xlu0 %v3329, 16
        %v3351 = vpop.permute.xlu0 %3350
        %3352 = vrot.lane.b32.xlu0 %v3330, 16
        %v3353 = vpop.permute.xlu0 %3352
        %3354 = vrot.lane.b32.xlu0 %v3331, 16
        %v3355 = vpop.permute.xlu0 %3354
        %vm3364 = vcmask 261248
        %3365 = vst.msk [vmem:[#allocation7] sm:$0xff] %vm3364, %v3341
        %3366 = vst.msk [vmem:[#allocation7 + $0x10] sm:$0xff] %vm3364, %v3343
        %3367 = vst.msk [vmem:[#allocation7 + $0x20] sm:$0xff] %vm3364, %v3345
        %3368 = vst.msk [vmem:[#allocation7 + $0x30] sm:$0xff] %vm3364, %v3347
        %3369 = vst.msk [vmem:[#allocation7 + $0x40] sm:$0xff] %vm3364, %v3349
        %3370 = vst.msk [vmem:[#allocation7 + $0x50] sm:$0xff] %vm3364, %v3351
        %3371 = vst.msk [vmem:[#allocation7 + $0x60] sm:$0xff] %vm3364, %v3353
        %3372 = vst.msk [vmem:[#allocation7 + $0x70] sm:$0xff] %vm3364, %v3355
        %v3373 = vld [vmem:[#allocation5 + $0x1] sm:$0xff]
        %v3374 = vld [vmem:[#allocation5 + $0x21] sm:$0xff]
        %v3375 = vld [vmem:[#allocation5 + $0x41] sm:$0xff]
        %v3376 = vld [vmem:[#allocation5 + $0x61] sm:$0xff]
        %v3377 = vld [vmem:[#allocation5 + $0x81] sm:$0xff]
        %v3378 = vld [vmem:[#allocation5 + $0xa1] sm:$0xff]
        %v3379 = vld [vmem:[#allocation5 + $0xc1] sm:$0xff]
        %v3380 = vld [vmem:[#allocation5 + $0xe1] sm:$0xff]
        %3389 = vrot.lane.b32.xlu0 %v3373, 32
        %v3390 = vpop.permute.xlu0 %3389
        %3391 = vrot.lane.b32.xlu0 %v3374, 32
        %v3392 = vpop.permute.xlu0 %3391
        %3393 = vrot.lane.b32.xlu0 %v3375, 32
        %v3394 = vpop.permute.xlu0 %3393
        %3395 = vrot.lane.b32.xlu0 %v3376, 32
        %v3396 = vpop.permute.xlu0 %3395
        %3397 = vrot.lane.b32.xlu0 %v3377, 32
        %v3398 = vpop.permute.xlu0 %3397
        %3399 = vrot.lane.b32.xlu0 %v3378, 32
        %v3400 = vpop.permute.xlu0 %3399
        %3401 = vrot.lane.b32.xlu0 %v3379, 32
        %v3402 = vpop.permute.xlu0 %3401
        %3403 = vrot.lane.b32.xlu0 %v3380, 32
        %v3404 = vpop.permute.xlu0 %3403
        %vm3413 = vcmask 392448
        %3414 = vst.msk [vmem:[#allocation7] sm:$0xff] %vm3413, %v3390
        %3415 = vst.msk [vmem:[#allocation7 + $0x10] sm:$0xff] %vm3413, %v3392
        %3416 = vst.msk [vmem:[#allocation7 + $0x20] sm:$0xff] %vm3413, %v3394
        %3417 = vst.msk [vmem:[#allocation7 + $0x30] sm:$0xff] %vm3413, %v3396
        %3418 = vst.msk [vmem:[#allocation7 + $0x40] sm:$0xff] %vm3413, %v3398
        %3419 = vst.msk [vmem:[#allocation7 + $0x50] sm:$0xff] %vm3413, %v3400
        %3420 = vst.msk [vmem:[#allocation7 + $0x60] sm:$0xff] %vm3413, %v3402
        %3421 = vst.msk [vmem:[#allocation7 + $0x70] sm:$0xff] %vm3413, %v3404
        %s3422 = scalar_lea.vmem [#allocation5], 16
        %v3423 = vld [vmem:[%s3422] sm:$0xff]
        %v3424 = vld [vmem:[%s3422 + $0x20] sm:$0xff]
        %v3425 = vld [vmem:[%s3422 + $0x40] sm:$0xff]
        %v3426 = vld [vmem:[%s3422 + $0x60] sm:$0xff]
        %v3427 = vld [vmem:[%s3422 + $0x80] sm:$0xff]
        %v3428 = vld [vmem:[%s3422 + $0xa0] sm:$0xff]
        %v3429 = vld [vmem:[%s3422 + $0xc0] sm:$0xff]
        %v3430 = vld [vmem:[%s3422 + $0xe0] sm:$0xff]
        %3439 = vrot.lane.b32.xlu0 %v3423, 48
        %v3440 = vpop.permute.xlu0 %3439
        %3441 = vrot.lane.b32.xlu0 %v3424, 48
        %v3442 = vpop.permute.xlu0 %3441
        %3443 = vrot.lane.b32.xlu0 %v3425, 48
        %v3444 = vpop.permute.xlu0 %3443
        %3445 = vrot.lane.b32.xlu0 %v3426, 48
        %v3446 = vpop.permute.xlu0 %3445
        %3447 = vrot.lane.b32.xlu0 %v3427, 48
        %v3448 = vpop.permute.xlu0 %3447
        %3449 = vrot.lane.b32.xlu0 %v3428, 48
        %v3450 = vpop.permute.xlu0 %3449
        %3451 = vrot.lane.b32.xlu0 %v3429, 48
        %v3452 = vpop.permute.xlu0 %3451
        %3453 = vrot.lane.b32.xlu0 %v3430, 48
        %v3454 = vpop.permute.xlu0 %3453
        %vm3463 = vcmask 523648
        %3464 = vst.msk [vmem:[#allocation7] sm:$0xff] %vm3463, %v3440
        %3465 = vst.msk [vmem:[#allocation7 + $0x10] sm:$0xff] %vm3463, %v3442
        %3466 = vst.msk [vmem:[#allocation7 + $0x20] sm:$0xff] %vm3463, %v3444
        %3467 = vst.msk [vmem:[#allocation7 + $0x30] sm:$0xff] %vm3463, %v3446
        %3468 = vst.msk [vmem:[#allocation7 + $0x40] sm:$0xff] %vm3463, %v3448
        %3469 = vst.msk [vmem:[#allocation7 + $0x50] sm:$0xff] %vm3463, %v3450
        %3470 = vst.msk [vmem:[#allocation7 + $0x60] sm:$0xff] %vm3463, %v3452
        %3471 = vst.msk [vmem:[#allocation7 + $0x70] sm:$0xff] %vm3463, %v3454
        %s3472 = scalar_lea.vmem [#allocation6], 16
        %v3473 = vld [vmem:[%s3472] sm:$0xff]
        %v3474 = vld [vmem:[%s3472 + $0x20] sm:$0xff]
        %v3475 = vld [vmem:[%s3472 + $0x40] sm:$0xff]
        %v3476 = vld [vmem:[%s3472 + $0x60] sm:$0xff]
        %v3477 = vld [vmem:[%s3472 + $0x80] sm:$0xff]
        %v3478 = vld [vmem:[%s3472 + $0xa0] sm:$0xff]
        %v3479 = vld [vmem:[%s3472 + $0xc0] sm:$0xff]
        %v3480 = vld [vmem:[%s3472 + $0xe0] sm:$0xff]
        %3489 = vrot.lane.b32.xlu0 %v3473, 64
        %v3490 = vpop.permute.xlu0 %3489
        %3491 = vrot.lane.b32.xlu0 %v3474, 64
        %v3492 = vpop.permute.xlu0 %3491
        %3493 = vrot.lane.b32.xlu0 %v3475, 64
        %v3494 = vpop.permute.xlu0 %3493
        %3495 = vrot.lane.b32.xlu0 %v3476, 64
        %v3496 = vpop.permute.xlu0 %3495
        %3497 = vrot.lane.b32.xlu0 %v3477, 64
        %v3498 = vpop.permute.xlu0 %3497
        %3499 = vrot.lane.b32.xlu0 %v3478, 64
        %v3500 = vpop.permute.xlu0 %3499
        %3501 = vrot.lane.b32.xlu0 %v3479, 64
        %v3502 = vpop.permute.xlu0 %3501
        %3503 = vrot.lane.b32.xlu0 %v3480, 64
        %v3504 = vpop.permute.xlu0 %3503
        %vm3513 = vcmask 654848
        %3514 = vst.msk [vmem:[#allocation7] sm:$0xff] %vm3513, %v3490
        %3515 = vst.msk [vmem:[#allocation7 + $0x10] sm:$0xff] %vm3513, %v3492
        %3516 = vst.msk [vmem:[#allocation7 + $0x20] sm:$0xff] %vm3513, %v3494
        %3517 = vst.msk [vmem:[#allocation7 + $0x30] sm:$0xff] %vm3513, %v3496
        %3518 = vst.msk [vmem:[#allocation7 + $0x40] sm:$0xff] %vm3513, %v3498
        %3519 = vst.msk [vmem:[#allocation7 + $0x50] sm:$0xff] %vm3513, %v3500
        %3520 = vst.msk [vmem:[#allocation7 + $0x60] sm:$0xff] %vm3513, %v3502
        %3521 = vst.msk [vmem:[#allocation7 + $0x70] sm:$0xff] %vm3513, %v3504
        %v3522 = vld [vmem:[%s3422 + $0x1] sm:$0xff]
        %v3523 = vld [vmem:[%s3422 + $0x21] sm:$0xff]
        %v3524 = vld [vmem:[%s3422 + $0x41] sm:$0xff]
        %v3525 = vld [vmem:[%s3422 + $0x61] sm:$0xff]
        %v3526 = vld [vmem:[%s3422 + $0x81] sm:$0xff]
        %v3527 = vld [vmem:[%s3422 + $0xa1] sm:$0xff]
        %v3528 = vld [vmem:[%s3422 + $0xc1] sm:$0xff]
        %v3529 = vld [vmem:[%s3422 + $0xe1] sm:$0xff]
        %3538 = vrot.lane.b32.xlu0 %v3522, 80
        %v3539 = vpop.permute.xlu0 %3538
        %3540 = vrot.lane.b32.xlu0 %v3523, 80
        %v3541 = vpop.permute.xlu0 %3540
        %3542 = vrot.lane.b32.xlu0 %v3524, 80
        %v3543 = vpop.permute.xlu0 %3542
        %3544 = vrot.lane.b32.xlu0 %v3525, 80
        %v3545 = vpop.permute.xlu0 %3544
        %3546 = vrot.lane.b32.xlu0 %v3526, 80
        %v3547 = vpop.permute.xlu0 %3546
        %3548 = vrot.lane.b32.xlu0 %v3527, 80
        %v3549 = vpop.permute.xlu0 %3548
        %3550 = vrot.lane.b32.xlu0 %v3528, 80
        %v3551 = vpop.permute.xlu0 %3550
        %3552 = vrot.lane.b32.xlu0 %v3529, 80
        %v3553 = vpop.permute.xlu0 %3552
        %vm3562 = vcmask 786048
        %3563 = vst.msk [vmem:[#allocation7] sm:$0xff] %vm3562, %v3539
        %3564 = vst.msk [vmem:[#allocation7 + $0x10] sm:$0xff] %vm3562, %v3541
        %3565 = vst.msk [vmem:[#allocation7 + $0x20] sm:$0xff] %vm3562, %v3543
        %3566 = vst.msk [vmem:[#allocation7 + $0x30] sm:$0xff] %vm3562, %v3545
        %3567 = vst.msk [vmem:[#allocation7 + $0x40] sm:$0xff] %vm3562, %v3547
        %3568 = vst.msk [vmem:[#allocation7 + $0x50] sm:$0xff] %vm3562, %v3549
        %3569 = vst.msk [vmem:[#allocation7 + $0x60] sm:$0xff] %vm3562, %v3551
        %3570 = vst.msk [vmem:[#allocation7 + $0x70] sm:$0xff] %vm3562, %v3553
        %s3571 = scalar_lea.vmem [#allocation5], 32
        %v3572 = vld [vmem:[%s3571] sm:$0xff]
        %v3573 = vld [vmem:[%s3571 + $0x20] sm:$0xff]
        %v3574 = vld [vmem:[%s3571 + $0x40] sm:$0xff]
        %v3575 = vld [vmem:[%s3571 + $0x60] sm:$0xff]
        %v3576 = vld [vmem:[%s3571 + $0x80] sm:$0xff]
        %v3577 = vld [vmem:[%s3571 + $0xa0] sm:$0xff]
        %v3578 = vld [vmem:[%s3571 + $0xc0] sm:$0xff]
        %v3579 = vld [vmem:[%s3571 + $0xe0] sm:$0xff]
        %3588 = vrot.lane.b32.xlu0 %v3572, 96
        %v3589 = vpop.permute.xlu0 %3588
        %3590 = vrot.lane.b32.xlu0 %v3573, 96
        %v3591 = vpop.permute.xlu0 %3590
        %3592 = vrot.lane.b32.xlu0 %v3574, 96
        %v3593 = vpop.permute.xlu0 %3592
        %3594 = vrot.lane.b32.xlu0 %v3575, 96
        %v3595 = vpop.permute.xlu0 %3594
        %3596 = vrot.lane.b32.xlu0 %v3576, 96
        %v3597 = vpop.permute.xlu0 %3596
        %3598 = vrot.lane.b32.xlu0 %v3577, 96
        %v3599 = vpop.permute.xlu0 %3598
        %3600 = vrot.lane.b32.xlu0 %v3578, 96
        %v3601 = vpop.permute.xlu0 %3600
        %3602 = vrot.lane.b32.xlu0 %v3579, 96
        %v3603 = vpop.permute.xlu0 %3602
        %vm3612 = vcmask 917248
        %3613 = vst.msk [vmem:[#allocation7] sm:$0xff] %vm3612, %v3589
        %3614 = vst.msk [vmem:[#allocation7 + $0x10] sm:$0xff] %vm3612, %v3591
        %3615 = vst.msk [vmem:[#allocation7 + $0x20] sm:$0xff] %vm3612, %v3593
        %3616 = vst.msk [vmem:[#allocation7 + $0x30] sm:$0xff] %vm3612, %v3595
        %3617 = vst.msk [vmem:[#allocation7 + $0x40] sm:$0xff] %vm3612, %v3597
        %3618 = vst.msk [vmem:[#allocation7 + $0x50] sm:$0xff] %vm3612, %v3599
        %3619 = vst.msk [vmem:[#allocation7 + $0x60] sm:$0xff] %vm3612, %v3601
        %3620 = vst.msk [vmem:[#allocation7 + $0x70] sm:$0xff] %vm3612, %v3603
        %s3621 = scalar_lea.vmem [#allocation6], 32
        %v3622 = vld [vmem:[%s3621] sm:$0xff]
        %v3623 = vld [vmem:[%s3621 + $0x20] sm:$0xff]
        %v3624 = vld [vmem:[%s3621 + $0x40] sm:$0xff]
        %v3625 = vld [vmem:[%s3621 + $0x60] sm:$0xff]
        %v3626 = vld [vmem:[%s3621 + $0x80] sm:$0xff]
        %v3627 = vld [vmem:[%s3621 + $0xa0] sm:$0xff]
        %v3628 = vld [vmem:[%s3621 + $0xc0] sm:$0xff]
        %v3629 = vld [vmem:[%s3621 + $0xe0] sm:$0xff]
        %3638 = vrot.lane.b32.xlu0 %v3622, 112
        %v3639 = vpop.permute.xlu0 %3638
        %3640 = vrot.lane.b32.xlu0 %v3623, 112
        %v3641 = vpop.permute.xlu0 %3640
        %3642 = vrot.lane.b32.xlu0 %v3624, 112
        %v3643 = vpop.permute.xlu0 %3642
        %3644 = vrot.lane.b32.xlu0 %v3625, 112
        %v3645 = vpop.permute.xlu0 %3644
        %3646 = vrot.lane.b32.xlu0 %v3626, 112
        %v3647 = vpop.permute.xlu0 %3646
        %3648 = vrot.lane.b32.xlu0 %v3627, 112
        %v3649 = vpop.permute.xlu0 %3648
        %3650 = vrot.lane.b32.xlu0 %v3628, 112
        %v3651 = vpop.permute.xlu0 %3650
        %3652 = vrot.lane.b32.xlu0 %v3629, 112
        %v3653 = vpop.permute.xlu0 %3652
        %vm3662 = vcmask 1048448
        %3663 = vst.msk [vmem:[#allocation7] sm:$0xff] %vm3662, %v3639
        %3664 = vst.msk [vmem:[#allocation7 + $0x10] sm:$0xff] %vm3662, %v3641
        %3665 = vst.msk [vmem:[#allocation7 + $0x20] sm:$0xff] %vm3662, %v3643
        %3666 = vst.msk [vmem:[#allocation7 + $0x30] sm:$0xff] %vm3662, %v3645
        %3667 = vst.msk [vmem:[#allocation7 + $0x40] sm:$0xff] %vm3662, %v3647
        %3668 = vst.msk [vmem:[#allocation7 + $0x50] sm:$0xff] %vm3662, %v3649
        %3669 = vst.msk [vmem:[#allocation7 + $0x60] sm:$0xff] %vm3662, %v3651
        %3670 = vst.msk [vmem:[#allocation7 + $0x70] sm:$0xff] %vm3662, %v3653
        %v3671 = vld [vmem:[%s3571 + $0x1] sm:$0xff]
        %v3672 = vld [vmem:[%s3571 + $0x21] sm:$0xff]
        %v3673 = vld [vmem:[%s3571 + $0x41] sm:$0xff]
        %v3674 = vld [vmem:[%s3571 + $0x61] sm:$0xff]
        %v3675 = vld [vmem:[%s3571 + $0x81] sm:$0xff]
        %v3676 = vld [vmem:[%s3571 + $0xa1] sm:$0xff]
        %v3677 = vld [vmem:[%s3571 + $0xc1] sm:$0xff]
        %v3678 = vld [vmem:[%s3571 + $0xe1] sm:$0xff]
        %3679 = vst.msk [vmem:[#allocation7 + $0x8] sm:$0xff] %vm2570, %v3671
        %3680 = vst.msk [vmem:[#allocation7 + $0x18] sm:$0xff] %vm2570, %v3672
        %3681 = vst.msk [vmem:[#allocation7 + $0x28] sm:$0xff] %vm2570, %v3673
        %3682 = vst.msk [vmem:[#allocation7 + $0x38] sm:$0xff] %vm2570, %v3674
        %3683 = vst.msk [vmem:[#allocation7 + $0x48] sm:$0xff] %vm2570, %v3675
        %3684 = vst.msk [vmem:[#allocation7 + $0x58] sm:$0xff] %vm2570, %v3676
        %3685 = vst.msk [vmem:[#allocation7 + $0x68] sm:$0xff] %vm2570, %v3677
        %3686 = vst.msk [vmem:[#allocation7 + $0x78] sm:$0xff] %vm2570, %v3678
        %v3687 = vld [vmem:[#allocation7] sm:$0xff]
        %v3688 = vld [vmem:[#allocation7 + $0x8] sm:$0xff]
        %v3689 = vld [vmem:[#allocation7 + $0x10] sm:$0xff]
        %v3690 = vld [vmem:[#allocation7 + $0x18] sm:$0xff]
        %v3691 = vld [vmem:[#allocation7 + $0x20] sm:$0xff]
        %v3692 = vld [vmem:[#allocation7 + $0x28] sm:$0xff]
        %v3693 = vld [vmem:[#allocation7 + $0x30] sm:$0xff]
        %v3694 = vld [vmem:[#allocation7 + $0x38] sm:$0xff]
        %v3695 = vld [vmem:[#allocation7 + $0x40] sm:$0xff]
        %v3696 = vld [vmem:[#allocation7 + $0x48] sm:$0xff]
        %v3697 = vld [vmem:[#allocation7 + $0x50] sm:$0xff]
        %v3698 = vld [vmem:[#allocation7 + $0x58] sm:$0xff]
        %v3699 = vld [vmem:[#allocation7 + $0x60] sm:$0xff]
        %v3700 = vld [vmem:[#allocation7 + $0x68] sm:$0xff]
        %v3701 = vld [vmem:[#allocation7 + $0x70] sm:$0xff]
        %v3702 = vld [vmem:[#allocation7 + $0x78] sm:$0xff]
        %v3703 = vpack.c.bf16 %v3689, %v3687
        %v3704 = vpack.c.bf16 %v3690, %v3688
        %v3705 = vpack.c.bf16 %v3693, %v3691
        %v3706 = vpack.c.bf16 %v3694, %v3692
        %v3707 = vpack.c.bf16 %v3697, %v3695
        %v3708 = vpack.c.bf16 %v3698, %v3696
        %v3709 = vpack.c.bf16 %v3701, %v3699
        %v3710 = vpack.c.bf16 %v3702, %v3700
        %v3711 = vld [vmem:[%s3] sm:$0xf]
        %v3712 = vld [vmem:[%s3 + $0x4] sm:$0xf]
        %v3713 = vld [vmem:[%s3 + $0x8] sm:$0xf]
        %v3714 = vld [vmem:[%s3 + $0xc] sm:$0xf]
        %v3715 = vld [vmem:[%s3 + $0x10] sm:$0xf]
        %v3716 = vld [vmem:[%s3 + $0x14] sm:$0xf]
        %v3717 = vld [vmem:[%s3 + $0x18] sm:$0xf]
        %v3718 = vld [vmem:[%s3 + $0x1c] sm:$0xf]
        %v3719 = vld [vmem:[%s3 + $0x20] sm:$0xf]
        %v3720 = vld [vmem:[%s3 + $0x24] sm:$0xf]
        %v3721 = vld [vmem:[%s3 + $0x28] sm:$0xf]
        %v3722 = vld [vmem:[%s3 + $0x2c] sm:$0xf]
        %v3723 = vld [vmem:[%s3 + $0x30] sm:$0xf]
        %v3724 = vld [vmem:[%s3 + $0x34] sm:$0xf]
        %v3725 = vld [vmem:[%s3 + $0x38] sm:$0xf]
        %v3726 = vld [vmem:[%s3 + $0x3c] sm:$0xf]
        %v3727 = vld [vmem:[%s3 + $0x40] sm:$0xf]
        %v3728 = vld [vmem:[%s3 + $0x44] sm:$0xf]
        %v3747 = vunpack.c.l.b16 %v3711
        %v3748 = vunpack.c.l.b16 %v3712
        %v3749 = vunpack.c.l.b16 %v3713
        %v3750 = vunpack.c.l.b16 %v3714
        %v3751 = vunpack.c.l.b16 %v3715
        %v3752 = vunpack.c.l.b16 %v3716
        %v3753 = vunpack.c.l.b16 %v3717
        %v3754 = vunpack.c.l.b16 %v3718
        %v3755 = vunpack.c.l.b16 %v3719
        %v3756 = vunpack.c.l.b16 %v3720
        %v3757 = vunpack.c.l.b16 %v3721
        %v3758 = vunpack.c.l.b16 %v3722
        %v3759 = vunpack.c.l.b16 %v3723
        %v3760 = vunpack.c.l.b16 %v3724
        %v3761 = vunpack.c.l.b16 %v3725
        %v3762 = vunpack.c.l.b16 %v3726
        %v3763 = vunpack.c.l.b16 %v3727
        %v3764 = vunpack.c.l.b16 %v3728
        %v3765 = vpack.c.b16 %v3748, %v3747
        %v3766 = vpack.c.b16 %v3750, %v3749
        %v3767 = vpack.c.b16 %v3752, %v3751
        %v3768 = vpack.c.b16 %v3754, %v3753
        %v3769 = vpack.c.b16 %v3756, %v3755
        %v3770 = vpack.c.b16 %v3758, %v3757
        %v3771 = vpack.c.b16 %v3760, %v3759
        %v3772 = vpack.c.b16 %v3762, %v3761
        %v3773 = vpack.c.b16 %v3764, %v3763
        %v3784 = vsel %vm2570, %v3704, 0
        %v3787 = vsel %vm2570, %v3706, 0
        %v3790 = vsel %vm2570, %v3708, 0
        %v3793 = vsel %vm2570, %v3710, 0
        %3795 = vmatprep.subr.bf16.mxu0 0
        %3796 = vmatpush1.bf16.msra.mxu0 %v3765
        %3797 = vmatprep.subr.bf16.mxu0 0
        %3798 = vmatpush1.bf16.msra.mxu0 %v3766
        %3799 = vmatprep.subr.bf16.mxu0 0
        %3800 = vmatpush1.bf16.msra.mxu0 %v3767
        %3801 = vmatprep.subr.bf16.mxu0 0
        %3802 = vmatpush1.bf16.msra.mxu0 %v3768
        %3803 = vmatprep.subr.bf16.mxu0 0
        %3804 = vmatpush1.bf16.msra.mxu0 %v3769
        %3805 = vmatprep.subr.bf16.mxu0 0
        %3806 = vmatpush1.bf16.msra.mxu0 %v3770
        %3807 = vmatprep.subr.bf16.mxu0 0
        %3808 = vmatpush1.bf16.msra.mxu0 %v3771
        %3809 = vmatprep.subr.bf16.mxu0 0
        %3810 = vmatpush1.bf16.msra.mxu0 %v3772
        %3811 = vmatprep.subr.bf16.mxu0 0
        %3812 = vmatpush1.bf16.msra.mxu0 %v3773
        %3813 = vmatprep.subr.bf16.mxu0 0
        %3814 = vmatpush1.bf16.msra.mxu0 0
        %3815 = vmatprep.subr.bf16.mxu0 0
        %3816 = vmatpush1.bf16.msra.mxu0 0
        %3817 = vmatprep.subr.bf16.mxu0 0
        %3818 = vmatpush1.bf16.msra.mxu0 0
        %3819 = vmatprep.subr.bf16.mxu0 0
        %3820 = vmatpush1.bf16.msra.mxu0 0
        %3821 = vmatprep.subr.bf16.mxu0 0
        %3822 = vmatpush1.bf16.msra.mxu0 0
        %3823 = vmatprep.subr.bf16.mxu0 0
        %3824 = vmatpush1.bf16.msra.mxu0 0
        %3825 = vmatprep.subr.bf16.mxu0 0
        %3826 = vmatpush1.bf16.msra.mxu0 0
        %3827 = vmatprep.mubr.bf16.mxu0 %v3784
        %3828 = vmatmul.mubr.bf16.gmra.mrb[0].mxu0 %v3703
        %v3829 = vpop.f32.mrb[0].mxu0
        %v3830 = vadd.f32 0.0, %v3829
        %v3831 = vpop.f32.mrb[0].mxu0
        %v3832 = vpop.f32.mrb[0].mxu0
        %v3833 = vadd.f32 0.0, %v3832
        %v3834 = vpop.f32.mrb[0].mxu0
        %3835 = vmatprep.mubr.bf16.mxu0 %v3787
        %3836 = vmatmul.mubr.bf16.gmra.mrb[0].mxu0 %v3705
        %v3837 = vpop.f32.mrb[0].mxu0
        %v3838 = vadd.f32 0.0, %v3837
        %v3839 = vpop.f32.mrb[0].mxu0
        %v3840 = vpop.f32.mrb[0].mxu0
        %v3841 = vadd.f32 0.0, %v3840
        %v3842 = vpop.f32.mrb[0].mxu0
        %3843 = vmatprep.mubr.bf16.mxu0 %v3790
        %3844 = vmatmul.mubr.bf16.gmra.mrb[0].mxu0 %v3707
        %v3845 = vpop.f32.mrb[0].mxu0
        %v3846 = vadd.f32 0.0, %v3845
        %v3847 = vpop.f32.mrb[0].mxu0
        %v3848 = vpop.f32.mrb[0].mxu0
        %v3849 = vadd.f32 0.0, %v3848
        %v3850 = vpop.f32.mrb[0].mxu0
        %3851 = vmatprep.mubr.bf16.mxu0 %v3793
        %3852 = vmatmul.mubr.bf16.gmra.mrb[0].mxu0 %v3709
        %v3853 = vpop.f32.mrb[0].mxu0
        %v3854 = vadd.f32 0.0, %v3853
        %v3855 = vpop.f32.mrb[0].mxu0
        %v3856 = vpop.f32.mrb[0].mxu0
        %v3857 = vadd.f32 0.0, %v3856
        %v3858 = vpop.f32.mrb[0].mxu0
        %3859 = vdwg.mxu0
        %v3860 = vld [vmem:[%s4] sm:$0x1]
        %v3861 = vlaneseq
        %v3862 = vshrl.u32 %v3861, 7
        %v3863 = vsub.s32 0, %v3862
        %v3864 = vrot.slane %v3860, %v3863
        %v3865 = vmul.f32 %v3830, %v3864
        %v3866 = vmul.f32 %v3833, %v3864
        %v3867 = vmul.f32 %v3838, %v3864
        %v3868 = vmul.f32 %v3841, %v3864
        %v3869 = vmul.f32 %v3846, %v3864
        %v3870 = vmul.f32 %v3849, %v3864
        %v3871 = vmul.f32 %v3854, %v3864
        %v3872 = vmul.f32 %v3857, %v3864
        %v3873 = vld [vmem:[%s4 + $0x1] sm:$0x1]
        %v3874 = vlaneseq
        %v3875 = vshrl.u32 %v3874, 7
        %v3876 = vsub.s32 0, %v3875
        %v3877 = vrot.slane %v3873, %v3876
        %v3878 = vadd.f32 %v3865, %v3877
        %v3879 = vadd.f32 %v3866, %v3877
        %v3880 = vadd.f32 %v3867, %v3877
        %v3881 = vadd.f32 %v3868, %v3877
        %v3882 = vadd.f32 %v3869, %v3877
        %v3883 = vadd.f32 %v3870, %v3877
        %v3884 = vadd.f32 %v3871, %v3877
        %v3885 = vadd.f32 %v3872, %v3877
        %vm3886 = vcmp.gt.f32.partialorder %v3878, 0.0
        %vm3887 = vcmp.gt.f32.partialorder %v3879, 0.0
        %vm3888 = vcmp.gt.f32.partialorder %v3880, 0.0
        %vm3889 = vcmp.gt.f32.partialorder %v3881, 0.0
        %vm3890 = vcmp.gt.f32.partialorder %v3882, 0.0
        %vm3891 = vcmp.gt.f32.partialorder %v3883, 0.0
        %vm3892 = vcmp.gt.f32.partialorder %v3884, 0.0
        %vm3893 = vcmp.gt.f32.partialorder %v3885, 0.0
        %v3894 = vld [vmem:[%s4 + $0x2] sm:$0x1]
        %v3895 = vlaneseq
        %v3896 = vshrl.u32 %v3895, 7
        %v3897 = vsub.s32 0, %v3896
        %v3898 = vrot.slane %v3894, %v3897
        %v3899 = vmul.f32 %v3878, %v3898
        %v3900 = vmul.f32 %v3879, %v3898
        %v3901 = vmul.f32 %v3880, %v3898
        %v3902 = vmul.f32 %v3881, %v3898
        %v3903 = vmul.f32 %v3882, %v3898
        %v3904 = vmul.f32 %v3883, %v3898
        %v3905 = vmul.f32 %v3884, %v3898
        %v3906 = vmul.f32 %v3885, %v3898
        %v3907 = vsel %vm3886, %v3878, %v3899
        %v3908 = vsel %vm3887, %v3879, %v3900
        %v3909 = vsel %vm3888, %v3880, %v3901
        %v3910 = vsel %vm3889, %v3881, %v3902
        %v3911 = vsel %vm3890, %v3882, %v3903
        %v3912 = vsel %vm3891, %v3883, %v3904
        %v3913 = vsel %vm3892, %v3884, %v3905
        %v3914 = vsel %vm3893, %v3885, %v3906
        %vm3915 = vcmask 261120
        %3916 = vst.msk [vmem:[#allocation8] sm:$0xff] %vm3915, 0.0
        %vm3917 = vcmask 254976
        %3918 = vst.msk [vmem:[#allocation8 + $0x8] sm:$0x3] %vm3917, 0.0
        %3919 = vst.msk [vmem:[#allocation8 + $0x10] sm:$0xff] %vm3915, 0.0
        %3920 = vst.msk [vmem:[#allocation8 + $0x18] sm:$0x3] %vm3917, 0.0
        %3921 = vst.msk [vmem:[#allocation8 + $0x20] sm:$0xff] %vm3915, 0.0
        %3922 = vst.msk [vmem:[#allocation8 + $0x28] sm:$0x3] %vm3917, 0.0
        %3923 = vst.msk [vmem:[#allocation8 + $0x30] sm:$0xff] %vm3915, 0.0
        %3924 = vst.msk [vmem:[#allocation8 + $0x38] sm:$0x3] %vm3917, 0.0
        %3925 = vst.msk [vmem:[#allocation8 + $0x40] sm:$0xff] %vm3915, 0.0
        %3926 = vst.msk [vmem:[#allocation8 + $0x48] sm:$0x3] %vm3917, 0.0
        %3927 = vst.msk [vmem:[#allocation8 + $0x50] sm:$0xff] %vm3915, 0.0
        %3928 = vst.msk [vmem:[#allocation8 + $0x58] sm:$0x3] %vm3917, 0.0
        %3929 = vst.msk [vmem:[#allocation8 + $0x60] sm:$0xff] %vm3915, 0.0
        %3930 = vst.msk [vmem:[#allocation8 + $0x68] sm:$0x3] %vm3917, 0.0
        %3931 = vst.msk [vmem:[#allocation8 + $0x70] sm:$0xff] %vm3915, 0.0
        %3932 = vst.msk [vmem:[#allocation8 + $0x78] sm:$0x3] %vm3917, 0.0
        %3933 = vst.msk [vmem:[#allocation8 + $0x80] sm:$0xff] %vm3915, 0.0
        %3934 = vst.msk [vmem:[#allocation8 + $0x88] sm:$0x3] %vm3917, 0.0
        %3935 = vst.msk [vmem:[#allocation8 + $0x90] sm:$0xff] %vm3915, 0.0
        %3936 = vst.msk [vmem:[#allocation8 + $0x98] sm:$0x3] %vm3917, 0.0
        %s3937 = scalar_lea.vmem [#allocation8], 16
        %3938 = vst.msk [vmem:[%s3937 + $0x1] sm:$0xff] %vm3915, %v3907
        %3939 = vst.msk [vmem:[%s3937 + $0x11] sm:$0xff] %vm3915, %v3908
        %3940 = vst.msk [vmem:[%s3937 + $0x21] sm:$0xff] %vm3915, %v3909
        %3941 = vst.msk [vmem:[%s3937 + $0x31] sm:$0xff] %vm3915, %v3910
        %3942 = vst.msk [vmem:[%s3937 + $0x41] sm:$0xff] %vm3915, %v3911
        %3943 = vst.msk [vmem:[%s3937 + $0x51] sm:$0xff] %vm3915, %v3912
        %3944 = vst.msk [vmem:[%s3937 + $0x61] sm:$0xff] %vm3915, %v3913
        %3945 = vst.msk [vmem:[%s3937 + $0x71] sm:$0xff] %vm3915, %v3914
        %v3946 = vld [vmem:[#allocation8] sm:$0x1]
        %v3947 = vld [vmem:[#allocation8 + $0x10] sm:$0x1]
        %v3948 = vld [vmem:[#allocation8 + $0x20] sm:$0x1]
        %v3949 = vld [vmem:[#allocation8 + $0x30] sm:$0x1]
        %v3950 = vld [vmem:[#allocation8 + $0x40] sm:$0x1]
        %v3951 = vld [vmem:[#allocation8 + $0x50] sm:$0x1]
        %v3952 = vld [vmem:[#allocation8 + $0x60] sm:$0x1]
        %v3953 = vld [vmem:[#allocation8 + $0x70] sm:$0x1]
        %v3954 = vld [vmem:[#allocation8 + $0x80] sm:$0x1]
        %v3955 = vld [vmem:[#allocation8 + $0x90] sm:$0x1]
        %vm3956 = vcmask 253952
        %3957 = vst.msk [vmem:[#allocation9] sm:$0x1] %vm3956, %v3946
        %3958 = vst.msk [vmem:[#allocation9 + $0x8] sm:$0x1] %vm3956, %v3947
        %3959 = vst.msk [vmem:[#allocation9 + $0x10] sm:$0x1] %vm3956, %v3948
        %3960 = vst.msk [vmem:[#allocation9 + $0x18] sm:$0x1] %vm3956, %v3949
        %3961 = vst.msk [vmem:[#allocation9 + $0x20] sm:$0x1] %vm3956, %v3950
        %3962 = vst.msk [vmem:[#allocation9 + $0x28] sm:$0x1] %vm3956, %v3951
        %3963 = vst.msk [vmem:[#allocation9 + $0x30] sm:$0x1] %vm3956, %v3952
        %3964 = vst.msk [vmem:[#allocation9 + $0x38] sm:$0x1] %vm3956, %v3953
        %3965 = vst.msk [vmem:[#allocation9 + $0x40] sm:$0x1] %vm3956, %v3954
        %3966 = vst.msk [vmem:[#allocation9 + $0x48] sm:$0x1] %vm3956, %v3955
        %v3967 = vld [vmem:[#allocation8 + $0x1] sm:$0x1]
        %v3968 = vld [vmem:[#allocation8 + $0x11] sm:$0x1]
        %v3969 = vld [vmem:[#allocation8 + $0x21] sm:$0x1]
        %v3970 = vld [vmem:[#allocation8 + $0x31] sm:$0x1]
        %v3971 = vld [vmem:[#allocation8 + $0x41] sm:$0x1]
        %v3972 = vld [vmem:[#allocation8 + $0x51] sm:$0x1]
        %v3973 = vld [vmem:[#allocation8 + $0x61] sm:$0x1]
        %v3974 = vld [vmem:[#allocation8 + $0x71] sm:$0x1]
        %v3975 = vld [vmem:[#allocation8 + $0x81] sm:$0x1]
        %v3976 = vld [vmem:[#allocation8 + $0x91] sm:$0x1]
        %3977 = vst.msk [vmem:[#allocation10] sm:$0x1] %vm3956, %v3967
        %3978 = vst.msk [vmem:[#allocation10 + $0x8] sm:$0x1] %vm3956, %v3968
        %3979 = vst.msk [vmem:[#allocation10 + $0x10] sm:$0x1] %vm3956, %v3969
        %3980 = vst.msk [vmem:[#allocation10 + $0x18] sm:$0x1] %vm3956, %v3970
        %3981 = vst.msk [vmem:[#allocation10 + $0x20] sm:$0x1] %vm3956, %v3971
        %3982 = vst.msk [vmem:[#allocation10 + $0x28] sm:$0x1] %vm3956, %v3972
        %3983 = vst.msk [vmem:[#allocation10 + $0x30] sm:$0x1] %vm3956, %v3973
        %3984 = vst.msk [vmem:[#allocation10 + $0x38] sm:$0x1] %vm3956, %v3974
        %3985 = vst.msk [vmem:[#allocation10 + $0x40] sm:$0x1] %vm3956, %v3975
        %3986 = vst.msk [vmem:[#allocation10 + $0x48] sm:$0x1] %vm3956, %v3976
        %v3987 = vld [vmem:[#allocation8 + $0x2] sm:$0x1]
        %v3988 = vld [vmem:[#allocation8 + $0x12] sm:$0x1]
        %v3989 = vld [vmem:[#allocation8 + $0x22] sm:$0x1]
        %v3990 = vld [vmem:[#allocation8 + $0x32] sm:$0x1]
        %v3991 = vld [vmem:[#allocation8 + $0x42] sm:$0x1]
        %v3992 = vld [vmem:[#allocation8 + $0x52] sm:$0x1]
        %v3993 = vld [vmem:[#allocation8 + $0x62] sm:$0x1]
        %v3994 = vld [vmem:[#allocation8 + $0x72] sm:$0x1]
        %v3995 = vld [vmem:[#allocation8 + $0x82] sm:$0x1]
        %v3996 = vld [vmem:[#allocation8 + $0x92] sm:$0x1]
        %3997 = vst.msk [vmem:[#allocation9 + $0x1] sm:$0x1] %vm3956, %v3987
        %3998 = vst.msk [vmem:[#allocation9 + $0x9] sm:$0x1] %vm3956, %v3988
        %3999 = vst.msk [vmem:[#allocation9 + $0x11] sm:$0x1] %vm3956, %v3989
        %4000 = vst.msk [vmem:[#allocation9 + $0x19] sm:$0x1] %vm3956, %v3990
        %4001 = vst.msk [vmem:[#allocation9 + $0x21] sm:$0x1] %vm3956, %v3991
        %4002 = vst.msk [vmem:[#allocation9 + $0x29] sm:$0x1] %vm3956, %v3992
        %4003 = vst.msk [vmem:[#allocation9 + $0x31] sm:$0x1] %vm3956, %v3993
        %4004 = vst.msk [vmem:[#allocation9 + $0x39] sm:$0x1] %vm3956, %v3994
        %4005 = vst.msk [vmem:[#allocation9 + $0x41] sm:$0x1] %vm3956, %v3995
        %4006 = vst.msk [vmem:[#allocation9 + $0x49] sm:$0x1] %vm3956, %v3996
        %v4007 = vld [vmem:[#allocation8 + $0x3] sm:$0x1]
        %v4008 = vld [vmem:[#allocation8 + $0x13] sm:$0x1]
        %v4009 = vld [vmem:[#allocation8 + $0x23] sm:$0x1]
        %v4010 = vld [vmem:[#allocation8 + $0x33] sm:$0x1]
        %v4011 = vld [vmem:[#allocation8 + $0x43] sm:$0x1]
        %v4012 = vld [vmem:[#allocation8 + $0x53] sm:$0x1]
        %v4013 = vld [vmem:[#allocation8 + $0x63] sm:$0x1]
        %v4014 = vld [vmem:[#allocation8 + $0x73] sm:$0x1]
        %v4015 = vld [vmem:[#allocation8 + $0x83] sm:$0x1]
        %v4016 = vld [vmem:[#allocation8 + $0x93] sm:$0x1]
        %4017 = vst.msk [vmem:[#allocation10 + $0x1] sm:$0x1] %vm3956, %v4007
        %4018 = vst.msk [vmem:[#allocation10 + $0x9] sm:$0x1] %vm3956, %v4008
        %4019 = vst.msk [vmem:[#allocation10 + $0x11] sm:$0x1] %vm3956, %v4009
        %4020 = vst.msk [vmem:[#allocation10 + $0x19] sm:$0x1] %vm3956, %v4010
        %4021 = vst.msk [vmem:[#allocation10 + $0x21] sm:$0x1] %vm3956, %v4011
        %4022 = vst.msk [vmem:[#allocation10 + $0x29] sm:$0x1] %vm3956, %v4012
        %4023 = vst.msk [vmem:[#allocation10 + $0x31] sm:$0x1] %vm3956, %v4013
        %4024 = vst.msk [vmem:[#allocation10 + $0x39] sm:$0x1] %vm3956, %v4014
        %4025 = vst.msk [vmem:[#allocation10 + $0x41] sm:$0x1] %vm3956, %v4015
        %4026 = vst.msk [vmem:[#allocation10 + $0x49] sm:$0x1] %vm3956, %v4016
        %v4027 = vld [vmem:[#allocation8 + $0x4] sm:$0x1]
        %v4028 = vld [vmem:[#allocation8 + $0x14] sm:$0x1]
        %v4029 = vld [vmem:[#allocation8 + $0x24] sm:$0x1]
        %v4030 = vld [vmem:[#allocation8 + $0x34] sm:$0x1]
        %v4031 = vld [vmem:[#allocation8 + $0x44] sm:$0x1]
        %v4032 = vld [vmem:[#allocation8 + $0x54] sm:$0x1]
        %v4033 = vld [vmem:[#allocation8 + $0x64] sm:$0x1]
        %v4034 = vld [vmem:[#allocation8 + $0x74] sm:$0x1]
        %v4035 = vld [vmem:[#allocation8 + $0x84] sm:$0x1]
        %v4036 = vld [vmem:[#allocation8 + $0x94] sm:$0x1]
        %4037 = vst.msk [vmem:[#allocation9 + $0x2] sm:$0x1] %vm3956, %v4027
        %4038 = vst.msk [vmem:[#allocation9 + $0xa] sm:$0x1] %vm3956, %v4028
        %4039 = vst.msk [vmem:[#allocation9 + $0x12] sm:$0x1] %vm3956, %v4029
        %4040 = vst.msk [vmem:[#allocation9 + $0x1a] sm:$0x1] %vm3956, %v4030
        %4041 = vst.msk [vmem:[#allocation9 + $0x22] sm:$0x1] %vm3956, %v4031
        %4042 = vst.msk [vmem:[#allocation9 + $0x2a] sm:$0x1] %vm3956, %v4032
        %4043 = vst.msk [vmem:[#allocation9 + $0x32] sm:$0x1] %vm3956, %v4033
        %4044 = vst.msk [vmem:[#allocation9 + $0x3a] sm:$0x1] %vm3956, %v4034
        %4045 = vst.msk [vmem:[#allocation9 + $0x42] sm:$0x1] %vm3956, %v4035
        %4046 = vst.msk [vmem:[#allocation9 + $0x4a] sm:$0x1] %vm3956, %v4036
        %v4047 = vld [vmem:[#allocation8 + $0x5] sm:$0x1]
        %v4048 = vld [vmem:[#allocation8 + $0x15] sm:$0x1]
        %v4049 = vld [vmem:[#allocation8 + $0x25] sm:$0x1]
        %v4050 = vld [vmem:[#allocation8 + $0x35] sm:$0x1]
        %v4051 = vld [vmem:[#allocation8 + $0x45] sm:$0x1]
        %v4052 = vld [vmem:[#allocation8 + $0x55] sm:$0x1]
        %v4053 = vld [vmem:[#allocation8 + $0x65] sm:$0x1]
        %v4054 = vld [vmem:[#allocation8 + $0x75] sm:$0x1]
        %v4055 = vld [vmem:[#allocation8 + $0x85] sm:$0x1]
        %v4056 = vld [vmem:[#allocation8 + $0x95] sm:$0x1]
        %4057 = vst.msk [vmem:[#allocation10 + $0x2] sm:$0x1] %vm3956, %v4047
        %4058 = vst.msk [vmem:[#allocation10 + $0xa] sm:$0x1] %vm3956, %v4048
        %4059 = vst.msk [vmem:[#allocation10 + $0x12] sm:$0x1] %vm3956, %v4049
        %4060 = vst.msk [vmem:[#allocation10 + $0x1a] sm:$0x1] %vm3956, %v4050
        %4061 = vst.msk [vmem:[#allocation10 + $0x22] sm:$0x1] %vm3956, %v4051
        %4062 = vst.msk [vmem:[#allocation10 + $0x2a] sm:$0x1] %vm3956, %v4052
        %4063 = vst.msk [vmem:[#allocation10 + $0x32] sm:$0x1] %vm3956, %v4053
        %4064 = vst.msk [vmem:[#allocation10 + $0x3a] sm:$0x1] %vm3956, %v4054
        %4065 = vst.msk [vmem:[#allocation10 + $0x42] sm:$0x1] %vm3956, %v4055
        %4066 = vst.msk [vmem:[#allocation10 + $0x4a] sm:$0x1] %vm3956, %v4056
        %v4067 = vld [vmem:[#allocation8 + $0x6] sm:$0x1]
        %v4068 = vld [vmem:[#allocation8 + $0x16] sm:$0x1]
        %v4069 = vld [vmem:[#allocation8 + $0x26] sm:$0x1]
        %v4070 = vld [vmem:[#allocation8 + $0x36] sm:$0x1]
        %v4071 = vld [vmem:[#allocation8 + $0x46] sm:$0x1]
        %v4072 = vld [vmem:[#allocation8 + $0x56] sm:$0x1]
        %v4073 = vld [vmem:[#allocation8 + $0x66] sm:$0x1]
        %v4074 = vld [vmem:[#allocation8 + $0x76] sm:$0x1]
        %v4075 = vld [vmem:[#allocation8 + $0x86] sm:$0x1]
        %v4076 = vld [vmem:[#allocation8 + $0x96] sm:$0x1]
        %4077 = vst.msk [vmem:[#allocation9 + $0x3] sm:$0x1] %vm3956, %v4067
        %4078 = vst.msk [vmem:[#allocation9 + $0xb] sm:$0x1] %vm3956, %v4068
        %4079 = vst.msk [vmem:[#allocation9 + $0x13] sm:$0x1] %vm3956, %v4069
        %4080 = vst.msk [vmem:[#allocation9 + $0x1b] sm:$0x1] %vm3956, %v4070
        %4081 = vst.msk [vmem:[#allocation9 + $0x23] sm:$0x1] %vm3956, %v4071
        %4082 = vst.msk [vmem:[#allocation9 + $0x2b] sm:$0x1] %vm3956, %v4072
        %4083 = vst.msk [vmem:[#allocation9 + $0x33] sm:$0x1] %vm3956, %v4073
        %4084 = vst.msk [vmem:[#allocation9 + $0x3b] sm:$0x1] %vm3956, %v4074
        %4085 = vst.msk [vmem:[#allocation9 + $0x43] sm:$0x1] %vm3956, %v4075
        %4086 = vst.msk [vmem:[#allocation9 + $0x4b] sm:$0x1] %vm3956, %v4076
        %v4087 = vld [vmem:[#allocation8 + $0x7] sm:$0x1]
        %v4088 = vld [vmem:[#allocation8 + $0x17] sm:$0x1]
        %v4089 = vld [vmem:[#allocation8 + $0x27] sm:$0x1]
        %v4090 = vld [vmem:[#allocation8 + $0x37] sm:$0x1]
        %v4091 = vld [vmem:[#allocation8 + $0x47] sm:$0x1]
        %v4092 = vld [vmem:[#allocation8 + $0x57] sm:$0x1]
        %v4093 = vld [vmem:[#allocation8 + $0x67] sm:$0x1]
        %v4094 = vld [vmem:[#allocation8 + $0x77] sm:$0x1]
        %v4095 = vld [vmem:[#allocation8 + $0x87] sm:$0x1]
        %v4096 = vld [vmem:[#allocation8 + $0x97] sm:$0x1]
        %4097 = vst.msk [vmem:[#allocation10 + $0x3] sm:$0x1] %vm3956, %v4087
        %4098 = vst.msk [vmem:[#allocation10 + $0xb] sm:$0x1] %vm3956, %v4088
        %4099 = vst.msk [vmem:[#allocation10 + $0x13] sm:$0x1] %vm3956, %v4089
        %4100 = vst.msk [vmem:[#allocation10 + $0x1b] sm:$0x1] %vm3956, %v4090
        %4101 = vst.msk [vmem:[#allocation10 + $0x23] sm:$0x1] %vm3956, %v4091
        %4102 = vst.msk [vmem:[#allocation10 + $0x2b] sm:$0x1] %vm3956, %v4092
        %4103 = vst.msk [vmem:[#allocation10 + $0x33] sm:$0x1] %vm3956, %v4093
        %4104 = vst.msk [vmem:[#allocation10 + $0x3b] sm:$0x1] %vm3956, %v4094
        %4105 = vst.msk [vmem:[#allocation10 + $0x43] sm:$0x1] %vm3956, %v4095
        %4106 = vst.msk [vmem:[#allocation10 + $0x4b] sm:$0x1] %vm3956, %v4096
        %v4107 = vld [vmem:[#allocation8 + $0x8] sm:$0x1]
        %v4108 = vld [vmem:[#allocation8 + $0x18] sm:$0x1]
        %v4109 = vld [vmem:[#allocation8 + $0x28] sm:$0x1]
        %v4110 = vld [vmem:[#allocation8 + $0x38] sm:$0x1]
        %v4111 = vld [vmem:[#allocation8 + $0x48] sm:$0x1]
        %v4112 = vld [vmem:[#allocation8 + $0x58] sm:$0x1]
        %v4113 = vld [vmem:[#allocation8 + $0x68] sm:$0x1]
        %v4114 = vld [vmem:[#allocation8 + $0x78] sm:$0x1]
        %v4115 = vld [vmem:[#allocation8 + $0x88] sm:$0x1]
        %v4116 = vld [vmem:[#allocation8 + $0x98] sm:$0x1]
        %4117 = vst.msk [vmem:[#allocation9 + $0x4] sm:$0x1] %vm3956, %v4107
        %4118 = vst.msk [vmem:[#allocation9 + $0xc] sm:$0x1] %vm3956, %v4108
        %4119 = vst.msk [vmem:[#allocation9 + $0x14] sm:$0x1] %vm3956, %v4109
        %4120 = vst.msk [vmem:[#allocation9 + $0x1c] sm:$0x1] %vm3956, %v4110
        %4121 = vst.msk [vmem:[#allocation9 + $0x24] sm:$0x1] %vm3956, %v4111
        %4122 = vst.msk [vmem:[#allocation9 + $0x2c] sm:$0x1] %vm3956, %v4112
        %4123 = vst.msk [vmem:[#allocation9 + $0x34] sm:$0x1] %vm3956, %v4113
        %4124 = vst.msk [vmem:[#allocation9 + $0x3c] sm:$0x1] %vm3956, %v4114
        %4125 = vst.msk [vmem:[#allocation9 + $0x44] sm:$0x1] %vm3956, %v4115
        %4126 = vst.msk [vmem:[#allocation9 + $0x4c] sm:$0x1] %vm3956, %v4116
        %v4127 = vld [vmem:[#allocation8 + $0x9] sm:$0x1]
        %v4128 = vld [vmem:[#allocation8 + $0x19] sm:$0x1]
        %v4129 = vld [vmem:[#allocation8 + $0x29] sm:$0x1]
        %v4130 = vld [vmem:[#allocation8 + $0x39] sm:$0x1]
        %v4131 = vld [vmem:[#allocation8 + $0x49] sm:$0x1]
        %v4132 = vld [vmem:[#allocation8 + $0x59] sm:$0x1]
        %v4133 = vld [vmem:[#allocation8 + $0x69] sm:$0x1]
        %v4134 = vld [vmem:[#allocation8 + $0x79] sm:$0x1]
        %v4135 = vld [vmem:[#allocation8 + $0x89] sm:$0x1]
        %v4136 = vld [vmem:[#allocation8 + $0x99] sm:$0x1]
        %4137 = vst.msk [vmem:[#allocation10 + $0x4] sm:$0x1] %vm3956, %v4127
        %4138 = vst.msk [vmem:[#allocation10 + $0xc] sm:$0x1] %vm3956, %v4128
        %4139 = vst.msk [vmem:[#allocation10 + $0x14] sm:$0x1] %vm3956, %v4129
        %4140 = vst.msk [vmem:[#allocation10 + $0x1c] sm:$0x1] %vm3956, %v4130
        %4141 = vst.msk [vmem:[#allocation10 + $0x24] sm:$0x1] %vm3956, %v4131
        %4142 = vst.msk [vmem:[#allocation10 + $0x2c] sm:$0x1] %vm3956, %v4132
        %4143 = vst.msk [vmem:[#allocation10 + $0x34] sm:$0x1] %vm3956, %v4133
        %4144 = vst.msk [vmem:[#allocation10 + $0x3c] sm:$0x1] %vm3956, %v4134
        %4145 = vst.msk [vmem:[#allocation10 + $0x44] sm:$0x1] %vm3956, %v4135
        %4146 = vst.msk [vmem:[#allocation10 + $0x4c] sm:$0x1] %vm3956, %v4136
        %v4147 = vld [vmem:[#allocation9] sm:$0xf]
        %v4148 = vld [vmem:[#allocation9 + $0x10] sm:$0xf]
        %v4149 = vld [vmem:[#allocation9 + $0x20] sm:$0xf]
        %v4150 = vld [vmem:[#allocation9 + $0x30] sm:$0xf]
        %v4155 = vcombine.low %v4147, %v4148
        %v4156 = vcombine.low %v4149, %v4150
        %4159 = vst.msk [vmem:[#allocation11] sm:$0xff] %vm3915, %v4155
        %4160 = vst.msk [vmem:[#allocation11 + $0x18] sm:$0xff] %vm3915, %v4156
        %v4161 = vld [vmem:[#allocation10] sm:$0xf]
        %v4162 = vld [vmem:[#allocation10 + $0x10] sm:$0xf]
        %v4163 = vld [vmem:[#allocation10 + $0x20] sm:$0xf]
        %v4164 = vld [vmem:[#allocation10 + $0x30] sm:$0xf]
        %v4169 = vcombine.low %v4161, %v4162
        %v4170 = vcombine.low %v4163, %v4164
        %4171 = vrot.lane.b32.xlu0 %v4169, 32
        %v4172 = vpop.permute.xlu0 %4171
        %4173 = vrot.lane.b32.xlu0 %v4170, 32
        %v4174 = vpop.permute.xlu0 %4173
        %vm4177 = vcmask 523520
        %4178 = vst.msk [vmem:[#allocation11] sm:$0xff] %vm4177, %v4172
        %4179 = vst.msk [vmem:[#allocation11 + $0x18] sm:$0xff] %vm4177, %v4174
        %v4180 = vld [vmem:[#allocation9 + $0x1] sm:$0xf]
        %v4181 = vld [vmem:[#allocation9 + $0x11] sm:$0xf]
        %v4182 = vld [vmem:[#allocation9 + $0x21] sm:$0xf]
        %v4183 = vld [vmem:[#allocation9 + $0x31] sm:$0xf]
        %v4188 = vcombine.low %v4180, %v4181
        %v4189 = vcombine.low %v4182, %v4183
        %4190 = vrot.lane.b32.xlu0 %v4188, 64
        %v4191 = vpop.permute.xlu0 %4190
        %4192 = vrot.lane.b32.xlu0 %v4189, 64
        %v4193 = vpop.permute.xlu0 %4192
        %vm4196 = vcmask 785920
        %4197 = vst.msk [vmem:[#allocation11] sm:$0xff] %vm4196, %v4191
        %4198 = vst.msk [vmem:[#allocation11 + $0x18] sm:$0xff] %vm4196, %v4193
        %s4199 = scalar_lea.vmem [#allocation9], 8
        %v4200 = vld [vmem:[%s4199] sm:$0xf]
        %v4201 = vld [vmem:[%s4199 + $0x10] sm:$0xf]
        %v4202 = vld [vmem:[%s4199 + $0x20] sm:$0xf]
        %v4203 = vld [vmem:[%s4199 + $0x30] sm:$0xf]
        %v4208 = vcombine.low %v4200, %v4201
        %v4209 = vcombine.low %v4202, %v4203
        %4210 = vrot.lane.b32.xlu0 %v4208, 96
        %v4211 = vpop.permute.xlu0 %4210
        %4212 = vrot.lane.b32.xlu0 %v4209, 96
        %v4213 = vpop.permute.xlu0 %4212
        %vm4216 = vcmask 1048320
        %4217 = vst.msk [vmem:[#allocation11] sm:$0xff] %vm4216, %v4211
        %4218 = vst.msk [vmem:[#allocation11 + $0x18] sm:$0xff] %vm4216, %v4213
        %s4219 = scalar_lea.vmem [#allocation10], 8
        %v4220 = vld [vmem:[%s4219] sm:$0xf]
        %v4221 = vld [vmem:[%s4219 + $0x10] sm:$0xf]
        %v4222 = vld [vmem:[%s4219 + $0x20] sm:$0xf]
        %v4223 = vld [vmem:[%s4219 + $0x30] sm:$0xf]
        %v4228 = vcombine.low %v4220, %v4221
        %v4229 = vcombine.low %v4222, %v4223
        %4232 = vst.msk [vmem:[#allocation11 + $0x8] sm:$0xff] %vm3915, %v4228
        %4233 = vst.msk [vmem:[#allocation11 + $0x20] sm:$0xff] %vm3915, %v4229
        %v4234 = vld [vmem:[%s4199 + $0x1] sm:$0xf]
        %v4235 = vld [vmem:[%s4199 + $0x11] sm:$0xf]
        %v4236 = vld [vmem:[%s4199 + $0x21] sm:$0xf]
        %v4237 = vld [vmem:[%s4199 + $0x31] sm:$0xf]
        %v4242 = vcombine.low %v4234, %v4235
        %v4243 = vcombine.low %v4236, %v4237
        %4244 = vrot.lane.b32.xlu0 %v4242, 32
        %v4245 = vpop.permute.xlu0 %4244
        %4246 = vrot.lane.b32.xlu0 %v4243, 32
        %v4247 = vpop.permute.xlu0 %4246
        %4250 = vst.msk [vmem:[#allocation11 + $0x8] sm:$0xff] %vm4177, %v4245
        %4251 = vst.msk [vmem:[#allocation11 + $0x20] sm:$0xff] %vm4177, %v4247
        %s4252 = scalar_lea.vmem [#allocation9], 16
        %v4253 = vld [vmem:[%s4252] sm:$0xf]
        %v4254 = vld [vmem:[%s4252 + $0x10] sm:$0xf]
        %v4255 = vld [vmem:[%s4252 + $0x20] sm:$0xf]
        %v4256 = vld [vmem:[%s4252 + $0x30] sm:$0xf]
        %v4261 = vcombine.low %v4253, %v4254
        %v4262 = vcombine.low %v4255, %v4256
        %4263 = vrot.lane.b32.xlu0 %v4261, 64
        %v4264 = vpop.permute.xlu0 %4263
        %4265 = vrot.lane.b32.xlu0 %v4262, 64
        %v4266 = vpop.permute.xlu0 %4265
        %4269 = vst.msk [vmem:[#allocation11 + $0x8] sm:$0xff] %vm4196, %v4264
        %4270 = vst.msk [vmem:[#allocation11 + $0x20] sm:$0xff] %vm4196, %v4266
        %s4271 = scalar_lea.vmem [#allocation10], 16
        %v4272 = vld [vmem:[%s4271] sm:$0xf]
        %v4273 = vld [vmem:[%s4271 + $0x10] sm:$0xf]
        %v4274 = vld [vmem:[%s4271 + $0x20] sm:$0xf]
        %v4275 = vld [vmem:[%s4271 + $0x30] sm:$0xf]
        %v4280 = vcombine.low %v4272, %v4273
        %v4281 = vcombine.low %v4274, %v4275
        %4282 = vrot.lane.b32.xlu0 %v4280, 96
        %v4283 = vpop.permute.xlu0 %4282
        %4284 = vrot.lane.b32.xlu0 %v4281, 96
        %v4285 = vpop.permute.xlu0 %4284
        %4288 = vst.msk [vmem:[#allocation11 + $0x8] sm:$0xff] %vm4216, %v4283
        %4289 = vst.msk [vmem:[#allocation11 + $0x20] sm:$0xff] %vm4216, %v4285
        %v4290 = vld [vmem:[%s4252 + $0x1] sm:$0xf]
        %v4291 = vld [vmem:[%s4252 + $0x11] sm:$0xf]
        %v4292 = vld [vmem:[%s4252 + $0x21] sm:$0xf]
        %v4293 = vld [vmem:[%s4252 + $0x31] sm:$0xf]
        %v4298 = vcombine.low %v4290, %v4291
        %v4299 = vcombine.low %v4292, %v4293
        %4302 = vst.msk [vmem:[#allocation11 + $0x10] sm:$0xff] %vm3915, %v4298
        %4303 = vst.msk [vmem:[#allocation11 + $0x28] sm:$0xff] %vm3915, %v4299
        %v4304 = vld [vmem:[#allocation11] sm:$0xff]
        %v4305 = vld [vmem:[#allocation11 + $0x8] sm:$0xff]
        %v4306 = vld [vmem:[#allocation11 + $0x10] sm:$0xff]
        %v4307 = vld [vmem:[#allocation11 + $0x18] sm:$0xff]
        %v4308 = vld [vmem:[#allocation11 + $0x20] sm:$0xff]
        %v4309 = vld [vmem:[#allocation11 + $0x28] sm:$0xff]
        %v4310 = vpack.c.bf16 %v4307, %v4304
        %v4311 = vpack.c.bf16 %v4308, %v4305
        %v4312 = vpack.c.bf16 %v4309, %v4306
        %v4313 = vld [vmem:[%s5] sm:$0xf]
        %v4314 = vld [vmem:[%s5 + $0x4] sm:$0xf]
        %v4315 = vld [vmem:[%s5 + $0x8] sm:$0xf]
        %v4316 = vld [vmem:[%s5 + $0xc] sm:$0xf]
        %v4317 = vld [vmem:[%s5 + $0x10] sm:$0xf]
        %v4318 = vld [vmem:[%s5 + $0x14] sm:$0xf]
        %v4319 = vld [vmem:[%s5 + $0x18] sm:$0xf]
        %v4320 = vld [vmem:[%s5 + $0x1c] sm:$0xf]
        %v4321 = vld [vmem:[%s5 + $0x20] sm:$0xf]
        %v4322 = vld [vmem:[%s5 + $0x24] sm:$0xf]
        %v4323 = vld [vmem:[%s5 + $0x28] sm:$0xf]
        %v4324 = vld [vmem:[%s5 + $0x2c] sm:$0xf]
        %v4325 = vld [vmem:[%s5 + $0x30] sm:$0xf]
        %v4326 = vld [vmem:[%s5 + $0x34] sm:$0xf]
        %v4327 = vld [vmem:[%s5 + $0x38] sm:$0xf]
        %v4328 = vld [vmem:[%s5 + $0x3c] sm:$0xf]
        %v4329 = vld [vmem:[%s5 + $0x40] sm:$0xf]
        %v4330 = vld [vmem:[%s5 + $0x44] sm:$0xf]
        %v4331 = vld [vmem:[%s5 + $0x48] sm:$0xf]
        %v4332 = vld [vmem:[%s5 + $0x4c] sm:$0xf]
        %v4333 = vld [vmem:[%s5 + $0x50] sm:$0xf]
        %v4334 = vld [vmem:[%s5 + $0x54] sm:$0xf]
        %v4335 = vld [vmem:[%s5 + $0x58] sm:$0xf]
        %v4336 = vld [vmem:[%s5 + $0x5c] sm:$0xf]
        %v4337 = vld [vmem:[%s5 + $0x60] sm:$0xf]
        %v4338 = vld [vmem:[%s5 + $0x64] sm:$0xf]
        %v4339 = vld [vmem:[%s5 + $0x68] sm:$0xf]
        %v4340 = vld [vmem:[%s5 + $0x6c] sm:$0xf]
        %v4341 = vld [vmem:[%s5 + $0x70] sm:$0xf]
        %v4342 = vld [vmem:[%s5 + $0x74] sm:$0xf]
        %v4343 = vld [vmem:[%s5 + $0x78] sm:$0xf]
        %v4344 = vld [vmem:[%s5 + $0x7c] sm:$0xf]
        %v4345 = vld [vmem:[%s5 + $0x80] sm:$0xf]
        %v4346 = vld [vmem:[%s5 + $0x84] sm:$0xf]
        %v4347 = vld [vmem:[%s5 + $0x88] sm:$0xf]
        %v4348 = vld [vmem:[%s5 + $0x8c] sm:$0xf]
        %v4385 = vunpack.c.l.b16 %v4313
        %v4386 = vunpack.c.l.b16 %v4314
        %v4387 = vunpack.c.l.b16 %v4315
        %v4388 = vunpack.c.l.b16 %v4316
        %v4389 = vunpack.c.l.b16 %v4317
        %v4390 = vunpack.c.l.b16 %v4318
        %v4391 = vunpack.c.l.b16 %v4319
        %v4392 = vunpack.c.l.b16 %v4320
        %v4393 = vunpack.c.l.b16 %v4321
        %v4394 = vunpack.c.l.b16 %v4322
        %v4395 = vunpack.c.l.b16 %v4323
        %v4396 = vunpack.c.l.b16 %v4324
        %v4397 = vunpack.c.l.b16 %v4325
        %v4398 = vunpack.c.l.b16 %v4326
        %v4399 = vunpack.c.l.b16 %v4327
        %v4400 = vunpack.c.l.b16 %v4328
        %v4401 = vunpack.c.l.b16 %v4329
        %v4402 = vunpack.c.l.b16 %v4330
        %v4403 = vunpack.c.l.b16 %v4331
        %v4404 = vunpack.c.l.b16 %v4332
        %v4405 = vunpack.c.l.b16 %v4333
        %v4406 = vunpack.c.l.b16 %v4334
        %v4407 = vunpack.c.l.b16 %v4335
        %v4408 = vunpack.c.l.b16 %v4336
        %v4409 = vunpack.c.l.b16 %v4337
        %v4410 = vunpack.c.l.b16 %v4338
        %v4411 = vunpack.c.l.b16 %v4339
        %v4412 = vunpack.c.l.b16 %v4340
        %v4413 = vunpack.c.l.b16 %v4341
        %v4414 = vunpack.c.l.b16 %v4342
        %v4415 = vunpack.c.l.b16 %v4343
        %v4416 = vunpack.c.l.b16 %v4344
        %v4417 = vunpack.c.l.b16 %v4345
        %v4418 = vunpack.c.l.b16 %v4346
        %v4419 = vunpack.c.l.b16 %v4347
        %v4420 = vunpack.c.l.b16 %v4348
        %v4421 = vpack.c.b16 %v4386, %v4385
        %v4422 = vpack.c.b16 %v4388, %v4387
        %v4423 = vpack.c.b16 %v4390, %v4389
        %v4424 = vpack.c.b16 %v4392, %v4391
        %v4425 = vpack.c.b16 %v4394, %v4393
        %v4426 = vpack.c.b16 %v4396, %v4395
        %v4427 = vpack.c.b16 %v4398, %v4397
        %v4428 = vpack.c.b16 %v4400, %v4399
        %v4429 = vpack.c.b16 %v4402, %v4401
        %v4430 = vpack.c.b16 %v4404, %v4403
        %v4431 = vpack.c.b16 %v4406, %v4405
        %v4432 = vpack.c.b16 %v4408, %v4407
        %v4433 = vpack.c.b16 %v4410, %v4409
        %v4434 = vpack.c.b16 %v4412, %v4411
        %v4435 = vpack.c.b16 %v4414, %v4413
        %v4436 = vpack.c.b16 %v4416, %v4415
        %v4437 = vpack.c.b16 %v4418, %v4417
        %v4438 = vpack.c.b16 %v4420, %v4419
        %v4458 = vsel %vm3915, %v4312, 0
        %4460 = vmatprep.subr.bf16.mxu0 0
        %4461 = vmatpush1.bf16.msra.mxu0 %v4421
        %4462 = vmatprep.subr.bf16.mxu0 0
        %4463 = vmatpush1.bf16.msra.mxu0 %v4422
        %4464 = vmatprep.subr.bf16.mxu0 0
        %4465 = vmatpush1.bf16.msra.mxu0 %v4423
        %4466 = vmatprep.subr.bf16.mxu0 0
        %4467 = vmatpush1.bf16.msra.mxu0 %v4424
        %4468 = vmatprep.subr.bf16.mxu0 0
        %4469 = vmatpush1.bf16.msra.mxu0 %v4425
        %4470 = vmatprep.subr.bf16.mxu0 0
        %4471 = vmatpush1.bf16.msra.mxu0 %v4426
        %4472 = vmatprep.subr.bf16.mxu0 0
        %4473 = vmatpush1.bf16.msra.mxu0 %v4427
        %4474 = vmatprep.subr.bf16.mxu0 0
        %4475 = vmatpush1.bf16.msra.mxu0 %v4428
        %4476 = vmatprep.subr.bf16.mxu0 0
        %4477 = vmatpush1.bf16.msra.mxu0 %v4429
        %4478 = vmatprep.subr.bf16.mxu0 0
        %4479 = vmatpush1.bf16.msra.mxu0 %v4430
        %4480 = vmatprep.subr.bf16.mxu0 0
        %4481 = vmatpush1.bf16.msra.mxu0 %v4431
        %4482 = vmatprep.subr.bf16.mxu0 0
        %4483 = vmatpush1.bf16.msra.mxu0 %v4432
        %4484 = vmatprep.subr.bf16.mxu0 0
        %4485 = vmatpush1.bf16.msra.mxu0 %v4433
        %4486 = vmatprep.subr.bf16.mxu0 0
        %4487 = vmatpush1.bf16.msra.mxu0 %v4434
        %4488 = vmatprep.subr.bf16.mxu0 0
        %4489 = vmatpush1.bf16.msra.mxu0 %v4435
        %4490 = vmatprep.subr.bf16.mxu0 0
        %4491 = vmatpush1.bf16.msra.mxu0 %v4436
        %4492 = vmatprep.mubr.bf16.mxu0 %v4311
        %4493 = vmatmul.mubr.bf16.gmra.mrb[0].mxu0 %v4310
        %v4494 = vpop.f32.mrb[0].mxu0
        %v4495 = vadd.f32 0.0, %v4494
        %v4496 = vpop.f32.mrb[0].mxu0
        %v4497 = vpop.f32.mrb[0].mxu0
        %v4498 = vadd.f32 0.0, %v4497
        %v4499 = vpop.f32.mrb[0].mxu0
        %4500 = vdwg.mxu0
        %4501 = vmatprep.subr.bf16.mxu0 0
        %4502 = vmatpush1.bf16.msra.mxu0 %v4437
        %4503 = vmatprep.subr.bf16.mxu0 0
        %4504 = vmatpush1.bf16.msra.mxu0 %v4438
        %4505 = vmatprep.subr.bf16.mxu0 0
        %4506 = vmatpush1.bf16.msra.mxu0 0
        %4507 = vmatprep.subr.bf16.mxu0 0
        %4508 = vmatpush1.bf16.msra.mxu0 0
        %4509 = vmatprep.subr.bf16.mxu0 0
        %4510 = vmatpush1.bf16.msra.mxu0 0
        %4511 = vmatprep.subr.bf16.mxu0 0
        %4512 = vmatpush1.bf16.msra.mxu0 0
        %4513 = vmatprep.subr.bf16.mxu0 0
        %4514 = vmatpush1.bf16.msra.mxu0 0
        %4515 = vmatprep.subr.bf16.mxu0 0
        %4516 = vmatpush1.bf16.msra.mxu0 0
        %4517 = vmatprep.subr.bf16.mxu0 0
        %4518 = vmatpush1.bf16.msra.mxu0 0
        %4519 = vmatprep.subr.bf16.mxu0 0
        %4520 = vmatpush1.bf16.msra.mxu0 0
        %4521 = vmatprep.subr.bf16.mxu0 0
        %4522 = vmatpush1.bf16.msra.mxu0 0
        %4523 = vmatprep.subr.bf16.mxu0 0
        %4524 = vmatpush1.bf16.msra.mxu0 0
        %4525 = vmatprep.subr.bf16.mxu0 0
        %4526 = vmatpush1.bf16.msra.mxu0 0
        %4527 = vmatprep.subr.bf16.mxu0 0
        %4528 = vmatpush1.bf16.msra.mxu0 0
        %4529 = vmatprep.subr.bf16.mxu0 0
        %4530 = vmatpush1.bf16.msra.mxu0 0
        %4531 = vmatprep.subr.bf16.mxu0 0
        %4532 = vmatpush1.bf16.msra.mxu0 0
        %4533 = vmatprep.mubr.bf16.mxu0 0
        %4534 = vmatmul.mubr.bf16.gmra.mrb[0].mxu0 %v4458
        %v4535 = vpop.f32.mrb[0].mxu0
        %v4536 = vadd.f32 %v4495, %v4535
        %v4537 = vpop.f32.mrb[0].mxu0
        %v4538 = vpop.f32.mrb[0].mxu0
        %v4539 = vadd.f32 %v4498, %v4538
        %v4540 = vpop.f32.mrb[0].mxu0
        %4541 = vdwg.mxu0
        %v4542 = vld [vmem:[%s6] sm:$0x1]
        %v4543 = vlaneseq
        %v4544 = vshrl.u32 %v4543, 7
        %v4545 = vsub.s32 0, %v4544
        %v4546 = vrot.slane %v4542, %v4545
        %v4547 = vmul.f32 %v4536, %v4546
        %v4548 = vmul.f32 %v4539, %v4546
        %v4549 = vld [vmem:[%s6 + $0x1] sm:$0x1]
        %v4550 = vlaneseq
        %v4551 = vshrl.u32 %v4550, 7
        %v4552 = vsub.s32 0, %v4551
        %v4553 = vrot.slane %v4549, %v4552
        %v4554 = vadd.f32 %v4547, %v4553
        %v4555 = vadd.f32 %v4548, %v4553
        %vm4556 = vcmp.gt.f32.partialorder %v4554, 0.0
        %vm4557 = vcmp.gt.f32.partialorder %v4555, 0.0
        %v4558 = vld [vmem:[%s6 + $0x2] sm:$0x1]
        %v4559 = vlaneseq
        %v4560 = vshrl.u32 %v4559, 7
        %v4561 = vsub.s32 0, %v4560
        %v4562 = vrot.slane %v4558, %v4561
        %v4563 = vmul.f32 %v4554, %v4562
        %v4564 = vmul.f32 %v4555, %v4562
        %v4565 = vsel %vm4556, %v4554, %v4563
        %v4566 = vsel %vm4557, %v4555, %v4564
        %v4569 = vcombine.high %v4565, %v4565
        %v4570 = vcombine.high %v4566, %v4566
        %vm4573 = vcmask 521216
        %4574 = vst.msk [vmem:[#allocation12] sm:$0x3f] %vm4573, 0.0
        %4575 = vst.msk [vmem:[#allocation12 + $0x8] sm:$0x3f] %vm4573, 0.0
        %4576 = vst.msk [vmem:[#allocation12 + $0x10] sm:$0x3f] %vm4573, 0.0
        %4577 = vst.msk [vmem:[#allocation12 + $0x18] sm:$0x3f] %vm4573, 0.0
        %4578 = vst.msk [vmem:[#allocation12 + $0x20] sm:$0x3f] %vm4573, 0.0
        %4579 = vst.msk [vmem:[#allocation12 + $0x28] sm:$0x3f] %vm4573, 0.0
        %s4580 = scalar_lea.vmem [#allocation12], 8
        %vm4581 = vcmask 519168
        %4582 = vst.msk [vmem:[%s4580 + $0x1] sm:$0xf] %vm4581, %v4565
        %4583 = vst.msk [vmem:[%s4580 + $0x9] sm:$0xf] %vm4581, %v4569
        %4584 = vst.msk [vmem:[%s4580 + $0x11] sm:$0xf] %vm4581, %v4566
        %4585 = vst.msk [vmem:[%s4580 + $0x19] sm:$0xf] %vm4581, %v4570
        %v4586 = vld [vmem:[#allocation12] sm:$0x1]
        %v4587 = vld [vmem:[#allocation12 + $0x8] sm:$0x1]
        %v4588 = vld [vmem:[#allocation12 + $0x10] sm:$0x1]
        %v4589 = vld [vmem:[#allocation12 + $0x18] sm:$0x1]
        %v4590 = vld [vmem:[#allocation12 + $0x20] sm:$0x1]
        %v4591 = vld [vmem:[#allocation12 + $0x28] sm:$0x1]
        %vm4592 = vcmask 516096
        %4593 = vst.msk [vmem:[#allocation13] sm:$0x1] %vm4592, %v4586
        %4594 = vst.msk [vmem:[#allocation13 + $0x4] sm:$0x1] %vm4592, %v4587
        %4595 = vst.msk [vmem:[#allocation13 + $0x8] sm:$0x1] %vm4592, %v4588
        %4596 = vst.msk [vmem:[#allocation13 + $0xc] sm:$0x1] %vm4592, %v4589
        %4597 = vst.msk [vmem:[#allocation13 + $0x10] sm:$0x1] %vm4592, %v4590
        %4598 = vst.msk [vmem:[#allocation13 + $0x14] sm:$0x1] %vm4592, %v4591
        %v4599 = vld [vmem:[#allocation12 + $0x1] sm:$0x1]
        %v4600 = vld [vmem:[#allocation12 + $0x9] sm:$0x1]
        %v4601 = vld [vmem:[#allocation12 + $0x11] sm:$0x1]
        %v4602 = vld [vmem:[#allocation12 + $0x19] sm:$0x1]
        %v4603 = vld [vmem:[#allocation12 + $0x21] sm:$0x1]
        %v4604 = vld [vmem:[#allocation12 + $0x29] sm:$0x1]
        %4605 = vst.msk [vmem:[#allocation14] sm:$0x1] %vm4592, %v4599
        %4606 = vst.msk [vmem:[#allocation14 + $0x4] sm:$0x1] %vm4592, %v4600
        %4607 = vst.msk [vmem:[#allocation14 + $0x8] sm:$0x1] %vm4592, %v4601
        %4608 = vst.msk [vmem:[#allocation14 + $0xc] sm:$0x1] %vm4592, %v4602
        %4609 = vst.msk [vmem:[#allocation14 + $0x10] sm:$0x1] %vm4592, %v4603
        %4610 = vst.msk [vmem:[#allocation14 + $0x14] sm:$0x1] %vm4592, %v4604
        %v4611 = vld [vmem:[#allocation12 + $0x2] sm:$0x1]
        %v4612 = vld [vmem:[#allocation12 + $0xa] sm:$0x1]
        %v4613 = vld [vmem:[#allocation12 + $0x12] sm:$0x1]
        %v4614 = vld [vmem:[#allocation12 + $0x1a] sm:$0x1]
        %v4615 = vld [vmem:[#allocation12 + $0x22] sm:$0x1]
        %v4616 = vld [vmem:[#allocation12 + $0x2a] sm:$0x1]
        %4617 = vst.msk [vmem:[#allocation13 + $0x1] sm:$0x1] %vm4592, %v4611
        %4618 = vst.msk [vmem:[#allocation13 + $0x5] sm:$0x1] %vm4592, %v4612
        %4619 = vst.msk [vmem:[#allocation13 + $0x9] sm:$0x1] %vm4592, %v4613
        %4620 = vst.msk [vmem:[#allocation13 + $0xd] sm:$0x1] %vm4592, %v4614
        %4621 = vst.msk [vmem:[#allocation13 + $0x11] sm:$0x1] %vm4592, %v4615
        %4622 = vst.msk [vmem:[#allocation13 + $0x15] sm:$0x1] %vm4592, %v4616
        %v4623 = vld [vmem:[#allocation12 + $0x3] sm:$0x1]
        %v4624 = vld [vmem:[#allocation12 + $0xb] sm:$0x1]
        %v4625 = vld [vmem:[#allocation12 + $0x13] sm:$0x1]
        %v4626 = vld [vmem:[#allocation12 + $0x1b] sm:$0x1]
        %v4627 = vld [vmem:[#allocation12 + $0x23] sm:$0x1]
        %v4628 = vld [vmem:[#allocation12 + $0x2b] sm:$0x1]
        %4629 = vst.msk [vmem:[#allocation14 + $0x1] sm:$0x1] %vm4592, %v4623
        %4630 = vst.msk [vmem:[#allocation14 + $0x5] sm:$0x1] %vm4592, %v4624
        %4631 = vst.msk [vmem:[#allocation14 + $0x9] sm:$0x1] %vm4592, %v4625
        %4632 = vst.msk [vmem:[#allocation14 + $0xd] sm:$0x1] %vm4592, %v4626
        %4633 = vst.msk [vmem:[#allocation14 + $0x11] sm:$0x1] %vm4592, %v4627
        %4634 = vst.msk [vmem:[#allocation14 + $0x15] sm:$0x1] %vm4592, %v4628
        %v4635 = vld [vmem:[#allocation12 + $0x4] sm:$0x1]
        %v4636 = vld [vmem:[#allocation12 + $0xc] sm:$0x1]
        %v4637 = vld [vmem:[#allocation12 + $0x14] sm:$0x1]
        %v4638 = vld [vmem:[#allocation12 + $0x1c] sm:$0x1]
        %v4639 = vld [vmem:[#allocation12 + $0x24] sm:$0x1]
        %v4640 = vld [vmem:[#allocation12 + $0x2c] sm:$0x1]
        %4641 = vst.msk [vmem:[#allocation13 + $0x2] sm:$0x1] %vm4592, %v4635
        %4642 = vst.msk [vmem:[#allocation13 + $0x6] sm:$0x1] %vm4592, %v4636
        %4643 = vst.msk [vmem:[#allocation13 + $0xa] sm:$0x1] %vm4592, %v4637
        %4644 = vst.msk [vmem:[#allocation13 + $0xe] sm:$0x1] %vm4592, %v4638
        %4645 = vst.msk [vmem:[#allocation13 + $0x12] sm:$0x1] %vm4592, %v4639
        %4646 = vst.msk [vmem:[#allocation13 + $0x16] sm:$0x1] %vm4592, %v4640
        %v4647 = vld [vmem:[#allocation12 + $0x5] sm:$0x1]
        %v4648 = vld [vmem:[#allocation12 + $0xd] sm:$0x1]
        %v4649 = vld [vmem:[#allocation12 + $0x15] sm:$0x1]
        %v4650 = vld [vmem:[#allocation12 + $0x1d] sm:$0x1]
        %v4651 = vld [vmem:[#allocation12 + $0x25] sm:$0x1]
        %v4652 = vld [vmem:[#allocation12 + $0x2d] sm:$0x1]
        %4653 = vst.msk [vmem:[#allocation14 + $0x2] sm:$0x1] %vm4592, %v4647
        %4654 = vst.msk [vmem:[#allocation14 + $0x6] sm:$0x1] %vm4592, %v4648
        %4655 = vst.msk [vmem:[#allocation14 + $0xa] sm:$0x1] %vm4592, %v4649
        %4656 = vst.msk [vmem:[#allocation14 + $0xe] sm:$0x1] %vm4592, %v4650
        %4657 = vst.msk [vmem:[#allocation14 + $0x12] sm:$0x1] %vm4592, %v4651
        %4658 = vst.msk [vmem:[#allocation14 + $0x16] sm:$0x1] %vm4592, %v4652
        %v4659 = vld [vmem:[#allocation13] sm:$0x3]
        %v4660 = vld [vmem:[#allocation13 + $0x8] sm:$0x3]
        %v4663 = vcombine.low %v4659, %v4660
        %v4665 = vunpack.c.l.s4 1983009808
        %v4666 = vunpack.c.0.s8 %v4665
        %v4667 = vlaneseq
        %v4668 = vshrl.u32 %v4667, 7
        %v4669 = vsub.s32 %v4666, %v4668
        %v4670 = vrot.slane %v4663, %v4669
        %4672 = vst.msk [vmem:[#allocation15] sm:$0xf] %vm4581, %v4670
        %v4673 = vld [vmem:[#allocation14] sm:$0x3]
        %v4674 = vld [vmem:[#allocation14 + $0x8] sm:$0x3]
        %v4677 = vcombine.low %v4673, %v4674
        %v4679 = vunpack.c.l.s4 1983009808
        %v4680 = vunpack.c.0.s8 %v4679
        %v4681 = vlaneseq
        %v4682 = vshrl.u32 %v4681, 7
        %v4683 = vsub.s32 %v4680, %v4682
        %v4684 = vrot.slane %v4677, %v4683
        %4685 = vrot.lane.b32.xlu0 %v4684, 64
        %v4686 = vpop.permute.xlu0 %4685
        %vm4688 = vcmask 1043968
        %4689 = vst.msk [vmem:[#allocation15] sm:$0xf] %vm4688, %v4686
        %v4690 = vld [vmem:[#allocation13 + $0x1] sm:$0x3]
        %v4691 = vld [vmem:[#allocation13 + $0x9] sm:$0x3]
        %v4694 = vcombine.low %v4690, %v4691
        %v4696 = vunpack.c.l.s4 1983009808
        %v4697 = vunpack.c.0.s8 %v4696
        %v4698 = vlaneseq
        %v4699 = vshrl.u32 %v4698, 7
        %v4700 = vsub.s32 %v4697, %v4699
        %v4701 = vrot.slane %v4694, %v4700
        %4703 = vst.msk [vmem:[#allocation15 + $0x4] sm:$0xf] %vm4581, %v4701
        %s4704 = scalar_lea.vmem [#allocation13], 4
        %v4705 = vld [vmem:[%s4704] sm:$0x3]
        %v4706 = vld [vmem:[%s4704 + $0x8] sm:$0x3]
        %v4709 = vcombine.low %v4705, %v4706
        %v4711 = vunpack.c.l.s4 1983009808
        %v4712 = vunpack.c.0.s8 %v4711
        %v4713 = vlaneseq
        %v4714 = vshrl.u32 %v4713, 7
        %v4715 = vsub.s32 %v4712, %v4714
        %v4716 = vrot.slane %v4709, %v4715
        %4717 = vrot.lane.b32.xlu0 %v4716, 64
        %v4718 = vpop.permute.xlu0 %4717
        %4720 = vst.msk [vmem:[#allocation15 + $0x4] sm:$0xf] %vm4688, %v4718
        %s4721 = scalar_lea.vmem [#allocation14], 4
        %v4722 = vld [vmem:[%s4721] sm:$0x3]
        %v4723 = vld [vmem:[%s4721 + $0x8] sm:$0x3]
        %v4726 = vcombine.low %v4722, %v4723
        %v4728 = vunpack.c.l.s4 1983009808
        %v4729 = vunpack.c.0.s8 %v4728
        %v4730 = vlaneseq
        %v4731 = vshrl.u32 %v4730, 7
        %v4732 = vsub.s32 %v4729, %v4731
        %v4733 = vrot.slane %v4726, %v4732
        %4735 = vst.msk [vmem:[#allocation15 + $0x8] sm:$0xf] %vm4581, %v4733
        %v4736 = vld [vmem:[%s4704 + $0x1] sm:$0x3]
        %v4737 = vld [vmem:[%s4704 + $0x9] sm:$0x3]
        %v4740 = vcombine.low %v4736, %v4737
        %v4742 = vunpack.c.l.s4 1983009808
        %v4743 = vunpack.c.0.s8 %v4742
        %v4744 = vlaneseq
        %v4745 = vshrl.u32 %v4744, 7
        %v4746 = vsub.s32 %v4743, %v4745
        %v4747 = vrot.slane %v4740, %v4746
        %4748 = vrot.lane.b32.xlu0 %v4747, 64
        %v4749 = vpop.permute.xlu0 %4748
        %4751 = vst.msk [vmem:[#allocation15 + $0x8] sm:$0xf] %vm4688, %v4749
        %s4752 = scalar_lea.vmem [#allocation13], 8
        %v4753 = vld [vmem:[%s4752] sm:$0x3]
        %v4754 = vld [vmem:[%s4752 + $0x8] sm:$0x3]
        %v4757 = vcombine.low %v4753, %v4754
        %v4759 = vunpack.c.l.s4 1983009808
        %v4760 = vunpack.c.0.s8 %v4759
        %v4761 = vlaneseq
        %v4762 = vshrl.u32 %v4761, 7
        %v4763 = vsub.s32 %v4760, %v4762
        %v4764 = vrot.slane %v4757, %v4763
        %4766 = vst.msk [vmem:[#allocation15 + $0xc] sm:$0xf] %vm4581, %v4764
        %s4767 = scalar_lea.vmem [#allocation14], 8
        %v4768 = vld [vmem:[%s4767] sm:$0x3]
        %v4769 = vld [vmem:[%s4767 + $0x8] sm:$0x3]
        %v4772 = vcombine.low %v4768, %v4769
        %v4774 = vunpack.c.l.s4 1983009808
        %v4775 = vunpack.c.0.s8 %v4774
        %v4776 = vlaneseq
        %v4777 = vshrl.u32 %v4776, 7
        %v4778 = vsub.s32 %v4775, %v4777
        %v4779 = vrot.slane %v4772, %v4778
        %4780 = vrot.lane.b32.xlu0 %v4779, 64
        %v4781 = vpop.permute.xlu0 %4780
        %4783 = vst.msk [vmem:[#allocation15 + $0xc] sm:$0xf] %vm4688, %v4781
        %v4784 = vld [vmem:[%s4752 + $0x1] sm:$0x3]
        %v4785 = vld [vmem:[%s4752 + $0x9] sm:$0x3]
        %v4788 = vcombine.low %v4784, %v4785
        %v4790 = vunpack.c.l.s4 1983009808
        %v4791 = vunpack.c.0.s8 %v4790
        %v4792 = vlaneseq
        %v4793 = vshrl.u32 %v4792, 7
        %v4794 = vsub.s32 %v4791, %v4793
        %v4795 = vrot.slane %v4788, %v4794
        %4797 = vst.msk [vmem:[#allocation15 + $0x10] sm:$0xf] %vm4581, %v4795
        %v4798 = vld [vmem:[#allocation15] sm:$0xff]
        %v4799 = vld [vmem:[#allocation15 + $0x8] sm:$0xff]
        %v4800 = vld [vmem:[#allocation15 + $0x10] sm:$0xf]
        %v4803 = vcombine.high %v4798, %v4798
        %v4804 = vcombine.high %v4799, %v4799
        %v4807 = vpack.c.bf16 %v4798, %v4798
        %v4808 = vpack.c.bf16 %v4803, %v4803
        %v4809 = vpack.c.bf16 %v4799, %v4799
        %v4810 = vpack.c.bf16 %v4804, %v4804
        %v4811 = vpack.c.bf16 %v4800, %v4800
        %v4812 = vld [vmem:[%s7] sm:$0xf]
        %v4813 = vld [vmem:[%s7 + $0x4] sm:$0xf]
        %v4814 = vld [vmem:[%s7 + $0x8] sm:$0xf]
        %v4815 = vld [vmem:[%s7 + $0xc] sm:$0xf]
        %v4816 = vld [vmem:[%s7 + $0x10] sm:$0xf]
        %v4817 = vld [vmem:[%s7 + $0x14] sm:$0xf]
        %v4818 = vld [vmem:[%s7 + $0x18] sm:$0xf]
        %v4819 = vld [vmem:[%s7 + $0x1c] sm:$0xf]
        %v4820 = vld [vmem:[%s7 + $0x20] sm:$0xf]
        %v4821 = vld [vmem:[%s7 + $0x24] sm:$0xf]
        %v4822 = vld [vmem:[%s7 + $0x28] sm:$0xf]
        %v4823 = vld [vmem:[%s7 + $0x2c] sm:$0xf]
        %v4824 = vld [vmem:[%s7 + $0x30] sm:$0xf]
        %v4825 = vld [vmem:[%s7 + $0x34] sm:$0xf]
        %v4826 = vld [vmem:[%s7 + $0x38] sm:$0xf]
        %v4827 = vld [vmem:[%s7 + $0x3c] sm:$0xf]
        %v4828 = vld [vmem:[%s7 + $0x40] sm:$0xf]
        %v4829 = vld [vmem:[%s7 + $0x44] sm:$0xf]
        %v4830 = vld [vmem:[%s7 + $0x48] sm:$0xf]
        %v4831 = vld [vmem:[%s7 + $0x4c] sm:$0xf]
        %v4832 = vld [vmem:[%s7 + $0x50] sm:$0xf]
        %v4833 = vld [vmem:[%s7 + $0x54] sm:$0xf]
        %v4834 = vld [vmem:[%s7 + $0x58] sm:$0xf]
        %v4835 = vld [vmem:[%s7 + $0x5c] sm:$0xf]
        %v4836 = vld [vmem:[%s7 + $0x60] sm:$0xf]
        %v4837 = vld [vmem:[%s7 + $0x64] sm:$0xf]
        %v4838 = vld [vmem:[%s7 + $0x68] sm:$0xf]
        %v4839 = vld [vmem:[%s7 + $0x6c] sm:$0xf]
        %v4840 = vld [vmem:[%s7 + $0x70] sm:$0xf]
        %v4841 = vld [vmem:[%s7 + $0x74] sm:$0xf]
        %v4842 = vld [vmem:[%s7 + $0x78] sm:$0xf]
        %v4843 = vld [vmem:[%s7 + $0x7c] sm:$0xf]
        %v4844 = vld [vmem:[%s7 + $0x80] sm:$0xf]
        %v4845 = vld [vmem:[%s7 + $0x84] sm:$0xf]
        %v4846 = vld [vmem:[%s7 + $0x88] sm:$0xf]
        %v4847 = vld [vmem:[%s7 + $0x8c] sm:$0xf]
        %v4848 = vld [vmem:[%s7 + $0x90] sm:$0xf]
        %v4849 = vld [vmem:[%s7 + $0x94] sm:$0xf]
        %v4850 = vld [vmem:[%s7 + $0x98] sm:$0xf]
        %v4851 = vld [vmem:[%s7 + $0x9c] sm:$0xf]
        %v4852 = vld [vmem:[%s7 + $0xa0] sm:$0xf]
        %v4853 = vld [vmem:[%s7 + $0xa4] sm:$0xf]
        %v4854 = vld [vmem:[%s7 + $0xa8] sm:$0xf]
        %v4855 = vld [vmem:[%s7 + $0xac] sm:$0xf]
        %v4856 = vld [vmem:[%s7 + $0xb0] sm:$0xf]
        %v4857 = vld [vmem:[%s7 + $0xb4] sm:$0xf]
        %v4858 = vld [vmem:[%s7 + $0xb8] sm:$0xf]
        %v4859 = vld [vmem:[%s7 + $0xbc] sm:$0xf]
        %v4860 = vld [vmem:[%s7 + $0xc0] sm:$0xf]
        %v4861 = vld [vmem:[%s7 + $0xc4] sm:$0xf]
        %v4862 = vld [vmem:[%s7 + $0xc8] sm:$0xf]
        %v4863 = vld [vmem:[%s7 + $0xcc] sm:$0xf]
        %v4864 = vld [vmem:[%s7 + $0xd0] sm:$0xf]
        %v4865 = vld [vmem:[%s7 + $0xd4] sm:$0xf]
        %v4866 = vld [vmem:[%s7 + $0xd8] sm:$0xf]
        %v4867 = vld [vmem:[%s7 + $0xdc] sm:$0xf]
        %v4868 = vld [vmem:[%s7 + $0xe0] sm:$0xf]
        %v4869 = vld [vmem:[%s7 + $0xe4] sm:$0xf]
        %v4870 = vld [vmem:[%s7 + $0xe8] sm:$0xf]
        %v4871 = vld [vmem:[%s7 + $0xec] sm:$0xf]
        %v4872 = vld [vmem:[%s7 + $0xf0] sm:$0xf]
        %v4873 = vld [vmem:[%s7 + $0xf4] sm:$0xf]
        %v4874 = vld [vmem:[%s7 + $0xf8] sm:$0xf]
        %v4875 = vld [vmem:[%s7 + $0xfc] sm:$0xf]
        %v4876 = vld [vmem:[%s7 + $0x100] sm:$0xf]
        %v4877 = vld [vmem:[%s7 + $0x104] sm:$0xf]
        %v4878 = vld [vmem:[%s7 + $0x108] sm:$0xf]
        %v4879 = vld [vmem:[%s7 + $0x10c] sm:$0xf]
        %v4880 = vld [vmem:[%s7 + $0x110] sm:$0xf]
        %v4881 = vld [vmem:[%s7 + $0x114] sm:$0xf]
        %v4882 = vld [vmem:[%s7 + $0x118] sm:$0xf]
        %v4883 = vld [vmem:[%s7 + $0x11c] sm:$0xf]
        %v4956 = vunpack.c.l.b16 %v4812
        %v4957 = vunpack.c.l.b16 %v4813
        %v4958 = vunpack.c.l.b16 %v4814
        %v4959 = vunpack.c.l.b16 %v4815
        %v4960 = vunpack.c.l.b16 %v4816
        %v4961 = vunpack.c.l.b16 %v4817
        %v4962 = vunpack.c.l.b16 %v4818
        %v4963 = vunpack.c.l.b16 %v4819
        %v4964 = vunpack.c.l.b16 %v4820
        %v4965 = vunpack.c.l.b16 %v4821
        %v4966 = vunpack.c.l.b16 %v4822
        %v4967 = vunpack.c.l.b16 %v4823
        %v4968 = vunpack.c.l.b16 %v4824
        %v4969 = vunpack.c.l.b16 %v4825
        %v4970 = vunpack.c.l.b16 %v4826
        %v4971 = vunpack.c.l.b16 %v4827
        %v4972 = vunpack.c.l.b16 %v4828
        %v4973 = vunpack.c.l.b16 %v4829
        %v4974 = vunpack.c.l.b16 %v4830
        %v4975 = vunpack.c.l.b16 %v4831
        %v4976 = vunpack.c.l.b16 %v4832
        %v4977 = vunpack.c.l.b16 %v4833
        %v4978 = vunpack.c.l.b16 %v4834
        %v4979 = vunpack.c.l.b16 %v4835
        %v4980 = vunpack.c.l.b16 %v4836
        %v4981 = vunpack.c.l.b16 %v4837
        %v4982 = vunpack.c.l.b16 %v4838
        %v4983 = vunpack.c.l.b16 %v4839
        %v4984 = vunpack.c.l.b16 %v4840
        %v4985 = vunpack.c.l.b16 %v4841
        %v4986 = vunpack.c.l.b16 %v4842
        %v4987 = vunpack.c.l.b16 %v4843
        %v4988 = vunpack.c.l.b16 %v4844
        %v4989 = vunpack.c.l.b16 %v4845
        %v4990 = vunpack.c.l.b16 %v4846
        %v4991 = vunpack.c.l.b16 %v4847
        %v4992 = vunpack.c.l.b16 %v4848
        %v4993 = vunpack.c.l.b16 %v4849
        %v4994 = vunpack.c.l.b16 %v4850
        %v4995 = vunpack.c.l.b16 %v4851
        %v4996 = vunpack.c.l.b16 %v4852
        %v4997 = vunpack.c.l.b16 %v4853
        %v4998 = vunpack.c.l.b16 %v4854
        %v4999 = vunpack.c.l.b16 %v4855
        %v5000 = vunpack.c.l.b16 %v4856
        %v5001 = vunpack.c.l.b16 %v4857
        %v5002 = vunpack.c.l.b16 %v4858
        %v5003 = vunpack.c.l.b16 %v4859
        %v5004 = vunpack.c.l.b16 %v4860
        %v5005 = vunpack.c.l.b16 %v4861
        %v5006 = vunpack.c.l.b16 %v4862
        %v5007 = vunpack.c.l.b16 %v4863
        %v5008 = vunpack.c.l.b16 %v4864
        %v5009 = vunpack.c.l.b16 %v4865
        %v5010 = vunpack.c.l.b16 %v4866
        %v5011 = vunpack.c.l.b16 %v4867
        %v5012 = vunpack.c.l.b16 %v4868
        %v5013 = vunpack.c.l.b16 %v4869
        %v5014 = vunpack.c.l.b16 %v4870
        %v5015 = vunpack.c.l.b16 %v4871
        %v5016 = vunpack.c.l.b16 %v4872
        %v5017 = vunpack.c.l.b16 %v4873
        %v5018 = vunpack.c.l.b16 %v4874
        %v5019 = vunpack.c.l.b16 %v4875
        %v5020 = vunpack.c.l.b16 %v4876
        %v5021 = vunpack.c.l.b16 %v4877
        %v5022 = vunpack.c.l.b16 %v4878
        %v5023 = vunpack.c.l.b16 %v4879
        %v5024 = vunpack.c.l.b16 %v4880
        %v5025 = vunpack.c.l.b16 %v4881
        %v5026 = vunpack.c.l.b16 %v4882
        %v5027 = vunpack.c.l.b16 %v4883
        %v5028 = vpack.c.b16 %v4957, %v4956
        %v5029 = vpack.c.b16 %v4959, %v4958
        %v5030 = vpack.c.b16 %v4961, %v4960
        %v5031 = vpack.c.b16 %v4963, %v4962
        %v5032 = vpack.c.b16 %v4965, %v4964
        %v5033 = vpack.c.b16 %v4967, %v4966
        %v5034 = vpack.c.b16 %v4969, %v4968
        %v5035 = vpack.c.b16 %v4971, %v4970
        %v5036 = vpack.c.b16 %v4973, %v4972
        %v5037 = vpack.c.b16 %v4975, %v4974
        %v5038 = vpack.c.b16 %v4977, %v4976
        %v5039 = vpack.c.b16 %v4979, %v4978
        %v5040 = vpack.c.b16 %v4981, %v4980
        %v5041 = vpack.c.b16 %v4983, %v4982
        %v5042 = vpack.c.b16 %v4985, %v4984
        %v5043 = vpack.c.b16 %v4987, %v4986
        %v5044 = vpack.c.b16 %v4989, %v4988
        %v5045 = vpack.c.b16 %v4991, %v4990
        %v5046 = vpack.c.b16 %v4993, %v4992
        %v5047 = vpack.c.b16 %v4995, %v4994
        %v5048 = vpack.c.b16 %v4997, %v4996
        %v5049 = vpack.c.b16 %v4999, %v4998
        %v5050 = vpack.c.b16 %v5001, %v5000
        %v5051 = vpack.c.b16 %v5003, %v5002
        %v5052 = vpack.c.b16 %v5005, %v5004
        %v5053 = vpack.c.b16 %v5007, %v5006
        %v5054 = vpack.c.b16 %v5009, %v5008
        %v5055 = vpack.c.b16 %v5011, %v5010
        %v5056 = vpack.c.b16 %v5013, %v5012
        %v5057 = vpack.c.b16 %v5015, %v5014
        %v5058 = vpack.c.b16 %v5017, %v5016
        %v5059 = vpack.c.b16 %v5019, %v5018
        %v5060 = vpack.c.b16 %v5021, %v5020
        %v5061 = vpack.c.b16 %v5023, %v5022
        %v5062 = vpack.c.b16 %v5025, %v5024
        %v5063 = vpack.c.b16 %v5027, %v5026
        %vm5100 = vcmask 523264
        %v5102 = vsel %vm5100, %v4811, 0
        %5104 = vmatprep.subr.bf16.mxu0 0
        %5105 = vmatpush1.bf16.msra.mxu0 %v5028
        %5106 = vmatprep.subr.bf16.mxu0 0
        %5107 = vmatpush1.bf16.msra.mxu0 %v5029
        %5108 = vmatprep.subr.bf16.mxu0 0
        %5109 = vmatpush1.bf16.msra.mxu0 %v5030
        %5110 = vmatprep.subr.bf16.mxu0 0
        %5111 = vmatpush1.bf16.msra.mxu0 %v5031
        %5112 = vmatprep.subr.bf16.mxu0 0
        %5113 = vmatpush1.bf16.msra.mxu0 %v5032
        %5114 = vmatprep.subr.bf16.mxu0 0
        %5115 = vmatpush1.bf16.msra.mxu0 %v5033
        %5116 = vmatprep.subr.bf16.mxu0 0
        %5117 = vmatpush1.bf16.msra.mxu0 %v5034
        %5118 = vmatprep.subr.bf16.mxu0 0
        %5119 = vmatpush1.bf16.msra.mxu0 %v5035
        %5120 = vmatprep.subr.bf16.mxu0 0
        %5121 = vmatpush1.bf16.msra.mxu0 %v5036
        %5122 = vmatprep.subr.bf16.mxu0 0
        %5123 = vmatpush1.bf16.msra.mxu0 %v5037
        %5124 = vmatprep.subr.bf16.mxu0 0
        %5125 = vmatpush1.bf16.msra.mxu0 %v5038
        %5126 = vmatprep.subr.bf16.mxu0 0
        %5127 = vmatpush1.bf16.msra.mxu0 %v5039
        %5128 = vmatprep.subr.bf16.mxu0 0
        %5129 = vmatpush1.bf16.msra.mxu0 %v5040
        %5130 = vmatprep.subr.bf16.mxu0 0
        %5131 = vmatpush1.bf16.msra.mxu0 %v5041
        %5132 = vmatprep.subr.bf16.mxu0 0
        %5133 = vmatpush1.bf16.msra.mxu0 %v5042
        %5134 = vmatprep.subr.bf16.mxu0 0
        %5135 = vmatpush1.bf16.msra.mxu0 %v5043
        %5136 = vmatprep.mubr.bf16.mxu0 %v4808
        %5137 = vmatmul.mubr.bf16.gmra.mrb[0].mxu0 %v4807
        %v5138 = vpop.f32.mrb[0].mxu0
        %v5139 = vadd.f32 0.0, %v5138
        %v5140 = vpop.f32.mrb[0].mxu0
        %v5141 = vpop.f32.mrb[0].mxu0
        %v5142 = vpop.f32.mrb[0].mxu0
        %5143 = vdwg.mxu0
        %5144 = vmatprep.subr.bf16.mxu0 0
        %5145 = vmatpush1.bf16.msra.mxu0 %v5044
        %5146 = vmatprep.subr.bf16.mxu0 0
        %5147 = vmatpush1.bf16.msra.mxu0 %v5045
        %5148 = vmatprep.subr.bf16.mxu0 0
        %5149 = vmatpush1.bf16.msra.mxu0 %v5046
        %5150 = vmatprep.subr.bf16.mxu0 0
        %5151 = vmatpush1.bf16.msra.mxu0 %v5047
        %5152 = vmatprep.subr.bf16.mxu0 0
        %5153 = vmatpush1.bf16.msra.mxu0 %v5048
        %5154 = vmatprep.subr.bf16.mxu0 0
        %5155 = vmatpush1.bf16.msra.mxu0 %v5049
        %5156 = vmatprep.subr.bf16.mxu0 0
        %5157 = vmatpush1.bf16.msra.mxu0 %v5050
        %5158 = vmatprep.subr.bf16.mxu0 0
        %5159 = vmatpush1.bf16.msra.mxu0 %v5051
        %5160 = vmatprep.subr.bf16.mxu0 0
        %5161 = vmatpush1.bf16.msra.mxu0 %v5052
        %5162 = vmatprep.subr.bf16.mxu0 0
        %5163 = vmatpush1.bf16.msra.mxu0 %v5053
        %5164 = vmatprep.subr.bf16.mxu0 0
        %5165 = vmatpush1.bf16.msra.mxu0 %v5054
        %5166 = vmatprep.subr.bf16.mxu0 0
        %5167 = vmatpush1.bf16.msra.mxu0 %v5055
        %5168 = vmatprep.subr.bf16.mxu0 0
        %5169 = vmatpush1.bf16.msra.mxu0 %v5056
        %5170 = vmatprep.subr.bf16.mxu0 0
        %5171 = vmatpush1.bf16.msra.mxu0 %v5057
        %5172 = vmatprep.subr.bf16.mxu0 0
        %5173 = vmatpush1.bf16.msra.mxu0 %v5058
        %5174 = vmatprep.subr.bf16.mxu0 0
        %5175 = vmatpush1.bf16.msra.mxu0 %v5059
        %5176 = vmatprep.mubr.bf16.mxu0 %v4810
        %5177 = vmatmul.mubr.bf16.gmra.mrb[0].mxu0 %v4809
        %v5178 = vpop.f32.mrb[0].mxu0
        %v5179 = vadd.f32 %v5139, %v5178
        %v5180 = vpop.f32.mrb[0].mxu0
        %v5181 = vpop.f32.mrb[0].mxu0
        %v5182 = vpop.f32.mrb[0].mxu0
        %5183 = vdwg.mxu0
        %5184 = vmatprep.subr.bf16.mxu0 0
        %5185 = vmatpush1.bf16.msra.mxu0 %v5060
        %5186 = vmatprep.subr.bf16.mxu0 0
        %5187 = vmatpush1.bf16.msra.mxu0 %v5061
        %5188 = vmatprep.subr.bf16.mxu0 0
        %5189 = vmatpush1.bf16.msra.mxu0 %v5062
        %5190 = vmatprep.subr.bf16.mxu0 0
        %5191 = vmatpush1.bf16.msra.mxu0 %v5063
        %5192 = vmatprep.subr.bf16.mxu0 0
        %5193 = vmatpush1.bf16.msra.mxu0 0
        %5194 = vmatprep.subr.bf16.mxu0 0
        %5195 = vmatpush1.bf16.msra.mxu0 0
        %5196 = vmatprep.subr.bf16.mxu0 0
        %5197 = vmatpush1.bf16.msra.mxu0 0
        %5198 = vmatprep.subr.bf16.mxu0 0
        %5199 = vmatpush1.bf16.msra.mxu0 0
        %5200 = vmatprep.subr.bf16.mxu0 0
        %5201 = vmatpush1.bf16.msra.mxu0 0
        %5202 = vmatprep.subr.bf16.mxu0 0
        %5203 = vmatpush1.bf16.msra.mxu0 0
        %5204 = vmatprep.subr.bf16.mxu0 0
        %5205 = vmatpush1.bf16.msra.mxu0 0
        %5206 = vmatprep.subr.bf16.mxu0 0
        %5207 = vmatpush1.bf16.msra.mxu0 0
        %5208 = vmatprep.subr.bf16.mxu0 0
        %5209 = vmatpush1.bf16.msra.mxu0 0
        %5210 = vmatprep.subr.bf16.mxu0 0
        %5211 = vmatpush1.bf16.msra.mxu0 0
        %5212 = vmatprep.subr.bf16.mxu0 0
        %5213 = vmatpush1.bf16.msra.mxu0 0
        %5214 = vmatprep.subr.bf16.mxu0 0
        %5215 = vmatpush1.bf16.msra.mxu0 0
        %5216 = vmatprep.mubr.bf16.mxu0 0
        %5217 = vmatmul.mubr.bf16.gmra.mrb[0].mxu0 %v5102
        %v5218 = vpop.f32.mrb[0].mxu0
        %v5219 = vadd.f32 %v5179, %v5218
        %v5220 = vpop.f32.mrb[0].mxu0
        %v5221 = vpop.f32.mrb[0].mxu0
        %v5222 = vpop.f32.mrb[0].mxu0
        %5223 = vdwg.mxu0
        %v5224 = vld [vmem:[%s8] sm:$0x1]
        %v5225 = vlaneseq
        %v5226 = vshrl.u32 %v5225, 7
        %v5227 = vsub.s32 0, %v5226
        %v5228 = vrot.slane %v5224, %v5227
        %v5229 = vmul.f32 %v5219, %v5228
        %v5230 = vld [vmem:[%s8 + $0x1] sm:$0x1]
        %v5231 = vlaneseq
        %v5232 = vshrl.u32 %v5231, 7
        %v5233 = vsub.s32 0, %v5232
        %v5234 = vrot.slane %v5230, %v5233
        %v5235 = vadd.f32 %v5229, %v5234
        %vm5236 = vcmp.gt.f32.partialorder %v5235, 0.0
        %v5237 = vld [vmem:[%s8 + $0x2] sm:$0x1]
        %v5238 = vlaneseq
        %v5239 = vshrl.u32 %v5238, 7
        %v5240 = vsub.s32 0, %v5239
        %v5241 = vrot.slane %v5237, %v5240
        %v5242 = vmul.f32 %v5235, %v5241
        %v5243 = vsel %vm5236, %v5235, %v5242
        %vm5244 = vcmask 1043456
        %v5245 = vsel %vm5244, %v5243, 0.0
        %v5246 = vrot.slane %v5245, 4
        %v5247 = vadd.f32 %v5245, %v5246
        %v5248 = vrot.slane %v5247, 2
        %v5249 = vadd.f32 %v5247, %v5248
        %v5250 = vrot.slane %v5249, 1
        %v5251 = vadd.f32 %v5249, %v5250
        %v5252 = vrcp.pop 4.0
        %v5253 = vmul.f32 %v5251, %v5252
        %v5254 = vld [vmem:[%s9] sm:$0xff]
        %v5255 = vld [vmem:[%s9 + $0x8] sm:$0xff]
        %v5256 = vld [vmem:[%s9 + $0x10] sm:$0xff]
        %v5257 = vld [vmem:[%s9 + $0x18] sm:$0xff]
        %v5258 = vld [vmem:[%s9 + $0x20] sm:$0xff]
        %v5259 = vld [vmem:[%s9 + $0x28] sm:$0xff]
        %v5260 = vld [vmem:[%s9 + $0x30] sm:$0xff]
        %v5261 = vld [vmem:[%s9 + $0x38] sm:$0xff]
        %v5262 = vld [vmem:[%s9 + $0x40] sm:$0xff]
        %v5263 = vld [vmem:[%s9 + $0x48] sm:$0xff]
        %v5264 = vld [vmem:[%s9 + $0x50] sm:$0xff]
        %v5265 = vld [vmem:[%s9 + $0x58] sm:$0xff]
        %v5266 = vld [vmem:[%s9 + $0x60] sm:$0xff]
        %v5267 = vld [vmem:[%s9 + $0x68] sm:$0xff]
        %v5268 = vld [vmem:[%s9 + $0x70] sm:$0xff]
        %v5269 = vld [vmem:[%s9 + $0x78] sm:$0xff]
        %v5270 = vld [vmem:[%s10] sm:$0x1]
        %5271 = vmatprep.subr.mxu0 0.0
        %5272 = vmatpush1.msra.mxu0 %v5254
        %5273 = vmatprep.subr.mxu0 0.0
        %5274 = vmatpush1.msra.mxu0 %v5255
        %5275 = vmatprep.subr.mxu0 0.0
        %5276 = vmatpush1.msra.mxu0 %v5256
        %5277 = vmatprep.subr.mxu0 0.0
        %5278 = vmatpush1.msra.mxu0 %v5257
        %5279 = vmatprep.subr.mxu0 0.0
        %5280 = vmatpush1.msra.mxu0 %v5258
        %5281 = vmatprep.subr.mxu0 0.0
        %5282 = vmatpush1.msra.mxu0 %v5259
        %5283 = vmatprep.subr.mxu0 0.0
        %5284 = vmatpush1.msra.mxu0 %v5260
        %5285 = vmatprep.subr.mxu0 0.0
        %5286 = vmatpush1.msra.mxu0 %v5261
        %5287 = vmatprep.subr.mxu0 0.0
        %5288 = vmatpush1.msra.mxu0 %v5262
        %5289 = vmatprep.subr.mxu0 0.0
        %5290 = vmatpush1.msra.mxu0 %v5263
        %5291 = vmatprep.subr.mxu0 0.0
        %5292 = vmatpush1.msra.mxu0 %v5264
        %5293 = vmatprep.subr.mxu0 0.0
        %5294 = vmatpush1.msra.mxu0 %v5265
        %5295 = vmatprep.subr.mxu0 0.0
        %5296 = vmatpush1.msra.mxu0 %v5266
        %5297 = vmatprep.subr.mxu0 0.0
        %5298 = vmatpush1.msra.mxu0 %v5267
        %5299 = vmatprep.subr.mxu0 0.0
        %5300 = vmatpush1.msra.mxu0 %v5268
        %5301 = vmatprep.subr.mxu0 0.0
        %5302 = vmatpush1.msra.mxu0 %v5269
        %5303 = vmatprep.subr.mxu0 0.0
        %5304 = vmatpush1.msra.mxu0 0.0
        %5305 = vmatprep.subr.mxu0 0.0
        %5306 = vmatpush1.msra.mxu0 0.0
        %5307 = vmatprep.subr.mxu0 0.0
        %5308 = vmatpush1.msra.mxu0 0.0
        %5309 = vmatprep.subr.mxu0 0.0
        %5310 = vmatpush1.msra.mxu0 0.0
        %5311 = vmatprep.subr.mxu0 0.0
        %5312 = vmatpush1.msra.mxu0 0.0
        %5313 = vmatprep.subr.mxu0 0.0
        %5314 = vmatpush1.msra.mxu0 0.0
        %5315 = vmatprep.subr.mxu0 0.0
        %5316 = vmatpush1.msra.mxu0 0.0
        %5317 = vmatprep.subr.mxu0 0.0
        %5318 = vmatpush1.msra.mxu0 0.0
        %5319 = vmatprep.subr.mxu0 0.0
        %5320 = vmatpush1.msra.mxu0 0.0
        %5321 = vmatprep.subr.mxu0 0.0
        %5322 = vmatpush1.msra.mxu0 0.0
        %5323 = vmatprep.subr.mxu0 0.0
        %5324 = vmatpush1.msra.mxu0 0.0
        %5325 = vmatprep.subr.mxu0 0.0
        %5326 = vmatpush1.msra.mxu0 0.0
        %5327 = vmatprep.subr.mxu0 0.0
        %5328 = vmatpush1.msra.mxu0 0.0
        %5329 = vmatprep.subr.mxu0 0.0
        %5330 = vmatpush1.msra.mxu0 0.0
        %5331 = vmatprep.subr.mxu0 0.0
        %5332 = vmatpush1.msra.mxu0 0.0
        %5333 = vmatprep.subr.mxu0 0.0
        %5334 = vmatpush1.msra.mxu0 0.0
        %5335 = vmatprep.mubr.f32.mxu0 0.0
        %5336 = vmatmul.mubr.f32.gmra.mrb[0].mxu0 %v5253
        %v5337 = vpop.f32.mrb[0].mxu0
        %v5338 = vadd.f32 %v5270, %v5337
        %v5339 = vpop.f32.mrb[0].mxu0
        %5340 = vdwg.mxu0
        %vm5341 = vcmask 8192
        %5342 = vst.msk [vmem:[%s378] sm:$0x1] %vm5341, %v5338
        %s5343 = sand.u32 %s269, 1
        %s5344 = scalar_lea.sflag [#allocation17], %s5343
        %s5345 = sand.u32 %s269, 1
        %s5346 = scalar_lea.vmem [#allocation16], %s5345
        // Predicated region
        $region65: #{minifasnet_forward.1} parent=63 // pred_check
          %p5347 = pneg %p279
        $region66: #{minifasnet_forward.1} parent=63 // pred_check_branch
          %5349 = sbr.rel (%p5347) target = $region68
        $region67: #{minifasnet_forward.1} parent=63 // pred_region
          %s5351 = ssub.s32 16, 16
          %5352 = vsyncadd %s5344, %s5351
          %s5353 = smul.addr %s25, 16
          %s5354 = scalar_lea.hbm %s11, %s5353
          %s5356 = sshll.u32 %s5346, 4
          %s5357 = int_to_ptr.vmem [resolvable:$true] %s5356
          %5359 = dma.vmem_to_hbm [thread:$0]  %s5357, 16, %s5354, %s5344
        $region68: #{minifasnet_forward.1} parent=63 // pred_fallthru
          _
      $region64: #{minifasnet_forward.1} parent=5 // pred_fallthru
        _
      %p5360 = scmp.le.s32.totalorder 2, %s20
      // Predicated region
      $region69: #{minifasnet_forward.1} parent=5 // pred_check
        %p5361 = pneg %p5360
      $region70: #{minifasnet_forward.1} parent=5 // pred_check_branch
        %5363 = sbr.rel (%p5361) target = $region72
      $region71: #{minifasnet_forward.1} parent=5 // pred_region
        %s5364 = ssub.s32 %s20, 2
        // Predicated region
        $region73: #{minifasnet_forward.1} parent=71 // pred_check
          %p5365 = pneg %p285
        $region74: #{minifasnet_forward.1} parent=71 // pred_check_branch
          %5367 = sbr.rel (%p5365) target = $region76
        $region75: #{minifasnet_forward.1} parent=71 // pred_region
          %s5368 = sand.u32 %s270, 1
          %s5369 = scalar_lea.sflag [#allocation17], %s5368
          %s5370 = sand.u32 %s270, 1
          %s5371 = scalar_lea.vmem [#allocation16], %s5370
          %5372 = dma.done %s5369, 16
        $region76: #{minifasnet_forward.1} parent=71 // pred_fallthru
          _
      $region72: #{minifasnet_forward.1} parent=5 // pred_fallthru
        _
    $region6: #{minifasnet_forward.1} parent=1 // loop_footer
      %s24 = sadd.s32 1, %s20
    $region7: #{minifasnet_forward.1} parent=1 // loop_footer_branch
      %19 = sbr.rel target = $region3
    $region8: #{minifasnet_forward.1} parent=1 // loop_exit
      _
    %5373 = vsyncpa [#allocation17], 1
    %s5374 = scalar_lea.sflag [#allocation17], 1
    %5375 = vsyncpa %s5374, 1

</llo_original>
